<compile_context>
chip_gen: v7x
topology: tpu7x:2x2x1
jax: 0.10.0
libtpu: 0.0.40
codegen_flags: <defaults>
</compile_context>

<pallas_src>
import math
import functools

import jax
import jax.numpy as jnp
from jax.experimental import pallas as pl
from jax.experimental.pallas import tpu as pltpu


def _atan_pos(x):
    # arctan for x >= 0 (box aspect ratios).  Mosaic has no guaranteed native
    # atan lowering, so use the A&S 4.4.49 polynomial on [0,1] + reflection.
    # TODO(synk): polynomial approximation of atan (|err| ~ 1e-5) instead of
    # torch.atan's exact libm result.
    inv = x > 1.0
    z = jnp.where(inv, 1.0 / jnp.maximum(x, 1e-30), x)
    z2 = z * z
    p = z * (0.9998660 + z2 * (-0.3302995 + z2 * (0.1801410
             + z2 * (-0.0851330 + z2 * 0.0208351))))
    return jnp.where(inv, (math.pi / 2.0) - p, p)


def _powi(x, n):
    # x**n for a positive integer n via repeated squaring. Exact for negative
    # bases, matching torch.pow(x, float(n)) with integer-valued exponents
    # (CIoU overlaps can be negative).
    r, b = None, x
    while n:
        if n & 1:
            r = b if r is None else r * b
        b = b * b
        n >>= 1
    return r


def _recip(x):
    # EUP approximate reciprocal + one Newton-Raphson step (~f32 accuracy),
    # frees VALU bundles on the big (A, M) tiles.
    r = pl.reciprocal(x, approx=True)
    return r * (2.0 - x * r)


def _taa_kernel(ps_ref, pb_ref, gl_ref, gbt_ref, mg_ref, out_ref,
                *, topk, num_classes, alpha_i, beta_i, eps):
    f32 = jnp.float32
    A, nc = ps_ref.shape[1], ps_ref.shape[2]
    M = gl_ref.shape[2]
    nc_pad = out_ref.shape[2]

    ps = ps_ref[0]      # (A, nc)  predicted class scores
    pb = pb_ref[0]      # (A, 4)   predicted boxes xyxy
    gl = gl_ref[0]      # (1, M)   gt labels (float, integer valued)
    gbt = gbt_ref[0]    # (4, M)   gt boxes xyxy, coord-major
    mg = mg_ref[0]      # (1, M)   valid-gt mask (0/1 float)

    # ---------------- pairwise CIoU: overlaps[a, m] = CIoU(gt m, pred a) ----
    eps_iou = f32(1e-7)
    g_x1, g_y1 = gbt[0:1, :], gbt[1:2, :]          # (1, M)
    g_x2, g_y2 = gbt[2:3, :], gbt[3:4, :]
    p_x1, p_y1 = pb[:, 0:1], pb[:, 1:2]            # (A, 1)
    p_x2, p_y2 = pb[:, 2:3], pb[:, 3:4]

    ix1 = jnp.maximum(g_x1, p_x1)
    iy1 = jnp.maximum(g_y1, p_y1)
    ix2 = jnp.minimum(g_x2, p_x2)
    iy2 = jnp.minimum(g_y2, p_y2)
    inter = jnp.maximum(ix2 - ix1, 0.0) * jnp.maximum(iy2 - iy1, 0.0)   # (A, M)

    w1 = g_x2 - g_x1                      # box1 = gt  (eps only on heights,
    h1 = g_y2 - g_y1 + eps_iou            #  as in the reference bbox_iou)
    w2 = p_x2 - p_x1                      # box2 = pred
    h2 = p_y2 - p_y1 + eps_iou
    union = w1 * h1 + w2 * h2 - inter + eps_iou
    iou = inter * _recip(union)                                          # (A, M)

    cw = jnp.maximum(g_x2, p_x2) - jnp.minimum(g_x1, p_x1)
    ch = jnp.maximum(g_y2, p_y2) - jnp.minimum(g_y1, p_y1)
    c2 = cw * cw + ch * ch + eps_iou
    rho2 = ((p_x1 + p_x2 - g_x1 - g_x2) ** 2
            + (p_y1 + p_y2 - g_y1 - g_y2) ** 2) * 0.25
    v = (4.0 / (math.pi ** 2)) * (_atan_pos(w2 / h2) - _atan_pos(w1 / h1)) ** 2
    alpha_ciou = v * _recip(v - iou + (1.0 + eps_iou))
    overlaps = iou - (rho2 * _recip(c2) + v * alpha_ciou)                # (A, M)

    # -------- class-score gather via one-hot matmul (MXU):
    #          scores[a, m] = pd_scores[a, gt_label[m]] ---------------------
    lab_i = gl.astype(jnp.int32)                                    # (1, M)
    cls_iota_cm = jax.lax.broadcasted_iota(jnp.int32, (nc, M), 0)
    onehot_cm = (cls_iota_cm == lab_i).astype(f32)                  # (nc, M)
    scores = jnp.dot(ps, onehot_cm, preferred_element_type=f32)     # (A, M)

    # Task-aligned metric (reference ignores the in-gt candidate mask here).
    metric = _powi(scores, alpha_i) * _powi(overlaps, beta_i)       # (A, M)

    # ---------------- top-k anchors per gt (fused iterative select) --------
    # Per step: one max-reduce over anchors, one fused tie-break (lowest
    # anchor index among maxima), one knock-out select.  The selection mask
    # is recovered at the end from the -inf sentinels.
    # TODO(synk): for very large A a streaming top-k over anchor tiles with a
    # small carried per-gt buffer would cut this further and enable A-tiling.
    row = jax.lax.broadcasted_iota(jnp.int32, (A, M), 0)            # anchor id
    neg_inf = f32(-jnp.inf)
    work = metric
    for _ in range(topk):
        cur_max = jnp.max(work, axis=0, keepdims=True)              # (1, M)
        first = jnp.min(jnp.where(work == cur_max, row, A),
                        axis=0, keepdims=True)                      # (1, M)
        work = jnp.where(row == first, neg_inf, work)

    mask_pos = (work == neg_inf).astype(f32) * mg                   # (A, M)

    # per-gt mean CIoU over its positive anchors (reduced early so the CIoU
    # temporaries die here), clamped to [0, 1]
    pos_num = jnp.sum(overlaps * mask_pos, axis=0, keepdims=True)   # (1, M)
    pos_den = jnp.sum(mask_pos, axis=0, keepdims=True)              # (1, M)
    pos_ov = jnp.clip(pos_num * _recip(pos_den + f32(eps)), 0.0, 1.0)

    # ---------------- assignment ------------------------------------------
    fg_cnt = jnp.sum(mask_pos, axis=1, keepdims=True)               # (A, 1)
    fg = fg_cnt > 0.0                                               # (A, 1) bool

    col = jax.lax.broadcasted_iota(jnp.int32, (A, M), 1)            # gt id
    tgi = jnp.min(jnp.where(mask_pos > 0.0, col, M),
                  axis=1, keepdims=True)                            # first positive gt
    tgi = jnp.where(fg, tgi, 0)                                     # torch argmax of zeros -> 0

    assign = (col == tgi).astype(f32)                               # (A, M) one-hot over gts

    # ---------------- gathered targets (lane reductions, no MXU) -----------
    tb0 = jnp.sum(assign * g_x1, axis=1, keepdims=True)             # (A, 1)
    tb1 = jnp.sum(assign * g_y1, axis=1, keepdims=True)
    tb2 = jnp.sum(assign * g_x2, axis=1, keepdims=True)
    tb3 = jnp.sum(assign * g_y2, axis=1, keepdims=True)
    tl_f = jnp.sum(assign * gl, axis=1, keepdims=True)              # (A, 1)
    tl_i = tl_f.astype(jnp.int32)
    scale = jnp.sum(assign * pos_ov, axis=1, keepdims=True)         # (A, 1)

    # ---------------- single lane-dense output slab -------------------------
    # lanes [0:nc)      : target_scores (one-hot * clamped mean positive CIoU)
    # lanes [nc:nc+4)   : target_bboxes xyxy
    # lane  nc+4        : target_labels (float; bg=num_classes)
    # lane  nc+5        : fg_mask (0/1)
    # lane  nc+6        : target_gt_idx (float)
    lane = jax.lax.broadcasted_iota(jnp.int32, (A, nc_pad), 1)
    slab = jnp.where((lane == tl_i) & fg, scale, 0.0)               # (A, nc_pad)
    slab = jnp.where(lane == nc + 0, tb0, slab)
    slab = jnp.where(lane == nc + 1, tb1, slab)
    slab = jnp.where(lane == nc + 2, tb2, slab)
    slab = jnp.where(lane == nc + 3, tb3, slab)
    tl_out_f = jnp.where(fg, tl_f, f32(num_classes))                # bg_idx where not fg
    slab = jnp.where(lane == nc + 4, tl_out_f, slab)
    slab = jnp.where(lane == nc + 5, fg.astype(f32), slab)
    slab = jnp.where(lane == nc + 6, tgi.astype(f32), slab)

    out_ref[0] = slab


def task_aligned_assign(pd_scores, pd_bboxes, anc_points, gt_labels, gt_bboxes,
                        mask_gt, *, topk=13, num_classes=80, alpha=1.0,
                        beta=6.0, eps=1e-9):
    del anc_points  # reference's _get_alignment_metric drops the in-gt mask -> dead input
    b, A, nc = pd_scores.shape
    M = gt_bboxes.shape[1]
    assert nc == num_classes

    if M == 0:  # n_max_boxes == 0 early-out, mirroring the reference forward
        return (jnp.full((b, A), num_classes, jnp.int32),
                jnp.zeros_like(pd_bboxes),
                jnp.zeros_like(pd_scores),
                jnp.zeros((b, A), jnp.bool_),
                jnp.zeros((b, A), jnp.int32))

    assert float(alpha).is_integer() and float(beta).is_integer()
    pd_scores = pd_scores.astype(jnp.float32)
    pd_bboxes = pd_bboxes.astype(jnp.float32)
    gt_bboxes = gt_bboxes.astype(jnp.float32)
    gl_row = jnp.swapaxes(gt_labels.astype(jnp.float32), 1, 2)   # (b, 1, M)
    gbt = jnp.swapaxes(gt_bboxes, 1, 2)                          # (b, 4, M)
    mg_row = jnp.swapaxes(mask_gt.astype(jnp.float32), 1, 2)     # (b, 1, M)

    # lane-dense packed output width: classes padded to 128 + 7 extra fields
    nc_pad = -(-(nc + 7) // 128) * 128

    kernel = functools.partial(_taa_kernel, topk=topk, num_classes=num_classes,
                               alpha_i=int(alpha), beta_i=int(beta), eps=eps)

    in_specs = [
        pl.BlockSpec((1, A, nc), lambda i: (i, 0, 0)),  # pd_scores
        pl.BlockSpec((1, A, 4), lambda i: (i, 0, 0)),   # pd_bboxes
        pl.BlockSpec((1, 1, M), lambda i: (i, 0, 0)),   # gt_labels (row)
        pl.BlockSpec((1, 4, M), lambda i: (i, 0, 0)),   # gt_bboxes coord-major
        pl.BlockSpec((1, 1, M), lambda i: (i, 0, 0)),   # mask_gt (row)
    ]
    out_spec = pl.BlockSpec((1, A, nc_pad), lambda i: (i, 0, 0))

    # Rough per-grid-step VMEM estimate (double-buffered I/O + (A,M) temps).
    est_vmem = 4 * (2 * A * nc + 2 * A * 4 + 2 * A * nc_pad
                    + 14 * A * M + 32 * M + 8 * A)
    cparams = {"dimension_semantics": ("parallel",)}
    if est_vmem > (28 << 20):
        # TODO(synk): for very large A*M (e.g. YOLO A~8400, M~128) tile the anchor
        # axis with carried top-k state instead of raising the scoped-VMEM limit
        # (v7x only has 64 MiB physical VMEM).
        cparams["vmem_limit_bytes"] = int(min(est_vmem, 100 << 20))

    slab = pl.pallas_call(
        kernel,
        out_shape=jax.ShapeDtypeStruct((b, A, nc_pad), jnp.float32),
        grid=(b,),
        in_specs=in_specs,
        out_specs=out_spec,
        compiler_params=pltpu.CompilerParams(**cparams),
    )(pd_scores, pd_bboxes, gl_row, gbt, mg_row)

    # Decode the packed slab (cheap XLA slices outside the kernel).
    ts = slab[..., :nc]                                  # (b, A, nc)
    tb = slab[..., nc:nc + 4]                            # (b, A, 4)
    tl = slab[..., nc + 4].astype(jnp.int32)             # (b, A)
    fg = slab[..., nc + 5] > 0.5                         # (b, A) bool
    tgi = slab[..., nc + 6].astype(jnp.int32)            # (b, A)
    return tl, tb, ts, fg, tgi


class TaskAlignedAssigner:
    """JAX/Pallas port of the PyTorch TaskAlignedAssigner (no learnable params)."""

    def __init__(self, topk=13, num_classes=80, alpha=1.0, beta=6.0, eps=1e-9):
        self.topk = topk
        self.num_classes = num_classes
        self.bg_idx = num_classes
        self.alpha = alpha
        self.beta = beta
        self.eps = eps

    def __call__(self, pd_scores, pd_bboxes, anc_points, gt_labels, gt_bboxes, mask_gt):
        return task_aligned_assign(
            pd_scores, pd_bboxes, anc_points, gt_labels, gt_bboxes, mask_gt,
            topk=self.topk, num_classes=self.num_classes,
            alpha=self.alpha, beta=self.beta, eps=self.eps)


if __name__ == "__main__":
    b, A, M, nc = 2, 128, 8, 80
    key = jax.random.PRNGKey(0)
    ks = jax.random.split(key, 8)

    pd_scores = jax.nn.sigmoid(jax.random.normal(ks[0], (b, A, nc), jnp.float32))
    ctr = jax.random.uniform(ks[1], (b, A, 2), minval=4.0, maxval=60.0)
    wh = jax.random.uniform(ks[2], (b, A, 2), minval=2.0, maxval=12.0)
    pd_bboxes = jnp.concatenate([ctr - wh / 2, ctr + wh / 2], axis=-1)   # xyxy

    anc_points = jax.random.uniform(ks[3], (A, 2), minval=0.0, maxval=64.0)

    gt_labels = jnp.clip(
        jnp.floor(jax.random.uniform(ks[4], (b, M, 1), minval=0.0, maxval=float(nc))),
        0.0, float(nc - 1)).astype(jnp.float32)
    gctr = jax.random.uniform(ks[5], (b, M, 2), minval=8.0, maxval=56.0)
    gwh = jax.random.uniform(ks[6], (b, M, 2), minval=4.0, maxval=20.0)
    gt_bboxes = jnp.concatenate([gctr - gwh / 2, gctr + gwh / 2], axis=-1)  # xyxy
    mask_gt = (jax.random.uniform(ks[7], (b, M, 1)) > 0.25).astype(jnp.float32)

    assigner = TaskAlignedAssigner(topk=13, num_classes=nc, alpha=1.0, beta=6.0)
    outs = assigner(pd_scores, pd_bboxes, anc_points, gt_labels, gt_bboxes, mask_gt)
    jax.block_until_ready(outs)

    tl, tb, ts, fg, tgi = outs
    assert tl.shape == (b, A) and tb.shape == (b, A, 4)
    assert ts.shape == (b, A, nc) and fg.shape == (b, A) and tgi.shape == (b, A)
    print("KERNEL_OK")
</pallas_src>

<mosaic_0001>
module attributes {stable_mosaic.version = 11 : i64} {
  func.func @_taa_kernel(%arg0: i32, %arg1: memref<1x128x80xf32, #tpu.memory_space<vmem>>, %arg2: memref<1x128x4xf32, #tpu.memory_space<vmem>>, %arg3: memref<1x1x8xf32, #tpu.memory_space<vmem>>, %arg4: memref<1x4x8xf32, #tpu.memory_space<vmem>>, %arg5: memref<1x1x8xf32, #tpu.memory_space<vmem>>, %arg6: memref<1x128x128xf32, #tpu.memory_space<vmem>>) attributes {dimension_semantics = [#tpu.dimension_semantics<parallel>], iteration_bounds = array<i64: 2>, scalar_prefetch = 0 : i64, scratch_operands = 0 : i64, tpu.core_type = #tpu.core_type<tc>, window_params = [{transform_indices = @transform_0, window_bounds = array<i64: 1, 128, 80>}, {transform_indices = @transform_1, window_bounds = array<i64: 1, 128, 4>}, {transform_indices = @transform_2, window_bounds = array<i64: 1, 1, 8>}, {transform_indices = @transform_3, window_bounds = array<i64: 1, 4, 8>}, {transform_indices = @transform_4, window_bounds = array<i64: 1, 1, 8>}, {transform_indices = @transform_5, window_bounds = array<i64: 1, 128, 128>}]} {
    %c0 = arith.constant 0 : index
    %c0_0 = arith.constant 0 : index
    %c0_1 = arith.constant 0 : index
    %0 = vector.load %arg1[%c0, %c0_0, %c0_1] : memref<1x128x80xf32, #tpu.memory_space<vmem>>, vector<1x128x80xf32>
    %1 = vector.shape_cast %0 : vector<1x128x80xf32> to vector<128x80xf32>
    %c0_2 = arith.constant 0 : index
    %c0_3 = arith.constant 0 : index
    %c0_4 = arith.constant 0 : index
    %2 = vector.load %arg2[%c0_2, %c0_3, %c0_4] : memref<1x128x4xf32, #tpu.memory_space<vmem>>, vector<1x128x4xf32>
    %3 = vector.shape_cast %2 : vector<1x128x4xf32> to vector<128x4xf32>
    %c0_5 = arith.constant 0 : index
    %c0_6 = arith.constant 0 : index
    %c0_7 = arith.constant 0 : index
    %4 = vector.load %arg3[%c0_5, %c0_6, %c0_7] : memref<1x1x8xf32, #tpu.memory_space<vmem>>, vector<1x1x8xf32>
    %5 = vector.shape_cast %4 : vector<1x1x8xf32> to vector<1x8xf32>
    %c0_8 = arith.constant 0 : index
    %c0_9 = arith.constant 0 : index
    %c0_10 = arith.constant 0 : index
    %6 = vector.load %arg4[%c0_8, %c0_9, %c0_10] : memref<1x4x8xf32, #tpu.memory_space<vmem>>, vector<1x4x8xf32>
    %7 = vector.shape_cast %6 : vector<1x4x8xf32> to vector<4x8xf32>
    %c0_11 = arith.constant 0 : index
    %c0_12 = arith.constant 0 : index
    %c0_13 = arith.constant 0 : index
    %8 = vector.load %arg5[%c0_11, %c0_12, %c0_13] : memref<1x1x8xf32, #tpu.memory_space<vmem>>, vector<1x1x8xf32>
    %9 = vector.shape_cast %8 : vector<1x1x8xf32> to vector<1x8xf32>
    %10 = vector.extract_strided_slice %7 {offsets = [0, 0], sizes = [1, 8], strides = [1, 1]} : vector<4x8xf32> to vector<1x8xf32>
    %11 = vector.extract_strided_slice %7 {offsets = [1, 0], sizes = [1, 8], strides = [1, 1]} : vector<4x8xf32> to vector<1x8xf32>
    %12 = vector.extract_strided_slice %7 {offsets = [2, 0], sizes = [1, 8], strides = [1, 1]} : vector<4x8xf32> to vector<1x8xf32>
    %13 = vector.extract_strided_slice %7 {offsets = [3, 0], sizes = [1, 8], strides = [1, 1]} : vector<4x8xf32> to vector<1x8xf32>
    %14 = vector.extract_strided_slice %3 {offsets = [0, 0], sizes = [128, 1], strides = [1, 1]} : vector<128x4xf32> to vector<128x1xf32>
    %15 = vector.extract_strided_slice %3 {offsets = [0, 1], sizes = [128, 1], strides = [1, 1]} : vector<128x4xf32> to vector<128x1xf32>
    %16 = vector.extract_strided_slice %3 {offsets = [0, 2], sizes = [128, 1], strides = [1, 1]} : vector<128x4xf32> to vector<128x1xf32>
    %17 = vector.extract_strided_slice %3 {offsets = [0, 3], sizes = [128, 1], strides = [1, 1]} : vector<128x4xf32> to vector<128x1xf32>
    %18 = vector.broadcast %10 : vector<1x8xf32> to vector<128x8xf32>
    %19 = vector.broadcast %14 : vector<128x1xf32> to vector<128x8xf32>
    %20 = arith.maximumf %18, %19 : vector<128x8xf32>
    %21 = vector.broadcast %11 : vector<1x8xf32> to vector<128x8xf32>
    %22 = vector.broadcast %15 : vector<128x1xf32> to vector<128x8xf32>
    %23 = arith.maximumf %21, %22 : vector<128x8xf32>
    %24 = vector.broadcast %12 : vector<1x8xf32> to vector<128x8xf32>
    %25 = vector.broadcast %16 : vector<128x1xf32> to vector<128x8xf32>
    %26 = arith.minimumf %24, %25 : vector<128x8xf32>
    %27 = vector.broadcast %13 : vector<1x8xf32> to vector<128x8xf32>
    %28 = vector.broadcast %17 : vector<128x1xf32> to vector<128x8xf32>
    %29 = arith.minimumf %27, %28 : vector<128x8xf32>
    %30 = arith.subf %26, %20 : vector<128x8xf32>
    %cst = arith.constant 0.000000e+00 : f32
    %31 = vector.broadcast %cst : f32 to vector<128x8xf32>
    %32 = arith.maximumf %30, %31 : vector<128x8xf32>
    %33 = arith.subf %29, %23 : vector<128x8xf32>
    %cst_14 = arith.constant 0.000000e+00 : f32
    %34 = vector.broadcast %cst_14 : f32 to vector<128x8xf32>
    %35 = arith.maximumf %33, %34 : vector<128x8xf32>
    %36 = arith.mulf %32, %35 : vector<128x8xf32>
    %37 = arith.subf %12, %10 : vector<1x8xf32>
    %38 = arith.subf %13, %11 : vector<1x8xf32>
    %cst_15 = arith.constant 1.000000e-07 : f32
    %39 = vector.broadcast %cst_15 : f32 to vector<1x8xf32>
    %40 = arith.addf %38, %39 : vector<1x8xf32>
    %41 = arith.subf %16, %14 : vector<128x1xf32>
    %42 = arith.subf %17, %15 : vector<128x1xf32>
    %cst_16 = arith.constant 1.000000e-07 : f32
    %43 = vector.broadcast %cst_16 : f32 to vector<128x1xf32>
    %44 = arith.addf %42, %43 : vector<128x1xf32>
    %45 = arith.mulf %37, %40 : vector<1x8xf32>
    %46 = arith.mulf %41, %44 : vector<128x1xf32>
    %47 = vector.broadcast %45 : vector<1x8xf32> to vector<128x8xf32>
    %48 = vector.broadcast %46 : vector<128x1xf32> to vector<128x8xf32>
    %49 = arith.addf %47, %48 : vector<128x8xf32>
    %50 = arith.subf %49, %36 : vector<128x8xf32>
    %cst_17 = arith.constant 1.000000e-07 : f32
    %51 = vector.broadcast %cst_17 : f32 to vector<128x8xf32>
    %52 = arith.addf %50, %51 : vector<128x8xf32>
    %53 = tpu.reciprocal %52 {approx = true} : vector<128x8xf32> -> vector<128x8xf32>
    %54 = arith.mulf %52, %53 : vector<128x8xf32>
    %cst_18 = arith.constant 2.000000e+00 : f32
    %55 = vector.broadcast %cst_18 : f32 to vector<128x8xf32>
    %56 = arith.subf %55, %54 : vector<128x8xf32>
    %57 = arith.mulf %53, %56 : vector<128x8xf32>
    %58 = arith.mulf %36, %57 : vector<128x8xf32>
    %59 = vector.broadcast %12 : vector<1x8xf32> to vector<128x8xf32>
    %60 = vector.broadcast %16 : vector<128x1xf32> to vector<128x8xf32>
    %61 = arith.maximumf %59, %60 : vector<128x8xf32>
    %62 = vector.broadcast %10 : vector<1x8xf32> to vector<128x8xf32>
    %63 = vector.broadcast %14 : vector<128x1xf32> to vector<128x8xf32>
    %64 = arith.minimumf %62, %63 : vector<128x8xf32>
    %65 = arith.subf %61, %64 : vector<128x8xf32>
    %66 = vector.broadcast %13 : vector<1x8xf32> to vector<128x8xf32>
    %67 = vector.broadcast %17 : vector<128x1xf32> to vector<128x8xf32>
    %68 = arith.maximumf %66, %67 : vector<128x8xf32>
    %69 = vector.broadcast %11 : vector<1x8xf32> to vector<128x8xf32>
    %70 = vector.broadcast %15 : vector<128x1xf32> to vector<128x8xf32>
    %71 = arith.minimumf %69, %70 : vector<128x8xf32>
    %72 = arith.subf %68, %71 : vector<128x8xf32>
    %73 = arith.mulf %65, %65 : vector<128x8xf32>
    %74 = arith.mulf %72, %72 : vector<128x8xf32>
    %75 = arith.addf %73, %74 : vector<128x8xf32>
    %cst_19 = arith.constant 1.000000e-07 : f32
    %76 = vector.broadcast %cst_19 : f32 to vector<128x8xf32>
    %77 = arith.addf %75, %76 : vector<128x8xf32>
    %78 = arith.addf %14, %16 : vector<128x1xf32>
    %79 = vector.broadcast %78 : vector<128x1xf32> to vector<128x8xf32>
    %80 = vector.broadcast %10 : vector<1x8xf32> to vector<128x8xf32>
    %81 = arith.subf %79, %80 : vector<128x8xf32>
    %82 = vector.broadcast %12 : vector<1x8xf32> to vector<128x8xf32>
    %83 = arith.subf %81, %82 : vector<128x8xf32>
    %84 = arith.mulf %83, %83 : vector<128x8xf32>
    %85 = arith.addf %15, %17 : vector<128x1xf32>
    %86 = vector.broadcast %85 : vector<128x1xf32> to vector<128x8xf32>
    %87 = vector.broadcast %11 : vector<1x8xf32> to vector<128x8xf32>
    %88 = arith.subf %86, %87 : vector<128x8xf32>
    %89 = vector.broadcast %13 : vector<1x8xf32> to vector<128x8xf32>
    %90 = arith.subf %88, %89 : vector<128x8xf32>
    %91 = arith.mulf %90, %90 : vector<128x8xf32>
    %92 = arith.addf %84, %91 : vector<128x8xf32>
    %cst_20 = arith.constant 2.500000e-01 : f32
    %93 = vector.broadcast %cst_20 : f32 to vector<128x8xf32>
    %94 = arith.mulf %92, %93 : vector<128x8xf32>
    %95 = arith.divf %41, %44 : vector<128x1xf32>
    %cst_21 = arith.constant 1.000000e+00 : f32
    %96 = vector.broadcast %cst_21 : f32 to vector<128x1xf32>
    %97 = arith.cmpf ogt, %95, %96 : vector<128x1xf32>
    %cst_22 = arith.constant 1.000000e-30 : f32
    %98 = vector.broadcast %cst_22 : f32 to vector<128x1xf32>
    %99 = arith.maximumf %95, %98 : vector<128x1xf32>
    %cst_23 = arith.constant 1.000000e+00 : f32
    %100 = vector.broadcast %cst_23 : f32 to vector<128x1xf32>
    %101 = arith.divf %100, %99 : vector<128x1xf32>
    %102 = arith.select %97, %101, %95 : vector<128x1xi1>, vector<128x1xf32>
    %103 = arith.mulf %102, %102 : vector<128x1xf32>
    %cst_24 = arith.constant 2.083510e-02 : f32
    %104 = vector.broadcast %cst_24 : f32 to vector<128x1xf32>
    %105 = arith.mulf %103, %104 : vector<128x1xf32>
    %cst_25 = arith.constant -8.513300e-02 : f32
    %106 = vector.broadcast %cst_25 : f32 to vector<128x1xf32>
    %107 = arith.addf %106, %105 : vector<128x1xf32>
    %108 = arith.mulf %103, %107 : vector<128x1xf32>
    %cst_26 = arith.constant 1.801410e-01 : f32
    %109 = vector.broadcast %cst_26 : f32 to vector<128x1xf32>
    %110 = arith.addf %109, %108 : vector<128x1xf32>
    %111 = arith.mulf %103, %110 : vector<128x1xf32>
    %cst_27 = arith.constant -0.330299497 : f32
    %112 = vector.broadcast %cst_27 : f32 to vector<128x1xf32>
    %113 = arith.addf %112, %111 : vector<128x1xf32>
    %114 = arith.mulf %103, %113 : vector<128x1xf32>
    %cst_28 = arith.constant 9.998660e-01 : f32
    %115 = vector.broadcast %cst_28 : f32 to vector<128x1xf32>
    %116 = arith.addf %115, %114 : vector<128x1xf32>
    %117 = arith.mulf %102, %116 : vector<128x1xf32>
    %cst_29 = arith.constant 1.57079637 : f32
    %118 = vector.broadcast %cst_29 : f32 to vector<128x1xf32>
    %119 = arith.subf %118, %117 : vector<128x1xf32>
    %120 = arith.select %97, %119, %117 : vector<128x1xi1>, vector<128x1xf32>
    %121 = arith.divf %37, %40 : vector<1x8xf32>
    %cst_30 = arith.constant 1.000000e+00 : f32
    %122 = vector.broadcast %cst_30 : f32 to vector<1x8xf32>
    %123 = arith.cmpf ogt, %121, %122 : vector<1x8xf32>
    %cst_31 = arith.constant 1.000000e-30 : f32
    %124 = vector.broadcast %cst_31 : f32 to vector<1x8xf32>
    %125 = arith.maximumf %121, %124 : vector<1x8xf32>
    %cst_32 = arith.constant 1.000000e+00 : f32
    %126 = vector.broadcast %cst_32 : f32 to vector<1x8xf32>
    %127 = arith.divf %126, %125 : vector<1x8xf32>
    %128 = arith.select %123, %127, %121 : vector<1x8xi1>, vector<1x8xf32>
    %129 = arith.mulf %128, %128 : vector<1x8xf32>
    %cst_33 = arith.constant 2.083510e-02 : f32
    %130 = vector.broadcast %cst_33 : f32 to vector<1x8xf32>
    %131 = arith.mulf %129, %130 : vector<1x8xf32>
    %cst_34 = arith.constant -8.513300e-02 : f32
    %132 = vector.broadcast %cst_34 : f32 to vector<1x8xf32>
    %133 = arith.addf %132, %131 : vector<1x8xf32>
    %134 = arith.mulf %129, %133 : vector<1x8xf32>
    %cst_35 = arith.constant 1.801410e-01 : f32
    %135 = vector.broadcast %cst_35 : f32 to vector<1x8xf32>
    %136 = arith.addf %135, %134 : vector<1x8xf32>
    %137 = arith.mulf %129, %136 : vector<1x8xf32>
    %cst_36 = arith.constant -0.330299497 : f32
    %138 = vector.broadcast %cst_36 : f32 to vector<1x8xf32>
    %139 = arith.addf %138, %137 : vector<1x8xf32>
    %140 = arith.mulf %129, %139 : vector<1x8xf32>
    %cst_37 = arith.constant 9.998660e-01 : f32
    %141 = vector.broadcast %cst_37 : f32 to vector<1x8xf32>
    %142 = arith.addf %141, %140 : vector<1x8xf32>
    %143 = arith.mulf %128, %142 : vector<1x8xf32>
    %cst_38 = arith.constant 1.57079637 : f32
    %144 = vector.broadcast %cst_38 : f32 to vector<1x8xf32>
    %145 = arith.subf %144, %143 : vector<1x8xf32>
    %146 = arith.select %123, %145, %143 : vector<1x8xi1>, vector<1x8xf32>
    %147 = vector.broadcast %120 : vector<128x1xf32> to vector<128x8xf32>
    %148 = vector.broadcast %146 : vector<1x8xf32> to vector<128x8xf32>
    %149 = arith.subf %147, %148 : vector<128x8xf32>
    %150 = arith.mulf %149, %149 : vector<128x8xf32>
    %cst_39 = arith.constant 0.405284733 : f32
    %151 = vector.broadcast %cst_39 : f32 to vector<128x8xf32>
    %152 = arith.mulf %151, %150 : vector<128x8xf32>
    %153 = arith.subf %152, %58 : vector<128x8xf32>
    %cst_40 = arith.constant 1.000000e+00 : f32
    %cst_41 = arith.constant 1.000000e-07 : f32
    %154 = arith.addf %cst_40, %cst_41 : f32
    %155 = vector.broadcast %154 : f32 to vector<128x8xf32>
    %156 = arith.addf %153, %155 : vector<128x8xf32>
    %157 = tpu.reciprocal %156 {approx = true} : vector<128x8xf32> -> vector<128x8xf32>
    %158 = arith.mulf %156, %157 : vector<128x8xf32>
    %cst_42 = arith.constant 2.000000e+00 : f32
    %159 = vector.broadcast %cst_42 : f32 to vector<128x8xf32>
    %160 = arith.subf %159, %158 : vector<128x8xf32>
    %161 = arith.mulf %157, %160 : vector<128x8xf32>
    %162 = arith.mulf %152, %161 : vector<128x8xf32>
    %163 = tpu.reciprocal %77 {approx = true} : vector<128x8xf32> -> vector<128x8xf32>
    %164 = arith.mulf %77, %163 : vector<128x8xf32>
    %cst_43 = arith.constant 2.000000e+00 : f32
    %165 = vector.broadcast %cst_43 : f32 to vector<128x8xf32>
    %166 = arith.subf %165, %164 : vector<128x8xf32>
    %167 = arith.mulf %163, %166 : vector<128x8xf32>
    %168 = arith.mulf %94, %167 : vector<128x8xf32>
    %169 = arith.mulf %152, %162 : vector<128x8xf32>
    %170 = arith.addf %168, %169 : vector<128x8xf32>
    %171 = arith.subf %58, %170 : vector<128x8xf32>
    %172 = arith.fptosi %5 : vector<1x8xf32> to vector<1x8xi32>
    %173 = tpu.iota {dimensions = array<i32: 0>} : vector<80x8xi32>
    %174 = vector.broadcast %172 : vector<1x8xi32> to vector<80x8xi32>
    %175 = arith.cmpi eq, %173, %174 : vector<80x8xi32>
    %176 = arith.extui %175 : vector<80x8xi1> to vector<80x8xi32>
    %177 = arith.sitofp %176 : vector<80x8xi32> to vector<80x8xf32>
    %cst_44 = arith.constant dense<0.000000e+00> : vector<128x8xf32>
    %178 = tpu.matmul %1, %177, %cst_44 {dimension_numbers = #tpu.dot_dimension_numbers<[1], [0], [0], [1], [0, 0, 1, 1], [], []>} : vector<128x80xf32>, vector<80x8xf32>, vector<128x8xf32> -> vector<128x8xf32>
    %179 = arith.mulf %171, %171 : vector<128x8xf32>
    %180 = arith.mulf %179, %179 : vector<128x8xf32>
    %181 = arith.mulf %179, %180 : vector<128x8xf32>
    %182 = arith.mulf %178, %181 : vector<128x8xf32>
    %183 = tpu.iota {dimensions = array<i32: 0>} : vector<128x8xi32>
    %cst_45 = arith.constant dense<0xFF800000> : vector<8xf32>
    %184 = vector.multi_reduction <maximumf>, %182, %cst_45 [0] : vector<128x8xf32> to vector<8xf32>
    %185 = vector.shape_cast %184 : vector<8xf32> to vector<1x8xf32>
    %186 = vector.broadcast %185 : vector<1x8xf32> to vector<128x8xf32>
    %187 = arith.cmpf oeq, %182, %186 : vector<128x8xf32>
    %c128_i32 = arith.constant 128 : i32
    %188 = vector.broadcast %c128_i32 : i32 to vector<128x8xi32>
    %189 = arith.select %187, %183, %188 : vector<128x8xi1>, vector<128x8xi32>
    %cst_46 = arith.constant dense<2147483647> : vector<8xi32>
    %190 = vector.multi_reduction <minsi>, %189, %cst_46 [0] : vector<128x8xi32> to vector<8xi32>
    %191 = vector.shape_cast %190 : vector<8xi32> to vector<1x8xi32>
    %192 = vector.broadcast %191 : vector<1x8xi32> to vector<128x8xi32>
    %193 = arith.cmpi eq, %183, %192 : vector<128x8xi32>
    %cst_47 = arith.constant 0xFF800000 : f32
    %194 = vector.broadcast %cst_47 : f32 to vector<128x8xf32>
    %195 = arith.select %193, %194, %182 : vector<128x8xi1>, vector<128x8xf32>
    %cst_48 = arith.constant dense<0xFF800000> : vector<8xf32>
    %196 = vector.multi_reduction <maximumf>, %195, %cst_48 [0] : vector<128x8xf32> to vector<8xf32>
    %197 = vector.shape_cast %196 : vector<8xf32> to vector<1x8xf32>
    %198 = vector.broadcast %197 : vector<1x8xf32> to vector<128x8xf32>
    %199 = arith.cmpf oeq, %195, %198 : vector<128x8xf32>
    %c128_i32_49 = arith.constant 128 : i32
    %200 = vector.broadcast %c128_i32_49 : i32 to vector<128x8xi32>
    %201 = arith.select %199, %183, %200 : vector<128x8xi1>, vector<128x8xi32>
    %cst_50 = arith.constant dense<2147483647> : vector<8xi32>
    %202 = vector.multi_reduction <minsi>, %201, %cst_50 [0] : vector<128x8xi32> to vector<8xi32>
    %203 = vector.shape_cast %202 : vector<8xi32> to vector<1x8xi32>
    %204 = vector.broadcast %203 : vector<1x8xi32> to vector<128x8xi32>
    %205 = arith.cmpi eq, %183, %204 : vector<128x8xi32>
    %cst_51 = arith.constant 0xFF800000 : f32
    %206 = vector.broadcast %cst_51 : f32 to vector<128x8xf32>
    %207 = arith.select %205, %206, %195 : vector<128x8xi1>, vector<128x8xf32>
    %cst_52 = arith.constant dense<0xFF800000> : vector<8xf32>
    %208 = vector.multi_reduction <maximumf>, %207, %cst_52 [0] : vector<128x8xf32> to vector<8xf32>
    %209 = vector.shape_cast %208 : vector<8xf32> to vector<1x8xf32>
    %210 = vector.broadcast %209 : vector<1x8xf32> to vector<128x8xf32>
    %211 = arith.cmpf oeq, %207, %210 : vector<128x8xf32>
    %c128_i32_53 = arith.constant 128 : i32
    %212 = vector.broadcast %c128_i32_53 : i32 to vector<128x8xi32>
    %213 = arith.select %211, %183, %212 : vector<128x8xi1>, vector<128x8xi32>
    %cst_54 = arith.constant dense<2147483647> : vector<8xi32>
    %214 = vector.multi_reduction <minsi>, %213, %cst_54 [0] : vector<128x8xi32> to vector<8xi32>
    %215 = vector.shape_cast %214 : vector<8xi32> to vector<1x8xi32>
    %216 = vector.broadcast %215 : vector<1x8xi32> to vector<128x8xi32>
    %217 = arith.cmpi eq, %183, %216 : vector<128x8xi32>
    %cst_55 = arith.constant 0xFF800000 : f32
    %218 = vector.broadcast %cst_55 : f32 to vector<128x8xf32>
    %219 = arith.select %217, %218, %207 : vector<128x8xi1>, vector<128x8xf32>
    %cst_56 = arith.constant dense<0xFF800000> : vector<8xf32>
    %220 = vector.multi_reduction <maximumf>, %219, %cst_56 [0] : vector<128x8xf32> to vector<8xf32>
    %221 = vector.shape_cast %220 : vector<8xf32> to vector<1x8xf32>
    %222 = vector.broadcast %221 : vector<1x8xf32> to vector<128x8xf32>
    %223 = arith.cmpf oeq, %219, %222 : vector<128x8xf32>
    %c128_i32_57 = arith.constant 128 : i32
    %224 = vector.broadcast %c128_i32_57 : i32 to vector<128x8xi32>
    %225 = arith.select %223, %183, %224 : vector<128x8xi1>, vector<128x8xi32>
    %cst_58 = arith.constant dense<2147483647> : vector<8xi32>
    %226 = vector.multi_reduction <minsi>, %225, %cst_58 [0] : vector<128x8xi32> to vector<8xi32>
    %227 = vector.shape_cast %226 : vector<8xi32> to vector<1x8xi32>
    %228 = vector.broadcast %227 : vector<1x8xi32> to vector<128x8xi32>
    %229 = arith.cmpi eq, %183, %228 : vector<128x8xi32>
    %cst_59 = arith.constant 0xFF800000 : f32
    %230 = vector.broadcast %cst_59 : f32 to vector<128x8xf32>
    %231 = arith.select %229, %230, %219 : vector<128x8xi1>, vector<128x8xf32>
    %cst_60 = arith.constant dense<0xFF800000> : vector<8xf32>
    %232 = vector.multi_reduction <maximumf>, %231, %cst_60 [0] : vector<128x8xf32> to vector<8xf32>
    %233 = vector.shape_cast %232 : vector<8xf32> to vector<1x8xf32>
    %234 = vector.broadcast %233 : vector<1x8xf32> to vector<128x8xf32>
    %235 = arith.cmpf oeq, %231, %234 : vector<128x8xf32>
    %c128_i32_61 = arith.constant 128 : i32
    %236 = vector.broadcast %c128_i32_61 : i32 to vector<128x8xi32>
    %237 = arith.select %235, %183, %236 : vector<128x8xi1>, vector<128x8xi32>
    %cst_62 = arith.constant dense<2147483647> : vector<8xi32>
    %238 = vector.multi_reduction <minsi>, %237, %cst_62 [0] : vector<128x8xi32> to vector<8xi32>
    %239 = vector.shape_cast %238 : vector<8xi32> to vector<1x8xi32>
    %240 = vector.broadcast %239 : vector<1x8xi32> to vector<128x8xi32>
    %241 = arith.cmpi eq, %183, %240 : vector<128x8xi32>
    %cst_63 = arith.constant 0xFF800000 : f32
    %242 = vector.broadcast %cst_63 : f32 to vector<128x8xf32>
    %243 = arith.select %241, %242, %231 : vector<128x8xi1>, vector<128x8xf32>
    %cst_64 = arith.constant dense<0xFF800000> : vector<8xf32>
    %244 = vector.multi_reduction <maximumf>, %243, %cst_64 [0] : vector<128x8xf32> to vector<8xf32>
    %245 = vector.shape_cast %244 : vector<8xf32> to vector<1x8xf32>
    %246 = vector.broadcast %245 : vector<1x8xf32> to vector<128x8xf32>
    %247 = arith.cmpf oeq, %243, %246 : vector<128x8xf32>
    %c128_i32_65 = arith.constant 128 : i32
    %248 = vector.broadcast %c128_i32_65 : i32 to vector<128x8xi32>
    %249 = arith.select %247, %183, %248 : vector<128x8xi1>, vector<128x8xi32>
    %cst_66 = arith.constant dense<2147483647> : vector<8xi32>
    %250 = vector.multi_reduction <minsi>, %249, %cst_66 [0] : vector<128x8xi32> to vector<8xi32>
    %251 = vector.shape_cast %250 : vector<8xi32> to vector<1x8xi32>
    %252 = vector.broadcast %251 : vector<1x8xi32> to vector<128x8xi32>
    %253 = arith.cmpi eq, %183, %252 : vector<128x8xi32>
    %cst_67 = arith.constant 0xFF800000 : f32
    %254 = vector.broadcast %cst_67 : f32 to vector<128x8xf32>
    %255 = arith.select %253, %254, %243 : vector<128x8xi1>, vector<128x8xf32>
    %cst_68 = arith.constant dense<0xFF800000> : vector<8xf32>
    %256 = vector.multi_reduction <maximumf>, %255, %cst_68 [0] : vector<128x8xf32> to vector<8xf32>
    %257 = vector.shape_cast %256 : vector<8xf32> to vector<1x8xf32>
    %258 = vector.broadcast %257 : vector<1x8xf32> to vector<128x8xf32>
    %259 = arith.cmpf oeq, %255, %258 : vector<128x8xf32>
    %c128_i32_69 = arith.constant 128 : i32
    %260 = vector.broadcast %c128_i32_69 : i32 to vector<128x8xi32>
    %261 = arith.select %259, %183, %260 : vector<128x8xi1>, vector<128x8xi32>
    %cst_70 = arith.constant dense<2147483647> : vector<8xi32>
    %262 = vector.multi_reduction <minsi>, %261, %cst_70 [0] : vector<128x8xi32> to vector<8xi32>
    %263 = vector.shape_cast %262 : vector<8xi32> to vector<1x8xi32>
    %264 = vector.broadcast %263 : vector<1x8xi32> to vector<128x8xi32>
    %265 = arith.cmpi eq, %183, %264 : vector<128x8xi32>
    %cst_71 = arith.constant 0xFF800000 : f32
    %266 = vector.broadcast %cst_71 : f32 to vector<128x8xf32>
    %267 = arith.select %265, %266, %255 : vector<128x8xi1>, vector<128x8xf32>
    %cst_72 = arith.constant dense<0xFF800000> : vector<8xf32>
    %268 = vector.multi_reduction <maximumf>, %267, %cst_72 [0] : vector<128x8xf32> to vector<8xf32>
    %269 = vector.shape_cast %268 : vector<8xf32> to vector<1x8xf32>
    %270 = vector.broadcast %269 : vector<1x8xf32> to vector<128x8xf32>
    %271 = arith.cmpf oeq, %267, %270 : vector<128x8xf32>
    %c128_i32_73 = arith.constant 128 : i32
    %272 = vector.broadcast %c128_i32_73 : i32 to vector<128x8xi32>
    %273 = arith.select %271, %183, %272 : vector<128x8xi1>, vector<128x8xi32>
    %cst_74 = arith.constant dense<2147483647> : vector<8xi32>
    %274 = vector.multi_reduction <minsi>, %273, %cst_74 [0] : vector<128x8xi32> to vector<8xi32>
    %275 = vector.shape_cast %274 : vector<8xi32> to vector<1x8xi32>
    %276 = vector.broadcast %275 : vector<1x8xi32> to vector<128x8xi32>
    %277 = arith.cmpi eq, %183, %276 : vector<128x8xi32>
    %cst_75 = arith.constant 0xFF800000 : f32
    %278 = vector.broadcast %cst_75 : f32 to vector<128x8xf32>
    %279 = arith.select %277, %278, %267 : vector<128x8xi1>, vector<128x8xf32>
    %cst_76 = arith.constant dense<0xFF800000> : vector<8xf32>
    %280 = vector.multi_reduction <maximumf>, %279, %cst_76 [0] : vector<128x8xf32> to vector<8xf32>
    %281 = vector.shape_cast %280 : vector<8xf32> to vector<1x8xf32>
    %282 = vector.broadcast %281 : vector<1x8xf32> to vector<128x8xf32>
    %283 = arith.cmpf oeq, %279, %282 : vector<128x8xf32>
    %c128_i32_77 = arith.constant 128 : i32
    %284 = vector.broadcast %c128_i32_77 : i32 to vector<128x8xi32>
    %285 = arith.select %283, %183, %284 : vector<128x8xi1>, vector<128x8xi32>
    %cst_78 = arith.constant dense<2147483647> : vector<8xi32>
    %286 = vector.multi_reduction <minsi>, %285, %cst_78 [0] : vector<128x8xi32> to vector<8xi32>
    %287 = vector.shape_cast %286 : vector<8xi32> to vector<1x8xi32>
    %288 = vector.broadcast %287 : vector<1x8xi32> to vector<128x8xi32>
    %289 = arith.cmpi eq, %183, %288 : vector<128x8xi32>
    %cst_79 = arith.constant 0xFF800000 : f32
    %290 = vector.broadcast %cst_79 : f32 to vector<128x8xf32>
    %291 = arith.select %289, %290, %279 : vector<128x8xi1>, vector<128x8xf32>
    %cst_80 = arith.constant dense<0xFF800000> : vector<8xf32>
    %292 = vector.multi_reduction <maximumf>, %291, %cst_80 [0] : vector<128x8xf32> to vector<8xf32>
    %293 = vector.shape_cast %292 : vector<8xf32> to vector<1x8xf32>
    %294 = vector.broadcast %293 : vector<1x8xf32> to vector<128x8xf32>
    %295 = arith.cmpf oeq, %291, %294 : vector<128x8xf32>
    %c128_i32_81 = arith.constant 128 : i32
    %296 = vector.broadcast %c128_i32_81 : i32 to vector<128x8xi32>
    %297 = arith.select %295, %183, %296 : vector<128x8xi1>, vector<128x8xi32>
    %cst_82 = arith.constant dense<2147483647> : vector<8xi32>
    %298 = vector.multi_reduction <minsi>, %297, %cst_82 [0] : vector<128x8xi32> to vector<8xi32>
    %299 = vector.shape_cast %298 : vector<8xi32> to vector<1x8xi32>
    %300 = vector.broadcast %299 : vector<1x8xi32> to vector<128x8xi32>
    %301 = arith.cmpi eq, %183, %300 : vector<128x8xi32>
    %cst_83 = arith.constant 0xFF800000 : f32
    %302 = vector.broadcast %cst_83 : f32 to vector<128x8xf32>
    %303 = arith.select %301, %302, %291 : vector<128x8xi1>, vector<128x8xf32>
    %cst_84 = arith.constant dense<0xFF800000> : vector<8xf32>
    %304 = vector.multi_reduction <maximumf>, %303, %cst_84 [0] : vector<128x8xf32> to vector<8xf32>
    %305 = vector.shape_cast %304 : vector<8xf32> to vector<1x8xf32>
    %306 = vector.broadcast %305 : vector<1x8xf32> to vector<128x8xf32>
    %307 = arith.cmpf oeq, %303, %306 : vector<128x8xf32>
    %c128_i32_85 = arith.constant 128 : i32
    %308 = vector.broadcast %c128_i32_85 : i32 to vector<128x8xi32>
    %309 = arith.select %307, %183, %308 : vector<128x8xi1>, vector<128x8xi32>
    %cst_86 = arith.constant dense<2147483647> : vector<8xi32>
    %310 = vector.multi_reduction <minsi>, %309, %cst_86 [0] : vector<128x8xi32> to vector<8xi32>
    %311 = vector.shape_cast %310 : vector<8xi32> to vector<1x8xi32>
    %312 = vector.broadcast %311 : vector<1x8xi32> to vector<128x8xi32>
    %313 = arith.cmpi eq, %183, %312 : vector<128x8xi32>
    %cst_87 = arith.constant 0xFF800000 : f32
    %314 = vector.broadcast %cst_87 : f32 to vector<128x8xf32>
    %315 = arith.select %313, %314, %303 : vector<128x8xi1>, vector<128x8xf32>
    %cst_88 = arith.constant dense<0xFF800000> : vector<8xf32>
    %316 = vector.multi_reduction <maximumf>, %315, %cst_88 [0] : vector<128x8xf32> to vector<8xf32>
    %317 = vector.shape_cast %316 : vector<8xf32> to vector<1x8xf32>
    %318 = vector.broadcast %317 : vector<1x8xf32> to vector<128x8xf32>
    %319 = arith.cmpf oeq, %315, %318 : vector<128x8xf32>
    %c128_i32_89 = arith.constant 128 : i32
    %320 = vector.broadcast %c128_i32_89 : i32 to vector<128x8xi32>
    %321 = arith.select %319, %183, %320 : vector<128x8xi1>, vector<128x8xi32>
    %cst_90 = arith.constant dense<2147483647> : vector<8xi32>
    %322 = vector.multi_reduction <minsi>, %321, %cst_90 [0] : vector<128x8xi32> to vector<8xi32>
    %323 = vector.shape_cast %322 : vector<8xi32> to vector<1x8xi32>
    %324 = vector.broadcast %323 : vector<1x8xi32> to vector<128x8xi32>
    %325 = arith.cmpi eq, %183, %324 : vector<128x8xi32>
    %cst_91 = arith.constant 0xFF800000 : f32
    %326 = vector.broadcast %cst_91 : f32 to vector<128x8xf32>
    %327 = arith.select %325, %326, %315 : vector<128x8xi1>, vector<128x8xf32>
    %cst_92 = arith.constant dense<0xFF800000> : vector<8xf32>
    %328 = vector.multi_reduction <maximumf>, %327, %cst_92 [0] : vector<128x8xf32> to vector<8xf32>
    %329 = vector.shape_cast %328 : vector<8xf32> to vector<1x8xf32>
    %330 = vector.broadcast %329 : vector<1x8xf32> to vector<128x8xf32>
    %331 = arith.cmpf oeq, %327, %330 : vector<128x8xf32>
    %c128_i32_93 = arith.constant 128 : i32
    %332 = vector.broadcast %c128_i32_93 : i32 to vector<128x8xi32>
    %333 = arith.select %331, %183, %332 : vector<128x8xi1>, vector<128x8xi32>
    %cst_94 = arith.constant dense<2147483647> : vector<8xi32>
    %334 = vector.multi_reduction <minsi>, %333, %cst_94 [0] : vector<128x8xi32> to vector<8xi32>
    %335 = vector.shape_cast %334 : vector<8xi32> to vector<1x8xi32>
    %336 = vector.broadcast %335 : vector<1x8xi32> to vector<128x8xi32>
    %337 = arith.cmpi eq, %183, %336 : vector<128x8xi32>
    %cst_95 = arith.constant 0xFF800000 : f32
    %338 = vector.broadcast %cst_95 : f32 to vector<128x8xf32>
    %339 = arith.select %337, %338, %327 : vector<128x8xi1>, vector<128x8xf32>
    %cst_96 = arith.constant 0xFF800000 : f32
    %340 = vector.broadcast %cst_96 : f32 to vector<128x8xf32>
    %341 = arith.cmpf oeq, %339, %340 : vector<128x8xf32>
    %342 = arith.extui %341 : vector<128x8xi1> to vector<128x8xi32>
    %343 = arith.sitofp %342 : vector<128x8xi32> to vector<128x8xf32>
    %344 = vector.broadcast %9 : vector<1x8xf32> to vector<128x8xf32>
    %345 = arith.mulf %343, %344 : vector<128x8xf32>
    %346 = arith.mulf %171, %345 : vector<128x8xf32>
    %cst_97 = arith.constant dense<0.000000e+00> : vector<8xf32>
    %347 = vector.multi_reduction <add>, %346, %cst_97 [0] : vector<128x8xf32> to vector<8xf32>
    %348 = vector.shape_cast %347 : vector<8xf32> to vector<1x8xf32>
    %cst_98 = arith.constant dense<0.000000e+00> : vector<8xf32>
    %349 = vector.multi_reduction <add>, %345, %cst_98 [0] : vector<128x8xf32> to vector<8xf32>
    %350 = vector.shape_cast %349 : vector<8xf32> to vector<1x8xf32>
    %cst_99 = arith.constant 9.99999971E-10 : f32
    %351 = vector.broadcast %cst_99 : f32 to vector<1x8xf32>
    %352 = arith.addf %350, %351 : vector<1x8xf32>
    %353 = tpu.reciprocal %352 {approx = true} : vector<1x8xf32> -> vector<1x8xf32>
    %354 = arith.mulf %352, %353 : vector<1x8xf32>
    %cst_100 = arith.constant 2.000000e+00 : f32
    %355 = vector.broadcast %cst_100 : f32 to vector<1x8xf32>
    %356 = arith.subf %355, %354 : vector<1x8xf32>
    %357 = arith.mulf %353, %356 : vector<1x8xf32>
    %358 = arith.mulf %348, %357 : vector<1x8xf32>
    %cst_101 = arith.constant 0.000000e+00 : f32
    %cst_102 = arith.constant 1.000000e+00 : f32
    %359 = vector.broadcast %cst_101 : f32 to vector<1x8xf32>
    %360 = arith.maximumf %359, %358 : vector<1x8xf32>
    %361 = vector.broadcast %cst_102 : f32 to vector<1x8xf32>
    %362 = arith.minimumf %361, %360 : vector<1x8xf32>
    %cst_103 = arith.constant dense<0.000000e+00> : vector<128xf32>
    %363 = vector.multi_reduction <add>, %345, %cst_103 [1] : vector<128x8xf32> to vector<128xf32>
    %364 = vector.shape_cast %363 : vector<128xf32> to vector<128x1xf32>
    %cst_104 = arith.constant 0.000000e+00 : f32
    %365 = vector.broadcast %cst_104 : f32 to vector<128x1xf32>
    %366 = arith.cmpf ogt, %364, %365 : vector<128x1xf32>
    %367 = tpu.iota {dimensions = array<i32: 1>} : vector<128x8xi32>
    %cst_105 = arith.constant 0.000000e+00 : f32
    %368 = vector.broadcast %cst_105 : f32 to vector<128x8xf32>
    %369 = arith.cmpf ogt, %345, %368 : vector<128x8xf32>
    %c8_i32 = arith.constant 8 : i32
    %370 = vector.broadcast %c8_i32 : i32 to vector<128x8xi32>
    %371 = arith.select %369, %367, %370 : vector<128x8xi1>, vector<128x8xi32>
    %cst_106 = arith.constant dense<2147483647> : vector<128xi32>
    %372 = vector.multi_reduction <minsi>, %371, %cst_106 [1] : vector<128x8xi32> to vector<128xi32>
    %373 = vector.shape_cast %372 : vector<128xi32> to vector<128x1xi32>
    %c0_i32 = arith.constant 0 : i32
    %374 = vector.broadcast %c0_i32 : i32 to vector<128x1xi32>
    %375 = arith.select %366, %373, %374 : vector<128x1xi1>, vector<128x1xi32>
    %376 = vector.broadcast %375 : vector<128x1xi32> to vector<128x8xi32>
    %377 = arith.cmpi eq, %367, %376 : vector<128x8xi32>
    %378 = arith.extui %377 : vector<128x8xi1> to vector<128x8xi32>
    %379 = arith.sitofp %378 : vector<128x8xi32> to vector<128x8xf32>
    %380 = vector.broadcast %10 : vector<1x8xf32> to vector<128x8xf32>
    %381 = arith.mulf %379, %380 : vector<128x8xf32>
    %cst_107 = arith.constant dense<0.000000e+00> : vector<128xf32>
    %382 = vector.multi_reduction <add>, %381, %cst_107 [1] : vector<128x8xf32> to vector<128xf32>
    %383 = vector.shape_cast %382 : vector<128xf32> to vector<128x1xf32>
    %384 = vector.broadcast %11 : vector<1x8xf32> to vector<128x8xf32>
    %385 = arith.mulf %379, %384 : vector<128x8xf32>
    %cst_108 = arith.constant dense<0.000000e+00> : vector<128xf32>
    %386 = vector.multi_reduction <add>, %385, %cst_108 [1] : vector<128x8xf32> to vector<128xf32>
    %387 = vector.shape_cast %386 : vector<128xf32> to vector<128x1xf32>
    %388 = vector.broadcast %12 : vector<1x8xf32> to vector<128x8xf32>
    %389 = arith.mulf %379, %388 : vector<128x8xf32>
    %cst_109 = arith.constant dense<0.000000e+00> : vector<128xf32>
    %390 = vector.multi_reduction <add>, %389, %cst_109 [1] : vector<128x8xf32> to vector<128xf32>
    %391 = vector.shape_cast %390 : vector<128xf32> to vector<128x1xf32>
    %392 = vector.broadcast %13 : vector<1x8xf32> to vector<128x8xf32>
    %393 = arith.mulf %379, %392 : vector<128x8xf32>
    %cst_110 = arith.constant dense<0.000000e+00> : vector<128xf32>
    %394 = vector.multi_reduction <add>, %393, %cst_110 [1] : vector<128x8xf32> to vector<128xf32>
    %395 = vector.shape_cast %394 : vector<128xf32> to vector<128x1xf32>
    %396 = vector.broadcast %5 : vector<1x8xf32> to vector<128x8xf32>
    %397 = arith.mulf %379, %396 : vector<128x8xf32>
    %cst_111 = arith.constant dense<0.000000e+00> : vector<128xf32>
    %398 = vector.multi_reduction <add>, %397, %cst_111 [1] : vector<128x8xf32> to vector<128xf32>
    %399 = vector.shape_cast %398 : vector<128xf32> to vector<128x1xf32>
    %400 = arith.fptosi %399 : vector<128x1xf32> to vector<128x1xi32>
    %401 = vector.broadcast %362 : vector<1x8xf32> to vector<128x8xf32>
    %402 = arith.mulf %379, %401 : vector<128x8xf32>
    %cst_112 = arith.constant dense<0.000000e+00> : vector<128xf32>
    %403 = vector.multi_reduction <add>, %402, %cst_112 [1] : vector<128x8xf32> to vector<128xf32>
    %404 = vector.shape_cast %403 : vector<128xf32> to vector<128x1xf32>
    %405 = tpu.iota {dimensions = array<i32: 1>} : vector<128x128xi32>
    %406 = vector.broadcast %400 : vector<128x1xi32> to vector<128x128xi32>
    %407 = arith.cmpi eq, %405, %406 : vector<128x128xi32>
    %408 = vector.broadcast %366 : vector<128x1xi1> to vector<128x128xi1>
    %409 = arith.andi %407, %408 : vector<128x128xi1>
    %cst_113 = arith.constant 0.000000e+00 : f32
    %410 = vector.shape_cast %404 : vector<128x1xf32> to vector<128x1xf32>
    %411 = vector.broadcast %410 : vector<128x1xf32> to vector<128x128xf32>
    %412 = vector.broadcast %cst_113 : f32 to vector<128x128xf32>
    %413 = arith.select %409, %411, %412 : vector<128x128xi1>, vector<128x128xf32>
    %c80_i32 = arith.constant 80 : i32
    %414 = vector.broadcast %c80_i32 : i32 to vector<128x128xi32>
    %415 = arith.cmpi eq, %405, %414 : vector<128x128xi32>
    %416 = vector.shape_cast %383 : vector<128x1xf32> to vector<128x1xf32>
    %417 = vector.broadcast %416 : vector<128x1xf32> to vector<128x128xf32>
    %418 = arith.select %415, %417, %413 : vector<128x128xi1>, vector<128x128xf32>
    %c81_i32 = arith.constant 81 : i32
    %419 = vector.broadcast %c81_i32 : i32 to vector<128x128xi32>
    %420 = arith.cmpi eq, %405, %419 : vector<128x128xi32>
    %421 = vector.shape_cast %387 : vector<128x1xf32> to vector<128x1xf32>
    %422 = vector.broadcast %421 : vector<128x1xf32> to vector<128x128xf32>
    %423 = arith.select %420, %422, %418 : vector<128x128xi1>, vector<128x128xf32>
    %c82_i32 = arith.constant 82 : i32
    %424 = vector.broadcast %c82_i32 : i32 to vector<128x128xi32>
    %425 = arith.cmpi eq, %405, %424 : vector<128x128xi32>
    %426 = vector.shape_cast %391 : vector<128x1xf32> to vector<128x1xf32>
    %427 = vector.broadcast %426 : vector<128x1xf32> to vector<128x128xf32>
    %428 = arith.select %425, %427, %423 : vector<128x128xi1>, vector<128x128xf32>
    %c83_i32 = arith.constant 83 : i32
    %429 = vector.broadcast %c83_i32 : i32 to vector<128x128xi32>
    %430 = arith.cmpi eq, %405, %429 : vector<128x128xi32>
    %431 = vector.shape_cast %395 : vector<128x1xf32> to vector<128x1xf32>
    %432 = vector.broadcast %431 : vector<128x1xf32> to vector<128x128xf32>
    %433 = arith.select %430, %432, %428 : vector<128x128xi1>, vector<128x128xf32>
    %cst_114 = arith.constant 8.000000e+01 : f32
    %434 = vector.broadcast %cst_114 : f32 to vector<128x1xf32>
    %435 = arith.select %366, %399, %434 : vector<128x1xi1>, vector<128x1xf32>
    %c84_i32 = arith.constant 84 : i32
    %436 = vector.broadcast %c84_i32 : i32 to vector<128x128xi32>
    %437 = arith.cmpi eq, %405, %436 : vector<128x128xi32>
    %438 = vector.shape_cast %435 : vector<128x1xf32> to vector<128x1xf32>
    %439 = vector.broadcast %438 : vector<128x1xf32> to vector<128x128xf32>
    %440 = arith.select %437, %439, %433 : vector<128x128xi1>, vector<128x128xf32>
    %c85_i32 = arith.constant 85 : i32
    %441 = vector.broadcast %c85_i32 : i32 to vector<128x128xi32>
    %442 = arith.cmpi eq, %405, %441 : vector<128x128xi32>
    %443 = arith.extui %366 : vector<128x1xi1> to vector<128x1xi32>
    %444 = arith.sitofp %443 : vector<128x1xi32> to vector<128x1xf32>
    %445 = vector.shape_cast %444 : vector<128x1xf32> to vector<128x1xf32>
    %446 = vector.broadcast %445 : vector<128x1xf32> to vector<128x128xf32>
    %447 = arith.select %442, %446, %440 : vector<128x128xi1>, vector<128x128xf32>
    %c86_i32 = arith.constant 86 : i32
    %448 = vector.broadcast %c86_i32 : i32 to vector<128x128xi32>
    %449 = arith.cmpi eq, %405, %448 : vector<128x128xi32>
    %450 = arith.sitofp %375 : vector<128x1xi32> to vector<128x1xf32>
    %451 = vector.shape_cast %450 : vector<128x1xf32> to vector<128x1xf32>
    %452 = vector.broadcast %451 : vector<128x1xf32> to vector<128x128xf32>
    %453 = arith.select %449, %452, %447 : vector<128x128xi1>, vector<128x128xf32>
    %c0_115 = arith.constant 0 : index
    %c0_116 = arith.constant 0 : index
    %c0_117 = arith.constant 0 : index
    %454 = vector.load %arg6[%c0_115, %c0_116, %c0_117] : memref<1x128x128xf32, #tpu.memory_space<vmem>>, vector<1x128x128xf32>
    %455 = vector.shape_cast %454 : vector<1x128x128xf32> to vector<128x128xf32>
    %456 = vector.shape_cast %453 : vector<128x128xf32> to vector<1x128x128xf32>
    tpu.vector_store %arg6[%c0_115, %c0_116, %c0_117], %456 {strides = array<i32>} : memref<1x128x128xf32, #tpu.memory_space<vmem>>, vector<1x128x128xf32>,
    return
  }
  func.func @transform_0(%arg0: i32) -> (i32, i32, i32) {
    %c0_i32 = arith.constant 0 : i32
    %c0_i32_0 = arith.constant 0 : i32
    %c0_i32_1 = arith.constant 0 : i32
    return %arg0, %c0_i32, %c0_i32_0 : i32, i32, i32
  }
  func.func @transform_1(%arg0: i32) -> (i32, i32, i32) {
    %c0_i32 = arith.constant 0 : i32
    %c0_i32_0 = arith.constant 0 : i32
    %c0_i32_1 = arith.constant 0 : i32
    return %arg0, %c0_i32, %c0_i32_0 : i32, i32, i32
  }
  func.func @transform_2(%arg0: i32) -> (i32, i32, i32) {
    %c0_i32 = arith.constant 0 : i32
    %c0_i32_0 = arith.constant 0 : i32
    %c0_i32_1 = arith.constant 0 : i32
    return %arg0, %c0_i32, %c0_i32_0 : i32, i32, i32
  }
  func.func @transform_3(%arg0: i32) -> (i32, i32, i32) {
    %c0_i32 = arith.constant 0 : i32
    %c0_i32_0 = arith.constant 0 : i32
    %c0_i32_1 = arith.constant 0 : i32
    return %arg0, %c0_i32, %c0_i32_0 : i32, i32, i32
  }
  func.func @transform_4(%arg0: i32) -> (i32, i32, i32) {
    %c0_i32 = arith.constant 0 : i32
    %c0_i32_0 = arith.constant 0 : i32
    %c0_i32_1 = arith.constant 0 : i32
    return %arg0, %c0_i32, %c0_i32_0 : i32, i32, i32
  }
  func.func @transform_5(%arg0: i32) -> (i32, i32, i32) {
    %c0_i32 = arith.constant 0 : i32
    %c0_i32_0 = arith.constant 0 : i32
    %c0_i32_1 = arith.constant 0 : i32
    return %arg0, %c0_i32, %c0_i32_0 : i32, i32, i32
  }
}

</mosaic_0001>

<llo_original>
// kernel: tpu_custom_call.1
$region0: #{tpu_custom_call.1}
  #allocation0 [shape = 'u32[]', space=smem, size = 0x4, offset = 0x4, fixed_abs, tag = 'smem constant byte address 0x4 - core index']
  #allocation1 [shape = 'u32[144,128]{1,0:T(1,128)}', space=vmem, size = 0x12000, scoped, tag = 'internal scratch']
  %s0 = inlined_call_operand.vmem [shape: f32[2,128,80], index: 0, kind: input, shape index: {}]
  %s1 = inlined_call_operand.vmem [shape: f32[2,128,4], index: 1, kind: input, shape index: {}]
  %s2 = inlined_call_operand.vmem [shape: f32[2,1,8], index: 2, kind: input, shape index: {}]
  %s3 = inlined_call_operand.vmem [shape: f32[2,4,8], index: 3, kind: input, shape index: {}]
  %s4 = inlined_call_operand.vmem [shape: f32[2,1,8], index: 4, kind: input, shape index: {}]
  %s5 = inlined_call_operand.hbm [shape: f32[2,128,128], index: 5, kind: output, shape index: {}]
  %s6 = sld [smem:[#allocation0]]
  $region53: #{tpu_custom_call.1} parent=0
    _
  %s8 = ssub.s32 1, %s6
  %s9 = scalar_select 0, %s8, %s6
  $region1: #{tpu_custom_call.1} parent=0
    #allocation2 [shape = 'u8[131072]{0}', space=vmem, size = 0x20000, scoped, tag = 'output window, operand 0']
    #allocation3 [shape = 's32[2]{0}', space=sflag, size = 0x8, scoped, tag = 'scoped memory for tpu_custom_call.1']
    %10 = vsyncpa [#allocation3], 0
    %s11 = scalar_lea.sflag [#allocation3], 1
    %12 = vsyncpa %s11, 0
    loop: start=0, step=1, limit=4
    $region2: #{tpu_custom_call.1} parent=1 // loop_pre_header
      _
    $region3: #{tpu_custom_call.1} parent=1 // loop_header
      %s14 = sphi 0, %s18
      %p15 = scmp.ge.s32.totalorder %s14, 4
      %s24 = sphi 0, %s26
      %s27 = sphi 0, %s24
      %s28 = sphi 0, %s27
      %s44 = sphi 0, %s28
      %s50 = sphi 0, %s52
      %s53 = sphi 0, %s50
      %s54 = sphi 0, %s53
      %s70 = sphi 0, %s54
      %s76 = sphi 0, %s78
      %s79 = sphi 0, %s76
      %s80 = sphi 0, %s79
      %s96 = sphi 0, %s80
      %s102 = sphi 0, %s104
      %s105 = sphi 0, %s102
      %s106 = sphi 0, %s105
      %s122 = sphi 0, %s106
      %s128 = sphi 0, %s130
      %s131 = sphi 0, %s128
      %s132 = sphi 0, %s131
      %s148 = sphi 0, %s132
      %s154 = sphi 0, %s156
      %s157 = sphi 0, %s154
      %s158 = sphi 0, %s157
      %s174 = sphi 0, %s158
    $region4: #{tpu_custom_call.1} parent=1 // loop_header_branch
      %17 = sbr.rel (%p15) target = $region8
    $region5: #{tpu_custom_call.1} parent=1 // loop_body
      %s19 = ssub.s32 %s14, 1
      %s20 = ssub.s32 %s14, 2
      %s21 = sadd.s32 %s14, 1
      %s22 = ssub.s32 %s14, %s21
      %p23 = scmp.eq.s32.totalorder %s22, 0
      %s25 = sadd.s32 %s24, 1
      %s26 = scalar_select %p23, %s24, %s25
      %p29 = pneg %p23
      %p30 = scmp.eq.s32.totalorder %s14, 1
      %p31 = por %p29, %p30
      %p32 = scmp.ne.s32.totalorder %s24, %s27
      %p33 = scmp.eq.s32.totalorder %s14, 0
      %p34 = por %p32, %p33
      %p35 = scmp.ne.s32.totalorder %s24, %s27
      %p36 = scmp.eq.s32.totalorder %s19, 1
      %p37 = por %p35, %p36
      %p38 = scmp.ne.s32.totalorder %s27, %s28
      %p39 = scmp.eq.s32.totalorder %s19, 0
      %p40 = por %p38, %p39
      %p41 = scmp.ne.s32.totalorder %s27, %s28
      %p42 = scmp.eq.s32.totalorder %s20, 1
      %p43 = por %p41, %p42
      %p45 = scmp.ne.s32.totalorder %s28, %s44
      %p46 = scmp.eq.s32.totalorder %s20, 0
      %p47 = por %p45, %p46
      %s48 = ssub.s32 %s14, %s21
      %p49 = scmp.eq.s32.totalorder %s48, 0
      %s51 = sadd.s32 %s50, 1
      %s52 = scalar_select %p49, %s50, %s51
      %p55 = pneg %p49
      %p56 = scmp.eq.s32.totalorder %s14, 1
      %p57 = por %p55, %p56
      %p58 = scmp.ne.s32.totalorder %s50, %s53
      %p59 = scmp.eq.s32.totalorder %s14, 0
      %p60 = por %p58, %p59
      %p61 = scmp.ne.s32.totalorder %s50, %s53
      %p62 = scmp.eq.s32.totalorder %s19, 1
      %p63 = por %p61, %p62
      %p64 = scmp.ne.s32.totalorder %s53, %s54
      %p65 = scmp.eq.s32.totalorder %s19, 0
      %p66 = por %p64, %p65
      %p67 = scmp.ne.s32.totalorder %s53, %s54
      %p68 = scmp.eq.s32.totalorder %s20, 1
      %p69 = por %p67, %p68
      %p71 = scmp.ne.s32.totalorder %s54, %s70
      %p72 = scmp.eq.s32.totalorder %s20, 0
      %p73 = por %p71, %p72
      %s74 = ssub.s32 %s14, %s21
      %p75 = scmp.eq.s32.totalorder %s74, 0
      %s77 = sadd.s32 %s76, 1
      %s78 = scalar_select %p75, %s76, %s77
      %p81 = pneg %p75
      %p82 = scmp.eq.s32.totalorder %s14, 1
      %p83 = por %p81, %p82
      %p84 = scmp.ne.s32.totalorder %s76, %s79
      %p85 = scmp.eq.s32.totalorder %s14, 0
      %p86 = por %p84, %p85
      %p87 = scmp.ne.s32.totalorder %s76, %s79
      %p88 = scmp.eq.s32.totalorder %s19, 1
      %p89 = por %p87, %p88
      %p90 = scmp.ne.s32.totalorder %s79, %s80
      %p91 = scmp.eq.s32.totalorder %s19, 0
      %p92 = por %p90, %p91
      %p93 = scmp.ne.s32.totalorder %s79, %s80
      %p94 = scmp.eq.s32.totalorder %s20, 1
      %p95 = por %p93, %p94
      %p97 = scmp.ne.s32.totalorder %s80, %s96
      %p98 = scmp.eq.s32.totalorder %s20, 0
      %p99 = por %p97, %p98
      %s100 = ssub.s32 %s14, %s21
      %p101 = scmp.eq.s32.totalorder %s100, 0
      %s103 = sadd.s32 %s102, 1
      %s104 = scalar_select %p101, %s102, %s103
      %p107 = pneg %p101
      %p108 = scmp.eq.s32.totalorder %s14, 1
      %p109 = por %p107, %p108
      %p110 = scmp.ne.s32.totalorder %s102, %s105
      %p111 = scmp.eq.s32.totalorder %s14, 0
      %p112 = por %p110, %p111
      %p113 = scmp.ne.s32.totalorder %s102, %s105
      %p114 = scmp.eq.s32.totalorder %s19, 1
      %p115 = por %p113, %p114
      %p116 = scmp.ne.s32.totalorder %s105, %s106
      %p117 = scmp.eq.s32.totalorder %s19, 0
      %p118 = por %p116, %p117
      %p119 = scmp.ne.s32.totalorder %s105, %s106
      %p120 = scmp.eq.s32.totalorder %s20, 1
      %p121 = por %p119, %p120
      %p123 = scmp.ne.s32.totalorder %s106, %s122
      %p124 = scmp.eq.s32.totalorder %s20, 0
      %p125 = por %p123, %p124
      %s126 = ssub.s32 %s14, %s21
      %p127 = scmp.eq.s32.totalorder %s126, 0
      %s129 = sadd.s32 %s128, 1
      %s130 = scalar_select %p127, %s128, %s129
      %p133 = pneg %p127
      %p134 = scmp.eq.s32.totalorder %s14, 1
      %p135 = por %p133, %p134
      %p136 = scmp.ne.s32.totalorder %s128, %s131
      %p137 = scmp.eq.s32.totalorder %s14, 0
      %p138 = por %p136, %p137
      %p139 = scmp.ne.s32.totalorder %s128, %s131
      %p140 = scmp.eq.s32.totalorder %s19, 1
      %p141 = por %p139, %p140
      %p142 = scmp.ne.s32.totalorder %s131, %s132
      %p143 = scmp.eq.s32.totalorder %s19, 0
      %p144 = por %p142, %p143
      %p145 = scmp.ne.s32.totalorder %s131, %s132
      %p146 = scmp.eq.s32.totalorder %s20, 1
      %p147 = por %p145, %p146
      %p149 = scmp.ne.s32.totalorder %s132, %s148
      %p150 = scmp.eq.s32.totalorder %s20, 0
      %p151 = por %p149, %p150
      %s152 = ssub.s32 %s14, %s21
      %p153 = scmp.eq.s32.totalorder %s152, 0
      %s155 = sadd.s32 %s154, 1
      %s156 = scalar_select %p153, %s154, %s155
      %p159 = pneg %p153
      %p160 = scmp.eq.s32.totalorder %s14, 1
      %p161 = por %p159, %p160
      %p162 = scmp.ne.s32.totalorder %s154, %s157
      %p163 = scmp.eq.s32.totalorder %s14, 0
      %p164 = por %p162, %p163
      %p165 = scmp.ne.s32.totalorder %s154, %s157
      %p166 = scmp.eq.s32.totalorder %s19, 1
      %p167 = por %p165, %p166
      %p168 = scmp.ne.s32.totalorder %s157, %s158
      %p169 = scmp.eq.s32.totalorder %s19, 0
      %p170 = por %p168, %p169
      %p171 = scmp.ne.s32.totalorder %s157, %s158
      %p172 = scmp.eq.s32.totalorder %s20, 1
      %p173 = por %p171, %p172
      %p175 = scmp.ne.s32.totalorder %s158, %s174
      %p176 = scmp.eq.s32.totalorder %s20, 0
      %p177 = por %p175, %p176
      %p178 = scmp.le.s32.totalorder 1, %s14
      %p179 = scmp.lt.s32.totalorder %s14, 3
      %p180 = pnand %p178, %p179
      %p181 = pneg %p180
      // Predicated region
      $region9: #{tpu_custom_call.1} parent=5 // pred_check
        _
      $region10: #{tpu_custom_call.1} parent=5 // pred_check_branch
        %183 = sbr.rel (%p180) target = $region12
      $region11: #{tpu_custom_call.1} parent=5 // pred_region
        %s184 = ssub.s32 %s14, 1
      $region12: #{tpu_custom_call.1} parent=5 // pred_fallthru
        _
      %p185 = scmp.lt.s32.totalorder %s14, 2
      // Predicated region
      $region13: #{tpu_custom_call.1} parent=5 // pred_check
        %p186 = pneg %p185
      $region14: #{tpu_custom_call.1} parent=5 // pred_check_branch
        %188 = sbr.rel (%p186) target = $region16
      $region15: #{tpu_custom_call.1} parent=5 // pred_region
        // Predicated region
        $region17: #{tpu_custom_call.1} parent=15 // pred_check
          %p189 = pneg %p34
        $region18: #{tpu_custom_call.1} parent=15 // pred_check_branch
          %191 = sbr.rel (%p189) target = $region20
        $region19: #{tpu_custom_call.1} parent=15 // pred_region
          %p192 = scmp.lt.s32.totalorder %s14, 1
          %s193 = scalar_select %p192, %s14, 1
          %s194 = smul.addr %s193, 16
          %s195 = smul.addr %s194, 8
          %s196 = scalar_lea.vmem %s0, %s195
        $region20: #{tpu_custom_call.1} parent=15 // pred_fallthru
          _
        // Predicated region
        $region21: #{tpu_custom_call.1} parent=15 // pred_check
          %p197 = pneg %p60
        $region22: #{tpu_custom_call.1} parent=15 // pred_check_branch
          %199 = sbr.rel (%p197) target = $region24
        $region23: #{tpu_custom_call.1} parent=15 // pred_region
          %p200 = scmp.lt.s32.totalorder %s14, 1
          %s201 = scalar_select %p200, %s14, 1
          %s202 = smul.addr %s201, 16
          %s203 = smul.addr %s202, 8
          %s204 = scalar_lea.vmem %s1, %s203
        $region24: #{tpu_custom_call.1} parent=15 // pred_fallthru
          _
        // Predicated region
        $region25: #{tpu_custom_call.1} parent=15 // pred_check
          %p205 = pneg %p86
        $region26: #{tpu_custom_call.1} parent=15 // pred_check_branch
          %207 = sbr.rel (%p205) target = $region28
        $region27: #{tpu_custom_call.1} parent=15 // pred_region
          %p208 = scmp.lt.s32.totalorder %s14, 1
          %s209 = scalar_select %p208, %s14, 1
          %s210 = scalar_lea.vmem %s2, %s209
        $region28: #{tpu_custom_call.1} parent=15 // pred_fallthru
          _
        // Predicated region
        $region29: #{tpu_custom_call.1} parent=15 // pred_check
          %p211 = pneg %p112
        $region30: #{tpu_custom_call.1} parent=15 // pred_check_branch
          %213 = sbr.rel (%p211) target = $region32
        $region31: #{tpu_custom_call.1} parent=15 // pred_region
          %p214 = scmp.lt.s32.totalorder %s14, 1
          %s215 = scalar_select %p214, %s14, 1
          %s216 = smul.addr %s215, 4
          %s217 = scalar_lea.vmem %s3, %s216
        $region32: #{tpu_custom_call.1} parent=15 // pred_fallthru
          _
        // Predicated region
        $region33: #{tpu_custom_call.1} parent=15 // pred_check
          %p218 = pneg %p138
        $region34: #{tpu_custom_call.1} parent=15 // pred_check_branch
          %220 = sbr.rel (%p218) target = $region36
        $region35: #{tpu_custom_call.1} parent=15 // pred_region
          %p221 = scmp.lt.s32.totalorder %s14, 1
          %s222 = scalar_select %p221, %s14, 1
          %s223 = scalar_lea.vmem %s4, %s222
        $region36: #{tpu_custom_call.1} parent=15 // pred_fallthru
          _
      $region16: #{tpu_custom_call.1} parent=5 // pred_fallthru
        _
      %p224 = scmp.le.s32.totalorder 1, %s14
      %p225 = scmp.lt.s32.totalorder %s14, 3
      %p226 = pnand %p224, %p225
      %p227 = pneg %p226
      // Predicated region
      $region37: #{tpu_custom_call.1} parent=5 // pred_check
        _
      $region38: #{tpu_custom_call.1} parent=5 // pred_check_branch
        %229 = sbr.rel (%p226) target = $region40
      $region39: #{tpu_custom_call.1} parent=5 // pred_region
        %s230 = ssub.s32 %s14, 1
        %p231 = scmp.lt.s32.totalorder %s19, 1
        %s232 = scalar_select %p231, %s19, 1
        %s233 = smul.addr %s232, 16
        %s234 = smul.addr %s233, 8
        %s235 = scalar_lea.vmem %s0, %s234
        %p236 = pneg %p40
        %p237 = pneg %p37
        %p238 = scmp.lt.s32.totalorder %s19, 1
        %s239 = scalar_select %p238, %s19, 1
        %s240 = smul.addr %s239, 16
        %s241 = smul.addr %s240, 8
        %s242 = scalar_lea.vmem %s1, %s241
        %p243 = pneg %p66
        %p244 = pneg %p63
        %p245 = scmp.lt.s32.totalorder %s19, 1
        %s246 = scalar_select %p245, %s19, 1
        %s247 = scalar_lea.vmem %s2, %s246
        %p248 = pneg %p92
        %p249 = pneg %p89
        %p250 = scmp.lt.s32.totalorder %s19, 1
        %s251 = scalar_select %p250, %s19, 1
        %s252 = smul.addr %s251, 4
        %s253 = scalar_lea.vmem %s3, %s252
        %p254 = pneg %p118
        %p255 = pneg %p115
        %p256 = scmp.lt.s32.totalorder %s19, 1
        %s257 = scalar_select %p256, %s19, 1
        %s258 = scalar_lea.vmem %s4, %s257
        %p259 = pneg %p144
        %p260 = pneg %p141
        %p261 = pneg %p170
        %p262 = pneg %p167
        %s263 = sand.u32 %s157, 1
        %s264 = scalar_lea.sflag [#allocation3], %s263
        %s265 = sand.u32 %s157, 1
        %s266 = smul.addr %s265, 128
        %s267 = scalar_lea.vmem [#allocation2], %s266
        %p268 = scmp.lt.s32.totalorder %s19, 1
        %s269 = scalar_select %p268, %s19, 1
        %s270 = smul.addr %s269, 16
        %s271 = smul.addr %s270, 8
        %s272 = scalar_lea.vmem %s0, %s271
        %p273 = scmp.lt.s32.totalorder %s19, 1
        %s274 = scalar_select %p273, %s19, 1
        %s275 = smul.addr %s274, 16
        %s276 = smul.addr %s275, 8
        %s277 = scalar_lea.vmem %s1, %s276
        %p278 = scmp.lt.s32.totalorder %s19, 1
        %s279 = scalar_select %p278, %s19, 1
        %s280 = scalar_lea.vmem %s2, %s279
        %p281 = scmp.lt.s32.totalorder %s19, 1
        %s282 = scalar_select %p281, %s19, 1
        %s283 = smul.addr %s282, 4
        %s284 = scalar_lea.vmem %s3, %s283
        %p285 = scmp.lt.s32.totalorder %s19, 1
        %s286 = scalar_select %p285, %s19, 1
        %s287 = scalar_lea.vmem %s4, %s286
        %v288 = vld [vmem:[%s272] sm:$0xff]
        %v289 = vld [vmem:[%s272 + $0x8] sm:$0xff]
        %v290 = vld [vmem:[%s272 + $0x10] sm:$0xff]
        %v291 = vld [vmem:[%s272 + $0x18] sm:$0xff]
        %v292 = vld [vmem:[%s272 + $0x20] sm:$0xff]
        %v293 = vld [vmem:[%s272 + $0x28] sm:$0xff]
        %v294 = vld [vmem:[%s272 + $0x30] sm:$0xff]
        %v295 = vld [vmem:[%s272 + $0x38] sm:$0xff]
        %v296 = vld [vmem:[%s272 + $0x40] sm:$0xff]
        %v297 = vld [vmem:[%s272 + $0x48] sm:$0xff]
        %v298 = vld [vmem:[%s272 + $0x50] sm:$0xff]
        %v299 = vld [vmem:[%s272 + $0x58] sm:$0xff]
        %v300 = vld [vmem:[%s272 + $0x60] sm:$0xff]
        %v301 = vld [vmem:[%s272 + $0x68] sm:$0xff]
        %v302 = vld [vmem:[%s272 + $0x70] sm:$0xff]
        %v303 = vld [vmem:[%s272 + $0x78] sm:$0xff]
        %v304 = vld [vmem:[%s277] sm:$0xff]
        %v305 = vld [vmem:[%s277 + $0x8] sm:$0xff]
        %v306 = vld [vmem:[%s277 + $0x10] sm:$0xff]
        %v307 = vld [vmem:[%s277 + $0x18] sm:$0xff]
        %v308 = vld [vmem:[%s277 + $0x20] sm:$0xff]
        %v309 = vld [vmem:[%s277 + $0x28] sm:$0xff]
        %v310 = vld [vmem:[%s277 + $0x30] sm:$0xff]
        %v311 = vld [vmem:[%s277 + $0x38] sm:$0xff]
        %v312 = vld [vmem:[%s277 + $0x40] sm:$0xff]
        %v313 = vld [vmem:[%s277 + $0x48] sm:$0xff]
        %v314 = vld [vmem:[%s277 + $0x50] sm:$0xff]
        %v315 = vld [vmem:[%s277 + $0x58] sm:$0xff]
        %v316 = vld [vmem:[%s277 + $0x60] sm:$0xff]
        %v317 = vld [vmem:[%s277 + $0x68] sm:$0xff]
        %v318 = vld [vmem:[%s277 + $0x70] sm:$0xff]
        %v319 = vld [vmem:[%s277 + $0x78] sm:$0xff]
        %v320 = vld [vmem:[%s280] sm:$0x1]
        %v321 = vld [vmem:[%s284] sm:$0xf]
        %v322 = vld [vmem:[%s287] sm:$0x1]
        %v323 = vlaneseq
        %v324 = vshrl.u32 %v323, 7
        %v325 = vsub.s32 0, %v324
        %v326 = vrot.slane %v321, %v325
        %328 = vset.pattern.permute.xlu0 0
        %329 = vperm.xlu0 %328, %v304
        %v330 = vpop.permute.xlu0 %329
        %333 = vset.pattern.permute.xlu0 0
        %334 = vperm.xlu0 %333, %v305
        %v335 = vpop.permute.xlu0 %334
        %338 = vset.pattern.permute.xlu0 0
        %339 = vperm.xlu0 %338, %v306
        %v340 = vpop.permute.xlu0 %339
        %343 = vset.pattern.permute.xlu0 0
        %344 = vperm.xlu0 %343, %v307
        %v345 = vpop.permute.xlu0 %344
        %348 = vset.pattern.permute.xlu0 0
        %349 = vperm.xlu0 %348, %v308
        %v350 = vpop.permute.xlu0 %349
        %353 = vset.pattern.permute.xlu0 0
        %354 = vperm.xlu0 %353, %v309
        %v355 = vpop.permute.xlu0 %354
        %358 = vset.pattern.permute.xlu0 0
        %359 = vperm.xlu0 %358, %v310
        %v360 = vpop.permute.xlu0 %359
        %363 = vset.pattern.permute.xlu0 0
        %364 = vperm.xlu0 %363, %v311
        %v365 = vpop.permute.xlu0 %364
        %368 = vset.pattern.permute.xlu0 0
        %369 = vperm.xlu0 %368, %v312
        %v370 = vpop.permute.xlu0 %369
        %373 = vset.pattern.permute.xlu0 0
        %374 = vperm.xlu0 %373, %v313
        %v375 = vpop.permute.xlu0 %374
        %378 = vset.pattern.permute.xlu0 0
        %379 = vperm.xlu0 %378, %v314
        %v380 = vpop.permute.xlu0 %379
        %383 = vset.pattern.permute.xlu0 0
        %384 = vperm.xlu0 %383, %v315
        %v385 = vpop.permute.xlu0 %384
        %388 = vset.pattern.permute.xlu0 0
        %389 = vperm.xlu0 %388, %v316
        %v390 = vpop.permute.xlu0 %389
        %393 = vset.pattern.permute.xlu0 0
        %394 = vperm.xlu0 %393, %v317
        %v395 = vpop.permute.xlu0 %394
        %398 = vset.pattern.permute.xlu0 0
        %399 = vperm.xlu0 %398, %v318
        %v400 = vpop.permute.xlu0 %399
        %403 = vset.pattern.permute.xlu0 0
        %404 = vperm.xlu0 %403, %v319
        %v405 = vpop.permute.xlu0 %404
        %v407 = vmax.f32 %v326, %v330
        %v408 = vmax.f32 %v326, %v335
        %v409 = vmax.f32 %v326, %v340
        %v410 = vmax.f32 %v326, %v345
        %v411 = vmax.f32 %v326, %v350
        %v412 = vmax.f32 %v326, %v355
        %v413 = vmax.f32 %v326, %v360
        %v414 = vmax.f32 %v326, %v365
        %v415 = vmax.f32 %v326, %v370
        %v416 = vmax.f32 %v326, %v375
        %v417 = vmax.f32 %v326, %v380
        %v418 = vmax.f32 %v326, %v385
        %v419 = vmax.f32 %v326, %v390
        %v420 = vmax.f32 %v326, %v395
        %v421 = vmax.f32 %v326, %v400
        %v422 = vmax.f32 %v326, %v405
        %v423 = vlaneseq
        %v424 = vshrl.u32 %v423, 7
        %v425 = vsub.s32 1, %v424
        %v426 = vrot.slane %v321, %v425
        %427 = vset.pattern.permute.xlu0 1
        %428 = vperm.xlu0 %427, %v304
        %v429 = vpop.permute.xlu0 %428
        %431 = vset.pattern.permute.xlu0 1
        %432 = vperm.xlu0 %431, %v305
        %v433 = vpop.permute.xlu0 %432
        %435 = vset.pattern.permute.xlu0 1
        %436 = vperm.xlu0 %435, %v306
        %v437 = vpop.permute.xlu0 %436
        %439 = vset.pattern.permute.xlu0 1
        %440 = vperm.xlu0 %439, %v307
        %v441 = vpop.permute.xlu0 %440
        %443 = vset.pattern.permute.xlu0 1
        %444 = vperm.xlu0 %443, %v308
        %v445 = vpop.permute.xlu0 %444
        %447 = vset.pattern.permute.xlu0 1
        %448 = vperm.xlu0 %447, %v309
        %v449 = vpop.permute.xlu0 %448
        %451 = vset.pattern.permute.xlu0 1
        %452 = vperm.xlu0 %451, %v310
        %v453 = vpop.permute.xlu0 %452
        %455 = vset.pattern.permute.xlu0 1
        %456 = vperm.xlu0 %455, %v311
        %v457 = vpop.permute.xlu0 %456
        %459 = vset.pattern.permute.xlu0 1
        %460 = vperm.xlu0 %459, %v312
        %v461 = vpop.permute.xlu0 %460
        %463 = vset.pattern.permute.xlu0 1
        %464 = vperm.xlu0 %463, %v313
        %v465 = vpop.permute.xlu0 %464
        %467 = vset.pattern.permute.xlu0 1
        %468 = vperm.xlu0 %467, %v314
        %v469 = vpop.permute.xlu0 %468
        %471 = vset.pattern.permute.xlu0 1
        %472 = vperm.xlu0 %471, %v315
        %v473 = vpop.permute.xlu0 %472
        %475 = vset.pattern.permute.xlu0 1
        %476 = vperm.xlu0 %475, %v316
        %v477 = vpop.permute.xlu0 %476
        %479 = vset.pattern.permute.xlu0 1
        %480 = vperm.xlu0 %479, %v317
        %v481 = vpop.permute.xlu0 %480
        %483 = vset.pattern.permute.xlu0 1
        %484 = vperm.xlu0 %483, %v318
        %v485 = vpop.permute.xlu0 %484
        %487 = vset.pattern.permute.xlu0 1
        %488 = vperm.xlu0 %487, %v319
        %v489 = vpop.permute.xlu0 %488
        %v491 = vmax.f32 %v426, %v429
        %v492 = vmax.f32 %v426, %v433
        %v493 = vmax.f32 %v426, %v437
        %v494 = vmax.f32 %v426, %v441
        %v495 = vmax.f32 %v426, %v445
        %v496 = vmax.f32 %v426, %v449
        %v497 = vmax.f32 %v426, %v453
        %v498 = vmax.f32 %v426, %v457
        %v499 = vmax.f32 %v426, %v461
        %v500 = vmax.f32 %v426, %v465
        %v501 = vmax.f32 %v426, %v469
        %v502 = vmax.f32 %v426, %v473
        %v503 = vmax.f32 %v426, %v477
        %v504 = vmax.f32 %v426, %v481
        %v505 = vmax.f32 %v426, %v485
        %v506 = vmax.f32 %v426, %v489
        %v507 = vlaneseq
        %v508 = vshrl.u32 %v507, 7
        %v509 = vsub.s32 2, %v508
        %v510 = vrot.slane %v321, %v509
        %511 = vset.pattern.permute.xlu0 2
        %512 = vperm.xlu0 %511, %v304
        %v513 = vpop.permute.xlu0 %512
        %515 = vset.pattern.permute.xlu0 2
        %516 = vperm.xlu0 %515, %v305
        %v517 = vpop.permute.xlu0 %516
        %519 = vset.pattern.permute.xlu0 2
        %520 = vperm.xlu0 %519, %v306
        %v521 = vpop.permute.xlu0 %520
        %523 = vset.pattern.permute.xlu0 2
        %524 = vperm.xlu0 %523, %v307
        %v525 = vpop.permute.xlu0 %524
        %527 = vset.pattern.permute.xlu0 2
        %528 = vperm.xlu0 %527, %v308
        %v529 = vpop.permute.xlu0 %528
        %531 = vset.pattern.permute.xlu0 2
        %532 = vperm.xlu0 %531, %v309
        %v533 = vpop.permute.xlu0 %532
        %535 = vset.pattern.permute.xlu0 2
        %536 = vperm.xlu0 %535, %v310
        %v537 = vpop.permute.xlu0 %536
        %539 = vset.pattern.permute.xlu0 2
        %540 = vperm.xlu0 %539, %v311
        %v541 = vpop.permute.xlu0 %540
        %543 = vset.pattern.permute.xlu0 2
        %544 = vperm.xlu0 %543, %v312
        %v545 = vpop.permute.xlu0 %544
        %547 = vset.pattern.permute.xlu0 2
        %548 = vperm.xlu0 %547, %v313
        %v549 = vpop.permute.xlu0 %548
        %551 = vset.pattern.permute.xlu0 2
        %552 = vperm.xlu0 %551, %v314
        %v553 = vpop.permute.xlu0 %552
        %555 = vset.pattern.permute.xlu0 2
        %556 = vperm.xlu0 %555, %v315
        %v557 = vpop.permute.xlu0 %556
        %559 = vset.pattern.permute.xlu0 2
        %560 = vperm.xlu0 %559, %v316
        %v561 = vpop.permute.xlu0 %560
        %563 = vset.pattern.permute.xlu0 2
        %564 = vperm.xlu0 %563, %v317
        %v565 = vpop.permute.xlu0 %564
        %567 = vset.pattern.permute.xlu0 2
        %568 = vperm.xlu0 %567, %v318
        %v569 = vpop.permute.xlu0 %568
        %571 = vset.pattern.permute.xlu0 2
        %572 = vperm.xlu0 %571, %v319
        %v573 = vpop.permute.xlu0 %572
        %v575 = vmin.f32 %v510, %v513
        %v576 = vmin.f32 %v510, %v517
        %v577 = vmin.f32 %v510, %v521
        %v578 = vmin.f32 %v510, %v525
        %v579 = vmin.f32 %v510, %v529
        %v580 = vmin.f32 %v510, %v533
        %v581 = vmin.f32 %v510, %v537
        %v582 = vmin.f32 %v510, %v541
        %v583 = vmin.f32 %v510, %v545
        %v584 = vmin.f32 %v510, %v549
        %v585 = vmin.f32 %v510, %v553
        %v586 = vmin.f32 %v510, %v557
        %v587 = vmin.f32 %v510, %v561
        %v588 = vmin.f32 %v510, %v565
        %v589 = vmin.f32 %v510, %v569
        %v590 = vmin.f32 %v510, %v573
        %v591 = vlaneseq
        %v592 = vshrl.u32 %v591, 7
        %v593 = vsub.s32 3, %v592
        %v594 = vrot.slane %v321, %v593
        %595 = vset.pattern.permute.xlu0 3
        %596 = vperm.xlu0 %595, %v304
        %v597 = vpop.permute.xlu0 %596
        %599 = vset.pattern.permute.xlu0 3
        %600 = vperm.xlu0 %599, %v305
        %v601 = vpop.permute.xlu0 %600
        %603 = vset.pattern.permute.xlu0 3
        %604 = vperm.xlu0 %603, %v306
        %v605 = vpop.permute.xlu0 %604
        %607 = vset.pattern.permute.xlu0 3
        %608 = vperm.xlu0 %607, %v307
        %v609 = vpop.permute.xlu0 %608
        %611 = vset.pattern.permute.xlu0 3
        %612 = vperm.xlu0 %611, %v308
        %v613 = vpop.permute.xlu0 %612
        %615 = vset.pattern.permute.xlu0 3
        %616 = vperm.xlu0 %615, %v309
        %v617 = vpop.permute.xlu0 %616
        %619 = vset.pattern.permute.xlu0 3
        %620 = vperm.xlu0 %619, %v310
        %v621 = vpop.permute.xlu0 %620
        %623 = vset.pattern.permute.xlu0 3
        %624 = vperm.xlu0 %623, %v311
        %v625 = vpop.permute.xlu0 %624
        %627 = vset.pattern.permute.xlu0 3
        %628 = vperm.xlu0 %627, %v312
        %v629 = vpop.permute.xlu0 %628
        %631 = vset.pattern.permute.xlu0 3
        %632 = vperm.xlu0 %631, %v313
        %v633 = vpop.permute.xlu0 %632
        %635 = vset.pattern.permute.xlu0 3
        %636 = vperm.xlu0 %635, %v314
        %v637 = vpop.permute.xlu0 %636
        %639 = vset.pattern.permute.xlu0 3
        %640 = vperm.xlu0 %639, %v315
        %v641 = vpop.permute.xlu0 %640
        %643 = vset.pattern.permute.xlu0 3
        %644 = vperm.xlu0 %643, %v316
        %v645 = vpop.permute.xlu0 %644
        %647 = vset.pattern.permute.xlu0 3
        %648 = vperm.xlu0 %647, %v317
        %v649 = vpop.permute.xlu0 %648
        %651 = vset.pattern.permute.xlu0 3
        %652 = vperm.xlu0 %651, %v318
        %v653 = vpop.permute.xlu0 %652
        %655 = vset.pattern.permute.xlu0 3
        %656 = vperm.xlu0 %655, %v319
        %v657 = vpop.permute.xlu0 %656
        %v659 = vmin.f32 %v594, %v597
        %v660 = vmin.f32 %v594, %v601
        %v661 = vmin.f32 %v594, %v605
        %v662 = vmin.f32 %v594, %v609
        %v663 = vmin.f32 %v594, %v613
        %v664 = vmin.f32 %v594, %v617
        %v665 = vmin.f32 %v594, %v621
        %v666 = vmin.f32 %v594, %v625
        %v667 = vmin.f32 %v594, %v629
        %v668 = vmin.f32 %v594, %v633
        %v669 = vmin.f32 %v594, %v637
        %v670 = vmin.f32 %v594, %v641
        %v671 = vmin.f32 %v594, %v645
        %v672 = vmin.f32 %v594, %v649
        %v673 = vmin.f32 %v594, %v653
        %v674 = vmin.f32 %v594, %v657
        %v675 = vsub.f32 %v575, %v407
        %v676 = vsub.f32 %v576, %v408
        %v677 = vsub.f32 %v577, %v409
        %v678 = vsub.f32 %v578, %v410
        %v679 = vsub.f32 %v579, %v411
        %v680 = vsub.f32 %v580, %v412
        %v681 = vsub.f32 %v581, %v413
        %v682 = vsub.f32 %v582, %v414
        %v683 = vsub.f32 %v583, %v415
        %v684 = vsub.f32 %v584, %v416
        %v685 = vsub.f32 %v585, %v417
        %v686 = vsub.f32 %v586, %v418
        %v687 = vsub.f32 %v587, %v419
        %v688 = vsub.f32 %v588, %v420
        %v689 = vsub.f32 %v589, %v421
        %v690 = vsub.f32 %v590, %v422
        %v691 = vmax.f32 %v675, 0.0
        %v692 = vmax.f32 %v676, 0.0
        %v693 = vmax.f32 %v677, 0.0
        %v694 = vmax.f32 %v678, 0.0
        %v695 = vmax.f32 %v679, 0.0
        %v696 = vmax.f32 %v680, 0.0
        %v697 = vmax.f32 %v681, 0.0
        %v698 = vmax.f32 %v682, 0.0
        %v699 = vmax.f32 %v683, 0.0
        %v700 = vmax.f32 %v684, 0.0
        %v701 = vmax.f32 %v685, 0.0
        %v702 = vmax.f32 %v686, 0.0
        %v703 = vmax.f32 %v687, 0.0
        %v704 = vmax.f32 %v688, 0.0
        %v705 = vmax.f32 %v689, 0.0
        %v706 = vmax.f32 %v690, 0.0
        %v707 = vsub.f32 %v659, %v491
        %v708 = vsub.f32 %v660, %v492
        %v709 = vsub.f32 %v661, %v493
        %v710 = vsub.f32 %v662, %v494
        %v711 = vsub.f32 %v663, %v495
        %v712 = vsub.f32 %v664, %v496
        %v713 = vsub.f32 %v665, %v497
        %v714 = vsub.f32 %v666, %v498
        %v715 = vsub.f32 %v667, %v499
        %v716 = vsub.f32 %v668, %v500
        %v717 = vsub.f32 %v669, %v501
        %v718 = vsub.f32 %v670, %v502
        %v719 = vsub.f32 %v671, %v503
        %v720 = vsub.f32 %v672, %v504
        %v721 = vsub.f32 %v673, %v505
        %v722 = vsub.f32 %v674, %v506
        %v723 = vmax.f32 %v707, 0.0
        %v724 = vmax.f32 %v708, 0.0
        %v725 = vmax.f32 %v709, 0.0
        %v726 = vmax.f32 %v710, 0.0
        %v727 = vmax.f32 %v711, 0.0
        %v728 = vmax.f32 %v712, 0.0
        %v729 = vmax.f32 %v713, 0.0
        %v730 = vmax.f32 %v714, 0.0
        %v731 = vmax.f32 %v715, 0.0
        %v732 = vmax.f32 %v716, 0.0
        %v733 = vmax.f32 %v717, 0.0
        %v734 = vmax.f32 %v718, 0.0
        %v735 = vmax.f32 %v719, 0.0
        %v736 = vmax.f32 %v720, 0.0
        %v737 = vmax.f32 %v721, 0.0
        %v738 = vmax.f32 %v722, 0.0
        %v739 = vmul.f32 %v691, %v723
        %v740 = vmul.f32 %v692, %v724
        %v741 = vmul.f32 %v693, %v725
        %v742 = vmul.f32 %v694, %v726
        %v743 = vmul.f32 %v695, %v727
        %v744 = vmul.f32 %v696, %v728
        %v745 = vmul.f32 %v697, %v729
        %v746 = vmul.f32 %v698, %v730
        %v747 = vmul.f32 %v699, %v731
        %v748 = vmul.f32 %v700, %v732
        %v749 = vmul.f32 %v701, %v733
        %v750 = vmul.f32 %v702, %v734
        %v751 = vmul.f32 %v703, %v735
        %v752 = vmul.f32 %v704, %v736
        %v753 = vmul.f32 %v705, %v737
        %v754 = vmul.f32 %v706, %v738
        %v756 = vrot.slane %v321, 6
        %v758 = vsub.f32 %v321, %v756
        %v759 = vadd.f32 %v758, 1e-07
        %760 = vrot.lane.b32.xlu0 %v304, 2
        %v761 = vpop.permute.xlu0 %760
        %762 = vrot.lane.b32.xlu0 %v305, 2
        %v763 = vpop.permute.xlu0 %762
        %764 = vrot.lane.b32.xlu0 %v306, 2
        %v765 = vpop.permute.xlu0 %764
        %766 = vrot.lane.b32.xlu0 %v307, 2
        %v767 = vpop.permute.xlu0 %766
        %768 = vrot.lane.b32.xlu0 %v308, 2
        %v769 = vpop.permute.xlu0 %768
        %770 = vrot.lane.b32.xlu0 %v309, 2
        %v771 = vpop.permute.xlu0 %770
        %772 = vrot.lane.b32.xlu0 %v310, 2
        %v773 = vpop.permute.xlu0 %772
        %774 = vrot.lane.b32.xlu0 %v311, 2
        %v775 = vpop.permute.xlu0 %774
        %776 = vrot.lane.b32.xlu0 %v312, 2
        %v777 = vpop.permute.xlu0 %776
        %778 = vrot.lane.b32.xlu0 %v313, 2
        %v779 = vpop.permute.xlu0 %778
        %780 = vrot.lane.b32.xlu0 %v314, 2
        %v781 = vpop.permute.xlu0 %780
        %782 = vrot.lane.b32.xlu0 %v315, 2
        %v783 = vpop.permute.xlu0 %782
        %784 = vrot.lane.b32.xlu0 %v316, 2
        %v785 = vpop.permute.xlu0 %784
        %786 = vrot.lane.b32.xlu0 %v317, 2
        %v787 = vpop.permute.xlu0 %786
        %788 = vrot.lane.b32.xlu0 %v318, 2
        %v789 = vpop.permute.xlu0 %788
        %790 = vrot.lane.b32.xlu0 %v319, 2
        %v791 = vpop.permute.xlu0 %790
        %v808 = vsub.f32 %v304, %v761
        %v809 = vsub.f32 %v305, %v763
        %v810 = vsub.f32 %v306, %v765
        %v811 = vsub.f32 %v307, %v767
        %v812 = vsub.f32 %v308, %v769
        %v813 = vsub.f32 %v309, %v771
        %v814 = vsub.f32 %v310, %v773
        %v815 = vsub.f32 %v311, %v775
        %v816 = vsub.f32 %v312, %v777
        %v817 = vsub.f32 %v313, %v779
        %v818 = vsub.f32 %v314, %v781
        %v819 = vsub.f32 %v315, %v783
        %v820 = vsub.f32 %v316, %v785
        %v821 = vsub.f32 %v317, %v787
        %v822 = vsub.f32 %v318, %v789
        %v823 = vsub.f32 %v319, %v791
        %v824 = vadd.f32 %v808, 1e-07
        %v825 = vadd.f32 %v809, 1e-07
        %v826 = vadd.f32 %v810, 1e-07
        %v827 = vadd.f32 %v811, 1e-07
        %v828 = vadd.f32 %v812, 1e-07
        %v829 = vadd.f32 %v813, 1e-07
        %v830 = vadd.f32 %v814, 1e-07
        %v831 = vadd.f32 %v815, 1e-07
        %v832 = vadd.f32 %v816, 1e-07
        %v833 = vadd.f32 %v817, 1e-07
        %v834 = vadd.f32 %v818, 1e-07
        %v835 = vadd.f32 %v819, 1e-07
        %v836 = vadd.f32 %v820, 1e-07
        %v837 = vadd.f32 %v821, 1e-07
        %v838 = vadd.f32 %v822, 1e-07
        %v839 = vadd.f32 %v823, 1e-07
        %v841 = vrot.slane %v759, 1
        %v843 = vmul.f32 %v758, %v841
        %860 = vrot.lane.b32.xlu0 %v824, 127
        %v861 = vpop.permute.xlu0 %860
        %862 = vrot.lane.b32.xlu0 %v825, 127
        %v863 = vpop.permute.xlu0 %862
        %864 = vrot.lane.b32.xlu0 %v826, 127
        %v865 = vpop.permute.xlu0 %864
        %866 = vrot.lane.b32.xlu0 %v827, 127
        %v867 = vpop.permute.xlu0 %866
        %868 = vrot.lane.b32.xlu0 %v828, 127
        %v869 = vpop.permute.xlu0 %868
        %870 = vrot.lane.b32.xlu0 %v829, 127
        %v871 = vpop.permute.xlu0 %870
        %872 = vrot.lane.b32.xlu0 %v830, 127
        %v873 = vpop.permute.xlu0 %872
        %874 = vrot.lane.b32.xlu0 %v831, 127
        %v875 = vpop.permute.xlu0 %874
        %876 = vrot.lane.b32.xlu0 %v832, 127
        %v877 = vpop.permute.xlu0 %876
        %878 = vrot.lane.b32.xlu0 %v833, 127
        %v879 = vpop.permute.xlu0 %878
        %880 = vrot.lane.b32.xlu0 %v834, 127
        %v881 = vpop.permute.xlu0 %880
        %882 = vrot.lane.b32.xlu0 %v835, 127
        %v883 = vpop.permute.xlu0 %882
        %884 = vrot.lane.b32.xlu0 %v836, 127
        %v885 = vpop.permute.xlu0 %884
        %886 = vrot.lane.b32.xlu0 %v837, 127
        %v887 = vpop.permute.xlu0 %886
        %888 = vrot.lane.b32.xlu0 %v838, 127
        %v889 = vpop.permute.xlu0 %888
        %890 = vrot.lane.b32.xlu0 %v839, 127
        %v891 = vpop.permute.xlu0 %890
        %v908 = vmul.f32 %v808, %v861
        %v909 = vmul.f32 %v809, %v863
        %v910 = vmul.f32 %v810, %v865
        %v911 = vmul.f32 %v811, %v867
        %v912 = vmul.f32 %v812, %v869
        %v913 = vmul.f32 %v813, %v871
        %v914 = vmul.f32 %v814, %v873
        %v915 = vmul.f32 %v815, %v875
        %v916 = vmul.f32 %v816, %v877
        %v917 = vmul.f32 %v817, %v879
        %v918 = vmul.f32 %v818, %v881
        %v919 = vmul.f32 %v819, %v883
        %v920 = vmul.f32 %v820, %v885
        %v921 = vmul.f32 %v821, %v887
        %v922 = vmul.f32 %v822, %v889
        %v923 = vmul.f32 %v823, %v891
        %v924 = vlaneseq
        %v925 = vshrl.u32 %v924, 7
        %v926 = vsub.s32 2, %v925
        %v927 = vrot.slane %v843, %v926
        %929 = vset.pattern.permute.xlu0 2
        %930 = vperm.xlu0 %929, %v908
        %v931 = vpop.permute.xlu0 %930
        %934 = vset.pattern.permute.xlu0 2
        %935 = vperm.xlu0 %934, %v909
        %v936 = vpop.permute.xlu0 %935
        %939 = vset.pattern.permute.xlu0 2
        %940 = vperm.xlu0 %939, %v910
        %v941 = vpop.permute.xlu0 %940
        %944 = vset.pattern.permute.xlu0 2
        %945 = vperm.xlu0 %944, %v911
        %v946 = vpop.permute.xlu0 %945
        %949 = vset.pattern.permute.xlu0 2
        %950 = vperm.xlu0 %949, %v912
        %v951 = vpop.permute.xlu0 %950
        %954 = vset.pattern.permute.xlu0 2
        %955 = vperm.xlu0 %954, %v913
        %v956 = vpop.permute.xlu0 %955
        %959 = vset.pattern.permute.xlu0 2
        %960 = vperm.xlu0 %959, %v914
        %v961 = vpop.permute.xlu0 %960
        %964 = vset.pattern.permute.xlu0 2
        %965 = vperm.xlu0 %964, %v915
        %v966 = vpop.permute.xlu0 %965
        %969 = vset.pattern.permute.xlu0 2
        %970 = vperm.xlu0 %969, %v916
        %v971 = vpop.permute.xlu0 %970
        %974 = vset.pattern.permute.xlu0 2
        %975 = vperm.xlu0 %974, %v917
        %v976 = vpop.permute.xlu0 %975
        %979 = vset.pattern.permute.xlu0 2
        %980 = vperm.xlu0 %979, %v918
        %v981 = vpop.permute.xlu0 %980
        %984 = vset.pattern.permute.xlu0 2
        %985 = vperm.xlu0 %984, %v919
        %v986 = vpop.permute.xlu0 %985
        %989 = vset.pattern.permute.xlu0 2
        %990 = vperm.xlu0 %989, %v920
        %v991 = vpop.permute.xlu0 %990
        %994 = vset.pattern.permute.xlu0 2
        %995 = vperm.xlu0 %994, %v921
        %v996 = vpop.permute.xlu0 %995
        %999 = vset.pattern.permute.xlu0 2
        %1000 = vperm.xlu0 %999, %v922
        %v1001 = vpop.permute.xlu0 %1000
        %1004 = vset.pattern.permute.xlu0 2
        %1005 = vperm.xlu0 %1004, %v923
        %v1006 = vpop.permute.xlu0 %1005
        %v1008 = vadd.f32 %v927, %v931
        %v1009 = vadd.f32 %v927, %v936
        %v1010 = vadd.f32 %v927, %v941
        %v1011 = vadd.f32 %v927, %v946
        %v1012 = vadd.f32 %v927, %v951
        %v1013 = vadd.f32 %v927, %v956
        %v1014 = vadd.f32 %v927, %v961
        %v1015 = vadd.f32 %v927, %v966
        %v1016 = vadd.f32 %v927, %v971
        %v1017 = vadd.f32 %v927, %v976
        %v1018 = vadd.f32 %v927, %v981
        %v1019 = vadd.f32 %v927, %v986
        %v1020 = vadd.f32 %v927, %v991
        %v1021 = vadd.f32 %v927, %v996
        %v1022 = vadd.f32 %v927, %v1001
        %v1023 = vadd.f32 %v927, %v1006
        %v1024 = vsub.f32 %v1008, %v739
        %v1025 = vsub.f32 %v1009, %v740
        %v1026 = vsub.f32 %v1010, %v741
        %v1027 = vsub.f32 %v1011, %v742
        %v1028 = vsub.f32 %v1012, %v743
        %v1029 = vsub.f32 %v1013, %v744
        %v1030 = vsub.f32 %v1014, %v745
        %v1031 = vsub.f32 %v1015, %v746
        %v1032 = vsub.f32 %v1016, %v747
        %v1033 = vsub.f32 %v1017, %v748
        %v1034 = vsub.f32 %v1018, %v749
        %v1035 = vsub.f32 %v1019, %v750
        %v1036 = vsub.f32 %v1020, %v751
        %v1037 = vsub.f32 %v1021, %v752
        %v1038 = vsub.f32 %v1022, %v753
        %v1039 = vsub.f32 %v1023, %v754
        %v1040 = vadd.f32 %v1024, 1e-07
        %v1041 = vadd.f32 %v1025, 1e-07
        %v1042 = vadd.f32 %v1026, 1e-07
        %v1043 = vadd.f32 %v1027, 1e-07
        %v1044 = vadd.f32 %v1028, 1e-07
        %v1045 = vadd.f32 %v1029, 1e-07
        %v1046 = vadd.f32 %v1030, 1e-07
        %v1047 = vadd.f32 %v1031, 1e-07
        %v1048 = vadd.f32 %v1032, 1e-07
        %v1049 = vadd.f32 %v1033, 1e-07
        %v1050 = vadd.f32 %v1034, 1e-07
        %v1051 = vadd.f32 %v1035, 1e-07
        %v1052 = vadd.f32 %v1036, 1e-07
        %v1053 = vadd.f32 %v1037, 1e-07
        %v1054 = vadd.f32 %v1038, 1e-07
        %v1055 = vadd.f32 %v1039, 1e-07
        %v1056 = vrcp.pop %v1040
        %v1057 = vrcp.pop %v1041
        %v1058 = vrcp.pop %v1042
        %v1059 = vrcp.pop %v1043
        %v1060 = vrcp.pop %v1044
        %v1061 = vrcp.pop %v1045
        %v1062 = vrcp.pop %v1046
        %v1063 = vrcp.pop %v1047
        %v1064 = vrcp.pop %v1048
        %v1065 = vrcp.pop %v1049
        %v1066 = vrcp.pop %v1050
        %v1067 = vrcp.pop %v1051
        %v1068 = vrcp.pop %v1052
        %v1069 = vrcp.pop %v1053
        %v1070 = vrcp.pop %v1054
        %v1071 = vrcp.pop %v1055
        %v1072 = vmul.f32 %v1040, %v1056
        %v1073 = vmul.f32 %v1041, %v1057
        %v1074 = vmul.f32 %v1042, %v1058
        %v1075 = vmul.f32 %v1043, %v1059
        %v1076 = vmul.f32 %v1044, %v1060
        %v1077 = vmul.f32 %v1045, %v1061
        %v1078 = vmul.f32 %v1046, %v1062
        %v1079 = vmul.f32 %v1047, %v1063
        %v1080 = vmul.f32 %v1048, %v1064
        %v1081 = vmul.f32 %v1049, %v1065
        %v1082 = vmul.f32 %v1050, %v1066
        %v1083 = vmul.f32 %v1051, %v1067
        %v1084 = vmul.f32 %v1052, %v1068
        %v1085 = vmul.f32 %v1053, %v1069
        %v1086 = vmul.f32 %v1054, %v1070
        %v1087 = vmul.f32 %v1055, %v1071
        %v1088 = vsub.f32 2.0, %v1072
        %v1089 = vsub.f32 2.0, %v1073
        %v1090 = vsub.f32 2.0, %v1074
        %v1091 = vsub.f32 2.0, %v1075
        %v1092 = vsub.f32 2.0, %v1076
        %v1093 = vsub.f32 2.0, %v1077
        %v1094 = vsub.f32 2.0, %v1078
        %v1095 = vsub.f32 2.0, %v1079
        %v1096 = vsub.f32 2.0, %v1080
        %v1097 = vsub.f32 2.0, %v1081
        %v1098 = vsub.f32 2.0, %v1082
        %v1099 = vsub.f32 2.0, %v1083
        %v1100 = vsub.f32 2.0, %v1084
        %v1101 = vsub.f32 2.0, %v1085
        %v1102 = vsub.f32 2.0, %v1086
        %v1103 = vsub.f32 2.0, %v1087
        %v1104 = vmul.f32 %v1056, %v1088
        %v1105 = vmul.f32 %v1057, %v1089
        %v1106 = vmul.f32 %v1058, %v1090
        %v1107 = vmul.f32 %v1059, %v1091
        %v1108 = vmul.f32 %v1060, %v1092
        %v1109 = vmul.f32 %v1061, %v1093
        %v1110 = vmul.f32 %v1062, %v1094
        %v1111 = vmul.f32 %v1063, %v1095
        %v1112 = vmul.f32 %v1064, %v1096
        %v1113 = vmul.f32 %v1065, %v1097
        %v1114 = vmul.f32 %v1066, %v1098
        %v1115 = vmul.f32 %v1067, %v1099
        %v1116 = vmul.f32 %v1068, %v1100
        %v1117 = vmul.f32 %v1069, %v1101
        %v1118 = vmul.f32 %v1070, %v1102
        %v1119 = vmul.f32 %v1071, %v1103
        %v1120 = vmul.f32 %v739, %v1104
        %v1121 = vmul.f32 %v740, %v1105
        %v1122 = vmul.f32 %v741, %v1106
        %v1123 = vmul.f32 %v742, %v1107
        %v1124 = vmul.f32 %v743, %v1108
        %v1125 = vmul.f32 %v744, %v1109
        %v1126 = vmul.f32 %v745, %v1110
        %v1127 = vmul.f32 %v746, %v1111
        %v1128 = vmul.f32 %v747, %v1112
        %v1129 = vmul.f32 %v748, %v1113
        %v1130 = vmul.f32 %v749, %v1114
        %v1131 = vmul.f32 %v750, %v1115
        %v1132 = vmul.f32 %v751, %v1116
        %v1133 = vmul.f32 %v752, %v1117
        %v1134 = vmul.f32 %v753, %v1118
        %v1135 = vmul.f32 %v754, %v1119
        %v1136 = vmax.f32 %v510, %v513
        %v1137 = vmax.f32 %v510, %v517
        %v1138 = vmax.f32 %v510, %v521
        %v1139 = vmax.f32 %v510, %v525
        %v1140 = vmax.f32 %v510, %v529
        %v1141 = vmax.f32 %v510, %v533
        %v1142 = vmax.f32 %v510, %v537
        %v1143 = vmax.f32 %v510, %v541
        %v1144 = vmax.f32 %v510, %v545
        %v1145 = vmax.f32 %v510, %v549
        %v1146 = vmax.f32 %v510, %v553
        %v1147 = vmax.f32 %v510, %v557
        %v1148 = vmax.f32 %v510, %v561
        %v1149 = vmax.f32 %v510, %v565
        %v1150 = vmax.f32 %v510, %v569
        %v1151 = vmax.f32 %v510, %v573
        %v1152 = vmin.f32 %v326, %v330
        %v1153 = vmin.f32 %v326, %v335
        %v1154 = vmin.f32 %v326, %v340
        %v1155 = vmin.f32 %v326, %v345
        %v1156 = vmin.f32 %v326, %v350
        %v1157 = vmin.f32 %v326, %v355
        %v1158 = vmin.f32 %v326, %v360
        %v1159 = vmin.f32 %v326, %v365
        %v1160 = vmin.f32 %v326, %v370
        %v1161 = vmin.f32 %v326, %v375
        %v1162 = vmin.f32 %v326, %v380
        %v1163 = vmin.f32 %v326, %v385
        %v1164 = vmin.f32 %v326, %v390
        %v1165 = vmin.f32 %v326, %v395
        %v1166 = vmin.f32 %v326, %v400
        %v1167 = vmin.f32 %v326, %v405
        %v1168 = vsub.f32 %v1136, %v1152
        %v1169 = vsub.f32 %v1137, %v1153
        %v1170 = vsub.f32 %v1138, %v1154
        %v1171 = vsub.f32 %v1139, %v1155
        %v1172 = vsub.f32 %v1140, %v1156
        %v1173 = vsub.f32 %v1141, %v1157
        %v1174 = vsub.f32 %v1142, %v1158
        %v1175 = vsub.f32 %v1143, %v1159
        %v1176 = vsub.f32 %v1144, %v1160
        %v1177 = vsub.f32 %v1145, %v1161
        %v1178 = vsub.f32 %v1146, %v1162
        %v1179 = vsub.f32 %v1147, %v1163
        %v1180 = vsub.f32 %v1148, %v1164
        %v1181 = vsub.f32 %v1149, %v1165
        %v1182 = vsub.f32 %v1150, %v1166
        %v1183 = vsub.f32 %v1151, %v1167
        %v1184 = vmax.f32 %v594, %v597
        %v1185 = vmax.f32 %v594, %v601
        %v1186 = vmax.f32 %v594, %v605
        %v1187 = vmax.f32 %v594, %v609
        %v1188 = vmax.f32 %v594, %v613
        %v1189 = vmax.f32 %v594, %v617
        %v1190 = vmax.f32 %v594, %v621
        %v1191 = vmax.f32 %v594, %v625
        %v1192 = vmax.f32 %v594, %v629
        %v1193 = vmax.f32 %v594, %v633
        %v1194 = vmax.f32 %v594, %v637
        %v1195 = vmax.f32 %v594, %v641
        %v1196 = vmax.f32 %v594, %v645
        %v1197 = vmax.f32 %v594, %v649
        %v1198 = vmax.f32 %v594, %v653
        %v1199 = vmax.f32 %v594, %v657
        %v1200 = vmin.f32 %v426, %v429
        %v1201 = vmin.f32 %v426, %v433
        %v1202 = vmin.f32 %v426, %v437
        %v1203 = vmin.f32 %v426, %v441
        %v1204 = vmin.f32 %v426, %v445
        %v1205 = vmin.f32 %v426, %v449
        %v1206 = vmin.f32 %v426, %v453
        %v1207 = vmin.f32 %v426, %v457
        %v1208 = vmin.f32 %v426, %v461
        %v1209 = vmin.f32 %v426, %v465
        %v1210 = vmin.f32 %v426, %v469
        %v1211 = vmin.f32 %v426, %v473
        %v1212 = vmin.f32 %v426, %v477
        %v1213 = vmin.f32 %v426, %v481
        %v1214 = vmin.f32 %v426, %v485
        %v1215 = vmin.f32 %v426, %v489
        %v1216 = vsub.f32 %v1184, %v1200
        %v1217 = vsub.f32 %v1185, %v1201
        %v1218 = vsub.f32 %v1186, %v1202
        %v1219 = vsub.f32 %v1187, %v1203
        %v1220 = vsub.f32 %v1188, %v1204
        %v1221 = vsub.f32 %v1189, %v1205
        %v1222 = vsub.f32 %v1190, %v1206
        %v1223 = vsub.f32 %v1191, %v1207
        %v1224 = vsub.f32 %v1192, %v1208
        %v1225 = vsub.f32 %v1193, %v1209
        %v1226 = vsub.f32 %v1194, %v1210
        %v1227 = vsub.f32 %v1195, %v1211
        %v1228 = vsub.f32 %v1196, %v1212
        %v1229 = vsub.f32 %v1197, %v1213
        %v1230 = vsub.f32 %v1198, %v1214
        %v1231 = vsub.f32 %v1199, %v1215
        %v1232 = vmul.f32 %v1168, %v1168
        %v1233 = vmul.f32 %v1169, %v1169
        %v1234 = vmul.f32 %v1170, %v1170
        %v1235 = vmul.f32 %v1171, %v1171
        %v1236 = vmul.f32 %v1172, %v1172
        %v1237 = vmul.f32 %v1173, %v1173
        %v1238 = vmul.f32 %v1174, %v1174
        %v1239 = vmul.f32 %v1175, %v1175
        %v1240 = vmul.f32 %v1176, %v1176
        %v1241 = vmul.f32 %v1177, %v1177
        %v1242 = vmul.f32 %v1178, %v1178
        %v1243 = vmul.f32 %v1179, %v1179
        %v1244 = vmul.f32 %v1180, %v1180
        %v1245 = vmul.f32 %v1181, %v1181
        %v1246 = vmul.f32 %v1182, %v1182
        %v1247 = vmul.f32 %v1183, %v1183
        %v1248 = vmul.f32 %v1216, %v1216
        %v1249 = vmul.f32 %v1217, %v1217
        %v1250 = vmul.f32 %v1218, %v1218
        %v1251 = vmul.f32 %v1219, %v1219
        %v1252 = vmul.f32 %v1220, %v1220
        %v1253 = vmul.f32 %v1221, %v1221
        %v1254 = vmul.f32 %v1222, %v1222
        %v1255 = vmul.f32 %v1223, %v1223
        %v1256 = vmul.f32 %v1224, %v1224
        %v1257 = vmul.f32 %v1225, %v1225
        %v1258 = vmul.f32 %v1226, %v1226
        %v1259 = vmul.f32 %v1227, %v1227
        %v1260 = vmul.f32 %v1228, %v1228
        %v1261 = vmul.f32 %v1229, %v1229
        %v1262 = vmul.f32 %v1230, %v1230
        %v1263 = vmul.f32 %v1231, %v1231
        %v1264 = vadd.f32 %v1232, %v1248
        %v1265 = vadd.f32 %v1233, %v1249
        %v1266 = vadd.f32 %v1234, %v1250
        %v1267 = vadd.f32 %v1235, %v1251
        %v1268 = vadd.f32 %v1236, %v1252
        %v1269 = vadd.f32 %v1237, %v1253
        %v1270 = vadd.f32 %v1238, %v1254
        %v1271 = vadd.f32 %v1239, %v1255
        %v1272 = vadd.f32 %v1240, %v1256
        %v1273 = vadd.f32 %v1241, %v1257
        %v1274 = vadd.f32 %v1242, %v1258
        %v1275 = vadd.f32 %v1243, %v1259
        %v1276 = vadd.f32 %v1244, %v1260
        %v1277 = vadd.f32 %v1245, %v1261
        %v1278 = vadd.f32 %v1246, %v1262
        %v1279 = vadd.f32 %v1247, %v1263
        %v1280 = vadd.f32 %v1264, 1e-07
        %v1281 = vadd.f32 %v1265, 1e-07
        %v1282 = vadd.f32 %v1266, 1e-07
        %v1283 = vadd.f32 %v1267, 1e-07
        %v1284 = vadd.f32 %v1268, 1e-07
        %v1285 = vadd.f32 %v1269, 1e-07
        %v1286 = vadd.f32 %v1270, 1e-07
        %v1287 = vadd.f32 %v1271, 1e-07
        %v1288 = vadd.f32 %v1272, 1e-07
        %v1289 = vadd.f32 %v1273, 1e-07
        %v1290 = vadd.f32 %v1274, 1e-07
        %v1291 = vadd.f32 %v1275, 1e-07
        %v1292 = vadd.f32 %v1276, 1e-07
        %v1293 = vadd.f32 %v1277, 1e-07
        %v1294 = vadd.f32 %v1278, 1e-07
        %v1295 = vadd.f32 %v1279, 1e-07
        %1296 = vrot.lane.b32.xlu0 %v304, 126
        %v1297 = vpop.permute.xlu0 %1296
        %1298 = vrot.lane.b32.xlu0 %v305, 126
        %v1299 = vpop.permute.xlu0 %1298
        %1300 = vrot.lane.b32.xlu0 %v306, 126
        %v1301 = vpop.permute.xlu0 %1300
        %1302 = vrot.lane.b32.xlu0 %v307, 126
        %v1303 = vpop.permute.xlu0 %1302
        %1304 = vrot.lane.b32.xlu0 %v308, 126
        %v1305 = vpop.permute.xlu0 %1304
        %1306 = vrot.lane.b32.xlu0 %v309, 126
        %v1307 = vpop.permute.xlu0 %1306
        %1308 = vrot.lane.b32.xlu0 %v310, 126
        %v1309 = vpop.permute.xlu0 %1308
        %1310 = vrot.lane.b32.xlu0 %v311, 126
        %v1311 = vpop.permute.xlu0 %1310
        %1312 = vrot.lane.b32.xlu0 %v312, 126
        %v1313 = vpop.permute.xlu0 %1312
        %1314 = vrot.lane.b32.xlu0 %v313, 126
        %v1315 = vpop.permute.xlu0 %1314
        %1316 = vrot.lane.b32.xlu0 %v314, 126
        %v1317 = vpop.permute.xlu0 %1316
        %1318 = vrot.lane.b32.xlu0 %v315, 126
        %v1319 = vpop.permute.xlu0 %1318
        %1320 = vrot.lane.b32.xlu0 %v316, 126
        %v1321 = vpop.permute.xlu0 %1320
        %1322 = vrot.lane.b32.xlu0 %v317, 126
        %v1323 = vpop.permute.xlu0 %1322
        %1324 = vrot.lane.b32.xlu0 %v318, 126
        %v1325 = vpop.permute.xlu0 %1324
        %1326 = vrot.lane.b32.xlu0 %v319, 126
        %v1327 = vpop.permute.xlu0 %1326
        %v1344 = vadd.f32 %v304, %v1297
        %v1345 = vadd.f32 %v305, %v1299
        %v1346 = vadd.f32 %v306, %v1301
        %v1347 = vadd.f32 %v307, %v1303
        %v1348 = vadd.f32 %v308, %v1305
        %v1349 = vadd.f32 %v309, %v1307
        %v1350 = vadd.f32 %v310, %v1309
        %v1351 = vadd.f32 %v311, %v1311
        %v1352 = vadd.f32 %v312, %v1313
        %v1353 = vadd.f32 %v313, %v1315
        %v1354 = vadd.f32 %v314, %v1317
        %v1355 = vadd.f32 %v315, %v1319
        %v1356 = vadd.f32 %v316, %v1321
        %v1357 = vadd.f32 %v317, %v1323
        %v1358 = vadd.f32 %v318, %v1325
        %v1359 = vadd.f32 %v319, %v1327
        %1361 = vset.pattern.permute.xlu0 0
        %1362 = vperm.xlu0 %1361, %v1344
        %v1363 = vpop.permute.xlu0 %1362
        %1366 = vset.pattern.permute.xlu0 0
        %1367 = vperm.xlu0 %1366, %v1345
        %v1368 = vpop.permute.xlu0 %1367
        %1371 = vset.pattern.permute.xlu0 0
        %1372 = vperm.xlu0 %1371, %v1346
        %v1373 = vpop.permute.xlu0 %1372
        %1376 = vset.pattern.permute.xlu0 0
        %1377 = vperm.xlu0 %1376, %v1347
        %v1378 = vpop.permute.xlu0 %1377
        %1381 = vset.pattern.permute.xlu0 0
        %1382 = vperm.xlu0 %1381, %v1348
        %v1383 = vpop.permute.xlu0 %1382
        %1386 = vset.pattern.permute.xlu0 0
        %1387 = vperm.xlu0 %1386, %v1349
        %v1388 = vpop.permute.xlu0 %1387
        %1391 = vset.pattern.permute.xlu0 0
        %1392 = vperm.xlu0 %1391, %v1350
        %v1393 = vpop.permute.xlu0 %1392
        %1396 = vset.pattern.permute.xlu0 0
        %1397 = vperm.xlu0 %1396, %v1351
        %v1398 = vpop.permute.xlu0 %1397
        %1401 = vset.pattern.permute.xlu0 0
        %1402 = vperm.xlu0 %1401, %v1352
        %v1403 = vpop.permute.xlu0 %1402
        %1406 = vset.pattern.permute.xlu0 0
        %1407 = vperm.xlu0 %1406, %v1353
        %v1408 = vpop.permute.xlu0 %1407
        %1411 = vset.pattern.permute.xlu0 0
        %1412 = vperm.xlu0 %1411, %v1354
        %v1413 = vpop.permute.xlu0 %1412
        %1416 = vset.pattern.permute.xlu0 0
        %1417 = vperm.xlu0 %1416, %v1355
        %v1418 = vpop.permute.xlu0 %1417
        %1421 = vset.pattern.permute.xlu0 0
        %1422 = vperm.xlu0 %1421, %v1356
        %v1423 = vpop.permute.xlu0 %1422
        %1426 = vset.pattern.permute.xlu0 0
        %1427 = vperm.xlu0 %1426, %v1357
        %v1428 = vpop.permute.xlu0 %1427
        %1431 = vset.pattern.permute.xlu0 0
        %1432 = vperm.xlu0 %1431, %v1358
        %v1433 = vpop.permute.xlu0 %1432
        %1436 = vset.pattern.permute.xlu0 0
        %1437 = vperm.xlu0 %1436, %v1359
        %v1438 = vpop.permute.xlu0 %1437
        %v1440 = vsub.f32 %v1363, %v326
        %v1441 = vsub.f32 %v1368, %v326
        %v1442 = vsub.f32 %v1373, %v326
        %v1443 = vsub.f32 %v1378, %v326
        %v1444 = vsub.f32 %v1383, %v326
        %v1445 = vsub.f32 %v1388, %v326
        %v1446 = vsub.f32 %v1393, %v326
        %v1447 = vsub.f32 %v1398, %v326
        %v1448 = vsub.f32 %v1403, %v326
        %v1449 = vsub.f32 %v1408, %v326
        %v1450 = vsub.f32 %v1413, %v326
        %v1451 = vsub.f32 %v1418, %v326
        %v1452 = vsub.f32 %v1423, %v326
        %v1453 = vsub.f32 %v1428, %v326
        %v1454 = vsub.f32 %v1433, %v326
        %v1455 = vsub.f32 %v1438, %v326
        %v1456 = vsub.f32 %v1440, %v510
        %v1457 = vsub.f32 %v1441, %v510
        %v1458 = vsub.f32 %v1442, %v510
        %v1459 = vsub.f32 %v1443, %v510
        %v1460 = vsub.f32 %v1444, %v510
        %v1461 = vsub.f32 %v1445, %v510
        %v1462 = vsub.f32 %v1446, %v510
        %v1463 = vsub.f32 %v1447, %v510
        %v1464 = vsub.f32 %v1448, %v510
        %v1465 = vsub.f32 %v1449, %v510
        %v1466 = vsub.f32 %v1450, %v510
        %v1467 = vsub.f32 %v1451, %v510
        %v1468 = vsub.f32 %v1452, %v510
        %v1469 = vsub.f32 %v1453, %v510
        %v1470 = vsub.f32 %v1454, %v510
        %v1471 = vsub.f32 %v1455, %v510
        %v1472 = vmul.f32 %v1456, %v1456
        %v1473 = vmul.f32 %v1457, %v1457
        %v1474 = vmul.f32 %v1458, %v1458
        %v1475 = vmul.f32 %v1459, %v1459
        %v1476 = vmul.f32 %v1460, %v1460
        %v1477 = vmul.f32 %v1461, %v1461
        %v1478 = vmul.f32 %v1462, %v1462
        %v1479 = vmul.f32 %v1463, %v1463
        %v1480 = vmul.f32 %v1464, %v1464
        %v1481 = vmul.f32 %v1465, %v1465
        %v1482 = vmul.f32 %v1466, %v1466
        %v1483 = vmul.f32 %v1467, %v1467
        %v1484 = vmul.f32 %v1468, %v1468
        %v1485 = vmul.f32 %v1469, %v1469
        %v1486 = vmul.f32 %v1470, %v1470
        %v1487 = vmul.f32 %v1471, %v1471
        %1488 = vset.pattern.permute.xlu0 1
        %1489 = vperm.xlu0 %1488, %v1344
        %v1490 = vpop.permute.xlu0 %1489
        %1492 = vset.pattern.permute.xlu0 1
        %1493 = vperm.xlu0 %1492, %v1345
        %v1494 = vpop.permute.xlu0 %1493
        %1496 = vset.pattern.permute.xlu0 1
        %1497 = vperm.xlu0 %1496, %v1346
        %v1498 = vpop.permute.xlu0 %1497
        %1500 = vset.pattern.permute.xlu0 1
        %1501 = vperm.xlu0 %1500, %v1347
        %v1502 = vpop.permute.xlu0 %1501
        %1504 = vset.pattern.permute.xlu0 1
        %1505 = vperm.xlu0 %1504, %v1348
        %v1506 = vpop.permute.xlu0 %1505
        %1508 = vset.pattern.permute.xlu0 1
        %1509 = vperm.xlu0 %1508, %v1349
        %v1510 = vpop.permute.xlu0 %1509
        %1512 = vset.pattern.permute.xlu0 1
        %1513 = vperm.xlu0 %1512, %v1350
        %v1514 = vpop.permute.xlu0 %1513
        %1516 = vset.pattern.permute.xlu0 1
        %1517 = vperm.xlu0 %1516, %v1351
        %v1518 = vpop.permute.xlu0 %1517
        %1520 = vset.pattern.permute.xlu0 1
        %1521 = vperm.xlu0 %1520, %v1352
        %v1522 = vpop.permute.xlu0 %1521
        %1524 = vset.pattern.permute.xlu0 1
        %1525 = vperm.xlu0 %1524, %v1353
        %v1526 = vpop.permute.xlu0 %1525
        %1528 = vset.pattern.permute.xlu0 1
        %1529 = vperm.xlu0 %1528, %v1354
        %v1530 = vpop.permute.xlu0 %1529
        %1532 = vset.pattern.permute.xlu0 1
        %1533 = vperm.xlu0 %1532, %v1355
        %v1534 = vpop.permute.xlu0 %1533
        %1536 = vset.pattern.permute.xlu0 1
        %1537 = vperm.xlu0 %1536, %v1356
        %v1538 = vpop.permute.xlu0 %1537
        %1540 = vset.pattern.permute.xlu0 1
        %1541 = vperm.xlu0 %1540, %v1357
        %v1542 = vpop.permute.xlu0 %1541
        %1544 = vset.pattern.permute.xlu0 1
        %1545 = vperm.xlu0 %1544, %v1358
        %v1546 = vpop.permute.xlu0 %1545
        %1548 = vset.pattern.permute.xlu0 1
        %1549 = vperm.xlu0 %1548, %v1359
        %v1550 = vpop.permute.xlu0 %1549
        %v1552 = vsub.f32 %v1490, %v426
        %v1553 = vsub.f32 %v1494, %v426
        %v1554 = vsub.f32 %v1498, %v426
        %v1555 = vsub.f32 %v1502, %v426
        %v1556 = vsub.f32 %v1506, %v426
        %v1557 = vsub.f32 %v1510, %v426
        %v1558 = vsub.f32 %v1514, %v426
        %v1559 = vsub.f32 %v1518, %v426
        %v1560 = vsub.f32 %v1522, %v426
        %v1561 = vsub.f32 %v1526, %v426
        %v1562 = vsub.f32 %v1530, %v426
        %v1563 = vsub.f32 %v1534, %v426
        %v1564 = vsub.f32 %v1538, %v426
        %v1565 = vsub.f32 %v1542, %v426
        %v1566 = vsub.f32 %v1546, %v426
        %v1567 = vsub.f32 %v1550, %v426
        %v1568 = vsub.f32 %v1552, %v594
        %v1569 = vsub.f32 %v1553, %v594
        %v1570 = vsub.f32 %v1554, %v594
        %v1571 = vsub.f32 %v1555, %v594
        %v1572 = vsub.f32 %v1556, %v594
        %v1573 = vsub.f32 %v1557, %v594
        %v1574 = vsub.f32 %v1558, %v594
        %v1575 = vsub.f32 %v1559, %v594
        %v1576 = vsub.f32 %v1560, %v594
        %v1577 = vsub.f32 %v1561, %v594
        %v1578 = vsub.f32 %v1562, %v594
        %v1579 = vsub.f32 %v1563, %v594
        %v1580 = vsub.f32 %v1564, %v594
        %v1581 = vsub.f32 %v1565, %v594
        %v1582 = vsub.f32 %v1566, %v594
        %v1583 = vsub.f32 %v1567, %v594
        %v1584 = vmul.f32 %v1568, %v1568
        %v1585 = vmul.f32 %v1569, %v1569
        %v1586 = vmul.f32 %v1570, %v1570
        %v1587 = vmul.f32 %v1571, %v1571
        %v1588 = vmul.f32 %v1572, %v1572
        %v1589 = vmul.f32 %v1573, %v1573
        %v1590 = vmul.f32 %v1574, %v1574
        %v1591 = vmul.f32 %v1575, %v1575
        %v1592 = vmul.f32 %v1576, %v1576
        %v1593 = vmul.f32 %v1577, %v1577
        %v1594 = vmul.f32 %v1578, %v1578
        %v1595 = vmul.f32 %v1579, %v1579
        %v1596 = vmul.f32 %v1580, %v1580
        %v1597 = vmul.f32 %v1581, %v1581
        %v1598 = vmul.f32 %v1582, %v1582
        %v1599 = vmul.f32 %v1583, %v1583
        %v1600 = vadd.f32 %v1472, %v1584
        %v1601 = vadd.f32 %v1473, %v1585
        %v1602 = vadd.f32 %v1474, %v1586
        %v1603 = vadd.f32 %v1475, %v1587
        %v1604 = vadd.f32 %v1476, %v1588
        %v1605 = vadd.f32 %v1477, %v1589
        %v1606 = vadd.f32 %v1478, %v1590
        %v1607 = vadd.f32 %v1479, %v1591
        %v1608 = vadd.f32 %v1480, %v1592
        %v1609 = vadd.f32 %v1481, %v1593
        %v1610 = vadd.f32 %v1482, %v1594
        %v1611 = vadd.f32 %v1483, %v1595
        %v1612 = vadd.f32 %v1484, %v1596
        %v1613 = vadd.f32 %v1485, %v1597
        %v1614 = vadd.f32 %v1486, %v1598
        %v1615 = vadd.f32 %v1487, %v1599
        %v1616 = vmul.f32 %v1600, 0.25
        %v1617 = vmul.f32 %v1601, 0.25
        %v1618 = vmul.f32 %v1602, 0.25
        %v1619 = vmul.f32 %v1603, 0.25
        %v1620 = vmul.f32 %v1604, 0.25
        %v1621 = vmul.f32 %v1605, 0.25
        %v1622 = vmul.f32 %v1606, 0.25
        %v1623 = vmul.f32 %v1607, 0.25
        %v1624 = vmul.f32 %v1608, 0.25
        %v1625 = vmul.f32 %v1609, 0.25
        %v1626 = vmul.f32 %v1610, 0.25
        %v1627 = vmul.f32 %v1611, 0.25
        %v1628 = vmul.f32 %v1612, 0.25
        %v1629 = vmul.f32 %v1613, 0.25
        %v1630 = vmul.f32 %v1614, 0.25
        %v1631 = vmul.f32 %v1615, 0.25
        %v1632 = vrcp.pop %v861
        %v1633 = vmul.f32 %v808, %v1632
        %v1634 = vrcp.pop %v863
        %v1635 = vmul.f32 %v809, %v1634
        %v1636 = vrcp.pop %v865
        %v1637 = vmul.f32 %v810, %v1636
        %v1638 = vrcp.pop %v867
        %v1639 = vmul.f32 %v811, %v1638
        %v1640 = vrcp.pop %v869
        %v1641 = vmul.f32 %v812, %v1640
        %v1642 = vrcp.pop %v871
        %v1643 = vmul.f32 %v813, %v1642
        %v1644 = vrcp.pop %v873
        %v1645 = vmul.f32 %v814, %v1644
        %v1646 = vrcp.pop %v875
        %v1647 = vmul.f32 %v815, %v1646
        %v1648 = vrcp.pop %v877
        %v1649 = vmul.f32 %v816, %v1648
        %v1650 = vrcp.pop %v879
        %v1651 = vmul.f32 %v817, %v1650
        %v1652 = vrcp.pop %v881
        %v1653 = vmul.f32 %v818, %v1652
        %v1654 = vrcp.pop %v883
        %v1655 = vmul.f32 %v819, %v1654
        %v1656 = vrcp.pop %v885
        %v1657 = vmul.f32 %v820, %v1656
        %v1658 = vrcp.pop %v887
        %v1659 = vmul.f32 %v821, %v1658
        %v1660 = vrcp.pop %v889
        %v1661 = vmul.f32 %v822, %v1660
        %v1662 = vrcp.pop %v891
        %v1663 = vmul.f32 %v823, %v1662
        %vm1664 = vcmp.gt.f32.partialorder %v1633, 1.0
        %vm1665 = vcmp.gt.f32.partialorder %v1635, 1.0
        %vm1666 = vcmp.gt.f32.partialorder %v1637, 1.0
        %vm1667 = vcmp.gt.f32.partialorder %v1639, 1.0
        %vm1668 = vcmp.gt.f32.partialorder %v1641, 1.0
        %vm1669 = vcmp.gt.f32.partialorder %v1643, 1.0
        %vm1670 = vcmp.gt.f32.partialorder %v1645, 1.0
        %vm1671 = vcmp.gt.f32.partialorder %v1647, 1.0
        %vm1672 = vcmp.gt.f32.partialorder %v1649, 1.0
        %vm1673 = vcmp.gt.f32.partialorder %v1651, 1.0
        %vm1674 = vcmp.gt.f32.partialorder %v1653, 1.0
        %vm1675 = vcmp.gt.f32.partialorder %v1655, 1.0
        %vm1676 = vcmp.gt.f32.partialorder %v1657, 1.0
        %vm1677 = vcmp.gt.f32.partialorder %v1659, 1.0
        %vm1678 = vcmp.gt.f32.partialorder %v1661, 1.0
        %vm1679 = vcmp.gt.f32.partialorder %v1663, 1.0
        %v1680 = vmax.f32 %v1633, 1e-30
        %v1681 = vmax.f32 %v1635, 1e-30
        %v1682 = vmax.f32 %v1637, 1e-30
        %v1683 = vmax.f32 %v1639, 1e-30
        %v1684 = vmax.f32 %v1641, 1e-30
        %v1685 = vmax.f32 %v1643, 1e-30
        %v1686 = vmax.f32 %v1645, 1e-30
        %v1687 = vmax.f32 %v1647, 1e-30
        %v1688 = vmax.f32 %v1649, 1e-30
        %v1689 = vmax.f32 %v1651, 1e-30
        %v1690 = vmax.f32 %v1653, 1e-30
        %v1691 = vmax.f32 %v1655, 1e-30
        %v1692 = vmax.f32 %v1657, 1e-30
        %v1693 = vmax.f32 %v1659, 1e-30
        %v1694 = vmax.f32 %v1661, 1e-30
        %v1695 = vmax.f32 %v1663, 1e-30
        %v1696 = vrcp.pop %v1680
        %v1697 = vmul.f32 1.0, %v1696
        %v1698 = vrcp.pop %v1681
        %v1699 = vmul.f32 1.0, %v1698
        %v1700 = vrcp.pop %v1682
        %v1701 = vmul.f32 1.0, %v1700
        %v1702 = vrcp.pop %v1683
        %v1703 = vmul.f32 1.0, %v1702
        %v1704 = vrcp.pop %v1684
        %v1705 = vmul.f32 1.0, %v1704
        %v1706 = vrcp.pop %v1685
        %v1707 = vmul.f32 1.0, %v1706
        %v1708 = vrcp.pop %v1686
        %v1709 = vmul.f32 1.0, %v1708
        %v1710 = vrcp.pop %v1687
        %v1711 = vmul.f32 1.0, %v1710
        %v1712 = vrcp.pop %v1688
        %v1713 = vmul.f32 1.0, %v1712
        %v1714 = vrcp.pop %v1689
        %v1715 = vmul.f32 1.0, %v1714
        %v1716 = vrcp.pop %v1690
        %v1717 = vmul.f32 1.0, %v1716
        %v1718 = vrcp.pop %v1691
        %v1719 = vmul.f32 1.0, %v1718
        %v1720 = vrcp.pop %v1692
        %v1721 = vmul.f32 1.0, %v1720
        %v1722 = vrcp.pop %v1693
        %v1723 = vmul.f32 1.0, %v1722
        %v1724 = vrcp.pop %v1694
        %v1725 = vmul.f32 1.0, %v1724
        %v1726 = vrcp.pop %v1695
        %v1727 = vmul.f32 1.0, %v1726
        %v1728 = vsel %vm1664, %v1697, %v1633
        %v1729 = vsel %vm1665, %v1699, %v1635
        %v1730 = vsel %vm1666, %v1701, %v1637
        %v1731 = vsel %vm1667, %v1703, %v1639
        %v1732 = vsel %vm1668, %v1705, %v1641
        %v1733 = vsel %vm1669, %v1707, %v1643
        %v1734 = vsel %vm1670, %v1709, %v1645
        %v1735 = vsel %vm1671, %v1711, %v1647
        %v1736 = vsel %vm1672, %v1713, %v1649
        %v1737 = vsel %vm1673, %v1715, %v1651
        %v1738 = vsel %vm1674, %v1717, %v1653
        %v1739 = vsel %vm1675, %v1719, %v1655
        %v1740 = vsel %vm1676, %v1721, %v1657
        %v1741 = vsel %vm1677, %v1723, %v1659
        %v1742 = vsel %vm1678, %v1725, %v1661
        %v1743 = vsel %vm1679, %v1727, %v1663
        %v1744 = vmul.f32 %v1728, %v1728
        %v1745 = vmul.f32 %v1729, %v1729
        %v1746 = vmul.f32 %v1730, %v1730
        %v1747 = vmul.f32 %v1731, %v1731
        %v1748 = vmul.f32 %v1732, %v1732
        %v1749 = vmul.f32 %v1733, %v1733
        %v1750 = vmul.f32 %v1734, %v1734
        %v1751 = vmul.f32 %v1735, %v1735
        %v1752 = vmul.f32 %v1736, %v1736
        %v1753 = vmul.f32 %v1737, %v1737
        %v1754 = vmul.f32 %v1738, %v1738
        %v1755 = vmul.f32 %v1739, %v1739
        %v1756 = vmul.f32 %v1740, %v1740
        %v1757 = vmul.f32 %v1741, %v1741
        %v1758 = vmul.f32 %v1742, %v1742
        %v1759 = vmul.f32 %v1743, %v1743
        %v1760 = vmul.f32 %v1744, 0.0208351
        %v1761 = vmul.f32 %v1745, 0.0208351
        %v1762 = vmul.f32 %v1746, 0.0208351
        %v1763 = vmul.f32 %v1747, 0.0208351
        %v1764 = vmul.f32 %v1748, 0.0208351
        %v1765 = vmul.f32 %v1749, 0.0208351
        %v1766 = vmul.f32 %v1750, 0.0208351
        %v1767 = vmul.f32 %v1751, 0.0208351
        %v1768 = vmul.f32 %v1752, 0.0208351
        %v1769 = vmul.f32 %v1753, 0.0208351
        %v1770 = vmul.f32 %v1754, 0.0208351
        %v1771 = vmul.f32 %v1755, 0.0208351
        %v1772 = vmul.f32 %v1756, 0.0208351
        %v1773 = vmul.f32 %v1757, 0.0208351
        %v1774 = vmul.f32 %v1758, 0.0208351
        %v1775 = vmul.f32 %v1759, 0.0208351
        %v1776 = vadd.f32 %v1760, -0.085133
        %v1777 = vadd.f32 %v1761, -0.085133
        %v1778 = vadd.f32 %v1762, -0.085133
        %v1779 = vadd.f32 %v1763, -0.085133
        %v1780 = vadd.f32 %v1764, -0.085133
        %v1781 = vadd.f32 %v1765, -0.085133
        %v1782 = vadd.f32 %v1766, -0.085133
        %v1783 = vadd.f32 %v1767, -0.085133
        %v1784 = vadd.f32 %v1768, -0.085133
        %v1785 = vadd.f32 %v1769, -0.085133
        %v1786 = vadd.f32 %v1770, -0.085133
        %v1787 = vadd.f32 %v1771, -0.085133
        %v1788 = vadd.f32 %v1772, -0.085133
        %v1789 = vadd.f32 %v1773, -0.085133
        %v1790 = vadd.f32 %v1774, -0.085133
        %v1791 = vadd.f32 %v1775, -0.085133
        %v1792 = vmul.f32 %v1744, %v1776
        %v1793 = vmul.f32 %v1745, %v1777
        %v1794 = vmul.f32 %v1746, %v1778
        %v1795 = vmul.f32 %v1747, %v1779
        %v1796 = vmul.f32 %v1748, %v1780
        %v1797 = vmul.f32 %v1749, %v1781
        %v1798 = vmul.f32 %v1750, %v1782
        %v1799 = vmul.f32 %v1751, %v1783
        %v1800 = vmul.f32 %v1752, %v1784
        %v1801 = vmul.f32 %v1753, %v1785
        %v1802 = vmul.f32 %v1754, %v1786
        %v1803 = vmul.f32 %v1755, %v1787
        %v1804 = vmul.f32 %v1756, %v1788
        %v1805 = vmul.f32 %v1757, %v1789
        %v1806 = vmul.f32 %v1758, %v1790
        %v1807 = vmul.f32 %v1759, %v1791
        %v1808 = vadd.f32 %v1792, 0.180141
        %v1809 = vadd.f32 %v1793, 0.180141
        %v1810 = vadd.f32 %v1794, 0.180141
        %v1811 = vadd.f32 %v1795, 0.180141
        %v1812 = vadd.f32 %v1796, 0.180141
        %v1813 = vadd.f32 %v1797, 0.180141
        %v1814 = vadd.f32 %v1798, 0.180141
        %v1815 = vadd.f32 %v1799, 0.180141
        %v1816 = vadd.f32 %v1800, 0.180141
        %v1817 = vadd.f32 %v1801, 0.180141
        %v1818 = vadd.f32 %v1802, 0.180141
        %v1819 = vadd.f32 %v1803, 0.180141
        %v1820 = vadd.f32 %v1804, 0.180141
        %v1821 = vadd.f32 %v1805, 0.180141
        %v1822 = vadd.f32 %v1806, 0.180141
        %v1823 = vadd.f32 %v1807, 0.180141
        %v1824 = vmul.f32 %v1744, %v1808
        %v1825 = vmul.f32 %v1745, %v1809
        %v1826 = vmul.f32 %v1746, %v1810
        %v1827 = vmul.f32 %v1747, %v1811
        %v1828 = vmul.f32 %v1748, %v1812
        %v1829 = vmul.f32 %v1749, %v1813
        %v1830 = vmul.f32 %v1750, %v1814
        %v1831 = vmul.f32 %v1751, %v1815
        %v1832 = vmul.f32 %v1752, %v1816
        %v1833 = vmul.f32 %v1753, %v1817
        %v1834 = vmul.f32 %v1754, %v1818
        %v1835 = vmul.f32 %v1755, %v1819
        %v1836 = vmul.f32 %v1756, %v1820
        %v1837 = vmul.f32 %v1757, %v1821
        %v1838 = vmul.f32 %v1758, %v1822
        %v1839 = vmul.f32 %v1759, %v1823
        %v1840 = vadd.f32 %v1824, -0.3302995
        %v1841 = vadd.f32 %v1825, -0.3302995
        %v1842 = vadd.f32 %v1826, -0.3302995
        %v1843 = vadd.f32 %v1827, -0.3302995
        %v1844 = vadd.f32 %v1828, -0.3302995
        %v1845 = vadd.f32 %v1829, -0.3302995
        %v1846 = vadd.f32 %v1830, -0.3302995
        %v1847 = vadd.f32 %v1831, -0.3302995
        %v1848 = vadd.f32 %v1832, -0.3302995
        %v1849 = vadd.f32 %v1833, -0.3302995
        %v1850 = vadd.f32 %v1834, -0.3302995
        %v1851 = vadd.f32 %v1835, -0.3302995
        %v1852 = vadd.f32 %v1836, -0.3302995
        %v1853 = vadd.f32 %v1837, -0.3302995
        %v1854 = vadd.f32 %v1838, -0.3302995
        %v1855 = vadd.f32 %v1839, -0.3302995
        %v1856 = vmul.f32 %v1744, %v1840
        %v1857 = vmul.f32 %v1745, %v1841
        %v1858 = vmul.f32 %v1746, %v1842
        %v1859 = vmul.f32 %v1747, %v1843
        %v1860 = vmul.f32 %v1748, %v1844
        %v1861 = vmul.f32 %v1749, %v1845
        %v1862 = vmul.f32 %v1750, %v1846
        %v1863 = vmul.f32 %v1751, %v1847
        %v1864 = vmul.f32 %v1752, %v1848
        %v1865 = vmul.f32 %v1753, %v1849
        %v1866 = vmul.f32 %v1754, %v1850
        %v1867 = vmul.f32 %v1755, %v1851
        %v1868 = vmul.f32 %v1756, %v1852
        %v1869 = vmul.f32 %v1757, %v1853
        %v1870 = vmul.f32 %v1758, %v1854
        %v1871 = vmul.f32 %v1759, %v1855
        %v1872 = vadd.f32 %v1856, 0.999866
        %v1873 = vadd.f32 %v1857, 0.999866
        %v1874 = vadd.f32 %v1858, 0.999866
        %v1875 = vadd.f32 %v1859, 0.999866
        %v1876 = vadd.f32 %v1860, 0.999866
        %v1877 = vadd.f32 %v1861, 0.999866
        %v1878 = vadd.f32 %v1862, 0.999866
        %v1879 = vadd.f32 %v1863, 0.999866
        %v1880 = vadd.f32 %v1864, 0.999866
        %v1881 = vadd.f32 %v1865, 0.999866
        %v1882 = vadd.f32 %v1866, 0.999866
        %v1883 = vadd.f32 %v1867, 0.999866
        %v1884 = vadd.f32 %v1868, 0.999866
        %v1885 = vadd.f32 %v1869, 0.999866
        %v1886 = vadd.f32 %v1870, 0.999866
        %v1887 = vadd.f32 %v1871, 0.999866
        %v1888 = vmul.f32 %v1728, %v1872
        %v1889 = vmul.f32 %v1729, %v1873
        %v1890 = vmul.f32 %v1730, %v1874
        %v1891 = vmul.f32 %v1731, %v1875
        %v1892 = vmul.f32 %v1732, %v1876
        %v1893 = vmul.f32 %v1733, %v1877
        %v1894 = vmul.f32 %v1734, %v1878
        %v1895 = vmul.f32 %v1735, %v1879
        %v1896 = vmul.f32 %v1736, %v1880
        %v1897 = vmul.f32 %v1737, %v1881
        %v1898 = vmul.f32 %v1738, %v1882
        %v1899 = vmul.f32 %v1739, %v1883
        %v1900 = vmul.f32 %v1740, %v1884
        %v1901 = vmul.f32 %v1741, %v1885
        %v1902 = vmul.f32 %v1742, %v1886
        %v1903 = vmul.f32 %v1743, %v1887
        %v1904 = vsub.f32 1.5707964, %v1888
        %v1905 = vsub.f32 1.5707964, %v1889
        %v1906 = vsub.f32 1.5707964, %v1890
        %v1907 = vsub.f32 1.5707964, %v1891
        %v1908 = vsub.f32 1.5707964, %v1892
        %v1909 = vsub.f32 1.5707964, %v1893
        %v1910 = vsub.f32 1.5707964, %v1894
        %v1911 = vsub.f32 1.5707964, %v1895
        %v1912 = vsub.f32 1.5707964, %v1896
        %v1913 = vsub.f32 1.5707964, %v1897
        %v1914 = vsub.f32 1.5707964, %v1898
        %v1915 = vsub.f32 1.5707964, %v1899
        %v1916 = vsub.f32 1.5707964, %v1900
        %v1917 = vsub.f32 1.5707964, %v1901
        %v1918 = vsub.f32 1.5707964, %v1902
        %v1919 = vsub.f32 1.5707964, %v1903
        %v1920 = vsel %vm1664, %v1904, %v1888
        %v1921 = vsel %vm1665, %v1905, %v1889
        %v1922 = vsel %vm1666, %v1906, %v1890
        %v1923 = vsel %vm1667, %v1907, %v1891
        %v1924 = vsel %vm1668, %v1908, %v1892
        %v1925 = vsel %vm1669, %v1909, %v1893
        %v1926 = vsel %vm1670, %v1910, %v1894
        %v1927 = vsel %vm1671, %v1911, %v1895
        %v1928 = vsel %vm1672, %v1912, %v1896
        %v1929 = vsel %vm1673, %v1913, %v1897
        %v1930 = vsel %vm1674, %v1914, %v1898
        %v1931 = vsel %vm1675, %v1915, %v1899
        %v1932 = vsel %vm1676, %v1916, %v1900
        %v1933 = vsel %vm1677, %v1917, %v1901
        %v1934 = vsel %vm1678, %v1918, %v1902
        %v1935 = vsel %vm1679, %v1919, %v1903
        %v1936 = vrcp.pop %v841
        %v1937 = vmul.f32 %v758, %v1936
        %vm1938 = vcmp.gt.f32.partialorder %v1937, 1.0
        %v1939 = vmax.f32 %v1937, 1e-30
        %v1940 = vrcp.pop %v1939
        %v1941 = vmul.f32 1.0, %v1940
        %v1942 = vsel %vm1938, %v1941, %v1937
        %v1943 = vmul.f32 %v1942, %v1942
        %v1944 = vmul.f32 %v1943, 0.0208351
        %v1945 = vadd.f32 %v1944, -0.085133
        %v1946 = vmul.f32 %v1943, %v1945
        %v1947 = vadd.f32 %v1946, 0.180141
        %v1948 = vmul.f32 %v1943, %v1947
        %v1949 = vadd.f32 %v1948, -0.3302995
        %v1950 = vmul.f32 %v1943, %v1949
        %v1951 = vadd.f32 %v1950, 0.999866
        %v1952 = vmul.f32 %v1942, %v1951
        %v1953 = vsub.f32 1.5707964, %v1952
        %v1954 = vsel %vm1938, %v1953, %v1952
        %1956 = vset.pattern.permute.xlu0 2
        %1957 = vperm.xlu0 %1956, %v1920
        %v1958 = vpop.permute.xlu0 %1957
        %1961 = vset.pattern.permute.xlu0 2
        %1962 = vperm.xlu0 %1961, %v1921
        %v1963 = vpop.permute.xlu0 %1962
        %1966 = vset.pattern.permute.xlu0 2
        %1967 = vperm.xlu0 %1966, %v1922
        %v1968 = vpop.permute.xlu0 %1967
        %1971 = vset.pattern.permute.xlu0 2
        %1972 = vperm.xlu0 %1971, %v1923
        %v1973 = vpop.permute.xlu0 %1972
        %1976 = vset.pattern.permute.xlu0 2
        %1977 = vperm.xlu0 %1976, %v1924
        %v1978 = vpop.permute.xlu0 %1977
        %1981 = vset.pattern.permute.xlu0 2
        %1982 = vperm.xlu0 %1981, %v1925
        %v1983 = vpop.permute.xlu0 %1982
        %1986 = vset.pattern.permute.xlu0 2
        %1987 = vperm.xlu0 %1986, %v1926
        %v1988 = vpop.permute.xlu0 %1987
        %1991 = vset.pattern.permute.xlu0 2
        %1992 = vperm.xlu0 %1991, %v1927
        %v1993 = vpop.permute.xlu0 %1992
        %1996 = vset.pattern.permute.xlu0 2
        %1997 = vperm.xlu0 %1996, %v1928
        %v1998 = vpop.permute.xlu0 %1997
        %2001 = vset.pattern.permute.xlu0 2
        %2002 = vperm.xlu0 %2001, %v1929
        %v2003 = vpop.permute.xlu0 %2002
        %2006 = vset.pattern.permute.xlu0 2
        %2007 = vperm.xlu0 %2006, %v1930
        %v2008 = vpop.permute.xlu0 %2007
        %2011 = vset.pattern.permute.xlu0 2
        %2012 = vperm.xlu0 %2011, %v1931
        %v2013 = vpop.permute.xlu0 %2012
        %2016 = vset.pattern.permute.xlu0 2
        %2017 = vperm.xlu0 %2016, %v1932
        %v2018 = vpop.permute.xlu0 %2017
        %2021 = vset.pattern.permute.xlu0 2
        %2022 = vperm.xlu0 %2021, %v1933
        %v2023 = vpop.permute.xlu0 %2022
        %2026 = vset.pattern.permute.xlu0 2
        %2027 = vperm.xlu0 %2026, %v1934
        %v2028 = vpop.permute.xlu0 %2027
        %2031 = vset.pattern.permute.xlu0 2
        %2032 = vperm.xlu0 %2031, %v1935
        %v2033 = vpop.permute.xlu0 %2032
        %v2035 = vlaneseq
        %v2036 = vshrl.u32 %v2035, 7
        %v2037 = vsub.s32 2, %v2036
        %v2038 = vrot.slane %v1954, %v2037
        %v2039 = vsub.f32 %v1958, %v2038
        %v2040 = vsub.f32 %v1963, %v2038
        %v2041 = vsub.f32 %v1968, %v2038
        %v2042 = vsub.f32 %v1973, %v2038
        %v2043 = vsub.f32 %v1978, %v2038
        %v2044 = vsub.f32 %v1983, %v2038
        %v2045 = vsub.f32 %v1988, %v2038
        %v2046 = vsub.f32 %v1993, %v2038
        %v2047 = vsub.f32 %v1998, %v2038
        %v2048 = vsub.f32 %v2003, %v2038
        %v2049 = vsub.f32 %v2008, %v2038
        %v2050 = vsub.f32 %v2013, %v2038
        %v2051 = vsub.f32 %v2018, %v2038
        %v2052 = vsub.f32 %v2023, %v2038
        %v2053 = vsub.f32 %v2028, %v2038
        %v2054 = vsub.f32 %v2033, %v2038
        %v2055 = vmul.f32 %v2039, %v2039
        %v2056 = vmul.f32 %v2040, %v2040
        %v2057 = vmul.f32 %v2041, %v2041
        %v2058 = vmul.f32 %v2042, %v2042
        %v2059 = vmul.f32 %v2043, %v2043
        %v2060 = vmul.f32 %v2044, %v2044
        %v2061 = vmul.f32 %v2045, %v2045
        %v2062 = vmul.f32 %v2046, %v2046
        %v2063 = vmul.f32 %v2047, %v2047
        %v2064 = vmul.f32 %v2048, %v2048
        %v2065 = vmul.f32 %v2049, %v2049
        %v2066 = vmul.f32 %v2050, %v2050
        %v2067 = vmul.f32 %v2051, %v2051
        %v2068 = vmul.f32 %v2052, %v2052
        %v2069 = vmul.f32 %v2053, %v2053
        %v2070 = vmul.f32 %v2054, %v2054
        %v2071 = vmul.f32 %v2055, 0.40528473
        %v2072 = vmul.f32 %v2056, 0.40528473
        %v2073 = vmul.f32 %v2057, 0.40528473
        %v2074 = vmul.f32 %v2058, 0.40528473
        %v2075 = vmul.f32 %v2059, 0.40528473
        %v2076 = vmul.f32 %v2060, 0.40528473
        %v2077 = vmul.f32 %v2061, 0.40528473
        %v2078 = vmul.f32 %v2062, 0.40528473
        %v2079 = vmul.f32 %v2063, 0.40528473
        %v2080 = vmul.f32 %v2064, 0.40528473
        %v2081 = vmul.f32 %v2065, 0.40528473
        %v2082 = vmul.f32 %v2066, 0.40528473
        %v2083 = vmul.f32 %v2067, 0.40528473
        %v2084 = vmul.f32 %v2068, 0.40528473
        %v2085 = vmul.f32 %v2069, 0.40528473
        %v2086 = vmul.f32 %v2070, 0.40528473
        %v2087 = vsub.f32 %v2071, %v1120
        %v2088 = vsub.f32 %v2072, %v1121
        %v2089 = vsub.f32 %v2073, %v1122
        %v2090 = vsub.f32 %v2074, %v1123
        %v2091 = vsub.f32 %v2075, %v1124
        %v2092 = vsub.f32 %v2076, %v1125
        %v2093 = vsub.f32 %v2077, %v1126
        %v2094 = vsub.f32 %v2078, %v1127
        %v2095 = vsub.f32 %v2079, %v1128
        %v2096 = vsub.f32 %v2080, %v1129
        %v2097 = vsub.f32 %v2081, %v1130
        %v2098 = vsub.f32 %v2082, %v1131
        %v2099 = vsub.f32 %v2083, %v1132
        %v2100 = vsub.f32 %v2084, %v1133
        %v2101 = vsub.f32 %v2085, %v1134
        %v2102 = vsub.f32 %v2086, %v1135
        %v2103 = vadd.f32 %v2087, 1.0000001
        %v2104 = vadd.f32 %v2088, 1.0000001
        %v2105 = vadd.f32 %v2089, 1.0000001
        %v2106 = vadd.f32 %v2090, 1.0000001
        %v2107 = vadd.f32 %v2091, 1.0000001
        %v2108 = vadd.f32 %v2092, 1.0000001
        %v2109 = vadd.f32 %v2093, 1.0000001
        %v2110 = vadd.f32 %v2094, 1.0000001
        %v2111 = vadd.f32 %v2095, 1.0000001
        %v2112 = vadd.f32 %v2096, 1.0000001
        %v2113 = vadd.f32 %v2097, 1.0000001
        %v2114 = vadd.f32 %v2098, 1.0000001
        %v2115 = vadd.f32 %v2099, 1.0000001
        %v2116 = vadd.f32 %v2100, 1.0000001
        %v2117 = vadd.f32 %v2101, 1.0000001
        %v2118 = vadd.f32 %v2102, 1.0000001
        %v2119 = vrcp.pop %v2103
        %v2120 = vrcp.pop %v2104
        %v2121 = vrcp.pop %v2105
        %v2122 = vrcp.pop %v2106
        %v2123 = vrcp.pop %v2107
        %v2124 = vrcp.pop %v2108
        %v2125 = vrcp.pop %v2109
        %v2126 = vrcp.pop %v2110
        %v2127 = vrcp.pop %v2111
        %v2128 = vrcp.pop %v2112
        %v2129 = vrcp.pop %v2113
        %v2130 = vrcp.pop %v2114
        %v2131 = vrcp.pop %v2115
        %v2132 = vrcp.pop %v2116
        %v2133 = vrcp.pop %v2117
        %v2134 = vrcp.pop %v2118
        %v2135 = vmul.f32 %v2103, %v2119
        %v2136 = vmul.f32 %v2104, %v2120
        %v2137 = vmul.f32 %v2105, %v2121
        %v2138 = vmul.f32 %v2106, %v2122
        %v2139 = vmul.f32 %v2107, %v2123
        %v2140 = vmul.f32 %v2108, %v2124
        %v2141 = vmul.f32 %v2109, %v2125
        %v2142 = vmul.f32 %v2110, %v2126
        %v2143 = vmul.f32 %v2111, %v2127
        %v2144 = vmul.f32 %v2112, %v2128
        %v2145 = vmul.f32 %v2113, %v2129
        %v2146 = vmul.f32 %v2114, %v2130
        %v2147 = vmul.f32 %v2115, %v2131
        %v2148 = vmul.f32 %v2116, %v2132
        %v2149 = vmul.f32 %v2117, %v2133
        %v2150 = vmul.f32 %v2118, %v2134
        %v2151 = vsub.f32 2.0, %v2135
        %v2152 = vsub.f32 2.0, %v2136
        %v2153 = vsub.f32 2.0, %v2137
        %v2154 = vsub.f32 2.0, %v2138
        %v2155 = vsub.f32 2.0, %v2139
        %v2156 = vsub.f32 2.0, %v2140
        %v2157 = vsub.f32 2.0, %v2141
        %v2158 = vsub.f32 2.0, %v2142
        %v2159 = vsub.f32 2.0, %v2143
        %v2160 = vsub.f32 2.0, %v2144
        %v2161 = vsub.f32 2.0, %v2145
        %v2162 = vsub.f32 2.0, %v2146
        %v2163 = vsub.f32 2.0, %v2147
        %v2164 = vsub.f32 2.0, %v2148
        %v2165 = vsub.f32 2.0, %v2149
        %v2166 = vsub.f32 2.0, %v2150
        %v2167 = vmul.f32 %v2119, %v2151
        %v2168 = vmul.f32 %v2120, %v2152
        %v2169 = vmul.f32 %v2121, %v2153
        %v2170 = vmul.f32 %v2122, %v2154
        %v2171 = vmul.f32 %v2123, %v2155
        %v2172 = vmul.f32 %v2124, %v2156
        %v2173 = vmul.f32 %v2125, %v2157
        %v2174 = vmul.f32 %v2126, %v2158
        %v2175 = vmul.f32 %v2127, %v2159
        %v2176 = vmul.f32 %v2128, %v2160
        %v2177 = vmul.f32 %v2129, %v2161
        %v2178 = vmul.f32 %v2130, %v2162
        %v2179 = vmul.f32 %v2131, %v2163
        %v2180 = vmul.f32 %v2132, %v2164
        %v2181 = vmul.f32 %v2133, %v2165
        %v2182 = vmul.f32 %v2134, %v2166
        %v2183 = vmul.f32 %v2071, %v2167
        %v2184 = vmul.f32 %v2072, %v2168
        %v2185 = vmul.f32 %v2073, %v2169
        %v2186 = vmul.f32 %v2074, %v2170
        %v2187 = vmul.f32 %v2075, %v2171
        %v2188 = vmul.f32 %v2076, %v2172
        %v2189 = vmul.f32 %v2077, %v2173
        %v2190 = vmul.f32 %v2078, %v2174
        %v2191 = vmul.f32 %v2079, %v2175
        %v2192 = vmul.f32 %v2080, %v2176
        %v2193 = vmul.f32 %v2081, %v2177
        %v2194 = vmul.f32 %v2082, %v2178
        %v2195 = vmul.f32 %v2083, %v2179
        %v2196 = vmul.f32 %v2084, %v2180
        %v2197 = vmul.f32 %v2085, %v2181
        %v2198 = vmul.f32 %v2086, %v2182
        %v2199 = vrcp.pop %v1280
        %v2200 = vrcp.pop %v1281
        %v2201 = vrcp.pop %v1282
        %v2202 = vrcp.pop %v1283
        %v2203 = vrcp.pop %v1284
        %v2204 = vrcp.pop %v1285
        %v2205 = vrcp.pop %v1286
        %v2206 = vrcp.pop %v1287
        %v2207 = vrcp.pop %v1288
        %v2208 = vrcp.pop %v1289
        %v2209 = vrcp.pop %v1290
        %v2210 = vrcp.pop %v1291
        %v2211 = vrcp.pop %v1292
        %v2212 = vrcp.pop %v1293
        %v2213 = vrcp.pop %v1294
        %v2214 = vrcp.pop %v1295
        %v2215 = vmul.f32 %v1280, %v2199
        %v2216 = vmul.f32 %v1281, %v2200
        %v2217 = vmul.f32 %v1282, %v2201
        %v2218 = vmul.f32 %v1283, %v2202
        %v2219 = vmul.f32 %v1284, %v2203
        %v2220 = vmul.f32 %v1285, %v2204
        %v2221 = vmul.f32 %v1286, %v2205
        %v2222 = vmul.f32 %v1287, %v2206
        %v2223 = vmul.f32 %v1288, %v2207
        %v2224 = vmul.f32 %v1289, %v2208
        %v2225 = vmul.f32 %v1290, %v2209
        %v2226 = vmul.f32 %v1291, %v2210
        %v2227 = vmul.f32 %v1292, %v2211
        %v2228 = vmul.f32 %v1293, %v2212
        %v2229 = vmul.f32 %v1294, %v2213
        %v2230 = vmul.f32 %v1295, %v2214
        %v2231 = vsub.f32 2.0, %v2215
        %v2232 = vsub.f32 2.0, %v2216
        %v2233 = vsub.f32 2.0, %v2217
        %v2234 = vsub.f32 2.0, %v2218
        %v2235 = vsub.f32 2.0, %v2219
        %v2236 = vsub.f32 2.0, %v2220
        %v2237 = vsub.f32 2.0, %v2221
        %v2238 = vsub.f32 2.0, %v2222
        %v2239 = vsub.f32 2.0, %v2223
        %v2240 = vsub.f32 2.0, %v2224
        %v2241 = vsub.f32 2.0, %v2225
        %v2242 = vsub.f32 2.0, %v2226
        %v2243 = vsub.f32 2.0, %v2227
        %v2244 = vsub.f32 2.0, %v2228
        %v2245 = vsub.f32 2.0, %v2229
        %v2246 = vsub.f32 2.0, %v2230
        %v2247 = vmul.f32 %v2199, %v2231
        %v2248 = vmul.f32 %v2200, %v2232
        %v2249 = vmul.f32 %v2201, %v2233
        %v2250 = vmul.f32 %v2202, %v2234
        %v2251 = vmul.f32 %v2203, %v2235
        %v2252 = vmul.f32 %v2204, %v2236
        %v2253 = vmul.f32 %v2205, %v2237
        %v2254 = vmul.f32 %v2206, %v2238
        %v2255 = vmul.f32 %v2207, %v2239
        %v2256 = vmul.f32 %v2208, %v2240
        %v2257 = vmul.f32 %v2209, %v2241
        %v2258 = vmul.f32 %v2210, %v2242
        %v2259 = vmul.f32 %v2211, %v2243
        %v2260 = vmul.f32 %v2212, %v2244
        %v2261 = vmul.f32 %v2213, %v2245
        %v2262 = vmul.f32 %v2214, %v2246
        %v2263 = vmul.f32 %v1616, %v2247
        %v2264 = vmul.f32 %v1617, %v2248
        %v2265 = vmul.f32 %v1618, %v2249
        %v2266 = vmul.f32 %v1619, %v2250
        %v2267 = vmul.f32 %v1620, %v2251
        %v2268 = vmul.f32 %v1621, %v2252
        %v2269 = vmul.f32 %v1622, %v2253
        %v2270 = vmul.f32 %v1623, %v2254
        %v2271 = vmul.f32 %v1624, %v2255
        %v2272 = vmul.f32 %v1625, %v2256
        %v2273 = vmul.f32 %v1626, %v2257
        %v2274 = vmul.f32 %v1627, %v2258
        %v2275 = vmul.f32 %v1628, %v2259
        %v2276 = vmul.f32 %v1629, %v2260
        %v2277 = vmul.f32 %v1630, %v2261
        %v2278 = vmul.f32 %v1631, %v2262
        %v2279 = vmul.f32 %v2071, %v2183
        %v2280 = vmul.f32 %v2072, %v2184
        %v2281 = vmul.f32 %v2073, %v2185
        %v2282 = vmul.f32 %v2074, %v2186
        %v2283 = vmul.f32 %v2075, %v2187
        %v2284 = vmul.f32 %v2076, %v2188
        %v2285 = vmul.f32 %v2077, %v2189
        %v2286 = vmul.f32 %v2078, %v2190
        %v2287 = vmul.f32 %v2079, %v2191
        %v2288 = vmul.f32 %v2080, %v2192
        %v2289 = vmul.f32 %v2081, %v2193
        %v2290 = vmul.f32 %v2082, %v2194
        %v2291 = vmul.f32 %v2083, %v2195
        %v2292 = vmul.f32 %v2084, %v2196
        %v2293 = vmul.f32 %v2085, %v2197
        %v2294 = vmul.f32 %v2086, %v2198
        %v2295 = vadd.f32 %v2263, %v2279
        %v2296 = vadd.f32 %v2264, %v2280
        %v2297 = vadd.f32 %v2265, %v2281
        %v2298 = vadd.f32 %v2266, %v2282
        %v2299 = vadd.f32 %v2267, %v2283
        %v2300 = vadd.f32 %v2268, %v2284
        %v2301 = vadd.f32 %v2269, %v2285
        %v2302 = vadd.f32 %v2270, %v2286
        %v2303 = vadd.f32 %v2271, %v2287
        %v2304 = vadd.f32 %v2272, %v2288
        %v2305 = vadd.f32 %v2273, %v2289
        %v2306 = vadd.f32 %v2274, %v2290
        %v2307 = vadd.f32 %v2275, %v2291
        %v2308 = vadd.f32 %v2276, %v2292
        %v2309 = vadd.f32 %v2277, %v2293
        %v2310 = vadd.f32 %v2278, %v2294
        %v2311 = vsub.f32 %v1120, %v2295
        %v2312 = vsub.f32 %v1121, %v2296
        %v2313 = vsub.f32 %v1122, %v2297
        %v2314 = vsub.f32 %v1123, %v2298
        %v2315 = vsub.f32 %v1124, %v2299
        %v2316 = vsub.f32 %v1125, %v2300
        %v2317 = vsub.f32 %v1126, %v2301
        %v2318 = vsub.f32 %v1127, %v2302
        %v2319 = vsub.f32 %v1128, %v2303
        %v2320 = vsub.f32 %v1129, %v2304
        %v2321 = vsub.f32 %v1130, %v2305
        %v2322 = vsub.f32 %v1131, %v2306
        %v2323 = vsub.f32 %v1132, %v2307
        %v2324 = vsub.f32 %v1133, %v2308
        %v2325 = vsub.f32 %v1134, %v2309
        %v2326 = vsub.f32 %v1135, %v2310
        %v2327 = vcvt.f32.s32.to.zero.pseudo %v320
        %v2328 = vlaneseq
        %v2329 = vshrl.u32 %v2328, 7
        %v2330 = vadd.s32 %v2329, 8
        %v2331 = vadd.s32 %v2329, 16
        %v2332 = vadd.s32 %v2329, 24
        %v2333 = vadd.s32 %v2329, 32
        %v2334 = vadd.s32 %v2329, 40
        %v2335 = vadd.s32 %v2329, 48
        %v2336 = vadd.s32 %v2329, 56
        %v2337 = vadd.s32 %v2329, 64
        %v2338 = vadd.s32 %v2329, 72
        %v2339 = vlaneseq
        %v2340 = vshrl.u32 %v2339, 7
        %v2341 = vsub.s32 0, %v2340
        %v2342 = vrot.slane %v2327, %v2341
        %vm2343 = vcmp.eq.s32.totalorder %v2329, %v2342
        %vm2344 = vcmp.eq.s32.totalorder %v2330, %v2342
        %vm2345 = vcmp.eq.s32.totalorder %v2331, %v2342
        %vm2346 = vcmp.eq.s32.totalorder %v2332, %v2342
        %vm2347 = vcmp.eq.s32.totalorder %v2333, %v2342
        %vm2348 = vcmp.eq.s32.totalorder %v2334, %v2342
        %vm2349 = vcmp.eq.s32.totalorder %v2335, %v2342
        %vm2350 = vcmp.eq.s32.totalorder %v2336, %v2342
        %vm2351 = vcmp.eq.s32.totalorder %v2337, %v2342
        %vm2352 = vcmp.eq.s32.totalorder %v2338, %v2342
        %v2353 = vsel %vm2343, 1, 0
        %v2354 = vsel %vm2344, 1, 0
        %v2355 = vsel %vm2345, 1, 0
        %v2356 = vsel %vm2346, 1, 0
        %v2357 = vsel %vm2347, 1, 0
        %v2358 = vsel %vm2348, 1, 0
        %v2359 = vsel %vm2349, 1, 0
        %v2360 = vsel %vm2350, 1, 0
        %v2361 = vsel %vm2351, 1, 0
        %v2362 = vsel %vm2352, 1, 0
        %v2363 = vcvt.s32.f32 %v2353
        %v2364 = vcvt.s32.f32 %v2354
        %v2365 = vcvt.s32.f32 %v2355
        %v2366 = vcvt.s32.f32 %v2356
        %v2367 = vcvt.s32.f32 %v2357
        %v2368 = vcvt.s32.f32 %v2358
        %v2369 = vcvt.s32.f32 %v2359
        %v2370 = vcvt.s32.f32 %v2360
        %v2371 = vcvt.s32.f32 %v2361
        %v2372 = vcvt.s32.f32 %v2362
        %vm2373 = vcmask 654336
        %v2375 = vsel %vm2373, %v288, 0
        %v2378 = vsel %vm2373, %v289, 0
        %v2381 = vsel %vm2373, %v290, 0
        %v2384 = vsel %vm2373, %v291, 0
        %v2387 = vsel %vm2373, %v292, 0
        %v2390 = vsel %vm2373, %v293, 0
        %v2393 = vsel %vm2373, %v294, 0
        %v2396 = vsel %vm2373, %v295, 0
        %v2399 = vsel %vm2373, %v296, 0
        %v2402 = vsel %vm2373, %v297, 0
        %v2405 = vsel %vm2373, %v298, 0
        %v2408 = vsel %vm2373, %v299, 0
        %v2411 = vsel %vm2373, %v300, 0
        %v2414 = vsel %vm2373, %v301, 0
        %v2417 = vsel %vm2373, %v302, 0
        %v2420 = vsel %vm2373, %v303, 0
        %2422 = vmatprep.subr.mxu0 0.0
        %2423 = vmatpush1.msra.mxu0 %v2363
        %2424 = vmatprep.subr.mxu0 0.0
        %2425 = vmatpush1.msra.mxu0 %v2364
        %2426 = vmatprep.subr.mxu0 0.0
        %2427 = vmatpush1.msra.mxu0 %v2365
        %2428 = vmatprep.subr.mxu0 0.0
        %2429 = vmatpush1.msra.mxu0 %v2366
        %2430 = vmatprep.subr.mxu0 0.0
        %2431 = vmatpush1.msra.mxu0 %v2367
        %2432 = vmatprep.subr.mxu0 0.0
        %2433 = vmatpush1.msra.mxu0 %v2368
        %2434 = vmatprep.subr.mxu0 0.0
        %2435 = vmatpush1.msra.mxu0 %v2369
        %2436 = vmatprep.subr.mxu0 0.0
        %2437 = vmatpush1.msra.mxu0 %v2370
        %2438 = vmatprep.subr.mxu0 0.0
        %2439 = vmatpush1.msra.mxu0 %v2371
        %2440 = vmatprep.subr.mxu0 0.0
        %2441 = vmatpush1.msra.mxu0 %v2372
        %2442 = vmatprep.subr.mxu0 0.0
        %2443 = vmatpush1.msra.mxu0 0.0
        %2444 = vmatprep.subr.mxu0 0.0
        %2445 = vmatpush1.msra.mxu0 0.0
        %2446 = vmatprep.subr.mxu0 0.0
        %2447 = vmatpush1.msra.mxu0 0.0
        %2448 = vmatprep.subr.mxu0 0.0
        %2449 = vmatpush1.msra.mxu0 0.0
        %2450 = vmatprep.subr.mxu0 0.0
        %2451 = vmatpush1.msra.mxu0 0.0
        %2452 = vmatprep.subr.mxu0 0.0
        %2453 = vmatpush1.msra.mxu0 0.0
        %2454 = vmatprep.subr.mxu0 0.0
        %2455 = vmatpush1.msra.mxu0 0.0
        %2456 = vmatprep.subr.mxu0 0.0
        %2457 = vmatpush1.msra.mxu0 0.0
        %2458 = vmatprep.subr.mxu0 0.0
        %2459 = vmatpush1.msra.mxu0 0.0
        %2460 = vmatprep.subr.mxu0 0.0
        %2461 = vmatpush1.msra.mxu0 0.0
        %2462 = vmatprep.subr.mxu0 0.0
        %2463 = vmatpush1.msra.mxu0 0.0
        %2464 = vmatprep.subr.mxu0 0.0
        %2465 = vmatpush1.msra.mxu0 0.0
        %2466 = vmatprep.subr.mxu0 0.0
        %2467 = vmatpush1.msra.mxu0 0.0
        %2468 = vmatprep.subr.mxu0 0.0
        %2469 = vmatpush1.msra.mxu0 0.0
        %2470 = vmatprep.subr.mxu0 0.0
        %2471 = vmatpush1.msra.mxu0 0.0
        %2472 = vmatprep.subr.mxu0 0.0
        %2473 = vmatpush1.msra.mxu0 0.0
        %2474 = vmatprep.subr.mxu0 0.0
        %2475 = vmatpush1.msra.mxu0 0.0
        %2476 = vmatprep.subr.mxu0 0.0
        %2477 = vmatpush1.msra.mxu0 0.0
        %2478 = vmatprep.subr.mxu0 0.0
        %2479 = vmatpush1.msra.mxu0 0.0
        %2480 = vmatprep.subr.mxu0 0.0
        %2481 = vmatpush1.msra.mxu0 0.0
        %2482 = vmatprep.subr.mxu0 0.0
        %2483 = vmatpush1.msra.mxu0 0.0
        %2484 = vmatprep.subr.mxu0 0.0
        %2485 = vmatpush1.msra.mxu0 0.0
        %2486 = vmatprep.mubr.f32.mxu0 0.0
        %2487 = vmatmul.mubr.f32.gmra.mrb[0].mxu0 %v2375
        %v2488 = vpop.f32.mrb[0].mxu0
        %v2489 = vadd.f32 0.0, %v2488
        %v2490 = vpop.f32.mrb[0].mxu0
        %2491 = vmatprep.mubr.f32.mxu0 0.0
        %2492 = vmatmul.mubr.f32.gmra.mrb[0].mxu0 %v2378
        %v2493 = vpop.f32.mrb[0].mxu0
        %v2494 = vadd.f32 0.0, %v2493
        %v2495 = vpop.f32.mrb[0].mxu0
        %2496 = vmatprep.mubr.f32.mxu0 0.0
        %2497 = vmatmul.mubr.f32.gmra.mrb[0].mxu0 %v2381
        %v2498 = vpop.f32.mrb[0].mxu0
        %v2499 = vadd.f32 0.0, %v2498
        %v2500 = vpop.f32.mrb[0].mxu0
        %2501 = vmatprep.mubr.f32.mxu0 0.0
        %2502 = vmatmul.mubr.f32.gmra.mrb[0].mxu0 %v2384
        %v2503 = vpop.f32.mrb[0].mxu0
        %v2504 = vadd.f32 0.0, %v2503
        %v2505 = vpop.f32.mrb[0].mxu0
        %2506 = vmatprep.mubr.f32.mxu0 0.0
        %2507 = vmatmul.mubr.f32.gmra.mrb[0].mxu0 %v2387
        %v2508 = vpop.f32.mrb[0].mxu0
        %v2509 = vadd.f32 0.0, %v2508
        %v2510 = vpop.f32.mrb[0].mxu0
        %2511 = vmatprep.mubr.f32.mxu0 0.0
        %2512 = vmatmul.mubr.f32.gmra.mrb[0].mxu0 %v2390
        %v2513 = vpop.f32.mrb[0].mxu0
        %v2514 = vadd.f32 0.0, %v2513
        %v2515 = vpop.f32.mrb[0].mxu0
        %2516 = vmatprep.mubr.f32.mxu0 0.0
        %2517 = vmatmul.mubr.f32.gmra.mrb[0].mxu0 %v2393
        %v2518 = vpop.f32.mrb[0].mxu0
        %v2519 = vadd.f32 0.0, %v2518
        %v2520 = vpop.f32.mrb[0].mxu0
        %2521 = vmatprep.mubr.f32.mxu0 0.0
        %2522 = vmatmul.mubr.f32.gmra.mrb[0].mxu0 %v2396
        %v2523 = vpop.f32.mrb[0].mxu0
        %v2524 = vadd.f32 0.0, %v2523
        %v2525 = vpop.f32.mrb[0].mxu0
        %2526 = vmatprep.mubr.f32.mxu0 0.0
        %2527 = vmatmul.mubr.f32.gmra.mrb[0].mxu0 %v2399
        %v2528 = vpop.f32.mrb[0].mxu0
        %v2529 = vadd.f32 0.0, %v2528
        %v2530 = vpop.f32.mrb[0].mxu0
        %2531 = vmatprep.mubr.f32.mxu0 0.0
        %2532 = vmatmul.mubr.f32.gmra.mrb[0].mxu0 %v2402
        %v2533 = vpop.f32.mrb[0].mxu0
        %v2534 = vadd.f32 0.0, %v2533
        %v2535 = vpop.f32.mrb[0].mxu0
        %2536 = vmatprep.mubr.f32.mxu0 0.0
        %2537 = vmatmul.mubr.f32.gmra.mrb[0].mxu0 %v2405
        %v2538 = vpop.f32.mrb[0].mxu0
        %v2539 = vadd.f32 0.0, %v2538
        %v2540 = vpop.f32.mrb[0].mxu0
        %2541 = vmatprep.mubr.f32.mxu0 0.0
        %2542 = vmatmul.mubr.f32.gmra.mrb[0].mxu0 %v2408
        %v2543 = vpop.f32.mrb[0].mxu0
        %v2544 = vadd.f32 0.0, %v2543
        %v2545 = vpop.f32.mrb[0].mxu0
        %2546 = vmatprep.mubr.f32.mxu0 0.0
        %2547 = vmatmul.mubr.f32.gmra.mrb[0].mxu0 %v2411
        %v2548 = vpop.f32.mrb[0].mxu0
        %v2549 = vadd.f32 0.0, %v2548
        %v2550 = vpop.f32.mrb[0].mxu0
        %2551 = vmatprep.mubr.f32.mxu0 0.0
        %2552 = vmatmul.mubr.f32.gmra.mrb[0].mxu0 %v2414
        %v2553 = vpop.f32.mrb[0].mxu0
        %v2554 = vadd.f32 0.0, %v2553
        %v2555 = vpop.f32.mrb[0].mxu0
        %2556 = vmatprep.mubr.f32.mxu0 0.0
        %2557 = vmatmul.mubr.f32.gmra.mrb[0].mxu0 %v2417
        %v2558 = vpop.f32.mrb[0].mxu0
        %v2559 = vadd.f32 0.0, %v2558
        %v2560 = vpop.f32.mrb[0].mxu0
        %2561 = vmatprep.mubr.f32.mxu0 0.0
        %2562 = vmatmul.mubr.f32.gmra.mrb[0].mxu0 %v2420
        %v2563 = vpop.f32.mrb[0].mxu0
        %v2564 = vadd.f32 0.0, %v2563
        %v2565 = vpop.f32.mrb[0].mxu0
        %2566 = vdwg.mxu0
        %v2567 = vmul.f32 %v2311, %v2311
        %v2568 = vmul.f32 %v2312, %v2312
        %v2569 = vmul.f32 %v2313, %v2313
        %v2570 = vmul.f32 %v2314, %v2314
        %v2571 = vmul.f32 %v2315, %v2315
        %v2572 = vmul.f32 %v2316, %v2316
        %v2573 = vmul.f32 %v2317, %v2317
        %v2574 = vmul.f32 %v2318, %v2318
        %v2575 = vmul.f32 %v2319, %v2319
        %v2576 = vmul.f32 %v2320, %v2320
        %v2577 = vmul.f32 %v2321, %v2321
        %v2578 = vmul.f32 %v2322, %v2322
        %v2579 = vmul.f32 %v2323, %v2323
        %v2580 = vmul.f32 %v2324, %v2324
        %v2581 = vmul.f32 %v2325, %v2325
        %v2582 = vmul.f32 %v2326, %v2326
        %v2583 = vmul.f32 %v2567, %v2567
        %v2584 = vmul.f32 %v2568, %v2568
        %v2585 = vmul.f32 %v2569, %v2569
        %v2586 = vmul.f32 %v2570, %v2570
        %v2587 = vmul.f32 %v2571, %v2571
        %v2588 = vmul.f32 %v2572, %v2572
        %v2589 = vmul.f32 %v2573, %v2573
        %v2590 = vmul.f32 %v2574, %v2574
        %v2591 = vmul.f32 %v2575, %v2575
        %v2592 = vmul.f32 %v2576, %v2576
        %v2593 = vmul.f32 %v2577, %v2577
        %v2594 = vmul.f32 %v2578, %v2578
        %v2595 = vmul.f32 %v2579, %v2579
        %v2596 = vmul.f32 %v2580, %v2580
        %v2597 = vmul.f32 %v2581, %v2581
        %v2598 = vmul.f32 %v2582, %v2582
        %v2599 = vmul.f32 %v2567, %v2583
        %v2600 = vmul.f32 %v2568, %v2584
        %v2601 = vmul.f32 %v2569, %v2585
        %v2602 = vmul.f32 %v2570, %v2586
        %v2603 = vmul.f32 %v2571, %v2587
        %v2604 = vmul.f32 %v2572, %v2588
        %v2605 = vmul.f32 %v2573, %v2589
        %v2606 = vmul.f32 %v2574, %v2590
        %v2607 = vmul.f32 %v2575, %v2591
        %v2608 = vmul.f32 %v2576, %v2592
        %v2609 = vmul.f32 %v2577, %v2593
        %v2610 = vmul.f32 %v2578, %v2594
        %v2611 = vmul.f32 %v2579, %v2595
        %v2612 = vmul.f32 %v2580, %v2596
        %v2613 = vmul.f32 %v2581, %v2597
        %v2614 = vmul.f32 %v2582, %v2598
        %v2615 = vmul.f32 %v2489, %v2599
        %v2616 = vmul.f32 %v2494, %v2600
        %v2617 = vmul.f32 %v2499, %v2601
        %v2618 = vmul.f32 %v2504, %v2602
        %v2619 = vmul.f32 %v2509, %v2603
        %v2620 = vmul.f32 %v2514, %v2604
        %v2621 = vmul.f32 %v2519, %v2605
        %v2622 = vmul.f32 %v2524, %v2606
        %v2623 = vmul.f32 %v2529, %v2607
        %v2624 = vmul.f32 %v2534, %v2608
        %v2625 = vmul.f32 %v2539, %v2609
        %v2626 = vmul.f32 %v2544, %v2610
        %v2627 = vmul.f32 %v2549, %v2611
        %v2628 = vmul.f32 %v2554, %v2612
        %v2629 = vmul.f32 %v2559, %v2613
        %v2630 = vmul.f32 %v2564, %v2614
        %v2631 = vadd.s32 %v2329, 80
        %v2632 = vadd.s32 %v2329, 88
        %v2633 = vadd.s32 %v2329, 96
        %v2634 = vadd.s32 %v2329, 104
        %v2635 = vadd.s32 %v2329, 112
        %v2636 = vadd.s32 %v2329, 120
        %vm2637 = vcmask 64512
        %v2638 = vsel %vm2637, %v2615, -inf
        %v2639 = vsel %vm2637, %v2616, -inf
        %v2640 = vsel %vm2637, %v2617, -inf
        %v2641 = vsel %vm2637, %v2618, -inf
        %v2642 = vsel %vm2637, %v2619, -inf
        %v2643 = vmax.f32 %v2638, %v2642
        %v2644 = vsel %vm2637, %v2620, -inf
        %v2645 = vmax.f32 %v2639, %v2644
        %v2646 = vsel %vm2637, %v2621, -inf
        %v2647 = vmax.f32 %v2640, %v2646
        %v2648 = vsel %vm2637, %v2622, -inf
        %v2649 = vmax.f32 %v2641, %v2648
        %v2650 = vsel %vm2637, %v2623, -inf
        %v2651 = vmax.f32 %v2643, %v2650
        %v2652 = vsel %vm2637, %v2624, -inf
        %v2653 = vmax.f32 %v2645, %v2652
        %v2654 = vsel %vm2637, %v2625, -inf
        %v2655 = vmax.f32 %v2647, %v2654
        %v2656 = vsel %vm2637, %v2626, -inf
        %v2657 = vmax.f32 %v2649, %v2656
        %v2658 = vsel %vm2637, %v2627, -inf
        %v2659 = vmax.f32 %v2651, %v2658
        %v2660 = vsel %vm2637, %v2628, -inf
        %v2661 = vmax.f32 %v2653, %v2660
        %v2662 = vsel %vm2637, %v2629, -inf
        %v2663 = vmax.f32 %v2655, %v2662
        %v2664 = vsel %vm2637, %v2630, -inf
        %v2665 = vmax.f32 %v2657, %v2664
        %v2666 = vmax.f32 %v2659, %v2661
        %v2667 = vmax.f32 %v2663, %v2665
        %v2668 = vmax.f32 %v2666, %v2667
        %v2669 = vrot.slane %v2668, 4
        %v2670 = vmax.f32 %v2668, %v2669
        %v2671 = vrot.slane %v2670, 2
        %v2672 = vmax.f32 %v2670, %v2671
        %v2673 = vrot.slane %v2672, 1
        %v2674 = vmax.f32 %v2672, %v2673
        %vm2675 = vcmp.eq.f32.partialorder %v2615, %v2674
        %vm2676 = vcmp.eq.f32.partialorder %v2616, %v2674
        %vm2677 = vcmp.eq.f32.partialorder %v2617, %v2674
        %vm2678 = vcmp.eq.f32.partialorder %v2618, %v2674
        %vm2679 = vcmp.eq.f32.partialorder %v2619, %v2674
        %vm2680 = vcmp.eq.f32.partialorder %v2620, %v2674
        %vm2681 = vcmp.eq.f32.partialorder %v2621, %v2674
        %vm2682 = vcmp.eq.f32.partialorder %v2622, %v2674
        %vm2683 = vcmp.eq.f32.partialorder %v2623, %v2674
        %vm2684 = vcmp.eq.f32.partialorder %v2624, %v2674
        %vm2685 = vcmp.eq.f32.partialorder %v2625, %v2674
        %vm2686 = vcmp.eq.f32.partialorder %v2626, %v2674
        %vm2687 = vcmp.eq.f32.partialorder %v2627, %v2674
        %vm2688 = vcmp.eq.f32.partialorder %v2628, %v2674
        %vm2689 = vcmp.eq.f32.partialorder %v2629, %v2674
        %vm2690 = vcmp.eq.f32.partialorder %v2630, %v2674
        %v2691 = vsel %vm2675, %v2329, 128
        %v2692 = vsel %vm2676, %v2330, 128
        %v2693 = vsel %vm2677, %v2331, 128
        %v2694 = vsel %vm2678, %v2332, 128
        %v2695 = vsel %vm2679, %v2333, 128
        %v2696 = vsel %vm2680, %v2334, 128
        %v2697 = vsel %vm2681, %v2335, 128
        %v2698 = vsel %vm2682, %v2336, 128
        %v2699 = vsel %vm2683, %v2337, 128
        %v2700 = vsel %vm2684, %v2338, 128
        %v2701 = vsel %vm2685, %v2631, 128
        %v2702 = vsel %vm2686, %v2632, 128
        %v2703 = vsel %vm2687, %v2633, 128
        %v2704 = vsel %vm2688, %v2634, 128
        %v2705 = vsel %vm2689, %v2635, 128
        %v2706 = vsel %vm2690, %v2636, 128
        %v2707 = vsel %vm2637, %v2691, 2147483647
        %v2708 = vsel %vm2637, %v2692, 2147483647
        %v2709 = vsel %vm2637, %v2693, 2147483647
        %v2710 = vsel %vm2637, %v2694, 2147483647
        %v2711 = vsel %vm2637, %v2695, 2147483647
        %vm2712 = vcmp.lt.s32.totalorder %v2707, %v2711
        %v2713 = vsel %vm2712, %v2707, %v2711
        %v2714 = vsel %vm2637, %v2696, 2147483647
        %vm2715 = vcmp.lt.s32.totalorder %v2708, %v2714
        %v2716 = vsel %vm2715, %v2708, %v2714
        %v2717 = vsel %vm2637, %v2697, 2147483647
        %vm2718 = vcmp.lt.s32.totalorder %v2709, %v2717
        %v2719 = vsel %vm2718, %v2709, %v2717
        %v2720 = vsel %vm2637, %v2698, 2147483647
        %vm2721 = vcmp.lt.s32.totalorder %v2710, %v2720
        %v2722 = vsel %vm2721, %v2710, %v2720
        %v2723 = vsel %vm2637, %v2699, 2147483647
        %vm2724 = vcmp.lt.s32.totalorder %v2713, %v2723
        %v2725 = vsel %vm2724, %v2713, %v2723
        %v2726 = vsel %vm2637, %v2700, 2147483647
        %vm2727 = vcmp.lt.s32.totalorder %v2716, %v2726
        %v2728 = vsel %vm2727, %v2716, %v2726
        %v2729 = vsel %vm2637, %v2701, 2147483647
        %vm2730 = vcmp.lt.s32.totalorder %v2719, %v2729
        %v2731 = vsel %vm2730, %v2719, %v2729
        %v2732 = vsel %vm2637, %v2702, 2147483647
        %vm2733 = vcmp.lt.s32.totalorder %v2722, %v2732
        %v2734 = vsel %vm2733, %v2722, %v2732
        %v2735 = vsel %vm2637, %v2703, 2147483647
        %vm2736 = vcmp.lt.s32.totalorder %v2725, %v2735
        %v2737 = vsel %vm2736, %v2725, %v2735
        %v2738 = vsel %vm2637, %v2704, 2147483647
        %vm2739 = vcmp.lt.s32.totalorder %v2728, %v2738
        %v2740 = vsel %vm2739, %v2728, %v2738
        %v2741 = vsel %vm2637, %v2705, 2147483647
        %vm2742 = vcmp.lt.s32.totalorder %v2731, %v2741
        %v2743 = vsel %vm2742, %v2731, %v2741
        %v2744 = vsel %vm2637, %v2706, 2147483647
        %vm2745 = vcmp.lt.s32.totalorder %v2734, %v2744
        %v2746 = vsel %vm2745, %v2734, %v2744
        %vm2747 = vcmp.lt.s32.totalorder %v2737, %v2740
        %v2748 = vsel %vm2747, %v2737, %v2740
        %vm2749 = vcmp.lt.s32.totalorder %v2743, %v2746
        %v2750 = vsel %vm2749, %v2743, %v2746
        %vm2751 = vcmp.lt.s32.totalorder %v2748, %v2750
        %v2752 = vsel %vm2751, %v2748, %v2750
        %v2753 = vrot.slane %v2752, 4
        %vm2754 = vcmp.lt.s32.totalorder %v2752, %v2753
        %v2755 = vsel %vm2754, %v2752, %v2753
        %v2756 = vrot.slane %v2755, 2
        %vm2757 = vcmp.lt.s32.totalorder %v2755, %v2756
        %v2758 = vsel %vm2757, %v2755, %v2756
        %v2759 = vrot.slane %v2758, 1
        %vm2760 = vcmp.lt.s32.totalorder %v2758, %v2759
        %v2761 = vsel %vm2760, %v2758, %v2759
        %vm2762 = vcmp.eq.s32.totalorder %v2329, %v2761
        %vm2763 = vcmp.eq.s32.totalorder %v2330, %v2761
        %vm2764 = vcmp.eq.s32.totalorder %v2331, %v2761
        %vm2765 = vcmp.eq.s32.totalorder %v2332, %v2761
        %vm2766 = vcmp.eq.s32.totalorder %v2333, %v2761
        %vm2767 = vcmp.eq.s32.totalorder %v2334, %v2761
        %vm2768 = vcmp.eq.s32.totalorder %v2335, %v2761
        %vm2769 = vcmp.eq.s32.totalorder %v2336, %v2761
        %vm2770 = vcmp.eq.s32.totalorder %v2337, %v2761
        %vm2771 = vcmp.eq.s32.totalorder %v2338, %v2761
        %vm2772 = vcmp.eq.s32.totalorder %v2631, %v2761
        %vm2773 = vcmp.eq.s32.totalorder %v2632, %v2761
        %vm2774 = vcmp.eq.s32.totalorder %v2633, %v2761
        %vm2775 = vcmp.eq.s32.totalorder %v2634, %v2761
        %vm2776 = vcmp.eq.s32.totalorder %v2635, %v2761
        %vm2777 = vcmp.eq.s32.totalorder %v2636, %v2761
        %v2778 = vsel %vm2762, -inf, %v2615
        %v2779 = vsel %vm2763, -inf, %v2616
        %v2780 = vsel %vm2764, -inf, %v2617
        %v2781 = vsel %vm2765, -inf, %v2618
        %v2782 = vsel %vm2766, -inf, %v2619
        %v2783 = vsel %vm2767, -inf, %v2620
        %v2784 = vsel %vm2768, -inf, %v2621
        %v2785 = vsel %vm2769, -inf, %v2622
        %v2786 = vsel %vm2770, -inf, %v2623
        %v2787 = vsel %vm2771, -inf, %v2624
        %v2788 = vsel %vm2772, -inf, %v2625
        %v2789 = vsel %vm2773, -inf, %v2626
        %v2790 = vsel %vm2774, -inf, %v2627
        %v2791 = vsel %vm2775, -inf, %v2628
        %v2792 = vsel %vm2776, -inf, %v2629
        %v2793 = vsel %vm2777, -inf, %v2630
        %v2794 = vsel %vm2637, %v2778, -inf
        %v2795 = vsel %vm2637, %v2779, -inf
        %v2796 = vsel %vm2637, %v2780, -inf
        %v2797 = vsel %vm2637, %v2781, -inf
        %v2798 = vsel %vm2637, %v2782, -inf
        %v2799 = vmax.f32 %v2794, %v2798
        %v2800 = vsel %vm2637, %v2783, -inf
        %v2801 = vmax.f32 %v2795, %v2800
        %v2802 = vsel %vm2637, %v2784, -inf
        %v2803 = vmax.f32 %v2796, %v2802
        %v2804 = vsel %vm2637, %v2785, -inf
        %v2805 = vmax.f32 %v2797, %v2804
        %v2806 = vsel %vm2637, %v2786, -inf
        %v2807 = vmax.f32 %v2799, %v2806
        %v2808 = vsel %vm2637, %v2787, -inf
        %v2809 = vmax.f32 %v2801, %v2808
        %v2810 = vsel %vm2637, %v2788, -inf
        %v2811 = vmax.f32 %v2803, %v2810
        %v2812 = vsel %vm2637, %v2789, -inf
        %v2813 = vmax.f32 %v2805, %v2812
        %v2814 = vsel %vm2637, %v2790, -inf
        %v2815 = vmax.f32 %v2807, %v2814
        %v2816 = vsel %vm2637, %v2791, -inf
        %v2817 = vmax.f32 %v2809, %v2816
        %v2818 = vsel %vm2637, %v2792, -inf
        %v2819 = vmax.f32 %v2811, %v2818
        %v2820 = vsel %vm2637, %v2793, -inf
        %v2821 = vmax.f32 %v2813, %v2820
        %v2822 = vmax.f32 %v2815, %v2817
        %v2823 = vmax.f32 %v2819, %v2821
        %v2824 = vmax.f32 %v2822, %v2823
        %v2825 = vrot.slane %v2824, 4
        %v2826 = vmax.f32 %v2824, %v2825
        %v2827 = vrot.slane %v2826, 2
        %v2828 = vmax.f32 %v2826, %v2827
        %v2829 = vrot.slane %v2828, 1
        %v2830 = vmax.f32 %v2828, %v2829
        %vm2831 = vcmp.eq.f32.partialorder %v2778, %v2830
        %vm2832 = vcmp.eq.f32.partialorder %v2779, %v2830
        %vm2833 = vcmp.eq.f32.partialorder %v2780, %v2830
        %vm2834 = vcmp.eq.f32.partialorder %v2781, %v2830
        %vm2835 = vcmp.eq.f32.partialorder %v2782, %v2830
        %vm2836 = vcmp.eq.f32.partialorder %v2783, %v2830
        %vm2837 = vcmp.eq.f32.partialorder %v2784, %v2830
        %vm2838 = vcmp.eq.f32.partialorder %v2785, %v2830
        %vm2839 = vcmp.eq.f32.partialorder %v2786, %v2830
        %vm2840 = vcmp.eq.f32.partialorder %v2787, %v2830
        %vm2841 = vcmp.eq.f32.partialorder %v2788, %v2830
        %vm2842 = vcmp.eq.f32.partialorder %v2789, %v2830
        %vm2843 = vcmp.eq.f32.partialorder %v2790, %v2830
        %vm2844 = vcmp.eq.f32.partialorder %v2791, %v2830
        %vm2845 = vcmp.eq.f32.partialorder %v2792, %v2830
        %vm2846 = vcmp.eq.f32.partialorder %v2793, %v2830
        %v2847 = vsel %vm2831, %v2329, 128
        %v2848 = vsel %vm2832, %v2330, 128
        %v2849 = vsel %vm2833, %v2331, 128
        %v2850 = vsel %vm2834, %v2332, 128
        %v2851 = vsel %vm2835, %v2333, 128
        %v2852 = vsel %vm2836, %v2334, 128
        %v2853 = vsel %vm2837, %v2335, 128
        %v2854 = vsel %vm2838, %v2336, 128
        %v2855 = vsel %vm2839, %v2337, 128
        %v2856 = vsel %vm2840, %v2338, 128
        %v2857 = vsel %vm2841, %v2631, 128
        %v2858 = vsel %vm2842, %v2632, 128
        %v2859 = vsel %vm2843, %v2633, 128
        %v2860 = vsel %vm2844, %v2634, 128
        %v2861 = vsel %vm2845, %v2635, 128
        %v2862 = vsel %vm2846, %v2636, 128
        %v2863 = vsel %vm2637, %v2847, 2147483647
        %v2864 = vsel %vm2637, %v2848, 2147483647
        %v2865 = vsel %vm2637, %v2849, 2147483647
        %v2866 = vsel %vm2637, %v2850, 2147483647
        %v2867 = vsel %vm2637, %v2851, 2147483647
        %vm2868 = vcmp.lt.s32.totalorder %v2863, %v2867
        %v2869 = vsel %vm2868, %v2863, %v2867
        %v2870 = vsel %vm2637, %v2852, 2147483647
        %vm2871 = vcmp.lt.s32.totalorder %v2864, %v2870
        %v2872 = vsel %vm2871, %v2864, %v2870
        %v2873 = vsel %vm2637, %v2853, 2147483647
        %vm2874 = vcmp.lt.s32.totalorder %v2865, %v2873
        %v2875 = vsel %vm2874, %v2865, %v2873
        %v2876 = vsel %vm2637, %v2854, 2147483647
        %vm2877 = vcmp.lt.s32.totalorder %v2866, %v2876
        %v2878 = vsel %vm2877, %v2866, %v2876
        %v2879 = vsel %vm2637, %v2855, 2147483647
        %vm2880 = vcmp.lt.s32.totalorder %v2869, %v2879
        %v2881 = vsel %vm2880, %v2869, %v2879
        %v2882 = vsel %vm2637, %v2856, 2147483647
        %vm2883 = vcmp.lt.s32.totalorder %v2872, %v2882
        %v2884 = vsel %vm2883, %v2872, %v2882
        %v2885 = vsel %vm2637, %v2857, 2147483647
        %vm2886 = vcmp.lt.s32.totalorder %v2875, %v2885
        %v2887 = vsel %vm2886, %v2875, %v2885
        %v2888 = vsel %vm2637, %v2858, 2147483647
        %vm2889 = vcmp.lt.s32.totalorder %v2878, %v2888
        %v2890 = vsel %vm2889, %v2878, %v2888
        %v2891 = vsel %vm2637, %v2859, 2147483647
        %vm2892 = vcmp.lt.s32.totalorder %v2881, %v2891
        %v2893 = vsel %vm2892, %v2881, %v2891
        %v2894 = vsel %vm2637, %v2860, 2147483647
        %vm2895 = vcmp.lt.s32.totalorder %v2884, %v2894
        %v2896 = vsel %vm2895, %v2884, %v2894
        %v2897 = vsel %vm2637, %v2861, 2147483647
        %vm2898 = vcmp.lt.s32.totalorder %v2887, %v2897
        %v2899 = vsel %vm2898, %v2887, %v2897
        %v2900 = vsel %vm2637, %v2862, 2147483647
        %vm2901 = vcmp.lt.s32.totalorder %v2890, %v2900
        %v2902 = vsel %vm2901, %v2890, %v2900
        %vm2903 = vcmp.lt.s32.totalorder %v2893, %v2896
        %v2904 = vsel %vm2903, %v2893, %v2896
        %vm2905 = vcmp.lt.s32.totalorder %v2899, %v2902
        %v2906 = vsel %vm2905, %v2899, %v2902
        %vm2907 = vcmp.lt.s32.totalorder %v2904, %v2906
        %v2908 = vsel %vm2907, %v2904, %v2906
        %v2909 = vrot.slane %v2908, 4
        %vm2910 = vcmp.lt.s32.totalorder %v2908, %v2909
        %v2911 = vsel %vm2910, %v2908, %v2909
        %v2912 = vrot.slane %v2911, 2
        %vm2913 = vcmp.lt.s32.totalorder %v2911, %v2912
        %v2914 = vsel %vm2913, %v2911, %v2912
        %v2915 = vrot.slane %v2914, 1
        %vm2916 = vcmp.lt.s32.totalorder %v2914, %v2915
        %v2917 = vsel %vm2916, %v2914, %v2915
        %vm2918 = vcmp.eq.s32.totalorder %v2329, %v2917
        %vm2919 = vcmp.eq.s32.totalorder %v2330, %v2917
        %vm2920 = vcmp.eq.s32.totalorder %v2331, %v2917
        %vm2921 = vcmp.eq.s32.totalorder %v2332, %v2917
        %vm2922 = vcmp.eq.s32.totalorder %v2333, %v2917
        %vm2923 = vcmp.eq.s32.totalorder %v2334, %v2917
        %vm2924 = vcmp.eq.s32.totalorder %v2335, %v2917
        %vm2925 = vcmp.eq.s32.totalorder %v2336, %v2917
        %vm2926 = vcmp.eq.s32.totalorder %v2337, %v2917
        %vm2927 = vcmp.eq.s32.totalorder %v2338, %v2917
        %vm2928 = vcmp.eq.s32.totalorder %v2631, %v2917
        %vm2929 = vcmp.eq.s32.totalorder %v2632, %v2917
        %vm2930 = vcmp.eq.s32.totalorder %v2633, %v2917
        %vm2931 = vcmp.eq.s32.totalorder %v2634, %v2917
        %vm2932 = vcmp.eq.s32.totalorder %v2635, %v2917
        %vm2933 = vcmp.eq.s32.totalorder %v2636, %v2917
        %v2934 = vsel %vm2918, -inf, %v2778
        %v2935 = vsel %vm2919, -inf, %v2779
        %v2936 = vsel %vm2920, -inf, %v2780
        %v2937 = vsel %vm2921, -inf, %v2781
        %v2938 = vsel %vm2922, -inf, %v2782
        %v2939 = vsel %vm2923, -inf, %v2783
        %v2940 = vsel %vm2924, -inf, %v2784
        %v2941 = vsel %vm2925, -inf, %v2785
        %v2942 = vsel %vm2926, -inf, %v2786
        %v2943 = vsel %vm2927, -inf, %v2787
        %v2944 = vsel %vm2928, -inf, %v2788
        %v2945 = vsel %vm2929, -inf, %v2789
        %v2946 = vsel %vm2930, -inf, %v2790
        %v2947 = vsel %vm2931, -inf, %v2791
        %v2948 = vsel %vm2932, -inf, %v2792
        %v2949 = vsel %vm2933, -inf, %v2793
        %v2950 = vsel %vm2637, %v2934, -inf
        %v2951 = vsel %vm2637, %v2935, -inf
        %v2952 = vsel %vm2637, %v2936, -inf
        %v2953 = vsel %vm2637, %v2937, -inf
        %v2954 = vsel %vm2637, %v2938, -inf
        %v2955 = vmax.f32 %v2950, %v2954
        %v2956 = vsel %vm2637, %v2939, -inf
        %v2957 = vmax.f32 %v2951, %v2956
        %v2958 = vsel %vm2637, %v2940, -inf
        %v2959 = vmax.f32 %v2952, %v2958
        %v2960 = vsel %vm2637, %v2941, -inf
        %v2961 = vmax.f32 %v2953, %v2960
        %v2962 = vsel %vm2637, %v2942, -inf
        %v2963 = vmax.f32 %v2955, %v2962
        %v2964 = vsel %vm2637, %v2943, -inf
        %v2965 = vmax.f32 %v2957, %v2964
        %v2966 = vsel %vm2637, %v2944, -inf
        %v2967 = vmax.f32 %v2959, %v2966
        %v2968 = vsel %vm2637, %v2945, -inf
        %v2969 = vmax.f32 %v2961, %v2968
        %v2970 = vsel %vm2637, %v2946, -inf
        %v2971 = vmax.f32 %v2963, %v2970
        %v2972 = vsel %vm2637, %v2947, -inf
        %v2973 = vmax.f32 %v2965, %v2972
        %v2974 = vsel %vm2637, %v2948, -inf
        %v2975 = vmax.f32 %v2967, %v2974
        %v2976 = vsel %vm2637, %v2949, -inf
        %v2977 = vmax.f32 %v2969, %v2976
        %v2978 = vmax.f32 %v2971, %v2973
        %v2979 = vmax.f32 %v2975, %v2977
        %v2980 = vmax.f32 %v2978, %v2979
        %v2981 = vrot.slane %v2980, 4
        %v2982 = vmax.f32 %v2980, %v2981
        %v2983 = vrot.slane %v2982, 2
        %v2984 = vmax.f32 %v2982, %v2983
        %v2985 = vrot.slane %v2984, 1
        %v2986 = vmax.f32 %v2984, %v2985
        %vm2987 = vcmp.eq.f32.partialorder %v2934, %v2986
        %vm2988 = vcmp.eq.f32.partialorder %v2935, %v2986
        %vm2989 = vcmp.eq.f32.partialorder %v2936, %v2986
        %vm2990 = vcmp.eq.f32.partialorder %v2937, %v2986
        %vm2991 = vcmp.eq.f32.partialorder %v2938, %v2986
        %vm2992 = vcmp.eq.f32.partialorder %v2939, %v2986
        %vm2993 = vcmp.eq.f32.partialorder %v2940, %v2986
        %vm2994 = vcmp.eq.f32.partialorder %v2941, %v2986
        %vm2995 = vcmp.eq.f32.partialorder %v2942, %v2986
        %vm2996 = vcmp.eq.f32.partialorder %v2943, %v2986
        %vm2997 = vcmp.eq.f32.partialorder %v2944, %v2986
        %vm2998 = vcmp.eq.f32.partialorder %v2945, %v2986
        %vm2999 = vcmp.eq.f32.partialorder %v2946, %v2986
        %vm3000 = vcmp.eq.f32.partialorder %v2947, %v2986
        %vm3001 = vcmp.eq.f32.partialorder %v2948, %v2986
        %vm3002 = vcmp.eq.f32.partialorder %v2949, %v2986
        %v3003 = vsel %vm2987, %v2329, 128
        %v3004 = vsel %vm2988, %v2330, 128
        %v3005 = vsel %vm2989, %v2331, 128
        %v3006 = vsel %vm2990, %v2332, 128
        %v3007 = vsel %vm2991, %v2333, 128
        %v3008 = vsel %vm2992, %v2334, 128
        %v3009 = vsel %vm2993, %v2335, 128
        %v3010 = vsel %vm2994, %v2336, 128
        %v3011 = vsel %vm2995, %v2337, 128
        %v3012 = vsel %vm2996, %v2338, 128
        %v3013 = vsel %vm2997, %v2631, 128
        %v3014 = vsel %vm2998, %v2632, 128
        %v3015 = vsel %vm2999, %v2633, 128
        %v3016 = vsel %vm3000, %v2634, 128
        %v3017 = vsel %vm3001, %v2635, 128
        %v3018 = vsel %vm3002, %v2636, 128
        %v3019 = vsel %vm2637, %v3003, 2147483647
        %v3020 = vsel %vm2637, %v3004, 2147483647
        %v3021 = vsel %vm2637, %v3005, 2147483647
        %v3022 = vsel %vm2637, %v3006, 2147483647
        %v3023 = vsel %vm2637, %v3007, 2147483647
        %vm3024 = vcmp.lt.s32.totalorder %v3019, %v3023
        %v3025 = vsel %vm3024, %v3019, %v3023
        %v3026 = vsel %vm2637, %v3008, 2147483647
        %vm3027 = vcmp.lt.s32.totalorder %v3020, %v3026
        %v3028 = vsel %vm3027, %v3020, %v3026
        %v3029 = vsel %vm2637, %v3009, 2147483647
        %vm3030 = vcmp.lt.s32.totalorder %v3021, %v3029
        %v3031 = vsel %vm3030, %v3021, %v3029
        %v3032 = vsel %vm2637, %v3010, 2147483647
        %vm3033 = vcmp.lt.s32.totalorder %v3022, %v3032
        %v3034 = vsel %vm3033, %v3022, %v3032
        %v3035 = vsel %vm2637, %v3011, 2147483647
        %vm3036 = vcmp.lt.s32.totalorder %v3025, %v3035
        %v3037 = vsel %vm3036, %v3025, %v3035
        %v3038 = vsel %vm2637, %v3012, 2147483647
        %vm3039 = vcmp.lt.s32.totalorder %v3028, %v3038
        %v3040 = vsel %vm3039, %v3028, %v3038
        %v3041 = vsel %vm2637, %v3013, 2147483647
        %vm3042 = vcmp.lt.s32.totalorder %v3031, %v3041
        %v3043 = vsel %vm3042, %v3031, %v3041
        %v3044 = vsel %vm2637, %v3014, 2147483647
        %vm3045 = vcmp.lt.s32.totalorder %v3034, %v3044
        %v3046 = vsel %vm3045, %v3034, %v3044
        %v3047 = vsel %vm2637, %v3015, 2147483647
        %vm3048 = vcmp.lt.s32.totalorder %v3037, %v3047
        %v3049 = vsel %vm3048, %v3037, %v3047
        %v3050 = vsel %vm2637, %v3016, 2147483647
        %vm3051 = vcmp.lt.s32.totalorder %v3040, %v3050
        %v3052 = vsel %vm3051, %v3040, %v3050
        %v3053 = vsel %vm2637, %v3017, 2147483647
        %vm3054 = vcmp.lt.s32.totalorder %v3043, %v3053
        %v3055 = vsel %vm3054, %v3043, %v3053
        %v3056 = vsel %vm2637, %v3018, 2147483647
        %vm3057 = vcmp.lt.s32.totalorder %v3046, %v3056
        %v3058 = vsel %vm3057, %v3046, %v3056
        %vm3059 = vcmp.lt.s32.totalorder %v3049, %v3052
        %v3060 = vsel %vm3059, %v3049, %v3052
        %vm3061 = vcmp.lt.s32.totalorder %v3055, %v3058
        %v3062 = vsel %vm3061, %v3055, %v3058
        %vm3063 = vcmp.lt.s32.totalorder %v3060, %v3062
        %v3064 = vsel %vm3063, %v3060, %v3062
        %v3065 = vrot.slane %v3064, 4
        %vm3066 = vcmp.lt.s32.totalorder %v3064, %v3065
        %v3067 = vsel %vm3066, %v3064, %v3065
        %v3068 = vrot.slane %v3067, 2
        %vm3069 = vcmp.lt.s32.totalorder %v3067, %v3068
        %v3070 = vsel %vm3069, %v3067, %v3068
        %v3071 = vrot.slane %v3070, 1
        %vm3072 = vcmp.lt.s32.totalorder %v3070, %v3071
        %v3073 = vsel %vm3072, %v3070, %v3071
        %vm3074 = vcmp.eq.s32.totalorder %v2329, %v3073
        %vm3075 = vcmp.eq.s32.totalorder %v2330, %v3073
        %vm3076 = vcmp.eq.s32.totalorder %v2331, %v3073
        %vm3077 = vcmp.eq.s32.totalorder %v2332, %v3073
        %vm3078 = vcmp.eq.s32.totalorder %v2333, %v3073
        %vm3079 = vcmp.eq.s32.totalorder %v2334, %v3073
        %vm3080 = vcmp.eq.s32.totalorder %v2335, %v3073
        %vm3081 = vcmp.eq.s32.totalorder %v2336, %v3073
        %vm3082 = vcmp.eq.s32.totalorder %v2337, %v3073
        %vm3083 = vcmp.eq.s32.totalorder %v2338, %v3073
        %vm3084 = vcmp.eq.s32.totalorder %v2631, %v3073
        %vm3085 = vcmp.eq.s32.totalorder %v2632, %v3073
        %vm3086 = vcmp.eq.s32.totalorder %v2633, %v3073
        %vm3087 = vcmp.eq.s32.totalorder %v2634, %v3073
        %vm3088 = vcmp.eq.s32.totalorder %v2635, %v3073
        %vm3089 = vcmp.eq.s32.totalorder %v2636, %v3073
        %v3090 = vsel %vm3074, -inf, %v2934
        %v3091 = vsel %vm3075, -inf, %v2935
        %v3092 = vsel %vm3076, -inf, %v2936
        %v3093 = vsel %vm3077, -inf, %v2937
        %v3094 = vsel %vm3078, -inf, %v2938
        %v3095 = vsel %vm3079, -inf, %v2939
        %v3096 = vsel %vm3080, -inf, %v2940
        %v3097 = vsel %vm3081, -inf, %v2941
        %v3098 = vsel %vm3082, -inf, %v2942
        %v3099 = vsel %vm3083, -inf, %v2943
        %v3100 = vsel %vm3084, -inf, %v2944
        %v3101 = vsel %vm3085, -inf, %v2945
        %v3102 = vsel %vm3086, -inf, %v2946
        %v3103 = vsel %vm3087, -inf, %v2947
        %v3104 = vsel %vm3088, -inf, %v2948
        %v3105 = vsel %vm3089, -inf, %v2949
        %v3106 = vsel %vm2637, %v3090, -inf
        %v3107 = vsel %vm2637, %v3091, -inf
        %v3108 = vsel %vm2637, %v3092, -inf
        %v3109 = vsel %vm2637, %v3093, -inf
        %v3110 = vsel %vm2637, %v3094, -inf
        %v3111 = vmax.f32 %v3106, %v3110
        %v3112 = vsel %vm2637, %v3095, -inf
        %v3113 = vmax.f32 %v3107, %v3112
        %v3114 = vsel %vm2637, %v3096, -inf
        %v3115 = vmax.f32 %v3108, %v3114
        %v3116 = vsel %vm2637, %v3097, -inf
        %v3117 = vmax.f32 %v3109, %v3116
        %v3118 = vsel %vm2637, %v3098, -inf
        %v3119 = vmax.f32 %v3111, %v3118
        %v3120 = vsel %vm2637, %v3099, -inf
        %v3121 = vmax.f32 %v3113, %v3120
        %v3122 = vsel %vm2637, %v3100, -inf
        %v3123 = vmax.f32 %v3115, %v3122
        %v3124 = vsel %vm2637, %v3101, -inf
        %v3125 = vmax.f32 %v3117, %v3124
        %v3126 = vsel %vm2637, %v3102, -inf
        %v3127 = vmax.f32 %v3119, %v3126
        %v3128 = vsel %vm2637, %v3103, -inf
        %v3129 = vmax.f32 %v3121, %v3128
        %v3130 = vsel %vm2637, %v3104, -inf
        %v3131 = vmax.f32 %v3123, %v3130
        %v3132 = vsel %vm2637, %v3105, -inf
        %v3133 = vmax.f32 %v3125, %v3132
        %v3134 = vmax.f32 %v3127, %v3129
        %v3135 = vmax.f32 %v3131, %v3133
        %v3136 = vmax.f32 %v3134, %v3135
        %v3137 = vrot.slane %v3136, 4
        %v3138 = vmax.f32 %v3136, %v3137
        %v3139 = vrot.slane %v3138, 2
        %v3140 = vmax.f32 %v3138, %v3139
        %v3141 = vrot.slane %v3140, 1
        %v3142 = vmax.f32 %v3140, %v3141
        %vm3143 = vcmp.eq.f32.partialorder %v3090, %v3142
        %vm3144 = vcmp.eq.f32.partialorder %v3091, %v3142
        %vm3145 = vcmp.eq.f32.partialorder %v3092, %v3142
        %vm3146 = vcmp.eq.f32.partialorder %v3093, %v3142
        %vm3147 = vcmp.eq.f32.partialorder %v3094, %v3142
        %vm3148 = vcmp.eq.f32.partialorder %v3095, %v3142
        %vm3149 = vcmp.eq.f32.partialorder %v3096, %v3142
        %vm3150 = vcmp.eq.f32.partialorder %v3097, %v3142
        %vm3151 = vcmp.eq.f32.partialorder %v3098, %v3142
        %vm3152 = vcmp.eq.f32.partialorder %v3099, %v3142
        %vm3153 = vcmp.eq.f32.partialorder %v3100, %v3142
        %vm3154 = vcmp.eq.f32.partialorder %v3101, %v3142
        %vm3155 = vcmp.eq.f32.partialorder %v3102, %v3142
        %vm3156 = vcmp.eq.f32.partialorder %v3103, %v3142
        %vm3157 = vcmp.eq.f32.partialorder %v3104, %v3142
        %vm3158 = vcmp.eq.f32.partialorder %v3105, %v3142
        %v3159 = vsel %vm3143, %v2329, 128
        %v3160 = vsel %vm3144, %v2330, 128
        %v3161 = vsel %vm3145, %v2331, 128
        %v3162 = vsel %vm3146, %v2332, 128
        %v3163 = vsel %vm3147, %v2333, 128
        %v3164 = vsel %vm3148, %v2334, 128
        %v3165 = vsel %vm3149, %v2335, 128
        %v3166 = vsel %vm3150, %v2336, 128
        %v3167 = vsel %vm3151, %v2337, 128
        %v3168 = vsel %vm3152, %v2338, 128
        %v3169 = vsel %vm3153, %v2631, 128
        %v3170 = vsel %vm3154, %v2632, 128
        %v3171 = vsel %vm3155, %v2633, 128
        %v3172 = vsel %vm3156, %v2634, 128
        %v3173 = vsel %vm3157, %v2635, 128
        %v3174 = vsel %vm3158, %v2636, 128
        %v3175 = vsel %vm2637, %v3159, 2147483647
        %v3176 = vsel %vm2637, %v3160, 2147483647
        %v3177 = vsel %vm2637, %v3161, 2147483647
        %v3178 = vsel %vm2637, %v3162, 2147483647
        %v3179 = vsel %vm2637, %v3163, 2147483647
        %vm3180 = vcmp.lt.s32.totalorder %v3175, %v3179
        %v3181 = vsel %vm3180, %v3175, %v3179
        %v3182 = vsel %vm2637, %v3164, 2147483647
        %vm3183 = vcmp.lt.s32.totalorder %v3176, %v3182
        %v3184 = vsel %vm3183, %v3176, %v3182
        %v3185 = vsel %vm2637, %v3165, 2147483647
        %vm3186 = vcmp.lt.s32.totalorder %v3177, %v3185
        %v3187 = vsel %vm3186, %v3177, %v3185
        %v3188 = vsel %vm2637, %v3166, 2147483647
        %vm3189 = vcmp.lt.s32.totalorder %v3178, %v3188
        %v3190 = vsel %vm3189, %v3178, %v3188
        %v3191 = vsel %vm2637, %v3167, 2147483647
        %vm3192 = vcmp.lt.s32.totalorder %v3181, %v3191
        %v3193 = vsel %vm3192, %v3181, %v3191
        %v3194 = vsel %vm2637, %v3168, 2147483647
        %vm3195 = vcmp.lt.s32.totalorder %v3184, %v3194
        %v3196 = vsel %vm3195, %v3184, %v3194
        %v3197 = vsel %vm2637, %v3169, 2147483647
        %vm3198 = vcmp.lt.s32.totalorder %v3187, %v3197
        %v3199 = vsel %vm3198, %v3187, %v3197
        %v3200 = vsel %vm2637, %v3170, 2147483647
        %vm3201 = vcmp.lt.s32.totalorder %v3190, %v3200
        %v3202 = vsel %vm3201, %v3190, %v3200
        %v3203 = vsel %vm2637, %v3171, 2147483647
        %vm3204 = vcmp.lt.s32.totalorder %v3193, %v3203
        %v3205 = vsel %vm3204, %v3193, %v3203
        %v3206 = vsel %vm2637, %v3172, 2147483647
        %vm3207 = vcmp.lt.s32.totalorder %v3196, %v3206
        %v3208 = vsel %vm3207, %v3196, %v3206
        %v3209 = vsel %vm2637, %v3173, 2147483647
        %vm3210 = vcmp.lt.s32.totalorder %v3199, %v3209
        %v3211 = vsel %vm3210, %v3199, %v3209
        %v3212 = vsel %vm2637, %v3174, 2147483647
        %vm3213 = vcmp.lt.s32.totalorder %v3202, %v3212
        %v3214 = vsel %vm3213, %v3202, %v3212
        %vm3215 = vcmp.lt.s32.totalorder %v3205, %v3208
        %v3216 = vsel %vm3215, %v3205, %v3208
        %vm3217 = vcmp.lt.s32.totalorder %v3211, %v3214
        %v3218 = vsel %vm3217, %v3211, %v3214
        %vm3219 = vcmp.lt.s32.totalorder %v3216, %v3218
        %v3220 = vsel %vm3219, %v3216, %v3218
        %v3221 = vrot.slane %v3220, 4
        %vm3222 = vcmp.lt.s32.totalorder %v3220, %v3221
        %v3223 = vsel %vm3222, %v3220, %v3221
        %v3224 = vrot.slane %v3223, 2
        %vm3225 = vcmp.lt.s32.totalorder %v3223, %v3224
        %v3226 = vsel %vm3225, %v3223, %v3224
        %v3227 = vrot.slane %v3226, 1
        %vm3228 = vcmp.lt.s32.totalorder %v3226, %v3227
        %v3229 = vsel %vm3228, %v3226, %v3227
        %vm3230 = vcmp.eq.s32.totalorder %v2329, %v3229
        %vm3231 = vcmp.eq.s32.totalorder %v2330, %v3229
        %vm3232 = vcmp.eq.s32.totalorder %v2331, %v3229
        %vm3233 = vcmp.eq.s32.totalorder %v2332, %v3229
        %vm3234 = vcmp.eq.s32.totalorder %v2333, %v3229
        %vm3235 = vcmp.eq.s32.totalorder %v2334, %v3229
        %vm3236 = vcmp.eq.s32.totalorder %v2335, %v3229
        %vm3237 = vcmp.eq.s32.totalorder %v2336, %v3229
        %vm3238 = vcmp.eq.s32.totalorder %v2337, %v3229
        %vm3239 = vcmp.eq.s32.totalorder %v2338, %v3229
        %vm3240 = vcmp.eq.s32.totalorder %v2631, %v3229
        %vm3241 = vcmp.eq.s32.totalorder %v2632, %v3229
        %vm3242 = vcmp.eq.s32.totalorder %v2633, %v3229
        %vm3243 = vcmp.eq.s32.totalorder %v2634, %v3229
        %vm3244 = vcmp.eq.s32.totalorder %v2635, %v3229
        %vm3245 = vcmp.eq.s32.totalorder %v2636, %v3229
        %v3246 = vsel %vm3230, -inf, %v3090
        %v3247 = vsel %vm3231, -inf, %v3091
        %v3248 = vsel %vm3232, -inf, %v3092
        %v3249 = vsel %vm3233, -inf, %v3093
        %v3250 = vsel %vm3234, -inf, %v3094
        %v3251 = vsel %vm3235, -inf, %v3095
        %v3252 = vsel %vm3236, -inf, %v3096
        %v3253 = vsel %vm3237, -inf, %v3097
        %v3254 = vsel %vm3238, -inf, %v3098
        %v3255 = vsel %vm3239, -inf, %v3099
        %v3256 = vsel %vm3240, -inf, %v3100
        %v3257 = vsel %vm3241, -inf, %v3101
        %v3258 = vsel %vm3242, -inf, %v3102
        %v3259 = vsel %vm3243, -inf, %v3103
        %v3260 = vsel %vm3244, -inf, %v3104
        %v3261 = vsel %vm3245, -inf, %v3105
        %v3262 = vsel %vm2637, %v3246, -inf
        %v3263 = vsel %vm2637, %v3247, -inf
        %v3264 = vsel %vm2637, %v3248, -inf
        %v3265 = vsel %vm2637, %v3249, -inf
        %v3266 = vsel %vm2637, %v3250, -inf
        %v3267 = vmax.f32 %v3262, %v3266
        %v3268 = vsel %vm2637, %v3251, -inf
        %v3269 = vmax.f32 %v3263, %v3268
        %v3270 = vsel %vm2637, %v3252, -inf
        %v3271 = vmax.f32 %v3264, %v3270
        %v3272 = vsel %vm2637, %v3253, -inf
        %v3273 = vmax.f32 %v3265, %v3272
        %v3274 = vsel %vm2637, %v3254, -inf
        %v3275 = vmax.f32 %v3267, %v3274
        %v3276 = vsel %vm2637, %v3255, -inf
        %v3277 = vmax.f32 %v3269, %v3276
        %v3278 = vsel %vm2637, %v3256, -inf
        %v3279 = vmax.f32 %v3271, %v3278
        %v3280 = vsel %vm2637, %v3257, -inf
        %v3281 = vmax.f32 %v3273, %v3280
        %v3282 = vsel %vm2637, %v3258, -inf
        %v3283 = vmax.f32 %v3275, %v3282
        %v3284 = vsel %vm2637, %v3259, -inf
        %v3285 = vmax.f32 %v3277, %v3284
        %v3286 = vsel %vm2637, %v3260, -inf
        %v3287 = vmax.f32 %v3279, %v3286
        %v3288 = vsel %vm2637, %v3261, -inf
        %v3289 = vmax.f32 %v3281, %v3288
        %v3290 = vmax.f32 %v3283, %v3285
        %v3291 = vmax.f32 %v3287, %v3289
        %v3292 = vmax.f32 %v3290, %v3291
        %v3293 = vrot.slane %v3292, 4
        %v3294 = vmax.f32 %v3292, %v3293
        %v3295 = vrot.slane %v3294, 2
        %v3296 = vmax.f32 %v3294, %v3295
        %v3297 = vrot.slane %v3296, 1
        %v3298 = vmax.f32 %v3296, %v3297
        %vm3299 = vcmp.eq.f32.partialorder %v3246, %v3298
        %vm3300 = vcmp.eq.f32.partialorder %v3247, %v3298
        %vm3301 = vcmp.eq.f32.partialorder %v3248, %v3298
        %vm3302 = vcmp.eq.f32.partialorder %v3249, %v3298
        %vm3303 = vcmp.eq.f32.partialorder %v3250, %v3298
        %vm3304 = vcmp.eq.f32.partialorder %v3251, %v3298
        %vm3305 = vcmp.eq.f32.partialorder %v3252, %v3298
        %vm3306 = vcmp.eq.f32.partialorder %v3253, %v3298
        %vm3307 = vcmp.eq.f32.partialorder %v3254, %v3298
        %vm3308 = vcmp.eq.f32.partialorder %v3255, %v3298
        %vm3309 = vcmp.eq.f32.partialorder %v3256, %v3298
        %vm3310 = vcmp.eq.f32.partialorder %v3257, %v3298
        %vm3311 = vcmp.eq.f32.partialorder %v3258, %v3298
        %vm3312 = vcmp.eq.f32.partialorder %v3259, %v3298
        %vm3313 = vcmp.eq.f32.partialorder %v3260, %v3298
        %vm3314 = vcmp.eq.f32.partialorder %v3261, %v3298
        %v3315 = vsel %vm3299, %v2329, 128
        %v3316 = vsel %vm3300, %v2330, 128
        %v3317 = vsel %vm3301, %v2331, 128
        %v3318 = vsel %vm3302, %v2332, 128
        %v3319 = vsel %vm3303, %v2333, 128
        %v3320 = vsel %vm3304, %v2334, 128
        %v3321 = vsel %vm3305, %v2335, 128
        %v3322 = vsel %vm3306, %v2336, 128
        %v3323 = vsel %vm3307, %v2337, 128
        %v3324 = vsel %vm3308, %v2338, 128
        %v3325 = vsel %vm3309, %v2631, 128
        %v3326 = vsel %vm3310, %v2632, 128
        %v3327 = vsel %vm3311, %v2633, 128
        %v3328 = vsel %vm3312, %v2634, 128
        %v3329 = vsel %vm3313, %v2635, 128
        %v3330 = vsel %vm3314, %v2636, 128
        %v3331 = vsel %vm2637, %v3315, 2147483647
        %v3332 = vsel %vm2637, %v3316, 2147483647
        %v3333 = vsel %vm2637, %v3317, 2147483647
        %v3334 = vsel %vm2637, %v3318, 2147483647
        %v3335 = vsel %vm2637, %v3319, 2147483647
        %vm3336 = vcmp.lt.s32.totalorder %v3331, %v3335
        %v3337 = vsel %vm3336, %v3331, %v3335
        %v3338 = vsel %vm2637, %v3320, 2147483647
        %vm3339 = vcmp.lt.s32.totalorder %v3332, %v3338
        %v3340 = vsel %vm3339, %v3332, %v3338
        %v3341 = vsel %vm2637, %v3321, 2147483647
        %vm3342 = vcmp.lt.s32.totalorder %v3333, %v3341
        %v3343 = vsel %vm3342, %v3333, %v3341
        %v3344 = vsel %vm2637, %v3322, 2147483647
        %vm3345 = vcmp.lt.s32.totalorder %v3334, %v3344
        %v3346 = vsel %vm3345, %v3334, %v3344
        %v3347 = vsel %vm2637, %v3323, 2147483647
        %vm3348 = vcmp.lt.s32.totalorder %v3337, %v3347
        %v3349 = vsel %vm3348, %v3337, %v3347
        %v3350 = vsel %vm2637, %v3324, 2147483647
        %vm3351 = vcmp.lt.s32.totalorder %v3340, %v3350
        %v3352 = vsel %vm3351, %v3340, %v3350
        %v3353 = vsel %vm2637, %v3325, 2147483647
        %vm3354 = vcmp.lt.s32.totalorder %v3343, %v3353
        %v3355 = vsel %vm3354, %v3343, %v3353
        %v3356 = vsel %vm2637, %v3326, 2147483647
        %vm3357 = vcmp.lt.s32.totalorder %v3346, %v3356
        %v3358 = vsel %vm3357, %v3346, %v3356
        %v3359 = vsel %vm2637, %v3327, 2147483647
        %vm3360 = vcmp.lt.s32.totalorder %v3349, %v3359
        %v3361 = vsel %vm3360, %v3349, %v3359
        %v3362 = vsel %vm2637, %v3328, 2147483647
        %vm3363 = vcmp.lt.s32.totalorder %v3352, %v3362
        %v3364 = vsel %vm3363, %v3352, %v3362
        %v3365 = vsel %vm2637, %v3329, 2147483647
        %vm3366 = vcmp.lt.s32.totalorder %v3355, %v3365
        %v3367 = vsel %vm3366, %v3355, %v3365
        %v3368 = vsel %vm2637, %v3330, 2147483647
        %vm3369 = vcmp.lt.s32.totalorder %v3358, %v3368
        %v3370 = vsel %vm3369, %v3358, %v3368
        %vm3371 = vcmp.lt.s32.totalorder %v3361, %v3364
        %v3372 = vsel %vm3371, %v3361, %v3364
        %vm3373 = vcmp.lt.s32.totalorder %v3367, %v3370
        %v3374 = vsel %vm3373, %v3367, %v3370
        %vm3375 = vcmp.lt.s32.totalorder %v3372, %v3374
        %v3376 = vsel %vm3375, %v3372, %v3374
        %v3377 = vrot.slane %v3376, 4
        %vm3378 = vcmp.lt.s32.totalorder %v3376, %v3377
        %v3379 = vsel %vm3378, %v3376, %v3377
        %v3380 = vrot.slane %v3379, 2
        %vm3381 = vcmp.lt.s32.totalorder %v3379, %v3380
        %v3382 = vsel %vm3381, %v3379, %v3380
        %v3383 = vrot.slane %v3382, 1
        %vm3384 = vcmp.lt.s32.totalorder %v3382, %v3383
        %v3385 = vsel %vm3384, %v3382, %v3383
        %vm3386 = vcmp.eq.s32.totalorder %v2329, %v3385
        %vm3387 = vcmp.eq.s32.totalorder %v2330, %v3385
        %vm3388 = vcmp.eq.s32.totalorder %v2331, %v3385
        %vm3389 = vcmp.eq.s32.totalorder %v2332, %v3385
        %vm3390 = vcmp.eq.s32.totalorder %v2333, %v3385
        %vm3391 = vcmp.eq.s32.totalorder %v2334, %v3385
        %vm3392 = vcmp.eq.s32.totalorder %v2335, %v3385
        %vm3393 = vcmp.eq.s32.totalorder %v2336, %v3385
        %vm3394 = vcmp.eq.s32.totalorder %v2337, %v3385
        %vm3395 = vcmp.eq.s32.totalorder %v2338, %v3385
        %vm3396 = vcmp.eq.s32.totalorder %v2631, %v3385
        %vm3397 = vcmp.eq.s32.totalorder %v2632, %v3385
        %vm3398 = vcmp.eq.s32.totalorder %v2633, %v3385
        %vm3399 = vcmp.eq.s32.totalorder %v2634, %v3385
        %vm3400 = vcmp.eq.s32.totalorder %v2635, %v3385
        %vm3401 = vcmp.eq.s32.totalorder %v2636, %v3385
        %v3402 = vsel %vm3386, -inf, %v3246
        %v3403 = vsel %vm3387, -inf, %v3247
        %v3404 = vsel %vm3388, -inf, %v3248
        %v3405 = vsel %vm3389, -inf, %v3249
        %v3406 = vsel %vm3390, -inf, %v3250
        %v3407 = vsel %vm3391, -inf, %v3251
        %v3408 = vsel %vm3392, -inf, %v3252
        %v3409 = vsel %vm3393, -inf, %v3253
        %v3410 = vsel %vm3394, -inf, %v3254
        %v3411 = vsel %vm3395, -inf, %v3255
        %v3412 = vsel %vm3396, -inf, %v3256
        %v3413 = vsel %vm3397, -inf, %v3257
        %v3414 = vsel %vm3398, -inf, %v3258
        %v3415 = vsel %vm3399, -inf, %v3259
        %v3416 = vsel %vm3400, -inf, %v3260
        %v3417 = vsel %vm3401, -inf, %v3261
        %v3418 = vsel %vm2637, %v3402, -inf
        %v3419 = vsel %vm2637, %v3403, -inf
        %v3420 = vsel %vm2637, %v3404, -inf
        %v3421 = vsel %vm2637, %v3405, -inf
        %v3422 = vsel %vm2637, %v3406, -inf
        %v3423 = vmax.f32 %v3418, %v3422
        %v3424 = vsel %vm2637, %v3407, -inf
        %v3425 = vmax.f32 %v3419, %v3424
        %v3426 = vsel %vm2637, %v3408, -inf
        %v3427 = vmax.f32 %v3420, %v3426
        %v3428 = vsel %vm2637, %v3409, -inf
        %v3429 = vmax.f32 %v3421, %v3428
        %v3430 = vsel %vm2637, %v3410, -inf
        %v3431 = vmax.f32 %v3423, %v3430
        %v3432 = vsel %vm2637, %v3411, -inf
        %v3433 = vmax.f32 %v3425, %v3432
        %v3434 = vsel %vm2637, %v3412, -inf
        %v3435 = vmax.f32 %v3427, %v3434
        %v3436 = vsel %vm2637, %v3413, -inf
        %v3437 = vmax.f32 %v3429, %v3436
        %v3438 = vsel %vm2637, %v3414, -inf
        %v3439 = vmax.f32 %v3431, %v3438
        %v3440 = vsel %vm2637, %v3415, -inf
        %v3441 = vmax.f32 %v3433, %v3440
        %v3442 = vsel %vm2637, %v3416, -inf
        %v3443 = vmax.f32 %v3435, %v3442
        %v3444 = vsel %vm2637, %v3417, -inf
        %v3445 = vmax.f32 %v3437, %v3444
        %v3446 = vmax.f32 %v3439, %v3441
        %v3447 = vmax.f32 %v3443, %v3445
        %v3448 = vmax.f32 %v3446, %v3447
        %v3449 = vrot.slane %v3448, 4
        %v3450 = vmax.f32 %v3448, %v3449
        %v3451 = vrot.slane %v3450, 2
        %v3452 = vmax.f32 %v3450, %v3451
        %v3453 = vrot.slane %v3452, 1
        %v3454 = vmax.f32 %v3452, %v3453
        %vm3455 = vcmp.eq.f32.partialorder %v3402, %v3454
        %vm3456 = vcmp.eq.f32.partialorder %v3403, %v3454
        %vm3457 = vcmp.eq.f32.partialorder %v3404, %v3454
        %vm3458 = vcmp.eq.f32.partialorder %v3405, %v3454
        %vm3459 = vcmp.eq.f32.partialorder %v3406, %v3454
        %vm3460 = vcmp.eq.f32.partialorder %v3407, %v3454
        %vm3461 = vcmp.eq.f32.partialorder %v3408, %v3454
        %vm3462 = vcmp.eq.f32.partialorder %v3409, %v3454
        %vm3463 = vcmp.eq.f32.partialorder %v3410, %v3454
        %vm3464 = vcmp.eq.f32.partialorder %v3411, %v3454
        %vm3465 = vcmp.eq.f32.partialorder %v3412, %v3454
        %vm3466 = vcmp.eq.f32.partialorder %v3413, %v3454
        %vm3467 = vcmp.eq.f32.partialorder %v3414, %v3454
        %vm3468 = vcmp.eq.f32.partialorder %v3415, %v3454
        %vm3469 = vcmp.eq.f32.partialorder %v3416, %v3454
        %vm3470 = vcmp.eq.f32.partialorder %v3417, %v3454
        %v3471 = vsel %vm3455, %v2329, 128
        %v3472 = vsel %vm3456, %v2330, 128
        %v3473 = vsel %vm3457, %v2331, 128
        %v3474 = vsel %vm3458, %v2332, 128
        %v3475 = vsel %vm3459, %v2333, 128
        %v3476 = vsel %vm3460, %v2334, 128
        %v3477 = vsel %vm3461, %v2335, 128
        %v3478 = vsel %vm3462, %v2336, 128
        %v3479 = vsel %vm3463, %v2337, 128
        %v3480 = vsel %vm3464, %v2338, 128
        %v3481 = vsel %vm3465, %v2631, 128
        %v3482 = vsel %vm3466, %v2632, 128
        %v3483 = vsel %vm3467, %v2633, 128
        %v3484 = vsel %vm3468, %v2634, 128
        %v3485 = vsel %vm3469, %v2635, 128
        %v3486 = vsel %vm3470, %v2636, 128
        %v3487 = vsel %vm2637, %v3471, 2147483647
        %v3488 = vsel %vm2637, %v3472, 2147483647
        %v3489 = vsel %vm2637, %v3473, 2147483647
        %v3490 = vsel %vm2637, %v3474, 2147483647
        %v3491 = vsel %vm2637, %v3475, 2147483647
        %vm3492 = vcmp.lt.s32.totalorder %v3487, %v3491
        %v3493 = vsel %vm3492, %v3487, %v3491
        %v3494 = vsel %vm2637, %v3476, 2147483647
        %vm3495 = vcmp.lt.s32.totalorder %v3488, %v3494
        %v3496 = vsel %vm3495, %v3488, %v3494
        %v3497 = vsel %vm2637, %v3477, 2147483647
        %vm3498 = vcmp.lt.s32.totalorder %v3489, %v3497
        %v3499 = vsel %vm3498, %v3489, %v3497
        %v3500 = vsel %vm2637, %v3478, 2147483647
        %vm3501 = vcmp.lt.s32.totalorder %v3490, %v3500
        %v3502 = vsel %vm3501, %v3490, %v3500
        %v3503 = vsel %vm2637, %v3479, 2147483647
        %vm3504 = vcmp.lt.s32.totalorder %v3493, %v3503
        %v3505 = vsel %vm3504, %v3493, %v3503
        %v3506 = vsel %vm2637, %v3480, 2147483647
        %vm3507 = vcmp.lt.s32.totalorder %v3496, %v3506
        %v3508 = vsel %vm3507, %v3496, %v3506
        %v3509 = vsel %vm2637, %v3481, 2147483647
        %vm3510 = vcmp.lt.s32.totalorder %v3499, %v3509
        %v3511 = vsel %vm3510, %v3499, %v3509
        %v3512 = vsel %vm2637, %v3482, 2147483647
        %vm3513 = vcmp.lt.s32.totalorder %v3502, %v3512
        %v3514 = vsel %vm3513, %v3502, %v3512
        %v3515 = vsel %vm2637, %v3483, 2147483647
        %vm3516 = vcmp.lt.s32.totalorder %v3505, %v3515
        %v3517 = vsel %vm3516, %v3505, %v3515
        %v3518 = vsel %vm2637, %v3484, 2147483647
        %vm3519 = vcmp.lt.s32.totalorder %v3508, %v3518
        %v3520 = vsel %vm3519, %v3508, %v3518
        %v3521 = vsel %vm2637, %v3485, 2147483647
        %vm3522 = vcmp.lt.s32.totalorder %v3511, %v3521
        %v3523 = vsel %vm3522, %v3511, %v3521
        %v3524 = vsel %vm2637, %v3486, 2147483647
        %vm3525 = vcmp.lt.s32.totalorder %v3514, %v3524
        %v3526 = vsel %vm3525, %v3514, %v3524
        %vm3527 = vcmp.lt.s32.totalorder %v3517, %v3520
        %v3528 = vsel %vm3527, %v3517, %v3520
        %vm3529 = vcmp.lt.s32.totalorder %v3523, %v3526
        %v3530 = vsel %vm3529, %v3523, %v3526
        %vm3531 = vcmp.lt.s32.totalorder %v3528, %v3530
        %v3532 = vsel %vm3531, %v3528, %v3530
        %v3533 = vrot.slane %v3532, 4
        %vm3534 = vcmp.lt.s32.totalorder %v3532, %v3533
        %v3535 = vsel %vm3534, %v3532, %v3533
        %v3536 = vrot.slane %v3535, 2
        %vm3537 = vcmp.lt.s32.totalorder %v3535, %v3536
        %v3538 = vsel %vm3537, %v3535, %v3536
        %v3539 = vrot.slane %v3538, 1
        %vm3540 = vcmp.lt.s32.totalorder %v3538, %v3539
        %v3541 = vsel %vm3540, %v3538, %v3539
        %vm3542 = vcmp.eq.s32.totalorder %v2329, %v3541
        %vm3543 = vcmp.eq.s32.totalorder %v2330, %v3541
        %vm3544 = vcmp.eq.s32.totalorder %v2331, %v3541
        %vm3545 = vcmp.eq.s32.totalorder %v2332, %v3541
        %vm3546 = vcmp.eq.s32.totalorder %v2333, %v3541
        %vm3547 = vcmp.eq.s32.totalorder %v2334, %v3541
        %vm3548 = vcmp.eq.s32.totalorder %v2335, %v3541
        %vm3549 = vcmp.eq.s32.totalorder %v2336, %v3541
        %vm3550 = vcmp.eq.s32.totalorder %v2337, %v3541
        %vm3551 = vcmp.eq.s32.totalorder %v2338, %v3541
        %vm3552 = vcmp.eq.s32.totalorder %v2631, %v3541
        %vm3553 = vcmp.eq.s32.totalorder %v2632, %v3541
        %vm3554 = vcmp.eq.s32.totalorder %v2633, %v3541
        %vm3555 = vcmp.eq.s32.totalorder %v2634, %v3541
        %vm3556 = vcmp.eq.s32.totalorder %v2635, %v3541
        %vm3557 = vcmp.eq.s32.totalorder %v2636, %v3541
        %v3558 = vsel %vm3542, -inf, %v3402
        %v3559 = vsel %vm3543, -inf, %v3403
        %v3560 = vsel %vm3544, -inf, %v3404
        %v3561 = vsel %vm3545, -inf, %v3405
        %v3562 = vsel %vm3546, -inf, %v3406
        %v3563 = vsel %vm3547, -inf, %v3407
        %v3564 = vsel %vm3548, -inf, %v3408
        %v3565 = vsel %vm3549, -inf, %v3409
        %v3566 = vsel %vm3550, -inf, %v3410
        %v3567 = vsel %vm3551, -inf, %v3411
        %v3568 = vsel %vm3552, -inf, %v3412
        %v3569 = vsel %vm3553, -inf, %v3413
        %v3570 = vsel %vm3554, -inf, %v3414
        %v3571 = vsel %vm3555, -inf, %v3415
        %v3572 = vsel %vm3556, -inf, %v3416
        %v3573 = vsel %vm3557, -inf, %v3417
        %v3574 = vsel %vm2637, %v3558, -inf
        %v3575 = vsel %vm2637, %v3559, -inf
        %v3576 = vsel %vm2637, %v3560, -inf
        %v3577 = vsel %vm2637, %v3561, -inf
        %v3578 = vsel %vm2637, %v3562, -inf
        %v3579 = vmax.f32 %v3574, %v3578
        %v3580 = vsel %vm2637, %v3563, -inf
        %v3581 = vmax.f32 %v3575, %v3580
        %v3582 = vsel %vm2637, %v3564, -inf
        %v3583 = vmax.f32 %v3576, %v3582
        %v3584 = vsel %vm2637, %v3565, -inf
        %v3585 = vmax.f32 %v3577, %v3584
        %v3586 = vsel %vm2637, %v3566, -inf
        %v3587 = vmax.f32 %v3579, %v3586
        %v3588 = vsel %vm2637, %v3567, -inf
        %v3589 = vmax.f32 %v3581, %v3588
        %v3590 = vsel %vm2637, %v3568, -inf
        %v3591 = vmax.f32 %v3583, %v3590
        %v3592 = vsel %vm2637, %v3569, -inf
        %v3593 = vmax.f32 %v3585, %v3592
        %v3594 = vsel %vm2637, %v3570, -inf
        %v3595 = vmax.f32 %v3587, %v3594
        %v3596 = vsel %vm2637, %v3571, -inf
        %v3597 = vmax.f32 %v3589, %v3596
        %v3598 = vsel %vm2637, %v3572, -inf
        %v3599 = vmax.f32 %v3591, %v3598
        %v3600 = vsel %vm2637, %v3573, -inf
        %v3601 = vmax.f32 %v3593, %v3600
        %v3602 = vmax.f32 %v3595, %v3597
        %v3603 = vmax.f32 %v3599, %v3601
        %v3604 = vmax.f32 %v3602, %v3603
        %v3605 = vrot.slane %v3604, 4
        %v3606 = vmax.f32 %v3604, %v3605
        %v3607 = vrot.slane %v3606, 2
        %v3608 = vmax.f32 %v3606, %v3607
        %v3609 = vrot.slane %v3608, 1
        %v3610 = vmax.f32 %v3608, %v3609
        %vm3611 = vcmp.eq.f32.partialorder %v3558, %v3610
        %vm3612 = vcmp.eq.f32.partialorder %v3559, %v3610
        %vm3613 = vcmp.eq.f32.partialorder %v3560, %v3610
        %vm3614 = vcmp.eq.f32.partialorder %v3561, %v3610
        %vm3615 = vcmp.eq.f32.partialorder %v3562, %v3610
        %vm3616 = vcmp.eq.f32.partialorder %v3563, %v3610
        %vm3617 = vcmp.eq.f32.partialorder %v3564, %v3610
        %vm3618 = vcmp.eq.f32.partialorder %v3565, %v3610
        %vm3619 = vcmp.eq.f32.partialorder %v3566, %v3610
        %vm3620 = vcmp.eq.f32.partialorder %v3567, %v3610
        %vm3621 = vcmp.eq.f32.partialorder %v3568, %v3610
        %vm3622 = vcmp.eq.f32.partialorder %v3569, %v3610
        %vm3623 = vcmp.eq.f32.partialorder %v3570, %v3610
        %vm3624 = vcmp.eq.f32.partialorder %v3571, %v3610
        %vm3625 = vcmp.eq.f32.partialorder %v3572, %v3610
        %vm3626 = vcmp.eq.f32.partialorder %v3573, %v3610
        %v3627 = vsel %vm3611, %v2329, 128
        %v3628 = vsel %vm3612, %v2330, 128
        %v3629 = vsel %vm3613, %v2331, 128
        %v3630 = vsel %vm3614, %v2332, 128
        %v3631 = vsel %vm3615, %v2333, 128
        %v3632 = vsel %vm3616, %v2334, 128
        %v3633 = vsel %vm3617, %v2335, 128
        %v3634 = vsel %vm3618, %v2336, 128
        %v3635 = vsel %vm3619, %v2337, 128
        %v3636 = vsel %vm3620, %v2338, 128
        %v3637 = vsel %vm3621, %v2631, 128
        %v3638 = vsel %vm3622, %v2632, 128
        %v3639 = vsel %vm3623, %v2633, 128
        %v3640 = vsel %vm3624, %v2634, 128
        %v3641 = vsel %vm3625, %v2635, 128
        %v3642 = vsel %vm3626, %v2636, 128
        %v3643 = vsel %vm2637, %v3627, 2147483647
        %v3644 = vsel %vm2637, %v3628, 2147483647
        %v3645 = vsel %vm2637, %v3629, 2147483647
        %v3646 = vsel %vm2637, %v3630, 2147483647
        %v3647 = vsel %vm2637, %v3631, 2147483647
        %vm3648 = vcmp.lt.s32.totalorder %v3643, %v3647
        %v3649 = vsel %vm3648, %v3643, %v3647
        %v3650 = vsel %vm2637, %v3632, 2147483647
        %vm3651 = vcmp.lt.s32.totalorder %v3644, %v3650
        %v3652 = vsel %vm3651, %v3644, %v3650
        %v3653 = vsel %vm2637, %v3633, 2147483647
        %vm3654 = vcmp.lt.s32.totalorder %v3645, %v3653
        %v3655 = vsel %vm3654, %v3645, %v3653
        %v3656 = vsel %vm2637, %v3634, 2147483647
        %vm3657 = vcmp.lt.s32.totalorder %v3646, %v3656
        %v3658 = vsel %vm3657, %v3646, %v3656
        %v3659 = vsel %vm2637, %v3635, 2147483647
        %vm3660 = vcmp.lt.s32.totalorder %v3649, %v3659
        %v3661 = vsel %vm3660, %v3649, %v3659
        %v3662 = vsel %vm2637, %v3636, 2147483647
        %vm3663 = vcmp.lt.s32.totalorder %v3652, %v3662
        %v3664 = vsel %vm3663, %v3652, %v3662
        %v3665 = vsel %vm2637, %v3637, 2147483647
        %vm3666 = vcmp.lt.s32.totalorder %v3655, %v3665
        %v3667 = vsel %vm3666, %v3655, %v3665
        %v3668 = vsel %vm2637, %v3638, 2147483647
        %vm3669 = vcmp.lt.s32.totalorder %v3658, %v3668
        %v3670 = vsel %vm3669, %v3658, %v3668
        %v3671 = vsel %vm2637, %v3639, 2147483647
        %vm3672 = vcmp.lt.s32.totalorder %v3661, %v3671
        %v3673 = vsel %vm3672, %v3661, %v3671
        %v3674 = vsel %vm2637, %v3640, 2147483647
        %vm3675 = vcmp.lt.s32.totalorder %v3664, %v3674
        %v3676 = vsel %vm3675, %v3664, %v3674
        %v3677 = vsel %vm2637, %v3641, 2147483647
        %vm3678 = vcmp.lt.s32.totalorder %v3667, %v3677
        %v3679 = vsel %vm3678, %v3667, %v3677
        %v3680 = vsel %vm2637, %v3642, 2147483647
        %vm3681 = vcmp.lt.s32.totalorder %v3670, %v3680
        %v3682 = vsel %vm3681, %v3670, %v3680
        %vm3683 = vcmp.lt.s32.totalorder %v3673, %v3676
        %v3684 = vsel %vm3683, %v3673, %v3676
        %vm3685 = vcmp.lt.s32.totalorder %v3679, %v3682
        %v3686 = vsel %vm3685, %v3679, %v3682
        %vm3687 = vcmp.lt.s32.totalorder %v3684, %v3686
        %v3688 = vsel %vm3687, %v3684, %v3686
        %v3689 = vrot.slane %v3688, 4
        %vm3690 = vcmp.lt.s32.totalorder %v3688, %v3689
        %v3691 = vsel %vm3690, %v3688, %v3689
        %v3692 = vrot.slane %v3691, 2
        %vm3693 = vcmp.lt.s32.totalorder %v3691, %v3692
        %v3694 = vsel %vm3693, %v3691, %v3692
        %v3695 = vrot.slane %v3694, 1
        %vm3696 = vcmp.lt.s32.totalorder %v3694, %v3695
        %v3697 = vsel %vm3696, %v3694, %v3695
        %vm3698 = vcmp.eq.s32.totalorder %v2329, %v3697
        %vm3699 = vcmp.eq.s32.totalorder %v2330, %v3697
        %vm3700 = vcmp.eq.s32.totalorder %v2331, %v3697
        %vm3701 = vcmp.eq.s32.totalorder %v2332, %v3697
        %vm3702 = vcmp.eq.s32.totalorder %v2333, %v3697
        %vm3703 = vcmp.eq.s32.totalorder %v2334, %v3697
        %vm3704 = vcmp.eq.s32.totalorder %v2335, %v3697
        %vm3705 = vcmp.eq.s32.totalorder %v2336, %v3697
        %vm3706 = vcmp.eq.s32.totalorder %v2337, %v3697
        %vm3707 = vcmp.eq.s32.totalorder %v2338, %v3697
        %vm3708 = vcmp.eq.s32.totalorder %v2631, %v3697
        %vm3709 = vcmp.eq.s32.totalorder %v2632, %v3697
        %vm3710 = vcmp.eq.s32.totalorder %v2633, %v3697
        %vm3711 = vcmp.eq.s32.totalorder %v2634, %v3697
        %vm3712 = vcmp.eq.s32.totalorder %v2635, %v3697
        %vm3713 = vcmp.eq.s32.totalorder %v2636, %v3697
        %v3714 = vsel %vm3698, -inf, %v3558
        %v3715 = vsel %vm3699, -inf, %v3559
        %v3716 = vsel %vm3700, -inf, %v3560
        %v3717 = vsel %vm3701, -inf, %v3561
        %v3718 = vsel %vm3702, -inf, %v3562
        %v3719 = vsel %vm3703, -inf, %v3563
        %v3720 = vsel %vm3704, -inf, %v3564
        %v3721 = vsel %vm3705, -inf, %v3565
        %v3722 = vsel %vm3706, -inf, %v3566
        %v3723 = vsel %vm3707, -inf, %v3567
        %v3724 = vsel %vm3708, -inf, %v3568
        %v3725 = vsel %vm3709, -inf, %v3569
        %v3726 = vsel %vm3710, -inf, %v3570
        %v3727 = vsel %vm3711, -inf, %v3571
        %v3728 = vsel %vm3712, -inf, %v3572
        %v3729 = vsel %vm3713, -inf, %v3573
        %v3730 = vsel %vm2637, %v3714, -inf
        %v3731 = vsel %vm2637, %v3715, -inf
        %v3732 = vsel %vm2637, %v3716, -inf
        %v3733 = vsel %vm2637, %v3717, -inf
        %v3734 = vsel %vm2637, %v3718, -inf
        %v3735 = vmax.f32 %v3730, %v3734
        %v3736 = vsel %vm2637, %v3719, -inf
        %v3737 = vmax.f32 %v3731, %v3736
        %v3738 = vsel %vm2637, %v3720, -inf
        %v3739 = vmax.f32 %v3732, %v3738
        %v3740 = vsel %vm2637, %v3721, -inf
        %v3741 = vmax.f32 %v3733, %v3740
        %v3742 = vsel %vm2637, %v3722, -inf
        %v3743 = vmax.f32 %v3735, %v3742
        %v3744 = vsel %vm2637, %v3723, -inf
        %v3745 = vmax.f32 %v3737, %v3744
        %v3746 = vsel %vm2637, %v3724, -inf
        %v3747 = vmax.f32 %v3739, %v3746
        %v3748 = vsel %vm2637, %v3725, -inf
        %v3749 = vmax.f32 %v3741, %v3748
        %v3750 = vsel %vm2637, %v3726, -inf
        %v3751 = vmax.f32 %v3743, %v3750
        %v3752 = vsel %vm2637, %v3727, -inf
        %v3753 = vmax.f32 %v3745, %v3752
        %v3754 = vsel %vm2637, %v3728, -inf
        %v3755 = vmax.f32 %v3747, %v3754
        %v3756 = vsel %vm2637, %v3729, -inf
        %v3757 = vmax.f32 %v3749, %v3756
        %v3758 = vmax.f32 %v3751, %v3753
        %v3759 = vmax.f32 %v3755, %v3757
        %v3760 = vmax.f32 %v3758, %v3759
        %v3761 = vrot.slane %v3760, 4
        %v3762 = vmax.f32 %v3760, %v3761
        %v3763 = vrot.slane %v3762, 2
        %v3764 = vmax.f32 %v3762, %v3763
        %v3765 = vrot.slane %v3764, 1
        %v3766 = vmax.f32 %v3764, %v3765
        %vm3767 = vcmp.eq.f32.partialorder %v3714, %v3766
        %vm3768 = vcmp.eq.f32.partialorder %v3715, %v3766
        %vm3769 = vcmp.eq.f32.partialorder %v3716, %v3766
        %vm3770 = vcmp.eq.f32.partialorder %v3717, %v3766
        %vm3771 = vcmp.eq.f32.partialorder %v3718, %v3766
        %vm3772 = vcmp.eq.f32.partialorder %v3719, %v3766
        %vm3773 = vcmp.eq.f32.partialorder %v3720, %v3766
        %vm3774 = vcmp.eq.f32.partialorder %v3721, %v3766
        %vm3775 = vcmp.eq.f32.partialorder %v3722, %v3766
        %vm3776 = vcmp.eq.f32.partialorder %v3723, %v3766
        %vm3777 = vcmp.eq.f32.partialorder %v3724, %v3766
        %vm3778 = vcmp.eq.f32.partialorder %v3725, %v3766
        %vm3779 = vcmp.eq.f32.partialorder %v3726, %v3766
        %vm3780 = vcmp.eq.f32.partialorder %v3727, %v3766
        %vm3781 = vcmp.eq.f32.partialorder %v3728, %v3766
        %vm3782 = vcmp.eq.f32.partialorder %v3729, %v3766
        %v3783 = vsel %vm3767, %v2329, 128
        %v3784 = vsel %vm3768, %v2330, 128
        %v3785 = vsel %vm3769, %v2331, 128
        %v3786 = vsel %vm3770, %v2332, 128
        %v3787 = vsel %vm3771, %v2333, 128
        %v3788 = vsel %vm3772, %v2334, 128
        %v3789 = vsel %vm3773, %v2335, 128
        %v3790 = vsel %vm3774, %v2336, 128
        %v3791 = vsel %vm3775, %v2337, 128
        %v3792 = vsel %vm3776, %v2338, 128
        %v3793 = vsel %vm3777, %v2631, 128
        %v3794 = vsel %vm3778, %v2632, 128
        %v3795 = vsel %vm3779, %v2633, 128
        %v3796 = vsel %vm3780, %v2634, 128
        %v3797 = vsel %vm3781, %v2635, 128
        %v3798 = vsel %vm3782, %v2636, 128
        %v3799 = vsel %vm2637, %v3783, 2147483647
        %v3800 = vsel %vm2637, %v3784, 2147483647
        %v3801 = vsel %vm2637, %v3785, 2147483647
        %v3802 = vsel %vm2637, %v3786, 2147483647
        %v3803 = vsel %vm2637, %v3787, 2147483647
        %vm3804 = vcmp.lt.s32.totalorder %v3799, %v3803
        %v3805 = vsel %vm3804, %v3799, %v3803
        %v3806 = vsel %vm2637, %v3788, 2147483647
        %vm3807 = vcmp.lt.s32.totalorder %v3800, %v3806
        %v3808 = vsel %vm3807, %v3800, %v3806
        %v3809 = vsel %vm2637, %v3789, 2147483647
        %vm3810 = vcmp.lt.s32.totalorder %v3801, %v3809
        %v3811 = vsel %vm3810, %v3801, %v3809
        %v3812 = vsel %vm2637, %v3790, 2147483647
        %vm3813 = vcmp.lt.s32.totalorder %v3802, %v3812
        %v3814 = vsel %vm3813, %v3802, %v3812
        %v3815 = vsel %vm2637, %v3791, 2147483647
        %vm3816 = vcmp.lt.s32.totalorder %v3805, %v3815
        %v3817 = vsel %vm3816, %v3805, %v3815
        %v3818 = vsel %vm2637, %v3792, 2147483647
        %vm3819 = vcmp.lt.s32.totalorder %v3808, %v3818
        %v3820 = vsel %vm3819, %v3808, %v3818
        %v3821 = vsel %vm2637, %v3793, 2147483647
        %vm3822 = vcmp.lt.s32.totalorder %v3811, %v3821
        %v3823 = vsel %vm3822, %v3811, %v3821
        %v3824 = vsel %vm2637, %v3794, 2147483647
        %vm3825 = vcmp.lt.s32.totalorder %v3814, %v3824
        %v3826 = vsel %vm3825, %v3814, %v3824
        %v3827 = vsel %vm2637, %v3795, 2147483647
        %vm3828 = vcmp.lt.s32.totalorder %v3817, %v3827
        %v3829 = vsel %vm3828, %v3817, %v3827
        %v3830 = vsel %vm2637, %v3796, 2147483647
        %vm3831 = vcmp.lt.s32.totalorder %v3820, %v3830
        %v3832 = vsel %vm3831, %v3820, %v3830
        %v3833 = vsel %vm2637, %v3797, 2147483647
        %vm3834 = vcmp.lt.s32.totalorder %v3823, %v3833
        %v3835 = vsel %vm3834, %v3823, %v3833
        %v3836 = vsel %vm2637, %v3798, 2147483647
        %vm3837 = vcmp.lt.s32.totalorder %v3826, %v3836
        %v3838 = vsel %vm3837, %v3826, %v3836
        %vm3839 = vcmp.lt.s32.totalorder %v3829, %v3832
        %v3840 = vsel %vm3839, %v3829, %v3832
        %vm3841 = vcmp.lt.s32.totalorder %v3835, %v3838
        %v3842 = vsel %vm3841, %v3835, %v3838
        %vm3843 = vcmp.lt.s32.totalorder %v3840, %v3842
        %v3844 = vsel %vm3843, %v3840, %v3842
        %v3845 = vrot.slane %v3844, 4
        %vm3846 = vcmp.lt.s32.totalorder %v3844, %v3845
        %v3847 = vsel %vm3846, %v3844, %v3845
        %v3848 = vrot.slane %v3847, 2
        %vm3849 = vcmp.lt.s32.totalorder %v3847, %v3848
        %v3850 = vsel %vm3849, %v3847, %v3848
        %v3851 = vrot.slane %v3850, 1
        %vm3852 = vcmp.lt.s32.totalorder %v3850, %v3851
        %v3853 = vsel %vm3852, %v3850, %v3851
        %vm3854 = vcmp.eq.s32.totalorder %v2329, %v3853
        %vm3855 = vcmp.eq.s32.totalorder %v2330, %v3853
        %vm3856 = vcmp.eq.s32.totalorder %v2331, %v3853
        %vm3857 = vcmp.eq.s32.totalorder %v2332, %v3853
        %vm3858 = vcmp.eq.s32.totalorder %v2333, %v3853
        %vm3859 = vcmp.eq.s32.totalorder %v2334, %v3853
        %vm3860 = vcmp.eq.s32.totalorder %v2335, %v3853
        %vm3861 = vcmp.eq.s32.totalorder %v2336, %v3853
        %vm3862 = vcmp.eq.s32.totalorder %v2337, %v3853
        %vm3863 = vcmp.eq.s32.totalorder %v2338, %v3853
        %vm3864 = vcmp.eq.s32.totalorder %v2631, %v3853
        %vm3865 = vcmp.eq.s32.totalorder %v2632, %v3853
        %vm3866 = vcmp.eq.s32.totalorder %v2633, %v3853
        %vm3867 = vcmp.eq.s32.totalorder %v2634, %v3853
        %vm3868 = vcmp.eq.s32.totalorder %v2635, %v3853
        %vm3869 = vcmp.eq.s32.totalorder %v2636, %v3853
        %v3870 = vsel %vm3854, -inf, %v3714
        %v3871 = vsel %vm3855, -inf, %v3715
        %v3872 = vsel %vm3856, -inf, %v3716
        %v3873 = vsel %vm3857, -inf, %v3717
        %v3874 = vsel %vm3858, -inf, %v3718
        %v3875 = vsel %vm3859, -inf, %v3719
        %v3876 = vsel %vm3860, -inf, %v3720
        %v3877 = vsel %vm3861, -inf, %v3721
        %v3878 = vsel %vm3862, -inf, %v3722
        %v3879 = vsel %vm3863, -inf, %v3723
        %v3880 = vsel %vm3864, -inf, %v3724
        %v3881 = vsel %vm3865, -inf, %v3725
        %v3882 = vsel %vm3866, -inf, %v3726
        %v3883 = vsel %vm3867, -inf, %v3727
        %v3884 = vsel %vm3868, -inf, %v3728
        %v3885 = vsel %vm3869, -inf, %v3729
        %v3886 = vsel %vm2637, %v3870, -inf
        %v3887 = vsel %vm2637, %v3871, -inf
        %v3888 = vsel %vm2637, %v3872, -inf
        %v3889 = vsel %vm2637, %v3873, -inf
        %v3890 = vsel %vm2637, %v3874, -inf
        %v3891 = vmax.f32 %v3886, %v3890
        %v3892 = vsel %vm2637, %v3875, -inf
        %v3893 = vmax.f32 %v3887, %v3892
        %v3894 = vsel %vm2637, %v3876, -inf
        %v3895 = vmax.f32 %v3888, %v3894
        %v3896 = vsel %vm2637, %v3877, -inf
        %v3897 = vmax.f32 %v3889, %v3896
        %v3898 = vsel %vm2637, %v3878, -inf
        %v3899 = vmax.f32 %v3891, %v3898
        %v3900 = vsel %vm2637, %v3879, -inf
        %v3901 = vmax.f32 %v3893, %v3900
        %v3902 = vsel %vm2637, %v3880, -inf
        %v3903 = vmax.f32 %v3895, %v3902
        %v3904 = vsel %vm2637, %v3881, -inf
        %v3905 = vmax.f32 %v3897, %v3904
        %v3906 = vsel %vm2637, %v3882, -inf
        %v3907 = vmax.f32 %v3899, %v3906
        %v3908 = vsel %vm2637, %v3883, -inf
        %v3909 = vmax.f32 %v3901, %v3908
        %v3910 = vsel %vm2637, %v3884, -inf
        %v3911 = vmax.f32 %v3903, %v3910
        %v3912 = vsel %vm2637, %v3885, -inf
        %v3913 = vmax.f32 %v3905, %v3912
        %v3914 = vmax.f32 %v3907, %v3909
        %v3915 = vmax.f32 %v3911, %v3913
        %v3916 = vmax.f32 %v3914, %v3915
        %v3917 = vrot.slane %v3916, 4
        %v3918 = vmax.f32 %v3916, %v3917
        %v3919 = vrot.slane %v3918, 2
        %v3920 = vmax.f32 %v3918, %v3919
        %v3921 = vrot.slane %v3920, 1
        %v3922 = vmax.f32 %v3920, %v3921
        %vm3923 = vcmp.eq.f32.partialorder %v3870, %v3922
        %vm3924 = vcmp.eq.f32.partialorder %v3871, %v3922
        %vm3925 = vcmp.eq.f32.partialorder %v3872, %v3922
        %vm3926 = vcmp.eq.f32.partialorder %v3873, %v3922
        %vm3927 = vcmp.eq.f32.partialorder %v3874, %v3922
        %vm3928 = vcmp.eq.f32.partialorder %v3875, %v3922
        %vm3929 = vcmp.eq.f32.partialorder %v3876, %v3922
        %vm3930 = vcmp.eq.f32.partialorder %v3877, %v3922
        %vm3931 = vcmp.eq.f32.partialorder %v3878, %v3922
        %vm3932 = vcmp.eq.f32.partialorder %v3879, %v3922
        %vm3933 = vcmp.eq.f32.partialorder %v3880, %v3922
        %vm3934 = vcmp.eq.f32.partialorder %v3881, %v3922
        %vm3935 = vcmp.eq.f32.partialorder %v3882, %v3922
        %vm3936 = vcmp.eq.f32.partialorder %v3883, %v3922
        %vm3937 = vcmp.eq.f32.partialorder %v3884, %v3922
        %vm3938 = vcmp.eq.f32.partialorder %v3885, %v3922
        %v3939 = vsel %vm3923, %v2329, 128
        %v3940 = vsel %vm3924, %v2330, 128
        %v3941 = vsel %vm3925, %v2331, 128
        %v3942 = vsel %vm3926, %v2332, 128
        %v3943 = vsel %vm3927, %v2333, 128
        %v3944 = vsel %vm3928, %v2334, 128
        %v3945 = vsel %vm3929, %v2335, 128
        %v3946 = vsel %vm3930, %v2336, 128
        %v3947 = vsel %vm3931, %v2337, 128
        %v3948 = vsel %vm3932, %v2338, 128
        %v3949 = vsel %vm3933, %v2631, 128
        %v3950 = vsel %vm3934, %v2632, 128
        %v3951 = vsel %vm3935, %v2633, 128
        %v3952 = vsel %vm3936, %v2634, 128
        %v3953 = vsel %vm3937, %v2635, 128
        %v3954 = vsel %vm3938, %v2636, 128
        %v3955 = vsel %vm2637, %v3939, 2147483647
        %v3956 = vsel %vm2637, %v3940, 2147483647
        %v3957 = vsel %vm2637, %v3941, 2147483647
        %v3958 = vsel %vm2637, %v3942, 2147483647
        %v3959 = vsel %vm2637, %v3943, 2147483647
        %vm3960 = vcmp.lt.s32.totalorder %v3955, %v3959
        %v3961 = vsel %vm3960, %v3955, %v3959
        %v3962 = vsel %vm2637, %v3944, 2147483647
        %vm3963 = vcmp.lt.s32.totalorder %v3956, %v3962
        %v3964 = vsel %vm3963, %v3956, %v3962
        %v3965 = vsel %vm2637, %v3945, 2147483647
        %vm3966 = vcmp.lt.s32.totalorder %v3957, %v3965
        %v3967 = vsel %vm3966, %v3957, %v3965
        %v3968 = vsel %vm2637, %v3946, 2147483647
        %vm3969 = vcmp.lt.s32.totalorder %v3958, %v3968
        %v3970 = vsel %vm3969, %v3958, %v3968
        %v3971 = vsel %vm2637, %v3947, 2147483647
        %vm3972 = vcmp.lt.s32.totalorder %v3961, %v3971
        %v3973 = vsel %vm3972, %v3961, %v3971
        %v3974 = vsel %vm2637, %v3948, 2147483647
        %vm3975 = vcmp.lt.s32.totalorder %v3964, %v3974
        %v3976 = vsel %vm3975, %v3964, %v3974
        %v3977 = vsel %vm2637, %v3949, 2147483647
        %vm3978 = vcmp.lt.s32.totalorder %v3967, %v3977
        %v3979 = vsel %vm3978, %v3967, %v3977
        %v3980 = vsel %vm2637, %v3950, 2147483647
        %vm3981 = vcmp.lt.s32.totalorder %v3970, %v3980
        %v3982 = vsel %vm3981, %v3970, %v3980
        %v3983 = vsel %vm2637, %v3951, 2147483647
        %vm3984 = vcmp.lt.s32.totalorder %v3973, %v3983
        %v3985 = vsel %vm3984, %v3973, %v3983
        %v3986 = vsel %vm2637, %v3952, 2147483647
        %vm3987 = vcmp.lt.s32.totalorder %v3976, %v3986
        %v3988 = vsel %vm3987, %v3976, %v3986
        %v3989 = vsel %vm2637, %v3953, 2147483647
        %vm3990 = vcmp.lt.s32.totalorder %v3979, %v3989
        %v3991 = vsel %vm3990, %v3979, %v3989
        %v3992 = vsel %vm2637, %v3954, 2147483647
        %vm3993 = vcmp.lt.s32.totalorder %v3982, %v3992
        %v3994 = vsel %vm3993, %v3982, %v3992
        %vm3995 = vcmp.lt.s32.totalorder %v3985, %v3988
        %v3996 = vsel %vm3995, %v3985, %v3988
        %vm3997 = vcmp.lt.s32.totalorder %v3991, %v3994
        %v3998 = vsel %vm3997, %v3991, %v3994
        %vm3999 = vcmp.lt.s32.totalorder %v3996, %v3998
        %v4000 = vsel %vm3999, %v3996, %v3998
        %v4001 = vrot.slane %v4000, 4
        %vm4002 = vcmp.lt.s32.totalorder %v4000, %v4001
        %v4003 = vsel %vm4002, %v4000, %v4001
        %v4004 = vrot.slane %v4003, 2
        %vm4005 = vcmp.lt.s32.totalorder %v4003, %v4004
        %v4006 = vsel %vm4005, %v4003, %v4004
        %v4007 = vrot.slane %v4006, 1
        %vm4008 = vcmp.lt.s32.totalorder %v4006, %v4007
        %v4009 = vsel %vm4008, %v4006, %v4007
        %vm4010 = vcmp.eq.s32.totalorder %v2329, %v4009
        %vm4011 = vcmp.eq.s32.totalorder %v2330, %v4009
        %vm4012 = vcmp.eq.s32.totalorder %v2331, %v4009
        %vm4013 = vcmp.eq.s32.totalorder %v2332, %v4009
        %vm4014 = vcmp.eq.s32.totalorder %v2333, %v4009
        %vm4015 = vcmp.eq.s32.totalorder %v2334, %v4009
        %vm4016 = vcmp.eq.s32.totalorder %v2335, %v4009
        %vm4017 = vcmp.eq.s32.totalorder %v2336, %v4009
        %vm4018 = vcmp.eq.s32.totalorder %v2337, %v4009
        %vm4019 = vcmp.eq.s32.totalorder %v2338, %v4009
        %vm4020 = vcmp.eq.s32.totalorder %v2631, %v4009
        %vm4021 = vcmp.eq.s32.totalorder %v2632, %v4009
        %vm4022 = vcmp.eq.s32.totalorder %v2633, %v4009
        %vm4023 = vcmp.eq.s32.totalorder %v2634, %v4009
        %vm4024 = vcmp.eq.s32.totalorder %v2635, %v4009
        %vm4025 = vcmp.eq.s32.totalorder %v2636, %v4009
        %v4026 = vsel %vm4010, -inf, %v3870
        %v4027 = vsel %vm4011, -inf, %v3871
        %v4028 = vsel %vm4012, -inf, %v3872
        %v4029 = vsel %vm4013, -inf, %v3873
        %v4030 = vsel %vm4014, -inf, %v3874
        %v4031 = vsel %vm4015, -inf, %v3875
        %v4032 = vsel %vm4016, -inf, %v3876
        %v4033 = vsel %vm4017, -inf, %v3877
        %v4034 = vsel %vm4018, -inf, %v3878
        %v4035 = vsel %vm4019, -inf, %v3879
        %v4036 = vsel %vm4020, -inf, %v3880
        %v4037 = vsel %vm4021, -inf, %v3881
        %v4038 = vsel %vm4022, -inf, %v3882
        %v4039 = vsel %vm4023, -inf, %v3883
        %v4040 = vsel %vm4024, -inf, %v3884
        %v4041 = vsel %vm4025, -inf, %v3885
        %v4042 = vsel %vm2637, %v4026, -inf
        %v4043 = vsel %vm2637, %v4027, -inf
        %v4044 = vsel %vm2637, %v4028, -inf
        %v4045 = vsel %vm2637, %v4029, -inf
        %v4046 = vsel %vm2637, %v4030, -inf
        %v4047 = vmax.f32 %v4042, %v4046
        %v4048 = vsel %vm2637, %v4031, -inf
        %v4049 = vmax.f32 %v4043, %v4048
        %v4050 = vsel %vm2637, %v4032, -inf
        %v4051 = vmax.f32 %v4044, %v4050
        %v4052 = vsel %vm2637, %v4033, -inf
        %v4053 = vmax.f32 %v4045, %v4052
        %v4054 = vsel %vm2637, %v4034, -inf
        %v4055 = vmax.f32 %v4047, %v4054
        %v4056 = vsel %vm2637, %v4035, -inf
        %v4057 = vmax.f32 %v4049, %v4056
        %v4058 = vsel %vm2637, %v4036, -inf
        %v4059 = vmax.f32 %v4051, %v4058
        %v4060 = vsel %vm2637, %v4037, -inf
        %v4061 = vmax.f32 %v4053, %v4060
        %v4062 = vsel %vm2637, %v4038, -inf
        %v4063 = vmax.f32 %v4055, %v4062
        %v4064 = vsel %vm2637, %v4039, -inf
        %v4065 = vmax.f32 %v4057, %v4064
        %v4066 = vsel %vm2637, %v4040, -inf
        %v4067 = vmax.f32 %v4059, %v4066
        %v4068 = vsel %vm2637, %v4041, -inf
        %v4069 = vmax.f32 %v4061, %v4068
        %v4070 = vmax.f32 %v4063, %v4065
        %v4071 = vmax.f32 %v4067, %v4069
        %v4072 = vmax.f32 %v4070, %v4071
        %v4073 = vrot.slane %v4072, 4
        %v4074 = vmax.f32 %v4072, %v4073
        %v4075 = vrot.slane %v4074, 2
        %v4076 = vmax.f32 %v4074, %v4075
        %v4077 = vrot.slane %v4076, 1
        %v4078 = vmax.f32 %v4076, %v4077
        %vm4079 = vcmp.eq.f32.partialorder %v4026, %v4078
        %vm4080 = vcmp.eq.f32.partialorder %v4027, %v4078
        %vm4081 = vcmp.eq.f32.partialorder %v4028, %v4078
        %vm4082 = vcmp.eq.f32.partialorder %v4029, %v4078
        %vm4083 = vcmp.eq.f32.partialorder %v4030, %v4078
        %vm4084 = vcmp.eq.f32.partialorder %v4031, %v4078
        %vm4085 = vcmp.eq.f32.partialorder %v4032, %v4078
        %vm4086 = vcmp.eq.f32.partialorder %v4033, %v4078
        %vm4087 = vcmp.eq.f32.partialorder %v4034, %v4078
        %vm4088 = vcmp.eq.f32.partialorder %v4035, %v4078
        %vm4089 = vcmp.eq.f32.partialorder %v4036, %v4078
        %vm4090 = vcmp.eq.f32.partialorder %v4037, %v4078
        %vm4091 = vcmp.eq.f32.partialorder %v4038, %v4078
        %vm4092 = vcmp.eq.f32.partialorder %v4039, %v4078
        %vm4093 = vcmp.eq.f32.partialorder %v4040, %v4078
        %vm4094 = vcmp.eq.f32.partialorder %v4041, %v4078
        %v4095 = vsel %vm4079, %v2329, 128
        %v4096 = vsel %vm4080, %v2330, 128
        %v4097 = vsel %vm4081, %v2331, 128
        %v4098 = vsel %vm4082, %v2332, 128
        %v4099 = vsel %vm4083, %v2333, 128
        %v4100 = vsel %vm4084, %v2334, 128
        %v4101 = vsel %vm4085, %v2335, 128
        %v4102 = vsel %vm4086, %v2336, 128
        %v4103 = vsel %vm4087, %v2337, 128
        %v4104 = vsel %vm4088, %v2338, 128
        %v4105 = vsel %vm4089, %v2631, 128
        %v4106 = vsel %vm4090, %v2632, 128
        %v4107 = vsel %vm4091, %v2633, 128
        %v4108 = vsel %vm4092, %v2634, 128
        %v4109 = vsel %vm4093, %v2635, 128
        %v4110 = vsel %vm4094, %v2636, 128
        %v4111 = vsel %vm2637, %v4095, 2147483647
        %v4112 = vsel %vm2637, %v4096, 2147483647
        %v4113 = vsel %vm2637, %v4097, 2147483647
        %v4114 = vsel %vm2637, %v4098, 2147483647
        %v4115 = vsel %vm2637, %v4099, 2147483647
        %vm4116 = vcmp.lt.s32.totalorder %v4111, %v4115
        %v4117 = vsel %vm4116, %v4111, %v4115
        %v4118 = vsel %vm2637, %v4100, 2147483647
        %vm4119 = vcmp.lt.s32.totalorder %v4112, %v4118
        %v4120 = vsel %vm4119, %v4112, %v4118
        %v4121 = vsel %vm2637, %v4101, 2147483647
        %vm4122 = vcmp.lt.s32.totalorder %v4113, %v4121
        %v4123 = vsel %vm4122, %v4113, %v4121
        %v4124 = vsel %vm2637, %v4102, 2147483647
        %vm4125 = vcmp.lt.s32.totalorder %v4114, %v4124
        %v4126 = vsel %vm4125, %v4114, %v4124
        %v4127 = vsel %vm2637, %v4103, 2147483647
        %vm4128 = vcmp.lt.s32.totalorder %v4117, %v4127
        %v4129 = vsel %vm4128, %v4117, %v4127
        %v4130 = vsel %vm2637, %v4104, 2147483647
        %vm4131 = vcmp.lt.s32.totalorder %v4120, %v4130
        %v4132 = vsel %vm4131, %v4120, %v4130
        %v4133 = vsel %vm2637, %v4105, 2147483647
        %vm4134 = vcmp.lt.s32.totalorder %v4123, %v4133
        %v4135 = vsel %vm4134, %v4123, %v4133
        %v4136 = vsel %vm2637, %v4106, 2147483647
        %vm4137 = vcmp.lt.s32.totalorder %v4126, %v4136
        %v4138 = vsel %vm4137, %v4126, %v4136
        %v4139 = vsel %vm2637, %v4107, 2147483647
        %vm4140 = vcmp.lt.s32.totalorder %v4129, %v4139
        %v4141 = vsel %vm4140, %v4129, %v4139
        %v4142 = vsel %vm2637, %v4108, 2147483647
        %vm4143 = vcmp.lt.s32.totalorder %v4132, %v4142
        %v4144 = vsel %vm4143, %v4132, %v4142
        %v4145 = vsel %vm2637, %v4109, 2147483647
        %vm4146 = vcmp.lt.s32.totalorder %v4135, %v4145
        %v4147 = vsel %vm4146, %v4135, %v4145
        %v4148 = vsel %vm2637, %v4110, 2147483647
        %vm4149 = vcmp.lt.s32.totalorder %v4138, %v4148
        %v4150 = vsel %vm4149, %v4138, %v4148
        %vm4151 = vcmp.lt.s32.totalorder %v4141, %v4144
        %v4152 = vsel %vm4151, %v4141, %v4144
        %vm4153 = vcmp.lt.s32.totalorder %v4147, %v4150
        %v4154 = vsel %vm4153, %v4147, %v4150
        %vm4155 = vcmp.lt.s32.totalorder %v4152, %v4154
        %v4156 = vsel %vm4155, %v4152, %v4154
        %v4157 = vrot.slane %v4156, 4
        %vm4158 = vcmp.lt.s32.totalorder %v4156, %v4157
        %v4159 = vsel %vm4158, %v4156, %v4157
        %v4160 = vrot.slane %v4159, 2
        %vm4161 = vcmp.lt.s32.totalorder %v4159, %v4160
        %v4162 = vsel %vm4161, %v4159, %v4160
        %v4163 = vrot.slane %v4162, 1
        %vm4164 = vcmp.lt.s32.totalorder %v4162, %v4163
        %v4165 = vsel %vm4164, %v4162, %v4163
        %vm4166 = vcmp.eq.s32.totalorder %v2329, %v4165
        %vm4167 = vcmp.eq.s32.totalorder %v2330, %v4165
        %vm4168 = vcmp.eq.s32.totalorder %v2331, %v4165
        %vm4169 = vcmp.eq.s32.totalorder %v2332, %v4165
        %vm4170 = vcmp.eq.s32.totalorder %v2333, %v4165
        %vm4171 = vcmp.eq.s32.totalorder %v2334, %v4165
        %vm4172 = vcmp.eq.s32.totalorder %v2335, %v4165
        %vm4173 = vcmp.eq.s32.totalorder %v2336, %v4165
        %vm4174 = vcmp.eq.s32.totalorder %v2337, %v4165
        %vm4175 = vcmp.eq.s32.totalorder %v2338, %v4165
        %vm4176 = vcmp.eq.s32.totalorder %v2631, %v4165
        %vm4177 = vcmp.eq.s32.totalorder %v2632, %v4165
        %vm4178 = vcmp.eq.s32.totalorder %v2633, %v4165
        %vm4179 = vcmp.eq.s32.totalorder %v2634, %v4165
        %vm4180 = vcmp.eq.s32.totalorder %v2635, %v4165
        %vm4181 = vcmp.eq.s32.totalorder %v2636, %v4165
        %v4182 = vsel %vm4166, -inf, %v4026
        %v4183 = vsel %vm4167, -inf, %v4027
        %v4184 = vsel %vm4168, -inf, %v4028
        %v4185 = vsel %vm4169, -inf, %v4029
        %v4186 = vsel %vm4170, -inf, %v4030
        %v4187 = vsel %vm4171, -inf, %v4031
        %v4188 = vsel %vm4172, -inf, %v4032
        %v4189 = vsel %vm4173, -inf, %v4033
        %v4190 = vsel %vm4174, -inf, %v4034
        %v4191 = vsel %vm4175, -inf, %v4035
        %v4192 = vsel %vm4176, -inf, %v4036
        %v4193 = vsel %vm4177, -inf, %v4037
        %v4194 = vsel %vm4178, -inf, %v4038
        %v4195 = vsel %vm4179, -inf, %v4039
        %v4196 = vsel %vm4180, -inf, %v4040
        %v4197 = vsel %vm4181, -inf, %v4041
        %v4198 = vsel %vm2637, %v4182, -inf
        %v4199 = vsel %vm2637, %v4183, -inf
        %v4200 = vsel %vm2637, %v4184, -inf
        %v4201 = vsel %vm2637, %v4185, -inf
        %v4202 = vsel %vm2637, %v4186, -inf
        %v4203 = vmax.f32 %v4198, %v4202
        %v4204 = vsel %vm2637, %v4187, -inf
        %v4205 = vmax.f32 %v4199, %v4204
        %v4206 = vsel %vm2637, %v4188, -inf
        %v4207 = vmax.f32 %v4200, %v4206
        %v4208 = vsel %vm2637, %v4189, -inf
        %v4209 = vmax.f32 %v4201, %v4208
        %v4210 = vsel %vm2637, %v4190, -inf
        %v4211 = vmax.f32 %v4203, %v4210
        %v4212 = vsel %vm2637, %v4191, -inf
        %v4213 = vmax.f32 %v4205, %v4212
        %v4214 = vsel %vm2637, %v4192, -inf
        %v4215 = vmax.f32 %v4207, %v4214
        %v4216 = vsel %vm2637, %v4193, -inf
        %v4217 = vmax.f32 %v4209, %v4216
        %v4218 = vsel %vm2637, %v4194, -inf
        %v4219 = vmax.f32 %v4211, %v4218
        %v4220 = vsel %vm2637, %v4195, -inf
        %v4221 = vmax.f32 %v4213, %v4220
        %v4222 = vsel %vm2637, %v4196, -inf
        %v4223 = vmax.f32 %v4215, %v4222
        %v4224 = vsel %vm2637, %v4197, -inf
        %v4225 = vmax.f32 %v4217, %v4224
        %v4226 = vmax.f32 %v4219, %v4221
        %v4227 = vmax.f32 %v4223, %v4225
        %v4228 = vmax.f32 %v4226, %v4227
        %v4229 = vrot.slane %v4228, 4
        %v4230 = vmax.f32 %v4228, %v4229
        %v4231 = vrot.slane %v4230, 2
        %v4232 = vmax.f32 %v4230, %v4231
        %v4233 = vrot.slane %v4232, 1
        %v4234 = vmax.f32 %v4232, %v4233
        %vm4235 = vcmp.eq.f32.partialorder %v4182, %v4234
        %vm4236 = vcmp.eq.f32.partialorder %v4183, %v4234
        %vm4237 = vcmp.eq.f32.partialorder %v4184, %v4234
        %vm4238 = vcmp.eq.f32.partialorder %v4185, %v4234
        %vm4239 = vcmp.eq.f32.partialorder %v4186, %v4234
        %vm4240 = vcmp.eq.f32.partialorder %v4187, %v4234
        %vm4241 = vcmp.eq.f32.partialorder %v4188, %v4234
        %vm4242 = vcmp.eq.f32.partialorder %v4189, %v4234
        %vm4243 = vcmp.eq.f32.partialorder %v4190, %v4234
        %vm4244 = vcmp.eq.f32.partialorder %v4191, %v4234
        %vm4245 = vcmp.eq.f32.partialorder %v4192, %v4234
        %vm4246 = vcmp.eq.f32.partialorder %v4193, %v4234
        %vm4247 = vcmp.eq.f32.partialorder %v4194, %v4234
        %vm4248 = vcmp.eq.f32.partialorder %v4195, %v4234
        %vm4249 = vcmp.eq.f32.partialorder %v4196, %v4234
        %vm4250 = vcmp.eq.f32.partialorder %v4197, %v4234
        %v4251 = vsel %vm4235, %v2329, 128
        %v4252 = vsel %vm4236, %v2330, 128
        %v4253 = vsel %vm4237, %v2331, 128
        %v4254 = vsel %vm4238, %v2332, 128
        %v4255 = vsel %vm4239, %v2333, 128
        %v4256 = vsel %vm4240, %v2334, 128
        %v4257 = vsel %vm4241, %v2335, 128
        %v4258 = vsel %vm4242, %v2336, 128
        %v4259 = vsel %vm4243, %v2337, 128
        %v4260 = vsel %vm4244, %v2338, 128
        %v4261 = vsel %vm4245, %v2631, 128
        %v4262 = vsel %vm4246, %v2632, 128
        %v4263 = vsel %vm4247, %v2633, 128
        %v4264 = vsel %vm4248, %v2634, 128
        %v4265 = vsel %vm4249, %v2635, 128
        %v4266 = vsel %vm4250, %v2636, 128
        %v4267 = vsel %vm2637, %v4251, 2147483647
        %v4268 = vsel %vm2637, %v4252, 2147483647
        %v4269 = vsel %vm2637, %v4253, 2147483647
        %v4270 = vsel %vm2637, %v4254, 2147483647
        %v4271 = vsel %vm2637, %v4255, 2147483647
        %vm4272 = vcmp.lt.s32.totalorder %v4267, %v4271
        %v4273 = vsel %vm4272, %v4267, %v4271
        %v4274 = vsel %vm2637, %v4256, 2147483647
        %vm4275 = vcmp.lt.s32.totalorder %v4268, %v4274
        %v4276 = vsel %vm4275, %v4268, %v4274
        %v4277 = vsel %vm2637, %v4257, 2147483647
        %vm4278 = vcmp.lt.s32.totalorder %v4269, %v4277
        %v4279 = vsel %vm4278, %v4269, %v4277
        %v4280 = vsel %vm2637, %v4258, 2147483647
        %vm4281 = vcmp.lt.s32.totalorder %v4270, %v4280
        %v4282 = vsel %vm4281, %v4270, %v4280
        %v4283 = vsel %vm2637, %v4259, 2147483647
        %vm4284 = vcmp.lt.s32.totalorder %v4273, %v4283
        %v4285 = vsel %vm4284, %v4273, %v4283
        %v4286 = vsel %vm2637, %v4260, 2147483647
        %vm4287 = vcmp.lt.s32.totalorder %v4276, %v4286
        %v4288 = vsel %vm4287, %v4276, %v4286
        %v4289 = vsel %vm2637, %v4261, 2147483647
        %vm4290 = vcmp.lt.s32.totalorder %v4279, %v4289
        %v4291 = vsel %vm4290, %v4279, %v4289
        %v4292 = vsel %vm2637, %v4262, 2147483647
        %vm4293 = vcmp.lt.s32.totalorder %v4282, %v4292
        %v4294 = vsel %vm4293, %v4282, %v4292
        %v4295 = vsel %vm2637, %v4263, 2147483647
        %vm4296 = vcmp.lt.s32.totalorder %v4285, %v4295
        %v4297 = vsel %vm4296, %v4285, %v4295
        %v4298 = vsel %vm2637, %v4264, 2147483647
        %vm4299 = vcmp.lt.s32.totalorder %v4288, %v4298
        %v4300 = vsel %vm4299, %v4288, %v4298
        %v4301 = vsel %vm2637, %v4265, 2147483647
        %vm4302 = vcmp.lt.s32.totalorder %v4291, %v4301
        %v4303 = vsel %vm4302, %v4291, %v4301
        %v4304 = vsel %vm2637, %v4266, 2147483647
        %vm4305 = vcmp.lt.s32.totalorder %v4294, %v4304
        %v4306 = vsel %vm4305, %v4294, %v4304
        %vm4307 = vcmp.lt.s32.totalorder %v4297, %v4300
        %v4308 = vsel %vm4307, %v4297, %v4300
        %vm4309 = vcmp.lt.s32.totalorder %v4303, %v4306
        %v4310 = vsel %vm4309, %v4303, %v4306
        %vm4311 = vcmp.lt.s32.totalorder %v4308, %v4310
        %v4312 = vsel %vm4311, %v4308, %v4310
        %v4313 = vrot.slane %v4312, 4
        %vm4314 = vcmp.lt.s32.totalorder %v4312, %v4313
        %v4315 = vsel %vm4314, %v4312, %v4313
        %v4316 = vrot.slane %v4315, 2
        %vm4317 = vcmp.lt.s32.totalorder %v4315, %v4316
        %v4318 = vsel %vm4317, %v4315, %v4316
        %v4319 = vrot.slane %v4318, 1
        %vm4320 = vcmp.lt.s32.totalorder %v4318, %v4319
        %v4321 = vsel %vm4320, %v4318, %v4319
        %vm4322 = vcmp.eq.s32.totalorder %v2329, %v4321
        %vm4323 = vcmp.eq.s32.totalorder %v2330, %v4321
        %vm4324 = vcmp.eq.s32.totalorder %v2331, %v4321
        %vm4325 = vcmp.eq.s32.totalorder %v2332, %v4321
        %vm4326 = vcmp.eq.s32.totalorder %v2333, %v4321
        %vm4327 = vcmp.eq.s32.totalorder %v2334, %v4321
        %vm4328 = vcmp.eq.s32.totalorder %v2335, %v4321
        %vm4329 = vcmp.eq.s32.totalorder %v2336, %v4321
        %vm4330 = vcmp.eq.s32.totalorder %v2337, %v4321
        %vm4331 = vcmp.eq.s32.totalorder %v2338, %v4321
        %vm4332 = vcmp.eq.s32.totalorder %v2631, %v4321
        %vm4333 = vcmp.eq.s32.totalorder %v2632, %v4321
        %vm4334 = vcmp.eq.s32.totalorder %v2633, %v4321
        %vm4335 = vcmp.eq.s32.totalorder %v2634, %v4321
        %vm4336 = vcmp.eq.s32.totalorder %v2635, %v4321
        %vm4337 = vcmp.eq.s32.totalorder %v2636, %v4321
        %v4338 = vsel %vm4322, -inf, %v4182
        %v4339 = vsel %vm4323, -inf, %v4183
        %v4340 = vsel %vm4324, -inf, %v4184
        %v4341 = vsel %vm4325, -inf, %v4185
        %v4342 = vsel %vm4326, -inf, %v4186
        %v4343 = vsel %vm4327, -inf, %v4187
        %v4344 = vsel %vm4328, -inf, %v4188
        %v4345 = vsel %vm4329, -inf, %v4189
        %v4346 = vsel %vm4330, -inf, %v4190
        %v4347 = vsel %vm4331, -inf, %v4191
        %v4348 = vsel %vm4332, -inf, %v4192
        %v4349 = vsel %vm4333, -inf, %v4193
        %v4350 = vsel %vm4334, -inf, %v4194
        %v4351 = vsel %vm4335, -inf, %v4195
        %v4352 = vsel %vm4336, -inf, %v4196
        %v4353 = vsel %vm4337, -inf, %v4197
        %v4354 = vsel %vm2637, %v4338, -inf
        %v4355 = vsel %vm2637, %v4339, -inf
        %v4356 = vsel %vm2637, %v4340, -inf
        %v4357 = vsel %vm2637, %v4341, -inf
        %v4358 = vsel %vm2637, %v4342, -inf
        %v4359 = vmax.f32 %v4354, %v4358
        %v4360 = vsel %vm2637, %v4343, -inf
        %v4361 = vmax.f32 %v4355, %v4360
        %v4362 = vsel %vm2637, %v4344, -inf
        %v4363 = vmax.f32 %v4356, %v4362
        %v4364 = vsel %vm2637, %v4345, -inf
        %v4365 = vmax.f32 %v4357, %v4364
        %v4366 = vsel %vm2637, %v4346, -inf
        %v4367 = vmax.f32 %v4359, %v4366
        %v4368 = vsel %vm2637, %v4347, -inf
        %v4369 = vmax.f32 %v4361, %v4368
        %v4370 = vsel %vm2637, %v4348, -inf
        %v4371 = vmax.f32 %v4363, %v4370
        %v4372 = vsel %vm2637, %v4349, -inf
        %v4373 = vmax.f32 %v4365, %v4372
        %v4374 = vsel %vm2637, %v4350, -inf
        %v4375 = vmax.f32 %v4367, %v4374
        %v4376 = vsel %vm2637, %v4351, -inf
        %v4377 = vmax.f32 %v4369, %v4376
        %v4378 = vsel %vm2637, %v4352, -inf
        %v4379 = vmax.f32 %v4371, %v4378
        %v4380 = vsel %vm2637, %v4353, -inf
        %v4381 = vmax.f32 %v4373, %v4380
        %v4382 = vmax.f32 %v4375, %v4377
        %v4383 = vmax.f32 %v4379, %v4381
        %v4384 = vmax.f32 %v4382, %v4383
        %v4385 = vrot.slane %v4384, 4
        %v4386 = vmax.f32 %v4384, %v4385
        %v4387 = vrot.slane %v4386, 2
        %v4388 = vmax.f32 %v4386, %v4387
        %v4389 = vrot.slane %v4388, 1
        %v4390 = vmax.f32 %v4388, %v4389
        %vm4391 = vcmp.eq.f32.partialorder %v4338, %v4390
        %vm4392 = vcmp.eq.f32.partialorder %v4339, %v4390
        %vm4393 = vcmp.eq.f32.partialorder %v4340, %v4390
        %vm4394 = vcmp.eq.f32.partialorder %v4341, %v4390
        %vm4395 = vcmp.eq.f32.partialorder %v4342, %v4390
        %vm4396 = vcmp.eq.f32.partialorder %v4343, %v4390
        %vm4397 = vcmp.eq.f32.partialorder %v4344, %v4390
        %vm4398 = vcmp.eq.f32.partialorder %v4345, %v4390
        %vm4399 = vcmp.eq.f32.partialorder %v4346, %v4390
        %vm4400 = vcmp.eq.f32.partialorder %v4347, %v4390
        %vm4401 = vcmp.eq.f32.partialorder %v4348, %v4390
        %vm4402 = vcmp.eq.f32.partialorder %v4349, %v4390
        %vm4403 = vcmp.eq.f32.partialorder %v4350, %v4390
        %vm4404 = vcmp.eq.f32.partialorder %v4351, %v4390
        %vm4405 = vcmp.eq.f32.partialorder %v4352, %v4390
        %vm4406 = vcmp.eq.f32.partialorder %v4353, %v4390
        %v4407 = vsel %vm4391, %v2329, 128
        %v4408 = vsel %vm4392, %v2330, 128
        %v4409 = vsel %vm4393, %v2331, 128
        %v4410 = vsel %vm4394, %v2332, 128
        %v4411 = vsel %vm4395, %v2333, 128
        %v4412 = vsel %vm4396, %v2334, 128
        %v4413 = vsel %vm4397, %v2335, 128
        %v4414 = vsel %vm4398, %v2336, 128
        %v4415 = vsel %vm4399, %v2337, 128
        %v4416 = vsel %vm4400, %v2338, 128
        %v4417 = vsel %vm4401, %v2631, 128
        %v4418 = vsel %vm4402, %v2632, 128
        %v4419 = vsel %vm4403, %v2633, 128
        %v4420 = vsel %vm4404, %v2634, 128
        %v4421 = vsel %vm4405, %v2635, 128
        %v4422 = vsel %vm4406, %v2636, 128
        %v4423 = vsel %vm2637, %v4407, 2147483647
        %v4424 = vsel %vm2637, %v4408, 2147483647
        %v4425 = vsel %vm2637, %v4409, 2147483647
        %v4426 = vsel %vm2637, %v4410, 2147483647
        %v4427 = vsel %vm2637, %v4411, 2147483647
        %vm4428 = vcmp.lt.s32.totalorder %v4423, %v4427
        %v4429 = vsel %vm4428, %v4423, %v4427
        %v4430 = vsel %vm2637, %v4412, 2147483647
        %vm4431 = vcmp.lt.s32.totalorder %v4424, %v4430
        %v4432 = vsel %vm4431, %v4424, %v4430
        %v4433 = vsel %vm2637, %v4413, 2147483647
        %vm4434 = vcmp.lt.s32.totalorder %v4425, %v4433
        %v4435 = vsel %vm4434, %v4425, %v4433
        %v4436 = vsel %vm2637, %v4414, 2147483647
        %vm4437 = vcmp.lt.s32.totalorder %v4426, %v4436
        %v4438 = vsel %vm4437, %v4426, %v4436
        %v4439 = vsel %vm2637, %v4415, 2147483647
        %vm4440 = vcmp.lt.s32.totalorder %v4429, %v4439
        %v4441 = vsel %vm4440, %v4429, %v4439
        %v4442 = vsel %vm2637, %v4416, 2147483647
        %vm4443 = vcmp.lt.s32.totalorder %v4432, %v4442
        %v4444 = vsel %vm4443, %v4432, %v4442
        %v4445 = vsel %vm2637, %v4417, 2147483647
        %vm4446 = vcmp.lt.s32.totalorder %v4435, %v4445
        %v4447 = vsel %vm4446, %v4435, %v4445
        %v4448 = vsel %vm2637, %v4418, 2147483647
        %vm4449 = vcmp.lt.s32.totalorder %v4438, %v4448
        %v4450 = vsel %vm4449, %v4438, %v4448
        %v4451 = vsel %vm2637, %v4419, 2147483647
        %vm4452 = vcmp.lt.s32.totalorder %v4441, %v4451
        %v4453 = vsel %vm4452, %v4441, %v4451
        %v4454 = vsel %vm2637, %v4420, 2147483647
        %vm4455 = vcmp.lt.s32.totalorder %v4444, %v4454
        %v4456 = vsel %vm4455, %v4444, %v4454
        %v4457 = vsel %vm2637, %v4421, 2147483647
        %vm4458 = vcmp.lt.s32.totalorder %v4447, %v4457
        %v4459 = vsel %vm4458, %v4447, %v4457
        %v4460 = vsel %vm2637, %v4422, 2147483647
        %vm4461 = vcmp.lt.s32.totalorder %v4450, %v4460
        %v4462 = vsel %vm4461, %v4450, %v4460
        %vm4463 = vcmp.lt.s32.totalorder %v4453, %v4456
        %v4464 = vsel %vm4463, %v4453, %v4456
        %vm4465 = vcmp.lt.s32.totalorder %v4459, %v4462
        %v4466 = vsel %vm4465, %v4459, %v4462
        %vm4467 = vcmp.lt.s32.totalorder %v4464, %v4466
        %v4468 = vsel %vm4467, %v4464, %v4466
        %v4469 = vrot.slane %v4468, 4
        %vm4470 = vcmp.lt.s32.totalorder %v4468, %v4469
        %v4471 = vsel %vm4470, %v4468, %v4469
        %v4472 = vrot.slane %v4471, 2
        %vm4473 = vcmp.lt.s32.totalorder %v4471, %v4472
        %v4474 = vsel %vm4473, %v4471, %v4472
        %v4475 = vrot.slane %v4474, 1
        %vm4476 = vcmp.lt.s32.totalorder %v4474, %v4475
        %v4477 = vsel %vm4476, %v4474, %v4475
        %vm4478 = vcmp.eq.s32.totalorder %v2329, %v4477
        %vm4479 = vcmp.eq.s32.totalorder %v2330, %v4477
        %vm4480 = vcmp.eq.s32.totalorder %v2331, %v4477
        %vm4481 = vcmp.eq.s32.totalorder %v2332, %v4477
        %vm4482 = vcmp.eq.s32.totalorder %v2333, %v4477
        %vm4483 = vcmp.eq.s32.totalorder %v2334, %v4477
        %vm4484 = vcmp.eq.s32.totalorder %v2335, %v4477
        %vm4485 = vcmp.eq.s32.totalorder %v2336, %v4477
        %vm4486 = vcmp.eq.s32.totalorder %v2337, %v4477
        %vm4487 = vcmp.eq.s32.totalorder %v2338, %v4477
        %vm4488 = vcmp.eq.s32.totalorder %v2631, %v4477
        %vm4489 = vcmp.eq.s32.totalorder %v2632, %v4477
        %vm4490 = vcmp.eq.s32.totalorder %v2633, %v4477
        %vm4491 = vcmp.eq.s32.totalorder %v2634, %v4477
        %vm4492 = vcmp.eq.s32.totalorder %v2635, %v4477
        %vm4493 = vcmp.eq.s32.totalorder %v2636, %v4477
        %v4494 = vsel %vm4478, -inf, %v4338
        %v4495 = vsel %vm4479, -inf, %v4339
        %v4496 = vsel %vm4480, -inf, %v4340
        %v4497 = vsel %vm4481, -inf, %v4341
        %v4498 = vsel %vm4482, -inf, %v4342
        %v4499 = vsel %vm4483, -inf, %v4343
        %v4500 = vsel %vm4484, -inf, %v4344
        %v4501 = vsel %vm4485, -inf, %v4345
        %v4502 = vsel %vm4486, -inf, %v4346
        %v4503 = vsel %vm4487, -inf, %v4347
        %v4504 = vsel %vm4488, -inf, %v4348
        %v4505 = vsel %vm4489, -inf, %v4349
        %v4506 = vsel %vm4490, -inf, %v4350
        %v4507 = vsel %vm4491, -inf, %v4351
        %v4508 = vsel %vm4492, -inf, %v4352
        %v4509 = vsel %vm4493, -inf, %v4353
        %v4510 = vsel %vm2637, %v4494, -inf
        %v4511 = vsel %vm2637, %v4495, -inf
        %v4512 = vsel %vm2637, %v4496, -inf
        %v4513 = vsel %vm2637, %v4497, -inf
        %v4514 = vsel %vm2637, %v4498, -inf
        %v4515 = vmax.f32 %v4510, %v4514
        %v4516 = vsel %vm2637, %v4499, -inf
        %v4517 = vmax.f32 %v4511, %v4516
        %v4518 = vsel %vm2637, %v4500, -inf
        %v4519 = vmax.f32 %v4512, %v4518
        %v4520 = vsel %vm2637, %v4501, -inf
        %v4521 = vmax.f32 %v4513, %v4520
        %v4522 = vsel %vm2637, %v4502, -inf
        %v4523 = vmax.f32 %v4515, %v4522
        %v4524 = vsel %vm2637, %v4503, -inf
        %v4525 = vmax.f32 %v4517, %v4524
        %v4526 = vsel %vm2637, %v4504, -inf
        %v4527 = vmax.f32 %v4519, %v4526
        %v4528 = vsel %vm2637, %v4505, -inf
        %v4529 = vmax.f32 %v4521, %v4528
        %v4530 = vsel %vm2637, %v4506, -inf
        %v4531 = vmax.f32 %v4523, %v4530
        %v4532 = vsel %vm2637, %v4507, -inf
        %v4533 = vmax.f32 %v4525, %v4532
        %v4534 = vsel %vm2637, %v4508, -inf
        %v4535 = vmax.f32 %v4527, %v4534
        %v4536 = vsel %vm2637, %v4509, -inf
        %v4537 = vmax.f32 %v4529, %v4536
        %v4538 = vmax.f32 %v4531, %v4533
        %v4539 = vmax.f32 %v4535, %v4537
        %v4540 = vmax.f32 %v4538, %v4539
        %v4541 = vrot.slane %v4540, 4
        %v4542 = vmax.f32 %v4540, %v4541
        %v4543 = vrot.slane %v4542, 2
        %v4544 = vmax.f32 %v4542, %v4543
        %v4545 = vrot.slane %v4544, 1
        %v4546 = vmax.f32 %v4544, %v4545
        %vm4547 = vcmp.eq.f32.partialorder %v4494, %v4546
        %vm4548 = vcmp.eq.f32.partialorder %v4495, %v4546
        %vm4549 = vcmp.eq.f32.partialorder %v4496, %v4546
        %vm4550 = vcmp.eq.f32.partialorder %v4497, %v4546
        %vm4551 = vcmp.eq.f32.partialorder %v4498, %v4546
        %vm4552 = vcmp.eq.f32.partialorder %v4499, %v4546
        %vm4553 = vcmp.eq.f32.partialorder %v4500, %v4546
        %vm4554 = vcmp.eq.f32.partialorder %v4501, %v4546
        %vm4555 = vcmp.eq.f32.partialorder %v4502, %v4546
        %vm4556 = vcmp.eq.f32.partialorder %v4503, %v4546
        %vm4557 = vcmp.eq.f32.partialorder %v4504, %v4546
        %vm4558 = vcmp.eq.f32.partialorder %v4505, %v4546
        %vm4559 = vcmp.eq.f32.partialorder %v4506, %v4546
        %vm4560 = vcmp.eq.f32.partialorder %v4507, %v4546
        %vm4561 = vcmp.eq.f32.partialorder %v4508, %v4546
        %vm4562 = vcmp.eq.f32.partialorder %v4509, %v4546
        %v4563 = vsel %vm4547, %v2329, 128
        %v4564 = vsel %vm4548, %v2330, 128
        %v4565 = vsel %vm4549, %v2331, 128
        %v4566 = vsel %vm4550, %v2332, 128
        %v4567 = vsel %vm4551, %v2333, 128
        %v4568 = vsel %vm4552, %v2334, 128
        %v4569 = vsel %vm4553, %v2335, 128
        %v4570 = vsel %vm4554, %v2336, 128
        %v4571 = vsel %vm4555, %v2337, 128
        %v4572 = vsel %vm4556, %v2338, 128
        %v4573 = vsel %vm4557, %v2631, 128
        %v4574 = vsel %vm4558, %v2632, 128
        %v4575 = vsel %vm4559, %v2633, 128
        %v4576 = vsel %vm4560, %v2634, 128
        %v4577 = vsel %vm4561, %v2635, 128
        %v4578 = vsel %vm4562, %v2636, 128
        %v4579 = vsel %vm2637, %v4563, 2147483647
        %v4580 = vsel %vm2637, %v4564, 2147483647
        %v4581 = vsel %vm2637, %v4565, 2147483647
        %v4582 = vsel %vm2637, %v4566, 2147483647
        %v4583 = vsel %vm2637, %v4567, 2147483647
        %vm4584 = vcmp.lt.s32.totalorder %v4579, %v4583
        %v4585 = vsel %vm4584, %v4579, %v4583
        %v4586 = vsel %vm2637, %v4568, 2147483647
        %vm4587 = vcmp.lt.s32.totalorder %v4580, %v4586
        %v4588 = vsel %vm4587, %v4580, %v4586
        %v4589 = vsel %vm2637, %v4569, 2147483647
        %vm4590 = vcmp.lt.s32.totalorder %v4581, %v4589
        %v4591 = vsel %vm4590, %v4581, %v4589
        %v4592 = vsel %vm2637, %v4570, 2147483647
        %vm4593 = vcmp.lt.s32.totalorder %v4582, %v4592
        %v4594 = vsel %vm4593, %v4582, %v4592
        %v4595 = vsel %vm2637, %v4571, 2147483647
        %vm4596 = vcmp.lt.s32.totalorder %v4585, %v4595
        %v4597 = vsel %vm4596, %v4585, %v4595
        %v4598 = vsel %vm2637, %v4572, 2147483647
        %vm4599 = vcmp.lt.s32.totalorder %v4588, %v4598
        %v4600 = vsel %vm4599, %v4588, %v4598
        %v4601 = vsel %vm2637, %v4573, 2147483647
        %vm4602 = vcmp.lt.s32.totalorder %v4591, %v4601
        %v4603 = vsel %vm4602, %v4591, %v4601
        %v4604 = vsel %vm2637, %v4574, 2147483647
        %vm4605 = vcmp.lt.s32.totalorder %v4594, %v4604
        %v4606 = vsel %vm4605, %v4594, %v4604
        %v4607 = vsel %vm2637, %v4575, 2147483647
        %vm4608 = vcmp.lt.s32.totalorder %v4597, %v4607
        %v4609 = vsel %vm4608, %v4597, %v4607
        %v4610 = vsel %vm2637, %v4576, 2147483647
        %vm4611 = vcmp.lt.s32.totalorder %v4600, %v4610
        %v4612 = vsel %vm4611, %v4600, %v4610
        %v4613 = vsel %vm2637, %v4577, 2147483647
        %vm4614 = vcmp.lt.s32.totalorder %v4603, %v4613
        %v4615 = vsel %vm4614, %v4603, %v4613
        %v4616 = vsel %vm2637, %v4578, 2147483647
        %vm4617 = vcmp.lt.s32.totalorder %v4606, %v4616
        %v4618 = vsel %vm4617, %v4606, %v4616
        %vm4619 = vcmp.lt.s32.totalorder %v4609, %v4612
        %v4620 = vsel %vm4619, %v4609, %v4612
        %vm4621 = vcmp.lt.s32.totalorder %v4615, %v4618
        %v4622 = vsel %vm4621, %v4615, %v4618
        %vm4623 = vcmp.lt.s32.totalorder %v4620, %v4622
        %v4624 = vsel %vm4623, %v4620, %v4622
        %v4625 = vrot.slane %v4624, 4
        %vm4626 = vcmp.lt.s32.totalorder %v4624, %v4625
        %v4627 = vsel %vm4626, %v4624, %v4625
        %v4628 = vrot.slane %v4627, 2
        %vm4629 = vcmp.lt.s32.totalorder %v4627, %v4628
        %v4630 = vsel %vm4629, %v4627, %v4628
        %v4631 = vrot.slane %v4630, 1
        %vm4632 = vcmp.lt.s32.totalorder %v4630, %v4631
        %v4633 = vsel %vm4632, %v4630, %v4631
        %vm4634 = vcmp.eq.s32.totalorder %v2329, %v4633
        %vm4635 = vcmp.eq.s32.totalorder %v2330, %v4633
        %vm4636 = vcmp.eq.s32.totalorder %v2331, %v4633
        %vm4637 = vcmp.eq.s32.totalorder %v2332, %v4633
        %vm4638 = vcmp.eq.s32.totalorder %v2333, %v4633
        %vm4639 = vcmp.eq.s32.totalorder %v2334, %v4633
        %vm4640 = vcmp.eq.s32.totalorder %v2335, %v4633
        %vm4641 = vcmp.eq.s32.totalorder %v2336, %v4633
        %vm4642 = vcmp.eq.s32.totalorder %v2337, %v4633
        %vm4643 = vcmp.eq.s32.totalorder %v2338, %v4633
        %vm4644 = vcmp.eq.s32.totalorder %v2631, %v4633
        %vm4645 = vcmp.eq.s32.totalorder %v2632, %v4633
        %vm4646 = vcmp.eq.s32.totalorder %v2633, %v4633
        %vm4647 = vcmp.eq.s32.totalorder %v2634, %v4633
        %vm4648 = vcmp.eq.s32.totalorder %v2635, %v4633
        %vm4649 = vcmp.eq.s32.totalorder %v2636, %v4633
        %v4650 = vsel %vm4634, -inf, %v4494
        %v4651 = vsel %vm4635, -inf, %v4495
        %v4652 = vsel %vm4636, -inf, %v4496
        %v4653 = vsel %vm4637, -inf, %v4497
        %v4654 = vsel %vm4638, -inf, %v4498
        %v4655 = vsel %vm4639, -inf, %v4499
        %v4656 = vsel %vm4640, -inf, %v4500
        %v4657 = vsel %vm4641, -inf, %v4501
        %v4658 = vsel %vm4642, -inf, %v4502
        %v4659 = vsel %vm4643, -inf, %v4503
        %v4660 = vsel %vm4644, -inf, %v4504
        %v4661 = vsel %vm4645, -inf, %v4505
        %v4662 = vsel %vm4646, -inf, %v4506
        %v4663 = vsel %vm4647, -inf, %v4507
        %v4664 = vsel %vm4648, -inf, %v4508
        %v4665 = vsel %vm4649, -inf, %v4509
        %vm4666 = vcmp.eq.f32.partialorder %v4650, -inf
        %vm4667 = vcmp.eq.f32.partialorder %v4651, -inf
        %vm4668 = vcmp.eq.f32.partialorder %v4652, -inf
        %vm4669 = vcmp.eq.f32.partialorder %v4653, -inf
        %vm4670 = vcmp.eq.f32.partialorder %v4654, -inf
        %vm4671 = vcmp.eq.f32.partialorder %v4655, -inf
        %vm4672 = vcmp.eq.f32.partialorder %v4656, -inf
        %vm4673 = vcmp.eq.f32.partialorder %v4657, -inf
        %vm4674 = vcmp.eq.f32.partialorder %v4658, -inf
        %vm4675 = vcmp.eq.f32.partialorder %v4659, -inf
        %vm4676 = vcmp.eq.f32.partialorder %v4660, -inf
        %vm4677 = vcmp.eq.f32.partialorder %v4661, -inf
        %vm4678 = vcmp.eq.f32.partialorder %v4662, -inf
        %vm4679 = vcmp.eq.f32.partialorder %v4663, -inf
        %vm4680 = vcmp.eq.f32.partialorder %v4664, -inf
        %vm4681 = vcmp.eq.f32.partialorder %v4665, -inf
        %v4682 = vsel %vm4666, 1, 0
        %v4683 = vsel %vm4667, 1, 0
        %v4684 = vsel %vm4668, 1, 0
        %v4685 = vsel %vm4669, 1, 0
        %v4686 = vsel %vm4670, 1, 0
        %v4687 = vsel %vm4671, 1, 0
        %v4688 = vsel %vm4672, 1, 0
        %v4689 = vsel %vm4673, 1, 0
        %v4690 = vsel %vm4674, 1, 0
        %v4691 = vsel %vm4675, 1, 0
        %v4692 = vsel %vm4676, 1, 0
        %v4693 = vsel %vm4677, 1, 0
        %v4694 = vsel %vm4678, 1, 0
        %v4695 = vsel %vm4679, 1, 0
        %v4696 = vsel %vm4680, 1, 0
        %v4697 = vsel %vm4681, 1, 0
        %v4698 = vcvt.s32.f32 %v4682
        %v4699 = vcvt.s32.f32 %v4683
        %v4700 = vcvt.s32.f32 %v4684
        %v4701 = vcvt.s32.f32 %v4685
        %v4702 = vcvt.s32.f32 %v4686
        %v4703 = vcvt.s32.f32 %v4687
        %v4704 = vcvt.s32.f32 %v4688
        %v4705 = vcvt.s32.f32 %v4689
        %v4706 = vcvt.s32.f32 %v4690
        %v4707 = vcvt.s32.f32 %v4691
        %v4708 = vcvt.s32.f32 %v4692
        %v4709 = vcvt.s32.f32 %v4693
        %v4710 = vcvt.s32.f32 %v4694
        %v4711 = vcvt.s32.f32 %v4695
        %v4712 = vcvt.s32.f32 %v4696
        %v4713 = vcvt.s32.f32 %v4697
        %v4715 = vlaneseq
        %v4716 = vshrl.u32 %v4715, 7
        %v4717 = vsub.s32 0, %v4716
        %v4718 = vrot.slane %v322, %v4717
        %v4720 = vmul.f32 %v4698, %v4718
        %v4721 = vmul.f32 %v4699, %v4718
        %v4722 = vmul.f32 %v4700, %v4718
        %v4723 = vmul.f32 %v4701, %v4718
        %v4724 = vmul.f32 %v4702, %v4718
        %v4725 = vmul.f32 %v4703, %v4718
        %v4726 = vmul.f32 %v4704, %v4718
        %v4727 = vmul.f32 %v4705, %v4718
        %v4728 = vmul.f32 %v4706, %v4718
        %v4729 = vmul.f32 %v4707, %v4718
        %v4730 = vmul.f32 %v4708, %v4718
        %v4731 = vmul.f32 %v4709, %v4718
        %v4732 = vmul.f32 %v4710, %v4718
        %v4733 = vmul.f32 %v4711, %v4718
        %v4734 = vmul.f32 %v4712, %v4718
        %v4735 = vmul.f32 %v4713, %v4718
        %v4736 = vmul.f32 %v2311, %v4720
        %v4737 = vmul.f32 %v2312, %v4721
        %v4738 = vmul.f32 %v2313, %v4722
        %v4739 = vmul.f32 %v2314, %v4723
        %v4740 = vmul.f32 %v2315, %v4724
        %v4741 = vmul.f32 %v2316, %v4725
        %v4742 = vmul.f32 %v2317, %v4726
        %v4743 = vmul.f32 %v2318, %v4727
        %v4744 = vmul.f32 %v2319, %v4728
        %v4745 = vmul.f32 %v2320, %v4729
        %v4746 = vmul.f32 %v2321, %v4730
        %v4747 = vmul.f32 %v2322, %v4731
        %v4748 = vmul.f32 %v2323, %v4732
        %v4749 = vmul.f32 %v2324, %v4733
        %v4750 = vmul.f32 %v2325, %v4734
        %v4751 = vmul.f32 %v2326, %v4735
        %v4752 = vsel %vm2637, %v4736, 0.0
        %v4753 = vsel %vm2637, %v4737, 0.0
        %v4754 = vadd.f32 %v4752, %v4753
        %v4755 = vsel %vm2637, %v4738, 0.0
        %v4756 = vadd.f32 %v4754, %v4755
        %v4757 = vsel %vm2637, %v4739, 0.0
        %v4758 = vadd.f32 %v4756, %v4757
        %v4759 = vsel %vm2637, %v4740, 0.0
        %v4760 = vadd.f32 %v4758, %v4759
        %v4761 = vsel %vm2637, %v4741, 0.0
        %v4762 = vadd.f32 %v4760, %v4761
        %v4763 = vsel %vm2637, %v4742, 0.0
        %v4764 = vadd.f32 %v4762, %v4763
        %v4765 = vsel %vm2637, %v4743, 0.0
        %v4766 = vadd.f32 %v4764, %v4765
        %v4767 = vsel %vm2637, %v4744, 0.0
        %v4768 = vadd.f32 %v4766, %v4767
        %v4769 = vsel %vm2637, %v4745, 0.0
        %v4770 = vadd.f32 %v4768, %v4769
        %v4771 = vsel %vm2637, %v4746, 0.0
        %v4772 = vadd.f32 %v4770, %v4771
        %v4773 = vsel %vm2637, %v4747, 0.0
        %v4774 = vadd.f32 %v4772, %v4773
        %v4775 = vsel %vm2637, %v4748, 0.0
        %v4776 = vadd.f32 %v4774, %v4775
        %v4777 = vsel %vm2637, %v4749, 0.0
        %v4778 = vadd.f32 %v4776, %v4777
        %v4779 = vsel %vm2637, %v4750, 0.0
        %v4780 = vadd.f32 %v4778, %v4779
        %v4781 = vsel %vm2637, %v4751, 0.0
        %v4782 = vadd.f32 %v4780, %v4781
        %v4783 = vrot.slane %v4782, 4
        %v4784 = vadd.f32 %v4782, %v4783
        %v4785 = vrot.slane %v4784, 2
        %v4786 = vadd.f32 %v4784, %v4785
        %v4787 = vrot.slane %v4786, 1
        %v4788 = vadd.f32 %v4786, %v4787
        %v4789 = vsel %vm2637, %v4720, 0.0
        %v4790 = vsel %vm2637, %v4721, 0.0
        %v4791 = vadd.f32 %v4789, %v4790
        %v4792 = vsel %vm2637, %v4722, 0.0
        %v4793 = vadd.f32 %v4791, %v4792
        %v4794 = vsel %vm2637, %v4723, 0.0
        %v4795 = vadd.f32 %v4793, %v4794
        %v4796 = vsel %vm2637, %v4724, 0.0
        %v4797 = vadd.f32 %v4795, %v4796
        %v4798 = vsel %vm2637, %v4725, 0.0
        %v4799 = vadd.f32 %v4797, %v4798
        %v4800 = vsel %vm2637, %v4726, 0.0
        %v4801 = vadd.f32 %v4799, %v4800
        %v4802 = vsel %vm2637, %v4727, 0.0
        %v4803 = vadd.f32 %v4801, %v4802
        %v4804 = vsel %vm2637, %v4728, 0.0
        %v4805 = vadd.f32 %v4803, %v4804
        %v4806 = vsel %vm2637, %v4729, 0.0
        %v4807 = vadd.f32 %v4805, %v4806
        %v4808 = vsel %vm2637, %v4730, 0.0
        %v4809 = vadd.f32 %v4807, %v4808
        %v4810 = vsel %vm2637, %v4731, 0.0
        %v4811 = vadd.f32 %v4809, %v4810
        %v4812 = vsel %vm2637, %v4732, 0.0
        %v4813 = vadd.f32 %v4811, %v4812
        %v4814 = vsel %vm2637, %v4733, 0.0
        %v4815 = vadd.f32 %v4813, %v4814
        %v4816 = vsel %vm2637, %v4734, 0.0
        %v4817 = vadd.f32 %v4815, %v4816
        %v4818 = vsel %vm2637, %v4735, 0.0
        %v4819 = vadd.f32 %v4817, %v4818
        %v4820 = vrot.slane %v4819, 4
        %v4821 = vadd.f32 %v4819, %v4820
        %v4822 = vrot.slane %v4821, 2
        %v4823 = vadd.f32 %v4821, %v4822
        %v4824 = vrot.slane %v4823, 1
        %v4825 = vadd.f32 %v4823, %v4824
        %v4826 = vadd.f32 %v4825, 1e-09
        %v4827 = vrcp.pop %v4826
        %v4828 = vmul.f32 %v4826, %v4827
        %v4829 = vsub.f32 2.0, %v4828
        %v4830 = vmul.f32 %v4827, %v4829
        %v4831 = vmul.f32 %v4788, %v4830
        %v4832 = vmax.f32 %v4831, 0.0
        %v4833 = vmin.f32 %v4832, 1.0
        %4834 = vadd.xlane.f32.xlu0 %v4789
        %v4835 = vpop.xlane.xlu0 %4834
        %4836 = vadd.xlane.f32.xlu0 %v4790
        %v4837 = vpop.xlane.xlu0 %4836
        %4838 = vadd.xlane.f32.xlu0 %v4792
        %v4839 = vpop.xlane.xlu0 %4838
        %4840 = vadd.xlane.f32.xlu0 %v4794
        %v4841 = vpop.xlane.xlu0 %4840
        %4842 = vadd.xlane.f32.xlu0 %v4796
        %v4843 = vpop.xlane.xlu0 %4842
        %4844 = vadd.xlane.f32.xlu0 %v4798
        %v4845 = vpop.xlane.xlu0 %4844
        %4846 = vadd.xlane.f32.xlu0 %v4800
        %v4847 = vpop.xlane.xlu0 %4846
        %4848 = vadd.xlane.f32.xlu0 %v4802
        %v4849 = vpop.xlane.xlu0 %4848
        %4850 = vadd.xlane.f32.xlu0 %v4804
        %v4851 = vpop.xlane.xlu0 %4850
        %4852 = vadd.xlane.f32.xlu0 %v4806
        %v4853 = vpop.xlane.xlu0 %4852
        %4854 = vadd.xlane.f32.xlu0 %v4808
        %v4855 = vpop.xlane.xlu0 %4854
        %4856 = vadd.xlane.f32.xlu0 %v4810
        %v4857 = vpop.xlane.xlu0 %4856
        %4858 = vadd.xlane.f32.xlu0 %v4812
        %v4859 = vpop.xlane.xlu0 %4858
        %4860 = vadd.xlane.f32.xlu0 %v4814
        %v4861 = vpop.xlane.xlu0 %4860
        %4862 = vadd.xlane.f32.xlu0 %v4816
        %v4863 = vpop.xlane.xlu0 %4862
        %4864 = vadd.xlane.f32.xlu0 %v4818
        %v4865 = vpop.xlane.xlu0 %4864
        %vm4866 = vcmp.gt.f32.partialorder %v4835, 0.0
        %vm4867 = vcmp.gt.f32.partialorder %v4837, 0.0
        %vm4868 = vcmp.gt.f32.partialorder %v4839, 0.0
        %vm4869 = vcmp.gt.f32.partialorder %v4841, 0.0
        %vm4870 = vcmp.gt.f32.partialorder %v4843, 0.0
        %vm4871 = vcmp.gt.f32.partialorder %v4845, 0.0
        %vm4872 = vcmp.gt.f32.partialorder %v4847, 0.0
        %vm4873 = vcmp.gt.f32.partialorder %v4849, 0.0
        %vm4874 = vcmp.gt.f32.partialorder %v4851, 0.0
        %vm4875 = vcmp.gt.f32.partialorder %v4853, 0.0
        %vm4876 = vcmp.gt.f32.partialorder %v4855, 0.0
        %vm4877 = vcmp.gt.f32.partialorder %v4857, 0.0
        %vm4878 = vcmp.gt.f32.partialorder %v4859, 0.0
        %vm4879 = vcmp.gt.f32.partialorder %v4861, 0.0
        %vm4880 = vcmp.gt.f32.partialorder %v4863, 0.0
        %vm4881 = vcmp.gt.f32.partialorder %v4865, 0.0
        %v4882 = vlaneseq
        %v4883 = vand.u32 %v4882, 127
        %vm4884 = vcmp.gt.f32.partialorder %v4720, 0.0
        %vm4885 = vcmp.gt.f32.partialorder %v4721, 0.0
        %vm4886 = vcmp.gt.f32.partialorder %v4722, 0.0
        %vm4887 = vcmp.gt.f32.partialorder %v4723, 0.0
        %vm4888 = vcmp.gt.f32.partialorder %v4724, 0.0
        %vm4889 = vcmp.gt.f32.partialorder %v4725, 0.0
        %vm4890 = vcmp.gt.f32.partialorder %v4726, 0.0
        %vm4891 = vcmp.gt.f32.partialorder %v4727, 0.0
        %vm4892 = vcmp.gt.f32.partialorder %v4728, 0.0
        %vm4893 = vcmp.gt.f32.partialorder %v4729, 0.0
        %vm4894 = vcmp.gt.f32.partialorder %v4730, 0.0
        %vm4895 = vcmp.gt.f32.partialorder %v4731, 0.0
        %vm4896 = vcmp.gt.f32.partialorder %v4732, 0.0
        %vm4897 = vcmp.gt.f32.partialorder %v4733, 0.0
        %vm4898 = vcmp.gt.f32.partialorder %v4734, 0.0
        %vm4899 = vcmp.gt.f32.partialorder %v4735, 0.0
        %v4900 = vsel %vm4884, %v4883, 8
        %v4901 = vsel %vm4885, %v4883, 8
        %v4902 = vsel %vm4886, %v4883, 8
        %v4903 = vsel %vm4887, %v4883, 8
        %v4904 = vsel %vm4888, %v4883, 8
        %v4905 = vsel %vm4889, %v4883, 8
        %v4906 = vsel %vm4890, %v4883, 8
        %v4907 = vsel %vm4891, %v4883, 8
        %v4908 = vsel %vm4892, %v4883, 8
        %v4909 = vsel %vm4893, %v4883, 8
        %v4910 = vsel %vm4894, %v4883, 8
        %v4911 = vsel %vm4895, %v4883, 8
        %v4912 = vsel %vm4896, %v4883, 8
        %v4913 = vsel %vm4897, %v4883, 8
        %v4914 = vsel %vm4898, %v4883, 8
        %v4915 = vsel %vm4899, %v4883, 8
        %v4916 = vsel %vm2637, %v4900, 2147483647
        %v4917 = vand.u32 %v4916, 65535
        %v4918 = vshra.s32 %v4916, 16
        %v4919 = vcvt.s32.f32 %v4917
        %v4920 = vcvt.s32.f32 %v4918
        %4921 = vmin.xlane.f32.xlu0 %v4920
        %v4922 = vpop.xlane.xlu0 %4921
        %vm4923 = vcmp.eq.f32.partialorder %v4920, %v4922
        %v4924 = vsel %vm4923, %v4919, inf
        %4925 = vmin.xlane.f32.xlu0 %v4924
        %v4926 = vpop.xlane.xlu0 %4925
        %v4927 = vcvt.f32.s32 %v4926
        %v4928 = vcvt.f32.s32 %v4922
        %v4929 = vshll.u32 %v4928, 16
        %v4930 = vadd.s32 %v4929, %v4927
        %v4931 = vsel %vm2637, %v4901, 2147483647
        %v4932 = vand.u32 %v4931, 65535
        %v4933 = vshra.s32 %v4931, 16
        %v4934 = vcvt.s32.f32 %v4932
        %v4935 = vcvt.s32.f32 %v4933
        %4936 = vmin.xlane.f32.xlu0 %v4935
        %v4937 = vpop.xlane.xlu0 %4936
        %vm4938 = vcmp.eq.f32.partialorder %v4935, %v4937
        %v4939 = vsel %vm4938, %v4934, inf
        %4940 = vmin.xlane.f32.xlu0 %v4939
        %v4941 = vpop.xlane.xlu0 %4940
        %v4942 = vcvt.f32.s32 %v4941
        %v4943 = vcvt.f32.s32 %v4937
        %v4944 = vshll.u32 %v4943, 16
        %v4945 = vadd.s32 %v4944, %v4942
        %v4946 = vsel %vm2637, %v4902, 2147483647
        %v4947 = vand.u32 %v4946, 65535
        %v4948 = vshra.s32 %v4946, 16
        %v4949 = vcvt.s32.f32 %v4947
        %v4950 = vcvt.s32.f32 %v4948
        %4951 = vmin.xlane.f32.xlu0 %v4950
        %v4952 = vpop.xlane.xlu0 %4951
        %vm4953 = vcmp.eq.f32.partialorder %v4950, %v4952
        %v4954 = vsel %vm4953, %v4949, inf
        %4955 = vmin.xlane.f32.xlu0 %v4954
        %v4956 = vpop.xlane.xlu0 %4955
        %v4957 = vcvt.f32.s32 %v4956
        %v4958 = vcvt.f32.s32 %v4952
        %v4959 = vshll.u32 %v4958, 16
        %v4960 = vadd.s32 %v4959, %v4957
        %v4961 = vsel %vm2637, %v4903, 2147483647
        %v4962 = vand.u32 %v4961, 65535
        %v4963 = vshra.s32 %v4961, 16
        %v4964 = vcvt.s32.f32 %v4962
        %v4965 = vcvt.s32.f32 %v4963
        %4966 = vmin.xlane.f32.xlu0 %v4965
        %v4967 = vpop.xlane.xlu0 %4966
        %vm4968 = vcmp.eq.f32.partialorder %v4965, %v4967
        %v4969 = vsel %vm4968, %v4964, inf
        %4970 = vmin.xlane.f32.xlu0 %v4969
        %v4971 = vpop.xlane.xlu0 %4970
        %v4972 = vcvt.f32.s32 %v4971
        %v4973 = vcvt.f32.s32 %v4967
        %v4974 = vshll.u32 %v4973, 16
        %v4975 = vadd.s32 %v4974, %v4972
        %v4976 = vsel %vm2637, %v4904, 2147483647
        %v4977 = vand.u32 %v4976, 65535
        %v4978 = vshra.s32 %v4976, 16
        %v4979 = vcvt.s32.f32 %v4977
        %v4980 = vcvt.s32.f32 %v4978
        %4981 = vmin.xlane.f32.xlu0 %v4980
        %v4982 = vpop.xlane.xlu0 %4981
        %vm4983 = vcmp.eq.f32.partialorder %v4980, %v4982
        %v4984 = vsel %vm4983, %v4979, inf
        %4985 = vmin.xlane.f32.xlu0 %v4984
        %v4986 = vpop.xlane.xlu0 %4985
        %v4987 = vcvt.f32.s32 %v4986
        %v4988 = vcvt.f32.s32 %v4982
        %v4989 = vshll.u32 %v4988, 16
        %v4990 = vadd.s32 %v4989, %v4987
        %v4991 = vsel %vm2637, %v4905, 2147483647
        %v4992 = vand.u32 %v4991, 65535
        %v4993 = vshra.s32 %v4991, 16
        %v4994 = vcvt.s32.f32 %v4992
        %v4995 = vcvt.s32.f32 %v4993
        %4996 = vmin.xlane.f32.xlu0 %v4995
        %v4997 = vpop.xlane.xlu0 %4996
        %vm4998 = vcmp.eq.f32.partialorder %v4995, %v4997
        %v4999 = vsel %vm4998, %v4994, inf
        %5000 = vmin.xlane.f32.xlu0 %v4999
        %v5001 = vpop.xlane.xlu0 %5000
        %v5002 = vcvt.f32.s32 %v5001
        %v5003 = vcvt.f32.s32 %v4997
        %v5004 = vshll.u32 %v5003, 16
        %v5005 = vadd.s32 %v5004, %v5002
        %v5006 = vsel %vm2637, %v4906, 2147483647
        %v5007 = vand.u32 %v5006, 65535
        %v5008 = vshra.s32 %v5006, 16
        %v5009 = vcvt.s32.f32 %v5007
        %v5010 = vcvt.s32.f32 %v5008
        %5011 = vmin.xlane.f32.xlu0 %v5010
        %v5012 = vpop.xlane.xlu0 %5011
        %vm5013 = vcmp.eq.f32.partialorder %v5010, %v5012
        %v5014 = vsel %vm5013, %v5009, inf
        %5015 = vmin.xlane.f32.xlu0 %v5014
        %v5016 = vpop.xlane.xlu0 %5015
        %v5017 = vcvt.f32.s32 %v5016
        %v5018 = vcvt.f32.s32 %v5012
        %v5019 = vshll.u32 %v5018, 16
        %v5020 = vadd.s32 %v5019, %v5017
        %v5021 = vsel %vm2637, %v4907, 2147483647
        %v5022 = vand.u32 %v5021, 65535
        %v5023 = vshra.s32 %v5021, 16
        %v5024 = vcvt.s32.f32 %v5022
        %v5025 = vcvt.s32.f32 %v5023
        %5026 = vmin.xlane.f32.xlu0 %v5025
        %v5027 = vpop.xlane.xlu0 %5026
        %vm5028 = vcmp.eq.f32.partialorder %v5025, %v5027
        %v5029 = vsel %vm5028, %v5024, inf
        %5030 = vmin.xlane.f32.xlu0 %v5029
        %v5031 = vpop.xlane.xlu0 %5030
        %v5032 = vcvt.f32.s32 %v5031
        %v5033 = vcvt.f32.s32 %v5027
        %v5034 = vshll.u32 %v5033, 16
        %v5035 = vadd.s32 %v5034, %v5032
        %v5036 = vsel %vm2637, %v4908, 2147483647
        %v5037 = vand.u32 %v5036, 65535
        %v5038 = vshra.s32 %v5036, 16
        %v5039 = vcvt.s32.f32 %v5037
        %v5040 = vcvt.s32.f32 %v5038
        %5041 = vmin.xlane.f32.xlu0 %v5040
        %v5042 = vpop.xlane.xlu0 %5041
        %vm5043 = vcmp.eq.f32.partialorder %v5040, %v5042
        %v5044 = vsel %vm5043, %v5039, inf
        %5045 = vmin.xlane.f32.xlu0 %v5044
        %v5046 = vpop.xlane.xlu0 %5045
        %v5047 = vcvt.f32.s32 %v5046
        %v5048 = vcvt.f32.s32 %v5042
        %v5049 = vshll.u32 %v5048, 16
        %v5050 = vadd.s32 %v5049, %v5047
        %v5051 = vsel %vm2637, %v4909, 2147483647
        %v5052 = vand.u32 %v5051, 65535
        %v5053 = vshra.s32 %v5051, 16
        %v5054 = vcvt.s32.f32 %v5052
        %v5055 = vcvt.s32.f32 %v5053
        %5056 = vmin.xlane.f32.xlu0 %v5055
        %v5057 = vpop.xlane.xlu0 %5056
        %vm5058 = vcmp.eq.f32.partialorder %v5055, %v5057
        %v5059 = vsel %vm5058, %v5054, inf
        %5060 = vmin.xlane.f32.xlu0 %v5059
        %v5061 = vpop.xlane.xlu0 %5060
        %v5062 = vcvt.f32.s32 %v5061
        %v5063 = vcvt.f32.s32 %v5057
        %v5064 = vshll.u32 %v5063, 16
        %v5065 = vadd.s32 %v5064, %v5062
        %v5066 = vsel %vm2637, %v4910, 2147483647
        %v5067 = vand.u32 %v5066, 65535
        %v5068 = vshra.s32 %v5066, 16
        %v5069 = vcvt.s32.f32 %v5067
        %v5070 = vcvt.s32.f32 %v5068
        %5071 = vmin.xlane.f32.xlu0 %v5070
        %v5072 = vpop.xlane.xlu0 %5071
        %vm5073 = vcmp.eq.f32.partialorder %v5070, %v5072
        %v5074 = vsel %vm5073, %v5069, inf
        %5075 = vmin.xlane.f32.xlu0 %v5074
        %v5076 = vpop.xlane.xlu0 %5075
        %v5077 = vcvt.f32.s32 %v5076
        %v5078 = vcvt.f32.s32 %v5072
        %v5079 = vshll.u32 %v5078, 16
        %v5080 = vadd.s32 %v5079, %v5077
        %v5081 = vsel %vm2637, %v4911, 2147483647
        %v5082 = vand.u32 %v5081, 65535
        %v5083 = vshra.s32 %v5081, 16
        %v5084 = vcvt.s32.f32 %v5082
        %v5085 = vcvt.s32.f32 %v5083
        %5086 = vmin.xlane.f32.xlu0 %v5085
        %v5087 = vpop.xlane.xlu0 %5086
        %vm5088 = vcmp.eq.f32.partialorder %v5085, %v5087
        %v5089 = vsel %vm5088, %v5084, inf
        %5090 = vmin.xlane.f32.xlu0 %v5089
        %v5091 = vpop.xlane.xlu0 %5090
        %v5092 = vcvt.f32.s32 %v5091
        %v5093 = vcvt.f32.s32 %v5087
        %v5094 = vshll.u32 %v5093, 16
        %v5095 = vadd.s32 %v5094, %v5092
        %v5096 = vsel %vm2637, %v4912, 2147483647
        %v5097 = vand.u32 %v5096, 65535
        %v5098 = vshra.s32 %v5096, 16
        %v5099 = vcvt.s32.f32 %v5097
        %v5100 = vcvt.s32.f32 %v5098
        %5101 = vmin.xlane.f32.xlu0 %v5100
        %v5102 = vpop.xlane.xlu0 %5101
        %vm5103 = vcmp.eq.f32.partialorder %v5100, %v5102
        %v5104 = vsel %vm5103, %v5099, inf
        %5105 = vmin.xlane.f32.xlu0 %v5104
        %v5106 = vpop.xlane.xlu0 %5105
        %v5107 = vcvt.f32.s32 %v5106
        %v5108 = vcvt.f32.s32 %v5102
        %v5109 = vshll.u32 %v5108, 16
        %v5110 = vadd.s32 %v5109, %v5107
        %v5111 = vsel %vm2637, %v4913, 2147483647
        %v5112 = vand.u32 %v5111, 65535
        %v5113 = vshra.s32 %v5111, 16
        %v5114 = vcvt.s32.f32 %v5112
        %v5115 = vcvt.s32.f32 %v5113
        %5116 = vmin.xlane.f32.xlu0 %v5115
        %v5117 = vpop.xlane.xlu0 %5116
        %vm5118 = vcmp.eq.f32.partialorder %v5115, %v5117
        %v5119 = vsel %vm5118, %v5114, inf
        %5120 = vmin.xlane.f32.xlu0 %v5119
        %v5121 = vpop.xlane.xlu0 %5120
        %v5122 = vcvt.f32.s32 %v5121
        %v5123 = vcvt.f32.s32 %v5117
        %v5124 = vshll.u32 %v5123, 16
        %v5125 = vadd.s32 %v5124, %v5122
        %v5126 = vsel %vm2637, %v4914, 2147483647
        %v5127 = vand.u32 %v5126, 65535
        %v5128 = vshra.s32 %v5126, 16
        %v5129 = vcvt.s32.f32 %v5127
        %v5130 = vcvt.s32.f32 %v5128
        %5131 = vmin.xlane.f32.xlu0 %v5130
        %v5132 = vpop.xlane.xlu0 %5131
        %vm5133 = vcmp.eq.f32.partialorder %v5130, %v5132
        %v5134 = vsel %vm5133, %v5129, inf
        %5135 = vmin.xlane.f32.xlu0 %v5134
        %v5136 = vpop.xlane.xlu0 %5135
        %v5137 = vcvt.f32.s32 %v5136
        %v5138 = vcvt.f32.s32 %v5132
        %v5139 = vshll.u32 %v5138, 16
        %v5140 = vadd.s32 %v5139, %v5137
        %v5141 = vsel %vm2637, %v4915, 2147483647
        %v5142 = vand.u32 %v5141, 65535
        %v5143 = vshra.s32 %v5141, 16
        %v5144 = vcvt.s32.f32 %v5142
        %v5145 = vcvt.s32.f32 %v5143
        %5146 = vmin.xlane.f32.xlu0 %v5145
        %v5147 = vpop.xlane.xlu0 %5146
        %vm5148 = vcmp.eq.f32.partialorder %v5145, %v5147
        %v5149 = vsel %vm5148, %v5144, inf
        %5150 = vmin.xlane.f32.xlu0 %v5149
        %v5151 = vpop.xlane.xlu0 %5150
        %v5152 = vcvt.f32.s32 %v5151
        %v5153 = vcvt.f32.s32 %v5147
        %v5154 = vshll.u32 %v5153, 16
        %v5155 = vadd.s32 %v5154, %v5152
        %v5156 = vsel %vm4866, %v4930, 0
        %v5157 = vsel %vm4867, %v4945, 0
        %v5158 = vsel %vm4868, %v4960, 0
        %v5159 = vsel %vm4869, %v4975, 0
        %v5160 = vsel %vm4870, %v4990, 0
        %v5161 = vsel %vm4871, %v5005, 0
        %v5162 = vsel %vm4872, %v5020, 0
        %v5163 = vsel %vm4873, %v5035, 0
        %v5164 = vsel %vm4874, %v5050, 0
        %v5165 = vsel %vm4875, %v5065, 0
        %v5166 = vsel %vm4876, %v5080, 0
        %v5167 = vsel %vm4877, %v5095, 0
        %v5168 = vsel %vm4878, %v5110, 0
        %v5169 = vsel %vm4879, %v5125, 0
        %v5170 = vsel %vm4880, %v5140, 0
        %v5171 = vsel %vm4881, %v5155, 0
        %vm5172 = vcmp.eq.s32.totalorder %v4883, %v5156
        %vm5173 = vcmp.eq.s32.totalorder %v4883, %v5157
        %vm5174 = vcmp.eq.s32.totalorder %v4883, %v5158
        %vm5175 = vcmp.eq.s32.totalorder %v4883, %v5159
        %vm5176 = vcmp.eq.s32.totalorder %v4883, %v5160
        %vm5177 = vcmp.eq.s32.totalorder %v4883, %v5161
        %vm5178 = vcmp.eq.s32.totalorder %v4883, %v5162
        %vm5179 = vcmp.eq.s32.totalorder %v4883, %v5163
        %vm5180 = vcmp.eq.s32.totalorder %v4883, %v5164
        %vm5181 = vcmp.eq.s32.totalorder %v4883, %v5165
        %vm5182 = vcmp.eq.s32.totalorder %v4883, %v5166
        %vm5183 = vcmp.eq.s32.totalorder %v4883, %v5167
        %vm5184 = vcmp.eq.s32.totalorder %v4883, %v5168
        %vm5185 = vcmp.eq.s32.totalorder %v4883, %v5169
        %vm5186 = vcmp.eq.s32.totalorder %v4883, %v5170
        %vm5187 = vcmp.eq.s32.totalorder %v4883, %v5171
        %v5188 = vsel %vm5172, 1, 0
        %v5189 = vsel %vm5173, 1, 0
        %v5190 = vsel %vm5174, 1, 0
        %v5191 = vsel %vm5175, 1, 0
        %v5192 = vsel %vm5176, 1, 0
        %v5193 = vsel %vm5177, 1, 0
        %v5194 = vsel %vm5178, 1, 0
        %v5195 = vsel %vm5179, 1, 0
        %v5196 = vsel %vm5180, 1, 0
        %v5197 = vsel %vm5181, 1, 0
        %v5198 = vsel %vm5182, 1, 0
        %v5199 = vsel %vm5183, 1, 0
        %v5200 = vsel %vm5184, 1, 0
        %v5201 = vsel %vm5185, 1, 0
        %v5202 = vsel %vm5186, 1, 0
        %v5203 = vsel %vm5187, 1, 0
        %v5204 = vcvt.s32.f32 %v5188
        %v5205 = vcvt.s32.f32 %v5189
        %v5206 = vcvt.s32.f32 %v5190
        %v5207 = vcvt.s32.f32 %v5191
        %v5208 = vcvt.s32.f32 %v5192
        %v5209 = vcvt.s32.f32 %v5193
        %v5210 = vcvt.s32.f32 %v5194
        %v5211 = vcvt.s32.f32 %v5195
        %v5212 = vcvt.s32.f32 %v5196
        %v5213 = vcvt.s32.f32 %v5197
        %v5214 = vcvt.s32.f32 %v5198
        %v5215 = vcvt.s32.f32 %v5199
        %v5216 = vcvt.s32.f32 %v5200
        %v5217 = vcvt.s32.f32 %v5201
        %v5218 = vcvt.s32.f32 %v5202
        %v5219 = vcvt.s32.f32 %v5203
        %v5220 = vmul.f32 %v5204, %v326
        %v5221 = vmul.f32 %v5205, %v326
        %v5222 = vmul.f32 %v5206, %v326
        %v5223 = vmul.f32 %v5207, %v326
        %v5224 = vmul.f32 %v5208, %v326
        %v5225 = vmul.f32 %v5209, %v326
        %v5226 = vmul.f32 %v5210, %v326
        %v5227 = vmul.f32 %v5211, %v326
        %v5228 = vmul.f32 %v5212, %v326
        %v5229 = vmul.f32 %v5213, %v326
        %v5230 = vmul.f32 %v5214, %v326
        %v5231 = vmul.f32 %v5215, %v326
        %v5232 = vmul.f32 %v5216, %v326
        %v5233 = vmul.f32 %v5217, %v326
        %v5234 = vmul.f32 %v5218, %v326
        %v5235 = vmul.f32 %v5219, %v326
        %v5236 = vsel %vm2637, %v5220, 0.0
        %5237 = vadd.xlane.f32.xlu0 %v5236
        %v5238 = vpop.xlane.xlu0 %5237
        %v5239 = vsel %vm2637, %v5221, 0.0
        %5240 = vadd.xlane.f32.xlu0 %v5239
        %v5241 = vpop.xlane.xlu0 %5240
        %v5242 = vsel %vm2637, %v5222, 0.0
        %5243 = vadd.xlane.f32.xlu0 %v5242
        %v5244 = vpop.xlane.xlu0 %5243
        %v5245 = vsel %vm2637, %v5223, 0.0
        %5246 = vadd.xlane.f32.xlu0 %v5245
        %v5247 = vpop.xlane.xlu0 %5246
        %v5248 = vsel %vm2637, %v5224, 0.0
        %5249 = vadd.xlane.f32.xlu0 %v5248
        %v5250 = vpop.xlane.xlu0 %5249
        %v5251 = vsel %vm2637, %v5225, 0.0
        %5252 = vadd.xlane.f32.xlu0 %v5251
        %v5253 = vpop.xlane.xlu0 %5252
        %v5254 = vsel %vm2637, %v5226, 0.0
        %5255 = vadd.xlane.f32.xlu0 %v5254
        %v5256 = vpop.xlane.xlu0 %5255
        %v5257 = vsel %vm2637, %v5227, 0.0
        %5258 = vadd.xlane.f32.xlu0 %v5257
        %v5259 = vpop.xlane.xlu0 %5258
        %v5260 = vsel %vm2637, %v5228, 0.0
        %5261 = vadd.xlane.f32.xlu0 %v5260
        %v5262 = vpop.xlane.xlu0 %5261
        %v5263 = vsel %vm2637, %v5229, 0.0
        %5264 = vadd.xlane.f32.xlu0 %v5263
        %v5265 = vpop.xlane.xlu0 %5264
        %v5266 = vsel %vm2637, %v5230, 0.0
        %5267 = vadd.xlane.f32.xlu0 %v5266
        %v5268 = vpop.xlane.xlu0 %5267
        %v5269 = vsel %vm2637, %v5231, 0.0
        %5270 = vadd.xlane.f32.xlu0 %v5269
        %v5271 = vpop.xlane.xlu0 %5270
        %v5272 = vsel %vm2637, %v5232, 0.0
        %5273 = vadd.xlane.f32.xlu0 %v5272
        %v5274 = vpop.xlane.xlu0 %5273
        %v5275 = vsel %vm2637, %v5233, 0.0
        %5276 = vadd.xlane.f32.xlu0 %v5275
        %v5277 = vpop.xlane.xlu0 %5276
        %v5278 = vsel %vm2637, %v5234, 0.0
        %5279 = vadd.xlane.f32.xlu0 %v5278
        %v5280 = vpop.xlane.xlu0 %5279
        %v5281 = vsel %vm2637, %v5235, 0.0
        %5282 = vadd.xlane.f32.xlu0 %v5281
        %v5283 = vpop.xlane.xlu0 %5282
        %v5284 = vmul.f32 %v5204, %v426
        %v5285 = vmul.f32 %v5205, %v426
        %v5286 = vmul.f32 %v5206, %v426
        %v5287 = vmul.f32 %v5207, %v426
        %v5288 = vmul.f32 %v5208, %v426
        %v5289 = vmul.f32 %v5209, %v426
        %v5290 = vmul.f32 %v5210, %v426
        %v5291 = vmul.f32 %v5211, %v426
        %v5292 = vmul.f32 %v5212, %v426
        %v5293 = vmul.f32 %v5213, %v426
        %v5294 = vmul.f32 %v5214, %v426
        %v5295 = vmul.f32 %v5215, %v426
        %v5296 = vmul.f32 %v5216, %v426
        %v5297 = vmul.f32 %v5217, %v426
        %v5298 = vmul.f32 %v5218, %v426
        %v5299 = vmul.f32 %v5219, %v426
        %v5300 = vsel %vm2637, %v5284, 0.0
        %5301 = vadd.xlane.f32.xlu0 %v5300
        %v5302 = vpop.xlane.xlu0 %5301
        %v5303 = vsel %vm2637, %v5285, 0.0
        %5304 = vadd.xlane.f32.xlu0 %v5303
        %v5305 = vpop.xlane.xlu0 %5304
        %v5306 = vsel %vm2637, %v5286, 0.0
        %5307 = vadd.xlane.f32.xlu0 %v5306
        %v5308 = vpop.xlane.xlu0 %5307
        %v5309 = vsel %vm2637, %v5287, 0.0
        %5310 = vadd.xlane.f32.xlu0 %v5309
        %v5311 = vpop.xlane.xlu0 %5310
        %v5312 = vsel %vm2637, %v5288, 0.0
        %5313 = vadd.xlane.f32.xlu0 %v5312
        %v5314 = vpop.xlane.xlu0 %5313
        %v5315 = vsel %vm2637, %v5289, 0.0
        %5316 = vadd.xlane.f32.xlu0 %v5315
        %v5317 = vpop.xlane.xlu0 %5316
        %v5318 = vsel %vm2637, %v5290, 0.0
        %5319 = vadd.xlane.f32.xlu0 %v5318
        %v5320 = vpop.xlane.xlu0 %5319
        %v5321 = vsel %vm2637, %v5291, 0.0
        %5322 = vadd.xlane.f32.xlu0 %v5321
        %v5323 = vpop.xlane.xlu0 %5322
        %v5324 = vsel %vm2637, %v5292, 0.0
        %5325 = vadd.xlane.f32.xlu0 %v5324
        %v5326 = vpop.xlane.xlu0 %5325
        %v5327 = vsel %vm2637, %v5293, 0.0
        %5328 = vadd.xlane.f32.xlu0 %v5327
        %v5329 = vpop.xlane.xlu0 %5328
        %v5330 = vsel %vm2637, %v5294, 0.0
        %5331 = vadd.xlane.f32.xlu0 %v5330
        %v5332 = vpop.xlane.xlu0 %5331
        %v5333 = vsel %vm2637, %v5295, 0.0
        %5334 = vadd.xlane.f32.xlu0 %v5333
        %v5335 = vpop.xlane.xlu0 %5334
        %v5336 = vsel %vm2637, %v5296, 0.0
        %5337 = vadd.xlane.f32.xlu0 %v5336
        %v5338 = vpop.xlane.xlu0 %5337
        %v5339 = vsel %vm2637, %v5297, 0.0
        %5340 = vadd.xlane.f32.xlu0 %v5339
        %v5341 = vpop.xlane.xlu0 %5340
        %v5342 = vsel %vm2637, %v5298, 0.0
        %5343 = vadd.xlane.f32.xlu0 %v5342
        %v5344 = vpop.xlane.xlu0 %5343
        %v5345 = vsel %vm2637, %v5299, 0.0
        %5346 = vadd.xlane.f32.xlu0 %v5345
        %v5347 = vpop.xlane.xlu0 %5346
        %v5348 = vmul.f32 %v5204, %v510
        %v5349 = vmul.f32 %v5205, %v510
        %v5350 = vmul.f32 %v5206, %v510
        %v5351 = vmul.f32 %v5207, %v510
        %v5352 = vmul.f32 %v5208, %v510
        %v5353 = vmul.f32 %v5209, %v510
        %v5354 = vmul.f32 %v5210, %v510
        %v5355 = vmul.f32 %v5211, %v510
        %v5356 = vmul.f32 %v5212, %v510
        %v5357 = vmul.f32 %v5213, %v510
        %v5358 = vmul.f32 %v5214, %v510
        %v5359 = vmul.f32 %v5215, %v510
        %v5360 = vmul.f32 %v5216, %v510
        %v5361 = vmul.f32 %v5217, %v510
        %v5362 = vmul.f32 %v5218, %v510
        %v5363 = vmul.f32 %v5219, %v510
        %v5364 = vsel %vm2637, %v5348, 0.0
        %5365 = vadd.xlane.f32.xlu0 %v5364
        %v5366 = vpop.xlane.xlu0 %5365
        %v5367 = vsel %vm2637, %v5349, 0.0
        %5368 = vadd.xlane.f32.xlu0 %v5367
        %v5369 = vpop.xlane.xlu0 %5368
        %v5370 = vsel %vm2637, %v5350, 0.0
        %5371 = vadd.xlane.f32.xlu0 %v5370
        %v5372 = vpop.xlane.xlu0 %5371
        %v5373 = vsel %vm2637, %v5351, 0.0
        %5374 = vadd.xlane.f32.xlu0 %v5373
        %v5375 = vpop.xlane.xlu0 %5374
        %v5376 = vsel %vm2637, %v5352, 0.0
        %5377 = vadd.xlane.f32.xlu0 %v5376
        %v5378 = vpop.xlane.xlu0 %5377
        %v5379 = vsel %vm2637, %v5353, 0.0
        %5380 = vadd.xlane.f32.xlu0 %v5379
        %v5381 = vpop.xlane.xlu0 %5380
        %v5382 = vsel %vm2637, %v5354, 0.0
        %5383 = vadd.xlane.f32.xlu0 %v5382
        %v5384 = vpop.xlane.xlu0 %5383
        %v5385 = vsel %vm2637, %v5355, 0.0
        %5386 = vadd.xlane.f32.xlu0 %v5385
        %v5387 = vpop.xlane.xlu0 %5386
        %v5388 = vsel %vm2637, %v5356, 0.0
        %5389 = vadd.xlane.f32.xlu0 %v5388
        %v5390 = vpop.xlane.xlu0 %5389
        %v5391 = vsel %vm2637, %v5357, 0.0
        %5392 = vadd.xlane.f32.xlu0 %v5391
        %v5393 = vpop.xlane.xlu0 %5392
        %v5394 = vsel %vm2637, %v5358, 0.0
        %5395 = vadd.xlane.f32.xlu0 %v5394
        %v5396 = vpop.xlane.xlu0 %5395
        %v5397 = vsel %vm2637, %v5359, 0.0
        %5398 = vadd.xlane.f32.xlu0 %v5397
        %v5399 = vpop.xlane.xlu0 %5398
        %v5400 = vsel %vm2637, %v5360, 0.0
        %5401 = vadd.xlane.f32.xlu0 %v5400
        %v5402 = vpop.xlane.xlu0 %5401
        %v5403 = vsel %vm2637, %v5361, 0.0
        %5404 = vadd.xlane.f32.xlu0 %v5403
        %v5405 = vpop.xlane.xlu0 %5404
        %v5406 = vsel %vm2637, %v5362, 0.0
        %5407 = vadd.xlane.f32.xlu0 %v5406
        %v5408 = vpop.xlane.xlu0 %5407
        %v5409 = vsel %vm2637, %v5363, 0.0
        %5410 = vadd.xlane.f32.xlu0 %v5409
        %v5411 = vpop.xlane.xlu0 %5410
        %v5412 = vmul.f32 %v5204, %v594
        %v5413 = vmul.f32 %v5205, %v594
        %v5414 = vmul.f32 %v5206, %v594
        %v5415 = vmul.f32 %v5207, %v594
        %v5416 = vmul.f32 %v5208, %v594
        %v5417 = vmul.f32 %v5209, %v594
        %v5418 = vmul.f32 %v5210, %v594
        %v5419 = vmul.f32 %v5211, %v594
        %v5420 = vmul.f32 %v5212, %v594
        %v5421 = vmul.f32 %v5213, %v594
        %v5422 = vmul.f32 %v5214, %v594
        %v5423 = vmul.f32 %v5215, %v594
        %v5424 = vmul.f32 %v5216, %v594
        %v5425 = vmul.f32 %v5217, %v594
        %v5426 = vmul.f32 %v5218, %v594
        %v5427 = vmul.f32 %v5219, %v594
        %v5428 = vsel %vm2637, %v5412, 0.0
        %5429 = vadd.xlane.f32.xlu0 %v5428
        %v5430 = vpop.xlane.xlu0 %5429
        %v5431 = vsel %vm2637, %v5413, 0.0
        %5432 = vadd.xlane.f32.xlu0 %v5431
        %v5433 = vpop.xlane.xlu0 %5432
        %v5434 = vsel %vm2637, %v5414, 0.0
        %5435 = vadd.xlane.f32.xlu0 %v5434
        %v5436 = vpop.xlane.xlu0 %5435
        %v5437 = vsel %vm2637, %v5415, 0.0
        %5438 = vadd.xlane.f32.xlu0 %v5437
        %v5439 = vpop.xlane.xlu0 %5438
        %v5440 = vsel %vm2637, %v5416, 0.0
        %5441 = vadd.xlane.f32.xlu0 %v5440
        %v5442 = vpop.xlane.xlu0 %5441
        %v5443 = vsel %vm2637, %v5417, 0.0
        %5444 = vadd.xlane.f32.xlu0 %v5443
        %v5445 = vpop.xlane.xlu0 %5444
        %v5446 = vsel %vm2637, %v5418, 0.0
        %5447 = vadd.xlane.f32.xlu0 %v5446
        %v5448 = vpop.xlane.xlu0 %5447
        %v5449 = vsel %vm2637, %v5419, 0.0
        %5450 = vadd.xlane.f32.xlu0 %v5449
        %v5451 = vpop.xlane.xlu0 %5450
        %v5452 = vsel %vm2637, %v5420, 0.0
        %5453 = vadd.xlane.f32.xlu0 %v5452
        %v5454 = vpop.xlane.xlu0 %5453
        %v5455 = vsel %vm2637, %v5421, 0.0
        %5456 = vadd.xlane.f32.xlu0 %v5455
        %v5457 = vpop.xlane.xlu0 %5456
        %v5458 = vsel %vm2637, %v5422, 0.0
        %5459 = vadd.xlane.f32.xlu0 %v5458
        %v5460 = vpop.xlane.xlu0 %5459
        %v5461 = vsel %vm2637, %v5423, 0.0
        %5462 = vadd.xlane.f32.xlu0 %v5461
        %v5463 = vpop.xlane.xlu0 %5462
        %v5464 = vsel %vm2637, %v5424, 0.0
        %5465 = vadd.xlane.f32.xlu0 %v5464
        %v5466 = vpop.xlane.xlu0 %5465
        %v5467 = vsel %vm2637, %v5425, 0.0
        %5468 = vadd.xlane.f32.xlu0 %v5467
        %v5469 = vpop.xlane.xlu0 %5468
        %v5470 = vsel %vm2637, %v5426, 0.0
        %5471 = vadd.xlane.f32.xlu0 %v5470
        %v5472 = vpop.xlane.xlu0 %5471
        %v5473 = vsel %vm2637, %v5427, 0.0
        %5474 = vadd.xlane.f32.xlu0 %v5473
        %v5475 = vpop.xlane.xlu0 %5474
        %v5477 = vlaneseq
        %v5478 = vshrl.u32 %v5477, 7
        %v5479 = vsub.s32 0, %v5478
        %v5480 = vrot.slane %v320, %v5479
        %v5482 = vmul.f32 %v5204, %v5480
        %v5483 = vmul.f32 %v5205, %v5480
        %v5484 = vmul.f32 %v5206, %v5480
        %v5485 = vmul.f32 %v5207, %v5480
        %v5486 = vmul.f32 %v5208, %v5480
        %v5487 = vmul.f32 %v5209, %v5480
        %v5488 = vmul.f32 %v5210, %v5480
        %v5489 = vmul.f32 %v5211, %v5480
        %v5490 = vmul.f32 %v5212, %v5480
        %v5491 = vmul.f32 %v5213, %v5480
        %v5492 = vmul.f32 %v5214, %v5480
        %v5493 = vmul.f32 %v5215, %v5480
        %v5494 = vmul.f32 %v5216, %v5480
        %v5495 = vmul.f32 %v5217, %v5480
        %v5496 = vmul.f32 %v5218, %v5480
        %v5497 = vmul.f32 %v5219, %v5480
        %v5498 = vsel %vm2637, %v5482, 0.0
        %5499 = vadd.xlane.f32.xlu0 %v5498
        %v5500 = vpop.xlane.xlu0 %5499
        %v5501 = vsel %vm2637, %v5483, 0.0
        %5502 = vadd.xlane.f32.xlu0 %v5501
        %v5503 = vpop.xlane.xlu0 %5502
        %v5504 = vsel %vm2637, %v5484, 0.0
        %5505 = vadd.xlane.f32.xlu0 %v5504
        %v5506 = vpop.xlane.xlu0 %5505
        %v5507 = vsel %vm2637, %v5485, 0.0
        %5508 = vadd.xlane.f32.xlu0 %v5507
        %v5509 = vpop.xlane.xlu0 %5508
        %v5510 = vsel %vm2637, %v5486, 0.0
        %5511 = vadd.xlane.f32.xlu0 %v5510
        %v5512 = vpop.xlane.xlu0 %5511
        %v5513 = vsel %vm2637, %v5487, 0.0
        %5514 = vadd.xlane.f32.xlu0 %v5513
        %v5515 = vpop.xlane.xlu0 %5514
        %v5516 = vsel %vm2637, %v5488, 0.0
        %5517 = vadd.xlane.f32.xlu0 %v5516
        %v5518 = vpop.xlane.xlu0 %5517
        %v5519 = vsel %vm2637, %v5489, 0.0
        %5520 = vadd.xlane.f32.xlu0 %v5519
        %v5521 = vpop.xlane.xlu0 %5520
        %v5522 = vsel %vm2637, %v5490, 0.0
        %5523 = vadd.xlane.f32.xlu0 %v5522
        %v5524 = vpop.xlane.xlu0 %5523
        %v5525 = vsel %vm2637, %v5491, 0.0
        %5526 = vadd.xlane.f32.xlu0 %v5525
        %v5527 = vpop.xlane.xlu0 %5526
        %v5528 = vsel %vm2637, %v5492, 0.0
        %5529 = vadd.xlane.f32.xlu0 %v5528
        %v5530 = vpop.xlane.xlu0 %5529
        %v5531 = vsel %vm2637, %v5493, 0.0
        %5532 = vadd.xlane.f32.xlu0 %v5531
        %v5533 = vpop.xlane.xlu0 %5532
        %v5534 = vsel %vm2637, %v5494, 0.0
        %5535 = vadd.xlane.f32.xlu0 %v5534
        %v5536 = vpop.xlane.xlu0 %5535
        %v5537 = vsel %vm2637, %v5495, 0.0
        %5538 = vadd.xlane.f32.xlu0 %v5537
        %v5539 = vpop.xlane.xlu0 %5538
        %v5540 = vsel %vm2637, %v5496, 0.0
        %5541 = vadd.xlane.f32.xlu0 %v5540
        %v5542 = vpop.xlane.xlu0 %5541
        %v5543 = vsel %vm2637, %v5497, 0.0
        %5544 = vadd.xlane.f32.xlu0 %v5543
        %v5545 = vpop.xlane.xlu0 %5544
        %v5546 = vcvt.f32.s32.to.zero.pseudo %v5500
        %v5547 = vcvt.f32.s32.to.zero.pseudo %v5503
        %v5548 = vcvt.f32.s32.to.zero.pseudo %v5506
        %v5549 = vcvt.f32.s32.to.zero.pseudo %v5509
        %v5550 = vcvt.f32.s32.to.zero.pseudo %v5512
        %v5551 = vcvt.f32.s32.to.zero.pseudo %v5515
        %v5552 = vcvt.f32.s32.to.zero.pseudo %v5518
        %v5553 = vcvt.f32.s32.to.zero.pseudo %v5521
        %v5554 = vcvt.f32.s32.to.zero.pseudo %v5524
        %v5555 = vcvt.f32.s32.to.zero.pseudo %v5527
        %v5556 = vcvt.f32.s32.to.zero.pseudo %v5530
        %v5557 = vcvt.f32.s32.to.zero.pseudo %v5533
        %v5558 = vcvt.f32.s32.to.zero.pseudo %v5536
        %v5559 = vcvt.f32.s32.to.zero.pseudo %v5539
        %v5560 = vcvt.f32.s32.to.zero.pseudo %v5542
        %v5561 = vcvt.f32.s32.to.zero.pseudo %v5545
        %v5562 = vmul.f32 %v5204, %v4833
        %v5563 = vmul.f32 %v5205, %v4833
        %v5564 = vmul.f32 %v5206, %v4833
        %v5565 = vmul.f32 %v5207, %v4833
        %v5566 = vmul.f32 %v5208, %v4833
        %v5567 = vmul.f32 %v5209, %v4833
        %v5568 = vmul.f32 %v5210, %v4833
        %v5569 = vmul.f32 %v5211, %v4833
        %v5570 = vmul.f32 %v5212, %v4833
        %v5571 = vmul.f32 %v5213, %v4833
        %v5572 = vmul.f32 %v5214, %v4833
        %v5573 = vmul.f32 %v5215, %v4833
        %v5574 = vmul.f32 %v5216, %v4833
        %v5575 = vmul.f32 %v5217, %v4833
        %v5576 = vmul.f32 %v5218, %v4833
        %v5577 = vmul.f32 %v5219, %v4833
        %v5578 = vsel %vm2637, %v5562, 0.0
        %5579 = vadd.xlane.f32.xlu0 %v5578
        %v5580 = vpop.xlane.xlu0 %5579
        %v5581 = vsel %vm2637, %v5563, 0.0
        %5582 = vadd.xlane.f32.xlu0 %v5581
        %v5583 = vpop.xlane.xlu0 %5582
        %v5584 = vsel %vm2637, %v5564, 0.0
        %5585 = vadd.xlane.f32.xlu0 %v5584
        %v5586 = vpop.xlane.xlu0 %5585
        %v5587 = vsel %vm2637, %v5565, 0.0
        %5588 = vadd.xlane.f32.xlu0 %v5587
        %v5589 = vpop.xlane.xlu0 %5588
        %v5590 = vsel %vm2637, %v5566, 0.0
        %5591 = vadd.xlane.f32.xlu0 %v5590
        %v5592 = vpop.xlane.xlu0 %5591
        %v5593 = vsel %vm2637, %v5567, 0.0
        %5594 = vadd.xlane.f32.xlu0 %v5593
        %v5595 = vpop.xlane.xlu0 %5594
        %v5596 = vsel %vm2637, %v5568, 0.0
        %5597 = vadd.xlane.f32.xlu0 %v5596
        %v5598 = vpop.xlane.xlu0 %5597
        %v5599 = vsel %vm2637, %v5569, 0.0
        %5600 = vadd.xlane.f32.xlu0 %v5599
        %v5601 = vpop.xlane.xlu0 %5600
        %v5602 = vsel %vm2637, %v5570, 0.0
        %5603 = vadd.xlane.f32.xlu0 %v5602
        %v5604 = vpop.xlane.xlu0 %5603
        %v5605 = vsel %vm2637, %v5571, 0.0
        %5606 = vadd.xlane.f32.xlu0 %v5605
        %v5607 = vpop.xlane.xlu0 %5606
        %v5608 = vsel %vm2637, %v5572, 0.0
        %5609 = vadd.xlane.f32.xlu0 %v5608
        %v5610 = vpop.xlane.xlu0 %5609
        %v5611 = vsel %vm2637, %v5573, 0.0
        %5612 = vadd.xlane.f32.xlu0 %v5611
        %v5613 = vpop.xlane.xlu0 %5612
        %v5614 = vsel %vm2637, %v5574, 0.0
        %5615 = vadd.xlane.f32.xlu0 %v5614
        %v5616 = vpop.xlane.xlu0 %5615
        %v5617 = vsel %vm2637, %v5575, 0.0
        %5618 = vadd.xlane.f32.xlu0 %v5617
        %v5619 = vpop.xlane.xlu0 %5618
        %v5620 = vsel %vm2637, %v5576, 0.0
        %5621 = vadd.xlane.f32.xlu0 %v5620
        %v5622 = vpop.xlane.xlu0 %5621
        %v5623 = vsel %vm2637, %v5577, 0.0
        %5624 = vadd.xlane.f32.xlu0 %v5623
        %v5625 = vpop.xlane.xlu0 %5624
        %vm5626 = vcmp.eq.s32.totalorder %v4883, %v5546
        %vm5627 = vcmp.eq.s32.totalorder %v4883, %v5547
        %vm5628 = vcmp.eq.s32.totalorder %v4883, %v5548
        %vm5629 = vcmp.eq.s32.totalorder %v4883, %v5549
        %vm5630 = vcmp.eq.s32.totalorder %v4883, %v5550
        %vm5631 = vcmp.eq.s32.totalorder %v4883, %v5551
        %vm5632 = vcmp.eq.s32.totalorder %v4883, %v5552
        %vm5633 = vcmp.eq.s32.totalorder %v4883, %v5553
        %vm5634 = vcmp.eq.s32.totalorder %v4883, %v5554
        %vm5635 = vcmp.eq.s32.totalorder %v4883, %v5555
        %vm5636 = vcmp.eq.s32.totalorder %v4883, %v5556
        %vm5637 = vcmp.eq.s32.totalorder %v4883, %v5557
        %vm5638 = vcmp.eq.s32.totalorder %v4883, %v5558
        %vm5639 = vcmp.eq.s32.totalorder %v4883, %v5559
        %vm5640 = vcmp.eq.s32.totalorder %v4883, %v5560
        %vm5641 = vcmp.eq.s32.totalorder %v4883, %v5561
        %v5642 = vsel %vm4866, 1, 0
        %v5643 = vsel %vm4867, 1, 0
        %v5644 = vsel %vm4868, 1, 0
        %v5645 = vsel %vm4869, 1, 0
        %v5646 = vsel %vm4870, 1, 0
        %v5647 = vsel %vm4871, 1, 0
        %v5648 = vsel %vm4872, 1, 0
        %v5649 = vsel %vm4873, 1, 0
        %v5650 = vsel %vm4874, 1, 0
        %v5651 = vsel %vm4875, 1, 0
        %v5652 = vsel %vm4876, 1, 0
        %v5653 = vsel %vm4877, 1, 0
        %v5654 = vsel %vm4878, 1, 0
        %v5655 = vsel %vm4879, 1, 0
        %v5656 = vsel %vm4880, 1, 0
        %v5657 = vsel %vm4881, 1, 0
        %vm5658 = vcmp.eq.s32.totalorder %v5642, 1
        %vm5659 = vcmp.eq.s32.totalorder %v5643, 1
        %vm5660 = vcmp.eq.s32.totalorder %v5644, 1
        %vm5661 = vcmp.eq.s32.totalorder %v5645, 1
        %vm5662 = vcmp.eq.s32.totalorder %v5646, 1
        %vm5663 = vcmp.eq.s32.totalorder %v5647, 1
        %vm5664 = vcmp.eq.s32.totalorder %v5648, 1
        %vm5665 = vcmp.eq.s32.totalorder %v5649, 1
        %vm5666 = vcmp.eq.s32.totalorder %v5650, 1
        %vm5667 = vcmp.eq.s32.totalorder %v5651, 1
        %vm5668 = vcmp.eq.s32.totalorder %v5652, 1
        %vm5669 = vcmp.eq.s32.totalorder %v5653, 1
        %vm5670 = vcmp.eq.s32.totalorder %v5654, 1
        %vm5671 = vcmp.eq.s32.totalorder %v5655, 1
        %vm5672 = vcmp.eq.s32.totalorder %v5656, 1
        %vm5673 = vcmp.eq.s32.totalorder %v5657, 1
        %vm5674 = vmand %vm5626, %vm5658
        %vm5675 = vmand %vm5627, %vm5659
        %vm5676 = vmand %vm5628, %vm5660
        %vm5677 = vmand %vm5629, %vm5661
        %vm5678 = vmand %vm5630, %vm5662
        %vm5679 = vmand %vm5631, %vm5663
        %vm5680 = vmand %vm5632, %vm5664
        %vm5681 = vmand %vm5633, %vm5665
        %vm5682 = vmand %vm5634, %vm5666
        %vm5683 = vmand %vm5635, %vm5667
        %vm5684 = vmand %vm5636, %vm5668
        %vm5685 = vmand %vm5637, %vm5669
        %vm5686 = vmand %vm5638, %vm5670
        %vm5687 = vmand %vm5639, %vm5671
        %vm5688 = vmand %vm5640, %vm5672
        %vm5689 = vmand %vm5641, %vm5673
        %v5690 = vsel %vm5674, %v5580, 0.0
        %v5691 = vsel %vm5675, %v5583, 0.0
        %v5692 = vsel %vm5676, %v5586, 0.0
        %v5693 = vsel %vm5677, %v5589, 0.0
        %v5694 = vsel %vm5678, %v5592, 0.0
        %v5695 = vsel %vm5679, %v5595, 0.0
        %v5696 = vsel %vm5680, %v5598, 0.0
        %v5697 = vsel %vm5681, %v5601, 0.0
        %v5698 = vsel %vm5682, %v5604, 0.0
        %v5699 = vsel %vm5683, %v5607, 0.0
        %v5700 = vsel %vm5684, %v5610, 0.0
        %v5701 = vsel %vm5685, %v5613, 0.0
        %v5702 = vsel %vm5686, %v5616, 0.0
        %v5703 = vsel %vm5687, %v5619, 0.0
        %v5704 = vsel %vm5688, %v5622, 0.0
        %v5705 = vsel %vm5689, %v5625, 0.0
        %vm5706 = vcmp.eq.s32.totalorder %v4883, 80
        %v5707 = vsel %vm5706, %v5238, %v5690
        %v5708 = vsel %vm5706, %v5241, %v5691
        %v5709 = vsel %vm5706, %v5244, %v5692
        %v5710 = vsel %vm5706, %v5247, %v5693
        %v5711 = vsel %vm5706, %v5250, %v5694
        %v5712 = vsel %vm5706, %v5253, %v5695
        %v5713 = vsel %vm5706, %v5256, %v5696
        %v5714 = vsel %vm5706, %v5259, %v5697
        %v5715 = vsel %vm5706, %v5262, %v5698
        %v5716 = vsel %vm5706, %v5265, %v5699
        %v5717 = vsel %vm5706, %v5268, %v5700
        %v5718 = vsel %vm5706, %v5271, %v5701
        %v5719 = vsel %vm5706, %v5274, %v5702
        %v5720 = vsel %vm5706, %v5277, %v5703
        %v5721 = vsel %vm5706, %v5280, %v5704
        %v5722 = vsel %vm5706, %v5283, %v5705
        %vm5723 = vcmp.eq.s32.totalorder %v4883, 81
        %v5724 = vsel %vm5723, %v5302, %v5707
        %v5725 = vsel %vm5723, %v5305, %v5708
        %v5726 = vsel %vm5723, %v5308, %v5709
        %v5727 = vsel %vm5723, %v5311, %v5710
        %v5728 = vsel %vm5723, %v5314, %v5711
        %v5729 = vsel %vm5723, %v5317, %v5712
        %v5730 = vsel %vm5723, %v5320, %v5713
        %v5731 = vsel %vm5723, %v5323, %v5714
        %v5732 = vsel %vm5723, %v5326, %v5715
        %v5733 = vsel %vm5723, %v5329, %v5716
        %v5734 = vsel %vm5723, %v5332, %v5717
        %v5735 = vsel %vm5723, %v5335, %v5718
        %v5736 = vsel %vm5723, %v5338, %v5719
        %v5737 = vsel %vm5723, %v5341, %v5720
        %v5738 = vsel %vm5723, %v5344, %v5721
        %v5739 = vsel %vm5723, %v5347, %v5722
        %vm5740 = vcmp.eq.s32.totalorder %v4883, 82
        %v5741 = vsel %vm5740, %v5366, %v5724
        %v5742 = vsel %vm5740, %v5369, %v5725
        %v5743 = vsel %vm5740, %v5372, %v5726
        %v5744 = vsel %vm5740, %v5375, %v5727
        %v5745 = vsel %vm5740, %v5378, %v5728
        %v5746 = vsel %vm5740, %v5381, %v5729
        %v5747 = vsel %vm5740, %v5384, %v5730
        %v5748 = vsel %vm5740, %v5387, %v5731
        %v5749 = vsel %vm5740, %v5390, %v5732
        %v5750 = vsel %vm5740, %v5393, %v5733
        %v5751 = vsel %vm5740, %v5396, %v5734
        %v5752 = vsel %vm5740, %v5399, %v5735
        %v5753 = vsel %vm5740, %v5402, %v5736
        %v5754 = vsel %vm5740, %v5405, %v5737
        %v5755 = vsel %vm5740, %v5408, %v5738
        %v5756 = vsel %vm5740, %v5411, %v5739
        %vm5757 = vcmp.eq.s32.totalorder %v4883, 83
        %v5758 = vsel %vm5757, %v5430, %v5741
        %v5759 = vsel %vm5757, %v5433, %v5742
        %v5760 = vsel %vm5757, %v5436, %v5743
        %v5761 = vsel %vm5757, %v5439, %v5744
        %v5762 = vsel %vm5757, %v5442, %v5745
        %v5763 = vsel %vm5757, %v5445, %v5746
        %v5764 = vsel %vm5757, %v5448, %v5747
        %v5765 = vsel %vm5757, %v5451, %v5748
        %v5766 = vsel %vm5757, %v5454, %v5749
        %v5767 = vsel %vm5757, %v5457, %v5750
        %v5768 = vsel %vm5757, %v5460, %v5751
        %v5769 = vsel %vm5757, %v5463, %v5752
        %v5770 = vsel %vm5757, %v5466, %v5753
        %v5771 = vsel %vm5757, %v5469, %v5754
        %v5772 = vsel %vm5757, %v5472, %v5755
        %v5773 = vsel %vm5757, %v5475, %v5756
        %v5774 = vsel %vm4866, %v5500, 80.0
        %v5775 = vsel %vm4867, %v5503, 80.0
        %v5776 = vsel %vm4868, %v5506, 80.0
        %v5777 = vsel %vm4869, %v5509, 80.0
        %v5778 = vsel %vm4870, %v5512, 80.0
        %v5779 = vsel %vm4871, %v5515, 80.0
        %v5780 = vsel %vm4872, %v5518, 80.0
        %v5781 = vsel %vm4873, %v5521, 80.0
        %v5782 = vsel %vm4874, %v5524, 80.0
        %v5783 = vsel %vm4875, %v5527, 80.0
        %v5784 = vsel %vm4876, %v5530, 80.0
        %v5785 = vsel %vm4877, %v5533, 80.0
        %v5786 = vsel %vm4878, %v5536, 80.0
        %v5787 = vsel %vm4879, %v5539, 80.0
        %v5788 = vsel %vm4880, %v5542, 80.0
        %v5789 = vsel %vm4881, %v5545, 80.0
        %vm5790 = vcmp.eq.s32.totalorder %v4883, 84
        %v5791 = vsel %vm5790, %v5774, %v5758
        %v5792 = vsel %vm5790, %v5775, %v5759
        %v5793 = vsel %vm5790, %v5776, %v5760
        %v5794 = vsel %vm5790, %v5777, %v5761
        %v5795 = vsel %vm5790, %v5778, %v5762
        %v5796 = vsel %vm5790, %v5779, %v5763
        %v5797 = vsel %vm5790, %v5780, %v5764
        %v5798 = vsel %vm5790, %v5781, %v5765
        %v5799 = vsel %vm5790, %v5782, %v5766
        %v5800 = vsel %vm5790, %v5783, %v5767
        %v5801 = vsel %vm5790, %v5784, %v5768
        %v5802 = vsel %vm5790, %v5785, %v5769
        %v5803 = vsel %vm5790, %v5786, %v5770
        %v5804 = vsel %vm5790, %v5787, %v5771
        %v5805 = vsel %vm5790, %v5788, %v5772
        %v5806 = vsel %vm5790, %v5789, %v5773
        %vm5807 = vcmp.eq.s32.totalorder %v4883, 85
        %v5808 = vcvt.s32.f32 %v5642
        %v5809 = vcvt.s32.f32 %v5643
        %v5810 = vcvt.s32.f32 %v5644
        %v5811 = vcvt.s32.f32 %v5645
        %v5812 = vcvt.s32.f32 %v5646
        %v5813 = vcvt.s32.f32 %v5647
        %v5814 = vcvt.s32.f32 %v5648
        %v5815 = vcvt.s32.f32 %v5649
        %v5816 = vcvt.s32.f32 %v5650
        %v5817 = vcvt.s32.f32 %v5651
        %v5818 = vcvt.s32.f32 %v5652
        %v5819 = vcvt.s32.f32 %v5653
        %v5820 = vcvt.s32.f32 %v5654
        %v5821 = vcvt.s32.f32 %v5655
        %v5822 = vcvt.s32.f32 %v5656
        %v5823 = vcvt.s32.f32 %v5657
        %v5824 = vsel %vm5807, %v5808, %v5791
        %v5825 = vsel %vm5807, %v5809, %v5792
        %v5826 = vsel %vm5807, %v5810, %v5793
        %v5827 = vsel %vm5807, %v5811, %v5794
        %v5828 = vsel %vm5807, %v5812, %v5795
        %v5829 = vsel %vm5807, %v5813, %v5796
        %v5830 = vsel %vm5807, %v5814, %v5797
        %v5831 = vsel %vm5807, %v5815, %v5798
        %v5832 = vsel %vm5807, %v5816, %v5799
        %v5833 = vsel %vm5807, %v5817, %v5800
        %v5834 = vsel %vm5807, %v5818, %v5801
        %v5835 = vsel %vm5807, %v5819, %v5802
        %v5836 = vsel %vm5807, %v5820, %v5803
        %v5837 = vsel %vm5807, %v5821, %v5804
        %v5838 = vsel %vm5807, %v5822, %v5805
        %v5839 = vsel %vm5807, %v5823, %v5806
        %vm5840 = vcmp.eq.s32.totalorder %v4883, 86
        %v5841 = vcvt.s32.f32 %v5156
        %v5842 = vcvt.s32.f32 %v5157
        %v5843 = vcvt.s32.f32 %v5158
        %v5844 = vcvt.s32.f32 %v5159
        %v5845 = vcvt.s32.f32 %v5160
        %v5846 = vcvt.s32.f32 %v5161
        %v5847 = vcvt.s32.f32 %v5162
        %v5848 = vcvt.s32.f32 %v5163
        %v5849 = vcvt.s32.f32 %v5164
        %v5850 = vcvt.s32.f32 %v5165
        %v5851 = vcvt.s32.f32 %v5166
        %v5852 = vcvt.s32.f32 %v5167
        %v5853 = vcvt.s32.f32 %v5168
        %v5854 = vcvt.s32.f32 %v5169
        %v5855 = vcvt.s32.f32 %v5170
        %v5856 = vcvt.s32.f32 %v5171
        %v5857 = vsel %vm5840, %v5841, %v5824
        %v5858 = vsel %vm5840, %v5842, %v5825
        %v5859 = vsel %vm5840, %v5843, %v5826
        %v5860 = vsel %vm5840, %v5844, %v5827
        %v5861 = vsel %vm5840, %v5845, %v5828
        %v5862 = vsel %vm5840, %v5846, %v5829
        %v5863 = vsel %vm5840, %v5847, %v5830
        %v5864 = vsel %vm5840, %v5848, %v5831
        %v5865 = vsel %vm5840, %v5849, %v5832
        %v5866 = vsel %vm5840, %v5850, %v5833
        %v5867 = vsel %vm5840, %v5851, %v5834
        %v5868 = vsel %vm5840, %v5852, %v5835
        %v5869 = vsel %vm5840, %v5853, %v5836
        %v5870 = vsel %vm5840, %v5854, %v5837
        %v5871 = vsel %vm5840, %v5855, %v5838
        %v5872 = vsel %vm5840, %v5856, %v5839
        %5873 = vst [vmem:[%s267] sm:$0xff] %v5857
        %5874 = vst [vmem:[%s267 + $0x8] sm:$0xff] %v5858
        %5875 = vst [vmem:[%s267 + $0x10] sm:$0xff] %v5859
        %5876 = vst [vmem:[%s267 + $0x18] sm:$0xff] %v5860
        %5877 = vst [vmem:[%s267 + $0x20] sm:$0xff] %v5861
        %5878 = vst [vmem:[%s267 + $0x28] sm:$0xff] %v5862
        %5879 = vst [vmem:[%s267 + $0x30] sm:$0xff] %v5863
        %5880 = vst [vmem:[%s267 + $0x38] sm:$0xff] %v5864
        %5881 = vst [vmem:[%s267 + $0x40] sm:$0xff] %v5865
        %5882 = vst [vmem:[%s267 + $0x48] sm:$0xff] %v5866
        %5883 = vst [vmem:[%s267 + $0x50] sm:$0xff] %v5867
        %5884 = vst [vmem:[%s267 + $0x58] sm:$0xff] %v5868
        %5885 = vst [vmem:[%s267 + $0x60] sm:$0xff] %v5869
        %5886 = vst [vmem:[%s267 + $0x68] sm:$0xff] %v5870
        %5887 = vst [vmem:[%s267 + $0x70] sm:$0xff] %v5871
        %5888 = vst [vmem:[%s267 + $0x78] sm:$0xff] %v5872
        %s5889 = sand.u32 %s157, 1
        %s5890 = scalar_lea.sflag [#allocation3], %s5889
        %s5891 = sand.u32 %s157, 1
        %s5892 = smul.addr %s5891, 128
        %s5893 = scalar_lea.vmem [#allocation2], %s5892
        // Predicated region
        $region41: #{tpu_custom_call.1} parent=39 // pred_check
          %p5894 = pneg %p167
        $region42: #{tpu_custom_call.1} parent=39 // pred_check_branch
          %5896 = sbr.rel (%p5894) target = $region44
        $region43: #{tpu_custom_call.1} parent=39 // pred_region
          %s5898 = ssub.s32 2048, 2048
          %5899 = vsyncadd %s5890, %s5898
          %s5900 = smul.addr %s19, 16
          %s5901 = smul.addr %s5900, 128
          %s5902 = scalar_lea.hbm %s5, %s5901
          %s5903 = sshll.u32 %s5893, 4
          %s5904 = int_to_ptr.vmem [resolvable:$true] %s5903
          %5909 = dma.vmem_to_hbm [thread:$0]  %s5904, 2048, %s5902, %s5890, 128, 128, 8
        $region44: #{tpu_custom_call.1} parent=39 // pred_fallthru
          _
      $region40: #{tpu_custom_call.1} parent=5 // pred_fallthru
        _
      %p5910 = scmp.le.s32.totalorder 2, %s14
      // Predicated region
      $region45: #{tpu_custom_call.1} parent=5 // pred_check
        %p5911 = pneg %p5910
      $region46: #{tpu_custom_call.1} parent=5 // pred_check_branch
        %5913 = sbr.rel (%p5911) target = $region48
      $region47: #{tpu_custom_call.1} parent=5 // pred_region
        %s5914 = ssub.s32 %s14, 2
        // Predicated region
        $region49: #{tpu_custom_call.1} parent=47 // pred_check
          %p5915 = pneg %p173
        $region50: #{tpu_custom_call.1} parent=47 // pred_check_branch
          %5917 = sbr.rel (%p5915) target = $region52
        $region51: #{tpu_custom_call.1} parent=47 // pred_region
          %s5918 = sand.u32 %s158, 1
          %s5919 = scalar_lea.sflag [#allocation3], %s5918
          %s5920 = sand.u32 %s158, 1
          %s5921 = smul.addr %s5920, 128
          %s5922 = scalar_lea.vmem [#allocation2], %s5921
          %5923 = dma.done %s5919, 2048
        $region52: #{tpu_custom_call.1} parent=47 // pred_fallthru
          _
      $region48: #{tpu_custom_call.1} parent=5 // pred_fallthru
        _
    $region6: #{tpu_custom_call.1} parent=1 // loop_footer
      %s18 = sadd.s32 1, %s14
    $region7: #{tpu_custom_call.1} parent=1 // loop_footer_branch
      %13 = sbr.rel target = $region3
    $region8: #{tpu_custom_call.1} parent=1 // loop_exit
      _
    %5924 = vsyncpa [#allocation3], 1
    %s5925 = scalar_lea.sflag [#allocation3], 1
    %5926 = vsyncpa %s5925, 1

</llo_original>
